<compile_context>
chip_gen: v7x
topology: tpu7x:2x2x1
jax: 0.10.0
libtpu: 0.0.40
codegen_flags: <defaults>
</compile_context>

<pallas_src>
import functools
import math

import jax
import jax.numpy as jnp
from jax.experimental import pallas as pl
from jax.experimental.pallas import tpu as pltpu

LANE = 128


def _round_up(x, m):
    return (x + m - 1) // m * m


@functools.lru_cache(maxsize=1)
def _vmem_limit_bytes():
    # Explicit VMEM budget (review item): ~100 MiB on v5e/v6e (128 MiB physical),
    # ~48 MiB on v7x (64 MiB physical).  Conservative fallback if the query fails.
    try:
        cap = int(pltpu.get_tpu_info().vmem_capacity_bytes)
    except Exception:
        cap = 64 << 20
    return int(max(32 << 20, min(cap - (16 << 20), 100 << 20)))


# ----------------------------- Pallas kernels ------------------------------------- #

def _mm_bn_relu_kernel(x_ref, w_ref, sb_ref, o_ref, acc_ref):
    # out = relu((x @ w) * scale + bias), K-tiled with f32 accumulator.
    k = pl.program_id(1)

    @pl.when(k == 0)
    def _():
        acc_ref[...] = jnp.zeros_like(acc_ref)

    acc_ref[...] += jnp.dot(x_ref[...], w_ref[...], preferred_element_type=jnp.float32)

    @pl.when(k == pl.num_programs(1) - 1)
    def _():
        y = acc_ref[...] * sb_ref[0:1, :] + sb_ref[1:2, :]
        o_ref[...] = jnp.maximum(y, 0.0).astype(o_ref.dtype)


def _mm_bn_res_relu_kernel(x_ref, w_ref, sb_ref, res_ref, o_ref, acc_ref):
    # out = relu((x @ w) * scale + bias + residual), K-tiled with f32 accumulator.
    # residual is streamed as bf16; math stays f32.
    k = pl.program_id(1)

    @pl.when(k == 0)
    def _():
        acc_ref[...] = jnp.zeros_like(acc_ref)

    acc_ref[...] += jnp.dot(x_ref[...], w_ref[...], preferred_element_type=jnp.float32)

    @pl.when(k == pl.num_programs(1) - 1)
    def _():
        y = (acc_ref[...] * sb_ref[0:1, :] + sb_ref[1:2, :]
             + res_ref[...].astype(jnp.float32))
        o_ref[...] = jnp.maximum(y, 0.0).astype(o_ref.dtype)


def _conv2_kernel(x0_ref, x1_ref, x2_ref, w_ref, sb_ref, o_ref, acc_ref,
                  *, dilation, Ho, Wo):
    # x{0,1,2}_ref : (Hp, Wp, C) -- the three kd-shifted, spatially padded depth slabs
    #                for output slab z (depth shift applied by the BlockSpec index_map).
    # w_ref        : (9, 3C, Cout) -- (kd*3+kh) major, kw-major-x-C contraction rows.
    #                Constant block index -> fetched once, VMEM resident.
    # acc_ref      : (Ho*Wo, Cout) f32 scratch, accumulated in-place per tap.
    d = dilation
    acc_ref[...] = jnp.zeros_like(acc_ref)
    taps = (x0_ref, x1_ref, x2_ref)
    for kd in range(3):
        x = taps[kd][...]                                              # (Hp, Wp, C)
        # Hoist the (sublane-shifted) kw column slices out of the kh loop:
        # 3 shifted views per slab instead of 9.
        shifted = [x[:, kw * d: kw * d + Wo, :] for kw in range(3)]    # 3 x (Hp, Wo, C)
        for kh in range(3):
            xs = jnp.concatenate(
                [s[kh * d: kh * d + Ho] for s in shifted], axis=-1)    # (Ho, Wo, 3C)
            xs = xs.reshape(Ho * Wo, xs.shape[-1])                     # (Ho*Wo, 3C)
            acc_ref[...] += jnp.dot(xs, w_ref[kd * 3 + kh],
                                    preferred_element_type=jnp.float32)
    y = acc_ref[...] * sb_ref[0:1, :] + sb_ref[1:2, :]
    o_ref[...] = jnp.maximum(y, 0.0).astype(o_ref.dtype)


# ----------------------------- kernel wrappers ------------------------------------- #

def fused_matmul_bn_relu(x, w, sb, residual=None, out_dtype=jnp.float32,
                         tm_cap=512, tk_cap=512):
    """relu((x @ w) * sb[0] + sb[1] [+ residual]).

    x: (M, K) bf16, w: (K, C) bf16, sb: (2, C) f32, residual: (M, C) bf16 or None.
    K and C must be lane-aligned (multiples of 128)."""
    M, K = x.shape
    Kw, C = w.shape
    assert K == Kw and K % LANE == 0 and C % LANE == 0

    # M tile: multiple of 16 (bf16 sublane packing); pad M up to the tile instead of
    # falling back to a whole-axis block.
    tm = min(tm_cap, _round_up(M, 16))
    Mp = _round_up(M, tm)
    # K tile: whole K if it fits, else a divisor aligned to the MXU depth.
    tk = K if K <= tk_cap else math.gcd(K, _round_up(tk_cap, 256))

    if Mp != M:
        x = jnp.pad(x, ((0, Mp - M), (0, 0)))
        if residual is not None:
            residual = jnp.pad(residual, ((0, Mp - M), (0, 0)))

    grid = (Mp // tm, K // tk)
    in_specs = [
        pl.BlockSpec((tm, tk), lambda i, k: (i, k)),
        pl.BlockSpec((tk, C), lambda i, k: (k, 0)),
        pl.BlockSpec((2, C), lambda i, k: (0, 0)),
    ]
    args = [x, w, sb]
    kernel = _mm_bn_relu_kernel
    if residual is not None:
        in_specs.append(pl.BlockSpec((tm, C), lambda i, k: (i, 0)))
        args.append(residual)
        kernel = _mm_bn_res_relu_kernel

    out = pl.pallas_call(
        kernel,
        out_shape=jax.ShapeDtypeStruct((Mp, C), out_dtype),
        grid=grid,
        in_specs=in_specs,
        out_specs=pl.BlockSpec((tm, C), lambda i, k: (i, 0)),
        scratch_shapes=[pltpu.VMEM((tm, C), jnp.float32)],
        compiler_params=pltpu.CompilerParams(
            dimension_semantics=("parallel", "arbitrary"),
            vmem_limit_bytes=_vmem_limit_bytes()),
    )(*args)
    return out if Mp == M else out[:M]


def conv3x3x3_bn_relu(y1_ndhwc, w2r, sb2, dilation):
    """3x3x3 conv (stride 1, padding = dilation) + fused BN + ReLU, no im2col.

    y1_ndhwc: (N, D, H, W, C) bf16, w2r: (9, 3C, Cout) bf16, sb2: (2, Cout) f32.
    Returns (N, D, H*W, Cout) bf16."""
    N, D, H, W, C = y1_ndhwc.shape
    Cout = w2r.shape[-1]
    d = dilation
    # Spatial zero-pad (pad = dilation).  TODO(synk): fold this halo into conv1's
    # output write and roll a depth buffer to drop the remaining ~3x slab reads.
    xp = jnp.pad(y1_ndhwc, ((0, 0), (d, d), (d, d), (d, d), (0, 0)))
    Hp, Wp = H + 2 * d, W + 2 * d
    Do, Ho, Wo = D, H, W                      # stride == 1, k == 3, pad == dilation

    kernel = functools.partial(_conv2_kernel, dilation=d, Ho=Ho, Wo=Wo)

    def tap_spec(kd):
        return pl.BlockSpec((None, None, Hp, Wp, C),
                            lambda n, z, kd=kd: (n, z + kd * d, 0, 0, 0))

    return pl.pallas_call(
        kernel,
        out_shape=jax.ShapeDtypeStruct((N, Do, Ho * Wo, Cout), jnp.bfloat16),
        grid=(N, Do),
        in_specs=[
            tap_spec(0), tap_spec(1), tap_spec(2),
            # Full weight tensor, constant block index -> DMA'd once, resident.
            pl.BlockSpec((9, 3 * C, Cout), lambda n, z: (0, 0, 0)),
            pl.BlockSpec((2, Cout), lambda n, z: (0, 0)),
        ],
        out_specs=pl.BlockSpec((None, None, Ho * Wo, Cout), lambda n, z: (n, z, 0, 0)),
        scratch_shapes=[pltpu.VMEM((Ho * Wo, Cout), jnp.float32)],
        compiler_params=pltpu.CompilerParams(
            dimension_semantics=("parallel", "parallel"),
            vmem_limit_bytes=_vmem_limit_bytes()),
    )(xp, xp, xp, w2r, sb2)


# ----------------------------- param folding / forward ----------------------------- #

def _fold_bn(gamma, beta, mean, var, eps=1e-5):
    scale = gamma / jnp.sqrt(var + eps)
    bias = beta - mean * scale
    return scale, bias


def _pack_sb(scale, bias, cp):
    c = scale.shape[0]
    sb = jnp.stack([scale, bias]).astype(jnp.float32)          # (2, c)
    return jnp.pad(sb, ((0, 0), (0, cp - c)))


@functools.partial(jax.jit, static_argnames=("stride", "dilation"))
def bottleneck_forward(x_ncdhw, params, stride=1, dilation=1):
    """Bottleneck forward (inference-mode BN).  x_ncdhw: (N, Cin, D, H, W) f32."""
    N, Cin, D, H, W = x_ncdhw.shape
    planes = params["w1"].shape[0]
    out_ch = params["w3"].shape[0]
    assert stride == 1 and Cin == out_ch, "identity residual needs stride=1, Cin==out_ch"

    cin_p = _round_up(Cin, LANE)
    mid_p = _round_up(planes, LANE)
    out_p = _round_up(out_ch, LANE)

    # NCDHW -> NDHWC, channel-pad to a lane multiple (lane-dense tiles everywhere).
    # TODO(synk): in a chained ResNet do this layout change only at model boundaries.
    x_cl = jnp.transpose(x_ncdhw, (0, 2, 3, 4, 1))
    x_cl = jnp.pad(x_cl, ((0, 0),) * 4 + ((0, cin_p - Cin),))
    x_flat = x_cl.reshape(-1, cin_p)                       # (M, cin_p)
    x_bf16 = x_flat.astype(jnp.bfloat16)

    # ---- conv1 (1x1x1) + bn1 + relu ----
    w1 = params["w1"].reshape(planes, Cin).T               # (Cin, planes)
    w1 = jnp.pad(w1, ((0, cin_p - Cin), (0, mid_p - planes))).astype(jnp.bfloat16)
    sb1 = _pack_sb(*_fold_bn(params["g1"], params["b1"], params["m1"], params["v1"]), mid_p)
    y1 = fused_matmul_bn_relu(x_bf16, w1, sb1, out_dtype=jnp.bfloat16)   # (M, mid_p)

    # ---- conv2 (3x3x3, stride 1, pad = dilation) + bn2 + relu ----
    w2 = jnp.transpose(params["w2"], (2, 3, 4, 1, 0))      # (kd, kh, kw, Cin, Cout)
    w2 = jnp.pad(w2, ((0, 0),) * 3 + ((0, mid_p - planes), (0, mid_p - planes)))
    w2 = w2.reshape(9, 3 * mid_p, mid_p).astype(jnp.bfloat16)   # (kd*3+kh, kw*C, Cout)
    sb2 = _pack_sb(*_fold_bn(params["g2"], params["b2"], params["m2"], params["v2"]), mid_p)
    y1_ndhwc = y1.reshape(N, D, H, W, mid_p)
    y2 = conv3x3x3_bn_relu(y1_ndhwc, w2, sb2, dilation)    # (N, D, H*W, mid_p) bf16
    y2 = y2.reshape(-1, mid_p)

    # ---- conv3 (1x1x1) + bn3 + residual add + relu ----
    w3 = params["w3"].reshape(out_ch, planes).T            # (planes, out_ch)
    w3 = jnp.pad(w3, ((0, mid_p - planes), (0, out_p - out_ch))).astype(jnp.bfloat16)
    sb3 = _pack_sb(*_fold_bn(params["g3"], params["b3"], params["m3"], params["v3"]), out_p)
    # Residual streamed as bf16; f32 output only because this is the model boundary.
    y3 = fused_matmul_bn_relu(y2, w3, sb3, residual=x_bf16, out_dtype=jnp.float32)

    out = y3.reshape(N, D, H, W, out_p)[..., :out_ch]
    return jnp.transpose(out, (0, 4, 1, 2, 3))             # back to NCDHW


# ----------------------------- reference (plain JAX, f32) -------------------------- #

def _ref_forward(x, p, stride=1, dilation=1):
    def conv(x, w, stride=1, dilation=1, padding=0):
        return jax.lax.conv_general_dilated(
            x, w, window_strides=(stride,) * 3,
            padding=[(padding, padding)] * 3,
            rhs_dilation=(dilation,) * 3,
            dimension_numbers=("NCDHW", "OIDHW", "NCDHW"))

    def bn(x, g, b, m, v):
        s = g / jnp.sqrt(v + 1e-5)
        return x * s[None, :, None, None, None] + (b - m * s)[None, :, None, None, None]

    relu = lambda t: jnp.maximum(t, 0.0)
    out = relu(bn(conv(x, p["w1"]), p["g1"], p["b1"], p["m1"], p["v1"]))
    out = relu(bn(conv(out, p["w2"], stride, dilation, dilation),
                  p["g2"], p["b2"], p["m2"], p["v2"]))
    out = bn(conv(out, p["w3"]), p["g3"], p["b3"], p["m3"], p["v3"])
    return relu(out + x)


# ----------------------------------- main ------------------------------------------ #

if __name__ == "__main__":
    key = jax.random.PRNGKey(0)
    ks = jax.random.split(key, 16)

    N_, D_, H_, W_ = 2, 8, 8, 8
    planes = 4
    inplanes = planes * 4          # 16 -> identity residual (downsample=None)

    x = jax.random.normal(ks[0], (N_, inplanes, D_, H_, W_), jnp.float32)

    params = {
        "w1": 0.1 * jax.random.normal(ks[1], (planes, inplanes, 1, 1, 1), jnp.float32),
        "w2": 0.1 * jax.random.normal(ks[2], (planes, planes, 3, 3, 3), jnp.float32),
        "w3": 0.1 * jax.random.normal(ks[3], (planes * 4, planes, 1, 1, 1), jnp.float32),
        "g1": 0.5 + jax.random.uniform(ks[4], (planes,), jnp.float32),
        "b1": 0.1 * jax.random.normal(ks[5], (planes,), jnp.float32),
        "m1": 0.1 * jax.random.normal(ks[6], (planes,), jnp.float32),
        "v1": 0.5 + jax.random.uniform(ks[7], (planes,), jnp.float32),
        "g2": 0.5 + jax.random.uniform(ks[8], (planes,), jnp.float32),
        "b2": 0.1 * jax.random.normal(ks[9], (planes,), jnp.float32),
        "m2": 0.1 * jax.random.normal(ks[10], (planes,), jnp.float32),
        "v2": 0.5 + jax.random.uniform(ks[11], (planes,), jnp.float32),
        "g3": 0.5 + jax.random.uniform(ks[12], (planes * 4,), jnp.float32),
        "b3": 0.1 * jax.random.normal(ks[13], (planes * 4,), jnp.float32),
        "m3": 0.1 * jax.random.normal(ks[14], (planes * 4,), jnp.float32),
        "v3": 0.5 + jax.random.uniform(ks[15], (planes * 4,), jnp.float32),
    }

    # dilation=1 (layer1/2 bodies) and dilation=2 (layer3 bodies) with stride=1.
    for dil in (1, 2):
        out = jax.block_until_ready(bottleneck_forward(x, params, stride=1, dilation=dil))
        ref = jax.block_until_ready(_ref_forward(x, params, stride=1, dilation=dil))
        assert out.shape == (N_, planes * 4, D_, H_, W_), out.shape
        err = float(jnp.max(jnp.abs(out - ref)))
        assert jnp.allclose(out, ref, rtol=5e-2, atol=5e-2), (dil, err)

    print("KERNEL_OK")
</pallas_src>

<mosaic_0001>
module attributes {stable_mosaic.version = 11 : i64} {
  func.func @_mm_bn_relu_kernel(%arg0: i32, %arg1: i32, %arg2: memref<512x128xbf16, #tpu.memory_space<vmem>>, %arg3: memref<128x128xbf16, #tpu.memory_space<vmem>>, %arg4: memref<2x128xf32, #tpu.memory_space<vmem>>, %arg5: memref<512x128xbf16, #tpu.memory_space<vmem>>, %arg6: memref<512x128xf32, #tpu.memory_space<vmem>>) attributes {dimension_semantics = [#tpu.dimension_semantics<parallel>, #tpu.dimension_semantics<arbitrary>], iteration_bounds = array<i64: 2, 1>, scalar_prefetch = 0 : i64, scratch_operands = 1 : i64, tpu.core_type = #tpu.core_type<tc>, window_params = [{transform_indices = @transform_0, window_bounds = array<i64: 512, 128>}, {transform_indices = @transform_1, window_bounds = array<i64: 128, 128>}, {pipeline_mode = #tpu.pipeline_mode<synchronous>, transform_indices = @transform_2, window_bounds = array<i64: 2, 128>}, {transform_indices = @transform_3, window_bounds = array<i64: 512, 128>}]} {
    %c0_i32 = arith.constant 0 : i32
    %0 = arith.cmpi eq, %arg1, %c0_i32 : i32
    %1 = arith.extui %0 : i1 to i32
    %c0_i32_0 = arith.constant 0 : i32
    %2 = arith.cmpi ne, %1, %c0_i32_0 : i32
    scf.if %2 {
      %cst_10 = arith.constant 0.000000e+00 : f32
      %12 = vector.broadcast %cst_10 : f32 to vector<512x128xf32>
      %c0_11 = arith.constant 0 : index
      %c0_12 = arith.constant 0 : index
      %13 = vector.load %arg6[%c0_11, %c0_12] : memref<512x128xf32, #tpu.memory_space<vmem>>, vector<512x128xf32>
      tpu.vector_store %arg6[%c0_11, %c0_12], %12 {strides = array<i32>} : memref<512x128xf32, #tpu.memory_space<vmem>>, vector<512x128xf32>,
    } else {
    }
    %c0 = arith.constant 0 : index
    %c0_1 = arith.constant 0 : index
    %3 = vector.load %arg6[%c0, %c0_1] : memref<512x128xf32, #tpu.memory_space<vmem>>, vector<512x128xf32>
    %c0_2 = arith.constant 0 : index
    %c0_3 = arith.constant 0 : index
    %4 = vector.load %arg2[%c0_2, %c0_3] : memref<512x128xbf16, #tpu.memory_space<vmem>>, vector<512x128xbf16>
    %c0_4 = arith.constant 0 : index
    %c0_5 = arith.constant 0 : index
    %5 = vector.load %arg3[%c0_4, %c0_5] : memref<128x128xbf16, #tpu.memory_space<vmem>>, vector<128x128xbf16>
    %cst = arith.constant dense<0.000000e+00> : vector<512x128xf32>
    %6 = tpu.matmul %4, %5, %cst {dimension_numbers = #tpu.dot_dimension_numbers<[1], [0], [0], [1], [0, 0, 1, 1], [], []>} : vector<512x128xbf16>, vector<128x128xbf16>, vector<512x128xf32> -> vector<512x128xf32>
    %7 = arith.addf %3, %6 : vector<512x128xf32>
    %c0_6 = arith.constant 0 : index
    %c0_7 = arith.constant 0 : index
    %8 = vector.load %arg6[%c0_6, %c0_7] : memref<512x128xf32, #tpu.memory_space<vmem>>, vector<512x128xf32>
    tpu.vector_store %arg6[%c0_6, %c0_7], %7 {strides = array<i32>} : memref<512x128xf32, #tpu.memory_space<vmem>>, vector<512x128xf32>,
    %c0_i32_8 = arith.constant 0 : i32
    %9 = arith.cmpi eq, %arg1, %c0_i32_8 : i32
    %10 = arith.extui %9 : i1 to i32
    %c0_i32_9 = arith.constant 0 : i32
    %11 = arith.cmpi ne, %10, %c0_i32_9 : i32
    scf.if %11 {
      %c0_10 = arith.constant 0 : index
      %c0_11 = arith.constant 0 : index
      %12 = vector.load %arg6[%c0_10, %c0_11] : memref<512x128xf32, #tpu.memory_space<vmem>>, vector<512x128xf32>
      %c0_12 = arith.constant 0 : index
      %c0_13 = arith.constant 0 : index
      %13 = vector.load %arg4[%c0_12, %c0_13] : memref<2x128xf32, #tpu.memory_space<vmem>>, vector<1x128xf32>
      %14 = vector.broadcast %13 : vector<1x128xf32> to vector<512x128xf32>
      %15 = arith.mulf %12, %14 : vector<512x128xf32>
      %c1 = arith.constant 1 : index
      %c0_14 = arith.constant 0 : index
      %16 = vector.load %arg4[%c1, %c0_14] : memref<2x128xf32, #tpu.memory_space<vmem>>, vector<1x128xf32>
      %17 = vector.broadcast %16 : vector<1x128xf32> to vector<512x128xf32>
      %18 = arith.addf %15, %17 : vector<512x128xf32>
      %cst_15 = arith.constant 0.000000e+00 : f32
      %19 = vector.broadcast %cst_15 : f32 to vector<512x128xf32>
      %20 = arith.maximumf %18, %19 : vector<512x128xf32>
      %21 = arith.truncf %20 : vector<512x128xf32> to vector<512x128xbf16>
      %c0_16 = arith.constant 0 : index
      %c0_17 = arith.constant 0 : index
      %22 = vector.load %arg5[%c0_16, %c0_17] : memref<512x128xbf16, #tpu.memory_space<vmem>>, vector<512x128xbf16>
      tpu.vector_store %arg5[%c0_16, %c0_17], %21 {strides = array<i32>} : memref<512x128xbf16, #tpu.memory_space<vmem>>, vector<512x128xbf16>,
    } else {
    }
    return
  }
  func.func @transform_0(%arg0: i32, %arg1: i32) -> (i32, i32) {
    %c0_i32 = arith.constant 0 : i32
    return %arg0, %arg1 : i32, i32
  }
  func.func @transform_1(%arg0: i32, %arg1: i32) -> (i32, i32) {
    %c0_i32 = arith.constant 0 : i32
    %c0_i32_0 = arith.constant 0 : i32
    return %arg1, %c0_i32 : i32, i32
  }
  func.func @transform_2(%arg0: i32, %arg1: i32) -> (i32, i32) {
    %c0_i32 = arith.constant 0 : i32
    %c0_i32_0 = arith.constant 0 : i32
    %c0_i32_1 = arith.constant 0 : i32
    return %c0_i32, %c0_i32_0 : i32, i32
  }
  func.func @transform_3(%arg0: i32, %arg1: i32) -> (i32, i32) {
    %c0_i32 = arith.constant 0 : i32
    %c0_i32_0 = arith.constant 0 : i32
    return %arg0, %c0_i32 : i32, i32
  }
}

module attributes {stable_mosaic.version = 11 : i64} {
  func.func @_conv2_kernel(%arg0: i32, %arg1: i32, %arg2: memref<1x1x10x10x128xbf16, #tpu.memory_space<vmem>>, %arg3: memref<1x1x10x10x128xbf16, #tpu.memory_space<vmem>>, %arg4: memref<1x1x10x10x128xbf16, #tpu.memory_space<vmem>>, %arg5: memref<9x384x128xbf16, #tpu.memory_space<vmem>>, %arg6: memref<2x128xf32, #tpu.memory_space<vmem>>, %arg7: memref<1x1x64x128xbf16, #tpu.memory_space<vmem>>, %arg8: memref<64x128xf32, #tpu.memory_space<vmem>>) attributes {dimension_semantics = [#tpu.dimension_semantics<parallel>, #tpu.dimension_semantics<parallel>], iteration_bounds = array<i64: 2, 8>, scalar_prefetch = 0 : i64, scratch_operands = 1 : i64, tpu.core_type = #tpu.core_type<tc>, window_params = [{transform_indices = @transform_0, window_bounds = array<i64: 1, 1, 10, 10, 128>}, {transform_indices = @transform_1, window_bounds = array<i64: 1, 1, 10, 10, 128>}, {transform_indices = @transform_2, window_bounds = array<i64: 1, 1, 10, 10, 128>}, {pipeline_mode = #tpu.pipeline_mode<synchronous>, transform_indices = @transform_3, window_bounds = array<i64: 9, 384, 128>}, {pipeline_mode = #tpu.pipeline_mode<synchronous>, transform_indices = @transform_4, window_bounds = array<i64: 2, 128>}, {transform_indices = @transform_5, window_bounds = array<i64: 1, 1, 64, 128>}]} {
    %cst = arith.constant 0.000000e+00 : f32
    %0 = vector.broadcast %cst : f32 to vector<64x128xf32>
    %c0 = arith.constant 0 : index
    %c0_0 = arith.constant 0 : index
    %1 = vector.load %arg8[%c0, %c0_0] : memref<64x128xf32, #tpu.memory_space<vmem>>, vector<64x128xf32>
    tpu.vector_store %arg8[%c0, %c0_0], %0 {strides = array<i32>} : memref<64x128xf32, #tpu.memory_space<vmem>>, vector<64x128xf32>,
    %c0_1 = arith.constant 0 : index
    %c0_2 = arith.constant 0 : index
    %c0_3 = arith.constant 0 : index
    %c0_4 = arith.constant 0 : index
    %c0_5 = arith.constant 0 : index
    %2 = vector.load %arg2[%c0_1, %c0_2, %c0_3, %c0_4, %c0_5] : memref<1x1x10x10x128xbf16, #tpu.memory_space<vmem>>, vector<1x1x10x10x128xbf16>
    %3 = vector.shape_cast %2 : vector<1x1x10x10x128xbf16> to vector<10x10x128xbf16>
    %4 = vector.extract_strided_slice %3 {offsets = [0, 0, 0], sizes = [10, 8, 128], strides = [1, 1, 1]} : vector<10x10x128xbf16> to vector<10x8x128xbf16>
    %5 = vector.extract_strided_slice %3 {offsets = [0, 1, 0], sizes = [10, 8, 128], strides = [1, 1, 1]} : vector<10x10x128xbf16> to vector<10x8x128xbf16>
    %6 = vector.extract_strided_slice %3 {offsets = [0, 2, 0], sizes = [10, 8, 128], strides = [1, 1, 1]} : vector<10x10x128xbf16> to vector<10x8x128xbf16>
    %7 = vector.extract_strided_slice %4 {offsets = [0, 0, 0], sizes = [8, 8, 128], strides = [1, 1, 1]} : vector<10x8x128xbf16> to vector<8x8x128xbf16>
    %8 = vector.extract_strided_slice %5 {offsets = [0, 0, 0], sizes = [8, 8, 128], strides = [1, 1, 1]} : vector<10x8x128xbf16> to vector<8x8x128xbf16>
    %9 = vector.extract_strided_slice %6 {offsets = [0, 0, 0], sizes = [8, 8, 128], strides = [1, 1, 1]} : vector<10x8x128xbf16> to vector<8x8x128xbf16>
    %10 = tpu.concatenate %7, %8, %9 in 2 : vector<8x8x128xbf16>, vector<8x8x128xbf16>, vector<8x8x128xbf16> -> vector<8x8x384xbf16>
    %11 = vector.shape_cast %10 : vector<8x8x384xbf16> to vector<64x384xbf16>
    %c0_6 = arith.constant 0 : index
    %c0_7 = arith.constant 0 : index
    %12 = vector.load %arg8[%c0_6, %c0_7] : memref<64x128xf32, #tpu.memory_space<vmem>>, vector<64x128xf32>
    %c0_8 = arith.constant 0 : index
    %c0_9 = arith.constant 0 : index
    %c0_10 = arith.constant 0 : index
    %13 = vector.load %arg5[%c0_8, %c0_9, %c0_10] : memref<9x384x128xbf16, #tpu.memory_space<vmem>>, vector<1x384x128xbf16>
    %14 = vector.shape_cast %13 : vector<1x384x128xbf16> to vector<384x128xbf16>
    %cst_11 = arith.constant dense<0.000000e+00> : vector<64x128xf32>
    %15 = tpu.matmul %11, %14, %cst_11 {dimension_numbers = #tpu.dot_dimension_numbers<[1], [0], [0], [1], [0, 0, 1, 1], [], []>} : vector<64x384xbf16>, vector<384x128xbf16>, vector<64x128xf32> -> vector<64x128xf32>
    %16 = arith.addf %12, %15 : vector<64x128xf32>
    %c0_12 = arith.constant 0 : index
    %c0_13 = arith.constant 0 : index
    %17 = vector.load %arg8[%c0_12, %c0_13] : memref<64x128xf32, #tpu.memory_space<vmem>>, vector<64x128xf32>
    tpu.vector_store %arg8[%c0_12, %c0_13], %16 {strides = array<i32>} : memref<64x128xf32, #tpu.memory_space<vmem>>, vector<64x128xf32>,
    %18 = vector.extract_strided_slice %4 {offsets = [1, 0, 0], sizes = [8, 8, 128], strides = [1, 1, 1]} : vector<10x8x128xbf16> to vector<8x8x128xbf16>
    %19 = vector.extract_strided_slice %5 {offsets = [1, 0, 0], sizes = [8, 8, 128], strides = [1, 1, 1]} : vector<10x8x128xbf16> to vector<8x8x128xbf16>
    %20 = vector.extract_strided_slice %6 {offsets = [1, 0, 0], sizes = [8, 8, 128], strides = [1, 1, 1]} : vector<10x8x128xbf16> to vector<8x8x128xbf16>
    %21 = tpu.concatenate %18, %19, %20 in 2 : vector<8x8x128xbf16>, vector<8x8x128xbf16>, vector<8x8x128xbf16> -> vector<8x8x384xbf16>
    %22 = vector.shape_cast %21 : vector<8x8x384xbf16> to vector<64x384xbf16>
    %c0_14 = arith.constant 0 : index
    %c0_15 = arith.constant 0 : index
    %23 = vector.load %arg8[%c0_14, %c0_15] : memref<64x128xf32, #tpu.memory_space<vmem>>, vector<64x128xf32>
    %c1 = arith.constant 1 : index
    %c0_16 = arith.constant 0 : index
    %c0_17 = arith.constant 0 : index
    %24 = vector.load %arg5[%c1, %c0_16, %c0_17] : memref<9x384x128xbf16, #tpu.memory_space<vmem>>, vector<1x384x128xbf16>
    %25 = vector.shape_cast %24 : vector<1x384x128xbf16> to vector<384x128xbf16>
    %cst_18 = arith.constant dense<0.000000e+00> : vector<64x128xf32>
    %26 = tpu.matmul %22, %25, %cst_18 {dimension_numbers = #tpu.dot_dimension_numbers<[1], [0], [0], [1], [0, 0, 1, 1], [], []>} : vector<64x384xbf16>, vector<384x128xbf16>, vector<64x128xf32> -> vector<64x128xf32>
    %27 = arith.addf %23, %26 : vector<64x128xf32>
    %c0_19 = arith.constant 0 : index
    %c0_20 = arith.constant 0 : index
    %28 = vector.load %arg8[%c0_19, %c0_20] : memref<64x128xf32, #tpu.memory_space<vmem>>, vector<64x128xf32>
    tpu.vector_store %arg8[%c0_19, %c0_20], %27 {strides = array<i32>} : memref<64x128xf32, #tpu.memory_space<vmem>>, vector<64x128xf32>,
    %29 = vector.extract_strided_slice %4 {offsets = [2, 0, 0], sizes = [8, 8, 128], strides = [1, 1, 1]} : vector<10x8x128xbf16> to vector<8x8x128xbf16>
    %30 = vector.extract_strided_slice %5 {offsets = [2, 0, 0], sizes = [8, 8, 128], strides = [1, 1, 1]} : vector<10x8x128xbf16> to vector<8x8x128xbf16>
    %31 = vector.extract_strided_slice %6 {offsets = [2, 0, 0], sizes = [8, 8, 128], strides = [1, 1, 1]} : vector<10x8x128xbf16> to vector<8x8x128xbf16>
    %32 = tpu.concatenate %29, %30, %31 in 2 : vector<8x8x128xbf16>, vector<8x8x128xbf16>, vector<8x8x128xbf16> -> vector<8x8x384xbf16>
    %33 = vector.shape_cast %32 : vector<8x8x384xbf16> to vector<64x384xbf16>
    %c0_21 = arith.constant 0 : index
    %c0_22 = arith.constant 0 : index
    %34 = vector.load %arg8[%c0_21, %c0_22] : memref<64x128xf32, #tpu.memory_space<vmem>>, vector<64x128xf32>
    %c2 = arith.constant 2 : index
    %c0_23 = arith.constant 0 : index
    %c0_24 = arith.constant 0 : index
    %35 = vector.load %arg5[%c2, %c0_23, %c0_24] : memref<9x384x128xbf16, #tpu.memory_space<vmem>>, vector<1x384x128xbf16>
    %36 = vector.shape_cast %35 : vector<1x384x128xbf16> to vector<384x128xbf16>
    %cst_25 = arith.constant dense<0.000000e+00> : vector<64x128xf32>
    %37 = tpu.matmul %33, %36, %cst_25 {dimension_numbers = #tpu.dot_dimension_numbers<[1], [0], [0], [1], [0, 0, 1, 1], [], []>} : vector<64x384xbf16>, vector<384x128xbf16>, vector<64x128xf32> -> vector<64x128xf32>
    %38 = arith.addf %34, %37 : vector<64x128xf32>
    %c0_26 = arith.constant 0 : index
    %c0_27 = arith.constant 0 : index
    %39 = vector.load %arg8[%c0_26, %c0_27] : memref<64x128xf32, #tpu.memory_space<vmem>>, vector<64x128xf32>
    tpu.vector_store %arg8[%c0_26, %c0_27], %38 {strides = array<i32>} : memref<64x128xf32, #tpu.memory_space<vmem>>, vector<64x128xf32>,
    %c0_28 = arith.constant 0 : index
    %c0_29 = arith.constant 0 : index
    %c0_30 = arith.constant 0 : index
    %c0_31 = arith.constant 0 : index
    %c0_32 = arith.constant 0 : index
    %40 = vector.load %arg3[%c0_28, %c0_29, %c0_30, %c0_31, %c0_32] : memref<1x1x10x10x128xbf16, #tpu.memory_space<vmem>>, vector<1x1x10x10x128xbf16>
    %41 = vector.shape_cast %40 : vector<1x1x10x10x128xbf16> to vector<10x10x128xbf16>
    %42 = vector.extract_strided_slice %41 {offsets = [0, 0, 0], sizes = [10, 8, 128], strides = [1, 1, 1]} : vector<10x10x128xbf16> to vector<10x8x128xbf16>
    %43 = vector.extract_strided_slice %41 {offsets = [0, 1, 0], sizes = [10, 8, 128], strides = [1, 1, 1]} : vector<10x10x128xbf16> to vector<10x8x128xbf16>
    %44 = vector.extract_strided_slice %41 {offsets = [0, 2, 0], sizes = [10, 8, 128], strides = [1, 1, 1]} : vector<10x10x128xbf16> to vector<10x8x128xbf16>
    %45 = vector.extract_strided_slice %42 {offsets = [0, 0, 0], sizes = [8, 8, 128], strides = [1, 1, 1]} : vector<10x8x128xbf16> to vector<8x8x128xbf16>
    %46 = vector.extract_strided_slice %43 {offsets = [0, 0, 0], sizes = [8, 8, 128], strides = [1, 1, 1]} : vector<10x8x128xbf16> to vector<8x8x128xbf16>
    %47 = vector.extract_strided_slice %44 {offsets = [0, 0, 0], sizes = [8, 8, 128], strides = [1, 1, 1]} : vector<10x8x128xbf16> to vector<8x8x128xbf16>
    %48 = tpu.concatenate %45, %46, %47 in 2 : vector<8x8x128xbf16>, vector<8x8x128xbf16>, vector<8x8x128xbf16> -> vector<8x8x384xbf16>
    %49 = vector.shape_cast %48 : vector<8x8x384xbf16> to vector<64x384xbf16>
    %c0_33 = arith.constant 0 : index
    %c0_34 = arith.constant 0 : index
    %50 = vector.load %arg8[%c0_33, %c0_34] : memref<64x128xf32, #tpu.memory_space<vmem>>, vector<64x128xf32>
    %c3 = arith.constant 3 : index
    %c0_35 = arith.constant 0 : index
    %c0_36 = arith.constant 0 : index
    %51 = vector.load %arg5[%c3, %c0_35, %c0_36] : memref<9x384x128xbf16, #tpu.memory_space<vmem>>, vector<1x384x128xbf16>
    %52 = vector.shape_cast %51 : vector<1x384x128xbf16> to vector<384x128xbf16>
    %cst_37 = arith.constant dense<0.000000e+00> : vector<64x128xf32>
    %53 = tpu.matmul %49, %52, %cst_37 {dimension_numbers = #tpu.dot_dimension_numbers<[1], [0], [0], [1], [0, 0, 1, 1], [], []>} : vector<64x384xbf16>, vector<384x128xbf16>, vector<64x128xf32> -> vector<64x128xf32>
    %54 = arith.addf %50, %53 : vector<64x128xf32>
    %c0_38 = arith.constant 0 : index
    %c0_39 = arith.constant 0 : index
    %55 = vector.load %arg8[%c0_38, %c0_39] : memref<64x128xf32, #tpu.memory_space<vmem>>, vector<64x128xf32>
    tpu.vector_store %arg8[%c0_38, %c0_39], %54 {strides = array<i32>} : memref<64x128xf32, #tpu.memory_space<vmem>>, vector<64x128xf32>,
    %56 = vector.extract_strided_slice %42 {offsets = [1, 0, 0], sizes = [8, 8, 128], strides = [1, 1, 1]} : vector<10x8x128xbf16> to vector<8x8x128xbf16>
    %57 = vector.extract_strided_slice %43 {offsets = [1, 0, 0], sizes = [8, 8, 128], strides = [1, 1, 1]} : vector<10x8x128xbf16> to vector<8x8x128xbf16>
    %58 = vector.extract_strided_slice %44 {offsets = [1, 0, 0], sizes = [8, 8, 128], strides = [1, 1, 1]} : vector<10x8x128xbf16> to vector<8x8x128xbf16>
    %59 = tpu.concatenate %56, %57, %58 in 2 : vector<8x8x128xbf16>, vector<8x8x128xbf16>, vector<8x8x128xbf16> -> vector<8x8x384xbf16>
    %60 = vector.shape_cast %59 : vector<8x8x384xbf16> to vector<64x384xbf16>
    %c0_40 = arith.constant 0 : index
    %c0_41 = arith.constant 0 : index
    %61 = vector.load %arg8[%c0_40, %c0_41] : memref<64x128xf32, #tpu.memory_space<vmem>>, vector<64x128xf32>
    %c4 = arith.constant 4 : index
    %c0_42 = arith.constant 0 : index
    %c0_43 = arith.constant 0 : index
    %62 = vector.load %arg5[%c4, %c0_42, %c0_43] : memref<9x384x128xbf16, #tpu.memory_space<vmem>>, vector<1x384x128xbf16>
    %63 = vector.shape_cast %62 : vector<1x384x128xbf16> to vector<384x128xbf16>
    %cst_44 = arith.constant dense<0.000000e+00> : vector<64x128xf32>
    %64 = tpu.matmul %60, %63, %cst_44 {dimension_numbers = #tpu.dot_dimension_numbers<[1], [0], [0], [1], [0, 0, 1, 1], [], []>} : vector<64x384xbf16>, vector<384x128xbf16>, vector<64x128xf32> -> vector<64x128xf32>
    %65 = arith.addf %61, %64 : vector<64x128xf32>
    %c0_45 = arith.constant 0 : index
    %c0_46 = arith.constant 0 : index
    %66 = vector.load %arg8[%c0_45, %c0_46] : memref<64x128xf32, #tpu.memory_space<vmem>>, vector<64x128xf32>
    tpu.vector_store %arg8[%c0_45, %c0_46], %65 {strides = array<i32>} : memref<64x128xf32, #tpu.memory_space<vmem>>, vector<64x128xf32>,
    %67 = vector.extract_strided_slice %42 {offsets = [2, 0, 0], sizes = [8, 8, 128], strides = [1, 1, 1]} : vector<10x8x128xbf16> to vector<8x8x128xbf16>
    %68 = vector.extract_strided_slice %43 {offsets = [2, 0, 0], sizes = [8, 8, 128], strides = [1, 1, 1]} : vector<10x8x128xbf16> to vector<8x8x128xbf16>
    %69 = vector.extract_strided_slice %44 {offsets = [2, 0, 0], sizes = [8, 8, 128], strides = [1, 1, 1]} : vector<10x8x128xbf16> to vector<8x8x128xbf16>
    %70 = tpu.concatenate %67, %68, %69 in 2 : vector<8x8x128xbf16>, vector<8x8x128xbf16>, vector<8x8x128xbf16> -> vector<8x8x384xbf16>
    %71 = vector.shape_cast %70 : vector<8x8x384xbf16> to vector<64x384xbf16>
    %c0_47 = arith.constant 0 : index
    %c0_48 = arith.constant 0 : index
    %72 = vector.load %arg8[%c0_47, %c0_48] : memref<64x128xf32, #tpu.memory_space<vmem>>, vector<64x128xf32>
    %c5 = arith.constant 5 : index
    %c0_49 = arith.constant 0 : index
    %c0_50 = arith.constant 0 : index
    %73 = vector.load %arg5[%c5, %c0_49, %c0_50] : memref<9x384x128xbf16, #tpu.memory_space<vmem>>, vector<1x384x128xbf16>
    %74 = vector.shape_cast %73 : vector<1x384x128xbf16> to vector<384x128xbf16>
    %cst_51 = arith.constant dense<0.000000e+00> : vector<64x128xf32>
    %75 = tpu.matmul %71, %74, %cst_51 {dimension_numbers = #tpu.dot_dimension_numbers<[1], [0], [0], [1], [0, 0, 1, 1], [], []>} : vector<64x384xbf16>, vector<384x128xbf16>, vector<64x128xf32> -> vector<64x128xf32>
    %76 = arith.addf %72, %75 : vector<64x128xf32>
    %c0_52 = arith.constant 0 : index
    %c0_53 = arith.constant 0 : index
    %77 = vector.load %arg8[%c0_52, %c0_53] : memref<64x128xf32, #tpu.memory_space<vmem>>, vector<64x128xf32>
    tpu.vector_store %arg8[%c0_52, %c0_53], %76 {strides = array<i32>} : memref<64x128xf32, #tpu.memory_space<vmem>>, vector<64x128xf32>,
    %c0_54 = arith.constant 0 : index
    %c0_55 = arith.constant 0 : index
    %c0_56 = arith.constant 0 : index
    %c0_57 = arith.constant 0 : index
    %c0_58 = arith.constant 0 : index
    %78 = vector.load %arg4[%c0_54, %c0_55, %c0_56, %c0_57, %c0_58] : memref<1x1x10x10x128xbf16, #tpu.memory_space<vmem>>, vector<1x1x10x10x128xbf16>
    %79 = vector.shape_cast %78 : vector<1x1x10x10x128xbf16> to vector<10x10x128xbf16>
    %80 = vector.extract_strided_slice %79 {offsets = [0, 0, 0], sizes = [10, 8, 128], strides = [1, 1, 1]} : vector<10x10x128xbf16> to vector<10x8x128xbf16>
    %81 = vector.extract_strided_slice %79 {offsets = [0, 1, 0], sizes = [10, 8, 128], strides = [1, 1, 1]} : vector<10x10x128xbf16> to vector<10x8x128xbf16>
    %82 = vector.extract_strided_slice %79 {offsets = [0, 2, 0], sizes = [10, 8, 128], strides = [1, 1, 1]} : vector<10x10x128xbf16> to vector<10x8x128xbf16>
    %83 = vector.extract_strided_slice %80 {offsets = [0, 0, 0], sizes = [8, 8, 128], strides = [1, 1, 1]} : vector<10x8x128xbf16> to vector<8x8x128xbf16>
    %84 = vector.extract_strided_slice %81 {offsets = [0, 0, 0], sizes = [8, 8, 128], strides = [1, 1, 1]} : vector<10x8x128xbf16> to vector<8x8x128xbf16>
    %85 = vector.extract_strided_slice %82 {offsets = [0, 0, 0], sizes = [8, 8, 128], strides = [1, 1, 1]} : vector<10x8x128xbf16> to vector<8x8x128xbf16>
    %86 = tpu.concatenate %83, %84, %85 in 2 : vector<8x8x128xbf16>, vector<8x8x128xbf16>, vector<8x8x128xbf16> -> vector<8x8x384xbf16>
    %87 = vector.shape_cast %86 : vector<8x8x384xbf16> to vector<64x384xbf16>
    %c0_59 = arith.constant 0 : index
    %c0_60 = arith.constant 0 : index
    %88 = vector.load %arg8[%c0_59, %c0_60] : memref<64x128xf32, #tpu.memory_space<vmem>>, vector<64x128xf32>
    %c6 = arith.constant 6 : index
    %c0_61 = arith.constant 0 : index
    %c0_62 = arith.constant 0 : index
    %89 = vector.load %arg5[%c6, %c0_61, %c0_62] : memref<9x384x128xbf16, #tpu.memory_space<vmem>>, vector<1x384x128xbf16>
    %90 = vector.shape_cast %89 : vector<1x384x128xbf16> to vector<384x128xbf16>
    %cst_63 = arith.constant dense<0.000000e+00> : vector<64x128xf32>
    %91 = tpu.matmul %87, %90, %cst_63 {dimension_numbers = #tpu.dot_dimension_numbers<[1], [0], [0], [1], [0, 0, 1, 1], [], []>} : vector<64x384xbf16>, vector<384x128xbf16>, vector<64x128xf32> -> vector<64x128xf32>
    %92 = arith.addf %88, %91 : vector<64x128xf32>
    %c0_64 = arith.constant 0 : index
    %c0_65 = arith.constant 0 : index
    %93 = vector.load %arg8[%c0_64, %c0_65] : memref<64x128xf32, #tpu.memory_space<vmem>>, vector<64x128xf32>
    tpu.vector_store %arg8[%c0_64, %c0_65], %92 {strides = array<i32>} : memref<64x128xf32, #tpu.memory_space<vmem>>, vector<64x128xf32>,
    %94 = vector.extract_strided_slice %80 {offsets = [1, 0, 0], sizes = [8, 8, 128], strides = [1, 1, 1]} : vector<10x8x128xbf16> to vector<8x8x128xbf16>
    %95 = vector.extract_strided_slice %81 {offsets = [1, 0, 0], sizes = [8, 8, 128], strides = [1, 1, 1]} : vector<10x8x128xbf16> to vector<8x8x128xbf16>
    %96 = vector.extract_strided_slice %82 {offsets = [1, 0, 0], sizes = [8, 8, 128], strides = [1, 1, 1]} : vector<10x8x128xbf16> to vector<8x8x128xbf16>
    %97 = tpu.concatenate %94, %95, %96 in 2 : vector<8x8x128xbf16>, vector<8x8x128xbf16>, vector<8x8x128xbf16> -> vector<8x8x384xbf16>
    %98 = vector.shape_cast %97 : vector<8x8x384xbf16> to vector<64x384xbf16>
    %c0_66 = arith.constant 0 : index
    %c0_67 = arith.constant 0 : index
    %99 = vector.load %arg8[%c0_66, %c0_67] : memref<64x128xf32, #tpu.memory_space<vmem>>, vector<64x128xf32>
    %c7 = arith.constant 7 : index
    %c0_68 = arith.constant 0 : index
    %c0_69 = arith.constant 0 : index
    %100 = vector.load %arg5[%c7, %c0_68, %c0_69] : memref<9x384x128xbf16, #tpu.memory_space<vmem>>, vector<1x384x128xbf16>
    %101 = vector.shape_cast %100 : vector<1x384x128xbf16> to vector<384x128xbf16>
    %cst_70 = arith.constant dense<0.000000e+00> : vector<64x128xf32>
    %102 = tpu.matmul %98, %101, %cst_70 {dimension_numbers = #tpu.dot_dimension_numbers<[1], [0], [0], [1], [0, 0, 1, 1], [], []>} : vector<64x384xbf16>, vector<384x128xbf16>, vector<64x128xf32> -> vector<64x128xf32>
    %103 = arith.addf %99, %102 : vector<64x128xf32>
    %c0_71 = arith.constant 0 : index
    %c0_72 = arith.constant 0 : index
    %104 = vector.load %arg8[%c0_71, %c0_72] : memref<64x128xf32, #tpu.memory_space<vmem>>, vector<64x128xf32>
    tpu.vector_store %arg8[%c0_71, %c0_72], %103 {strides = array<i32>} : memref<64x128xf32, #tpu.memory_space<vmem>>, vector<64x128xf32>,
    %105 = vector.extract_strided_slice %80 {offsets = [2, 0, 0], sizes = [8, 8, 128], strides = [1, 1, 1]} : vector<10x8x128xbf16> to vector<8x8x128xbf16>
    %106 = vector.extract_strided_slice %81 {offsets = [2, 0, 0], sizes = [8, 8, 128], strides = [1, 1, 1]} : vector<10x8x128xbf16> to vector<8x8x128xbf16>
    %107 = vector.extract_strided_slice %82 {offsets = [2, 0, 0], sizes = [8, 8, 128], strides = [1, 1, 1]} : vector<10x8x128xbf16> to vector<8x8x128xbf16>
    %108 = tpu.concatenate %105, %106, %107 in 2 : vector<8x8x128xbf16>, vector<8x8x128xbf16>, vector<8x8x128xbf16> -> vector<8x8x384xbf16>
    %109 = vector.shape_cast %108 : vector<8x8x384xbf16> to vector<64x384xbf16>
    %c0_73 = arith.constant 0 : index
    %c0_74 = arith.constant 0 : index
    %110 = vector.load %arg8[%c0_73, %c0_74] : memref<64x128xf32, #tpu.memory_space<vmem>>, vector<64x128xf32>
    %c8 = arith.constant 8 : index
    %c0_75 = arith.constant 0 : index
    %c0_76 = arith.constant 0 : index
    %111 = vector.load %arg5[%c8, %c0_75, %c0_76] : memref<9x384x128xbf16, #tpu.memory_space<vmem>>, vector<1x384x128xbf16>
    %112 = vector.shape_cast %111 : vector<1x384x128xbf16> to vector<384x128xbf16>
    %cst_77 = arith.constant dense<0.000000e+00> : vector<64x128xf32>
    %113 = tpu.matmul %109, %112, %cst_77 {dimension_numbers = #tpu.dot_dimension_numbers<[1], [0], [0], [1], [0, 0, 1, 1], [], []>} : vector<64x384xbf16>, vector<384x128xbf16>, vector<64x128xf32> -> vector<64x128xf32>
    %114 = arith.addf %110, %113 : vector<64x128xf32>
    %c0_78 = arith.constant 0 : index
    %c0_79 = arith.constant 0 : index
    %115 = vector.load %arg8[%c0_78, %c0_79] : memref<64x128xf32, #tpu.memory_space<vmem>>, vector<64x128xf32>
    tpu.vector_store %arg8[%c0_78, %c0_79], %114 {strides = array<i32>} : memref<64x128xf32, #tpu.memory_space<vmem>>, vector<64x128xf32>,
    %c0_80 = arith.constant 0 : index
    %c0_81 = arith.constant 0 : index
    %116 = vector.load %arg8[%c0_80, %c0_81] : memref<64x128xf32, #tpu.memory_space<vmem>>, vector<64x128xf32>
    %c0_82 = arith.constant 0 : index
    %c0_83 = arith.constant 0 : index
    %117 = vector.load %arg6[%c0_82, %c0_83] : memref<2x128xf32, #tpu.memory_space<vmem>>, vector<1x128xf32>
    %118 = vector.broadcast %117 : vector<1x128xf32> to vector<64x128xf32>
    %119 = arith.mulf %116, %118 : vector<64x128xf32>
    %c1_84 = arith.constant 1 : index
    %c0_85 = arith.constant 0 : index
    %120 = vector.load %arg6[%c1_84, %c0_85] : memref<2x128xf32, #tpu.memory_space<vmem>>, vector<1x128xf32>
    %121 = vector.broadcast %120 : vector<1x128xf32> to vector<64x128xf32>
    %122 = arith.addf %119, %121 : vector<64x128xf32>
    %cst_86 = arith.constant 0.000000e+00 : f32
    %123 = vector.broadcast %cst_86 : f32 to vector<64x128xf32>
    %124 = arith.maximumf %122, %123 : vector<64x128xf32>
    %125 = arith.truncf %124 : vector<64x128xf32> to vector<64x128xbf16>
    %c0_87 = arith.constant 0 : index
    %c0_88 = arith.constant 0 : index
    %c0_89 = arith.constant 0 : index
    %c0_90 = arith.constant 0 : index
    %126 = vector.load %arg7[%c0_87, %c0_88, %c0_89, %c0_90] : memref<1x1x64x128xbf16, #tpu.memory_space<vmem>>, vector<1x1x64x128xbf16>
    %127 = vector.shape_cast %126 : vector<1x1x64x128xbf16> to vector<64x128xbf16>
    %128 = vector.shape_cast %125 : vector<64x128xbf16> to vector<1x1x64x128xbf16>
    tpu.vector_store %arg7[%c0_87, %c0_88, %c0_89, %c0_90], %128 {strides = array<i32>} : memref<1x1x64x128xbf16, #tpu.memory_space<vmem>>, vector<1x1x64x128xbf16>,
    return
  }
  func.func @transform_0(%arg0: i32, %arg1: i32) -> (i32, i32, i32, i32, i32) {
    %c0_i32 = arith.constant 0 : i32
    %0 = arith.addi %arg1, %c0_i32 : i32
    %c0_i32_0 = arith.constant 0 : i32
    %c0_i32_1 = arith.constant 0 : i32
    %c0_i32_2 = arith.constant 0 : i32
    %c0_i32_3 = arith.constant 0 : i32
    return %arg0, %0, %c0_i32_0, %c0_i32_1, %c0_i32_2 : i32, i32, i32, i32, i32
  }
  func.func @transform_1(%arg0: i32, %arg1: i32) -> (i32, i32, i32, i32, i32) {
    %c1_i32 = arith.constant 1 : i32
    %0 = arith.addi %arg1, %c1_i32 : i32
    %c0_i32 = arith.constant 0 : i32
    %c0_i32_0 = arith.constant 0 : i32
    %c0_i32_1 = arith.constant 0 : i32
    %c0_i32_2 = arith.constant 0 : i32
    return %arg0, %0, %c0_i32, %c0_i32_0, %c0_i32_1 : i32, i32, i32, i32, i32
  }
  func.func @transform_2(%arg0: i32, %arg1: i32) -> (i32, i32, i32, i32, i32) {
    %c2_i32 = arith.constant 2 : i32
    %0 = arith.addi %arg1, %c2_i32 : i32
    %c0_i32 = arith.constant 0 : i32
    %c0_i32_0 = arith.constant 0 : i32
    %c0_i32_1 = arith.constant 0 : i32
    %c0_i32_2 = arith.constant 0 : i32
    return %arg0, %0, %c0_i32, %c0_i32_0, %c0_i32_1 : i32, i32, i32, i32, i32
  }
  func.func @transform_3(%arg0: i32, %arg1: i32) -> (i32, i32, i32) {
    %c0_i32 = arith.constant 0 : i32
    %c0_i32_0 = arith.constant 0 : i32
    %c0_i32_1 = arith.constant 0 : i32
    %c0_i32_2 = arith.constant 0 : i32
    return %c0_i32, %c0_i32_0, %c0_i32_1 : i32, i32, i32
  }
  func.func @transform_4(%arg0: i32, %arg1: i32) -> (i32, i32) {
    %c0_i32 = arith.constant 0 : i32
    %c0_i32_0 = arith.constant 0 : i32
    %c0_i32_1 = arith.constant 0 : i32
    return %c0_i32, %c0_i32_0 : i32, i32
  }
  func.func @transform_5(%arg0: i32, %arg1: i32) -> (i32, i32, i32, i32) {
    %c0_i32 = arith.constant 0 : i32
    %c0_i32_0 = arith.constant 0 : i32
    %c0_i32_1 = arith.constant 0 : i32
    return %arg0, %arg1, %c0_i32, %c0_i32_0 : i32, i32, i32, i32
  }
}

module attributes {stable_mosaic.version = 11 : i64} {
  func.func @_mm_bn_res_relu_kernel(%arg0: i32, %arg1: i32, %arg2: memref<512x128xbf16, #tpu.memory_space<vmem>>, %arg3: memref<128x128xbf16, #tpu.memory_space<vmem>>, %arg4: memref<2x128xf32, #tpu.memory_space<vmem>>, %arg5: memref<512x128xbf16, #tpu.memory_space<vmem>>, %arg6: memref<512x128xf32, #tpu.memory_space<vmem>>, %arg7: memref<512x128xf32, #tpu.memory_space<vmem>>) attributes {dimension_semantics = [#tpu.dimension_semantics<parallel>, #tpu.dimension_semantics<arbitrary>], iteration_bounds = array<i64: 2, 1>, scalar_prefetch = 0 : i64, scratch_operands = 1 : i64, tpu.core_type = #tpu.core_type<tc>, window_params = [{transform_indices = @transform_0, window_bounds = array<i64: 512, 128>}, {transform_indices = @transform_1, window_bounds = array<i64: 128, 128>}, {pipeline_mode = #tpu.pipeline_mode<synchronous>, transform_indices = @transform_2, window_bounds = array<i64: 2, 128>}, {transform_indices = @transform_3, window_bounds = array<i64: 512, 128>}, {transform_indices = @transform_4, window_bounds = array<i64: 512, 128>}]} {
    %c0_i32 = arith.constant 0 : i32
    %0 = arith.cmpi eq, %arg1, %c0_i32 : i32
    %1 = arith.extui %0 : i1 to i32
    %c0_i32_0 = arith.constant 0 : i32
    %2 = arith.cmpi ne, %1, %c0_i32_0 : i32
    scf.if %2 {
      %cst_10 = arith.constant 0.000000e+00 : f32
      %12 = vector.broadcast %cst_10 : f32 to vector<512x128xf32>
      %c0_11 = arith.constant 0 : index
      %c0_12 = arith.constant 0 : index
      %13 = vector.load %arg7[%c0_11, %c0_12] : memref<512x128xf32, #tpu.memory_space<vmem>>, vector<512x128xf32>
      tpu.vector_store %arg7[%c0_11, %c0_12], %12 {strides = array<i32>} : memref<512x128xf32, #tpu.memory_space<vmem>>, vector<512x128xf32>,
    } else {
    }
    %c0 = arith.constant 0 : index
    %c0_1 = arith.constant 0 : index
    %3 = vector.load %arg7[%c0, %c0_1] : memref<512x128xf32, #tpu.memory_space<vmem>>, vector<512x128xf32>
    %c0_2 = arith.constant 0 : index
    %c0_3 = arith.constant 0 : index
    %4 = vector.load %arg2[%c0_2, %c0_3] : memref<512x128xbf16, #tpu.memory_space<vmem>>, vector<512x128xbf16>
    %c0_4 = arith.constant 0 : index
    %c0_5 = arith.constant 0 : index
    %5 = vector.load %arg3[%c0_4, %c0_5] : memref<128x128xbf16, #tpu.memory_space<vmem>>, vector<128x128xbf16>
    %cst = arith.constant dense<0.000000e+00> : vector<512x128xf32>
    %6 = tpu.matmul %4, %5, %cst {dimension_numbers = #tpu.dot_dimension_numbers<[1], [0], [0], [1], [0, 0, 1, 1], [], []>} : vector<512x128xbf16>, vector<128x128xbf16>, vector<512x128xf32> -> vector<512x128xf32>
    %7 = arith.addf %3, %6 : vector<512x128xf32>
    %c0_6 = arith.constant 0 : index
    %c0_7 = arith.constant 0 : index
    %8 = vector.load %arg7[%c0_6, %c0_7] : memref<512x128xf32, #tpu.memory_space<vmem>>, vector<512x128xf32>
    tpu.vector_store %arg7[%c0_6, %c0_7], %7 {strides = array<i32>} : memref<512x128xf32, #tpu.memory_space<vmem>>, vector<512x128xf32>,
    %c0_i32_8 = arith.constant 0 : i32
    %9 = arith.cmpi eq, %arg1, %c0_i32_8 : i32
    %10 = arith.extui %9 : i1 to i32
    %c0_i32_9 = arith.constant 0 : i32
    %11 = arith.cmpi ne, %10, %c0_i32_9 : i32
    scf.if %11 {
      %c0_10 = arith.constant 0 : index
      %c0_11 = arith.constant 0 : index
      %12 = vector.load %arg7[%c0_10, %c0_11] : memref<512x128xf32, #tpu.memory_space<vmem>>, vector<512x128xf32>
      %c0_12 = arith.constant 0 : index
      %c0_13 = arith.constant 0 : index
      %13 = vector.load %arg4[%c0_12, %c0_13] : memref<2x128xf32, #tpu.memory_space<vmem>>, vector<1x128xf32>
      %14 = vector.broadcast %13 : vector<1x128xf32> to vector<512x128xf32>
      %15 = arith.mulf %12, %14 : vector<512x128xf32>
      %c1 = arith.constant 1 : index
      %c0_14 = arith.constant 0 : index
      %16 = vector.load %arg4[%c1, %c0_14] : memref<2x128xf32, #tpu.memory_space<vmem>>, vector<1x128xf32>
      %17 = vector.broadcast %16 : vector<1x128xf32> to vector<512x128xf32>
      %18 = arith.addf %15, %17 : vector<512x128xf32>
      %c0_15 = arith.constant 0 : index
      %c0_16 = arith.constant 0 : index
      %19 = vector.load %arg5[%c0_15, %c0_16] : memref<512x128xbf16, #tpu.memory_space<vmem>>, vector<512x128xbf16>
      %20 = arith.extf %19 : vector<512x128xbf16> to vector<512x128xf32>
      %21 = arith.addf %18, %20 : vector<512x128xf32>
      %cst_17 = arith.constant 0.000000e+00 : f32
      %22 = vector.broadcast %cst_17 : f32 to vector<512x128xf32>
      %23 = arith.maximumf %21, %22 : vector<512x128xf32>
      %c0_18 = arith.constant 0 : index
      %c0_19 = arith.constant 0 : index
      %24 = vector.load %arg6[%c0_18, %c0_19] : memref<512x128xf32, #tpu.memory_space<vmem>>, vector<512x128xf32>
      tpu.vector_store %arg6[%c0_18, %c0_19], %23 {strides = array<i32>} : memref<512x128xf32, #tpu.memory_space<vmem>>, vector<512x128xf32>,
    } else {
    }
    return
  }
  func.func @transform_0(%arg0: i32, %arg1: i32) -> (i32, i32) {
    %c0_i32 = arith.constant 0 : i32
    return %arg0, %arg1 : i32, i32
  }
  func.func @transform_1(%arg0: i32, %arg1: i32) -> (i32, i32) {
    %c0_i32 = arith.constant 0 : i32
    %c0_i32_0 = arith.constant 0 : i32
    return %arg1, %c0_i32 : i32, i32
  }
  func.func @transform_2(%arg0: i32, %arg1: i32) -> (i32, i32) {
    %c0_i32 = arith.constant 0 : i32
    %c0_i32_0 = arith.constant 0 : i32
    %c0_i32_1 = arith.constant 0 : i32
    return %c0_i32, %c0_i32_0 : i32, i32
  }
  func.func @transform_3(%arg0: i32, %arg1: i32) -> (i32, i32) {
    %c0_i32 = arith.constant 0 : i32
    %c0_i32_0 = arith.constant 0 : i32
    return %arg0, %c0_i32 : i32, i32
  }
  func.func @transform_4(%arg0: i32, %arg1: i32) -> (i32, i32) {
    %c0_i32 = arith.constant 0 : i32
    %c0_i32_0 = arith.constant 0 : i32
    return %arg0, %c0_i32 : i32, i32
  }
}

</mosaic_0001>

<llo_original>
// kernel: bottleneck_forward.3
$region0: #{bottleneck_forward.3}
  #allocation0 [shape = 'u32[]', space=smem, size = 0x4, offset = 0x4, fixed_abs, tag = 'smem constant byte address 0x4 - core index']
  #allocation1 [shape = 'u32[144,128]{1,0:T(1,128)}', space=vmem, size = 0x12000, scoped, tag = 'internal scratch']
  #allocation2 [shape = 'f32[512,128]{1,0:T(8,128)}', space=vmem, size = 0x40000, scoped, tag = 'scratch operand']
  %s0 = inlined_call_operand.vmem [shape: bf16[1024,128], index: 0, kind: input, shape index: {}]
  %s1 = inlined_call_operand.vmem [shape: bf16[128,128], index: 1, kind: input, shape index: {}]
  %s2 = inlined_call_operand.vmem [shape: f32[2,128], index: 2, kind: input, shape index: {}]
  %s3 = inlined_call_operand.vmem [shape: bf16[1024,128], index: 3, kind: output, shape index: {}]
  %s4 = sld [smem:[#allocation0]]
  $region53: #{bottleneck_forward.3} parent=0
    _
  %s6 = ssub.s32 1, %s4
  %s7 = scalar_select 0, %s6, %s4
  loop: start=0, step=1, limit=4
  $region2: #{bottleneck_forward.3} parent=0 // loop_pre_header
    _
  $region3: #{bottleneck_forward.3} parent=0 // loop_header
    %s9 = sphi 0, %s13
    %p10 = scmp.ge.s32.totalorder %s9, 4
    %s16 = sphi 0, %s28
    %s17 = sphi 0, %s24
    %s18 = sphi 0, %s16
    %s19 = sphi 0, %s17
    %s20 = sphi 0, %s18
    %s21 = sphi 0, %s19
    %s33 = sphi 0, %s35
    %s36 = sphi 0, %s33
    %s37 = sphi 0, %s36
    %s53 = sphi 0, %s37
    %s59 = sphi 0, %s61
    %s62 = sphi 0, %s59
    %s63 = sphi 0, %s62
    %s79 = sphi 0, %s63
    %s83 = sphi 0, %s83
    %s85 = sphi 0, %s83
    %s86 = sphi 0, %s85
    %s100 = sphi 0, %s86
    %s106 = sphi 0, %s108
    %s109 = sphi 0, %s106
    %s110 = sphi 0, %s109
    %s126 = sphi 0, %s110
  $region4: #{bottleneck_forward.3} parent=0 // loop_header_branch
    %12 = sbr.rel (%p10) target = $region8
  $region5: #{bottleneck_forward.3} parent=0 // loop_body
    %s14 = ssub.s32 %s9, 1
    %s15 = ssub.s32 %s9, 2
    %s22 = sadd.s32 1, %s17
    %p23 = scmp.ge.s32.totalorder %s22, 1
    %s24 = scalar_select %p23, 0, %s22
    %s25 = sadd.s32 1, %s16
    %s26 = scalar_select %p23, %s25, %s16
    %p27 = scmp.ge.s32.totalorder %s26, 2
    %s28 = scalar_select %p27, 0, %s26
    %s29 = ssub.s32 %s16, %s28
    %s30 = ssub.s32 %s17, %s24
    %s31 = sor.u32 %s29, %s30
    %p32 = scmp.eq.s32.totalorder %s31, 0
    %s34 = sadd.s32 %s33, 1
    %s35 = scalar_select %p32, %s33, %s34
    %p38 = pneg %p32
    %p39 = scmp.eq.s32.totalorder %s9, 1
    %p40 = por %p38, %p39
    %p41 = scmp.ne.s32.totalorder %s33, %s36
    %p42 = scmp.eq.s32.totalorder %s9, 0
    %p43 = por %p41, %p42
    %p44 = scmp.ne.s32.totalorder %s33, %s36
    %p45 = scmp.eq.s32.totalorder %s14, 1
    %p46 = por %p44, %p45
    %p47 = scmp.ne.s32.totalorder %s36, %s37
    %p48 = scmp.eq.s32.totalorder %s14, 0
    %p49 = por %p47, %p48
    %p50 = scmp.ne.s32.totalorder %s36, %s37
    %p51 = scmp.eq.s32.totalorder %s15, 1
    %p52 = por %p50, %p51
    %p54 = scmp.ne.s32.totalorder %s37, %s53
    %p55 = scmp.eq.s32.totalorder %s15, 0
    %p56 = por %p54, %p55
    %s57 = ssub.s32 %s17, %s24
    %p58 = scmp.eq.s32.totalorder %s57, 0
    %s60 = sadd.s32 %s59, 1
    %s61 = scalar_select %p58, %s59, %s60
    %p64 = pneg %p58
    %p65 = scmp.eq.s32.totalorder %s9, 1
    %p66 = por %p64, %p65
    %p67 = scmp.ne.s32.totalorder %s59, %s62
    %p68 = scmp.eq.s32.totalorder %s9, 0
    %p69 = por %p67, %p68
    %p70 = scmp.ne.s32.totalorder %s59, %s62
    %p71 = scmp.eq.s32.totalorder %s14, 1
    %p72 = por %p70, %p71
    %p73 = scmp.ne.s32.totalorder %s62, %s63
    %p74 = scmp.eq.s32.totalorder %s14, 0
    %p75 = por %p73, %p74
    %p76 = scmp.ne.s32.totalorder %s62, %s63
    %p77 = scmp.eq.s32.totalorder %s15, 1
    %p78 = por %p76, %p77
    %p80 = scmp.ne.s32.totalorder %s63, %s79
    %p81 = scmp.eq.s32.totalorder %s15, 0
    %p82 = por %p80, %p81
    %s84 = sadd.s32 %s83, 1
    %p87 = scmp.eq.s32.totalorder %s9, 1
    %p88 = scmp.ne.s32.totalorder %s83, %s85
    %p89 = scmp.eq.s32.totalorder %s9, 0
    %p90 = por %p88, %p89
    %p91 = scmp.ne.s32.totalorder %s83, %s85
    %p92 = scmp.eq.s32.totalorder %s14, 1
    %p93 = por %p91, %p92
    %p94 = scmp.ne.s32.totalorder %s85, %s86
    %p95 = scmp.eq.s32.totalorder %s14, 0
    %p96 = por %p94, %p95
    %p97 = scmp.ne.s32.totalorder %s85, %s86
    %p98 = scmp.eq.s32.totalorder %s15, 1
    %p99 = por %p97, %p98
    %p101 = scmp.ne.s32.totalorder %s86, %s100
    %p102 = scmp.eq.s32.totalorder %s15, 0
    %p103 = por %p101, %p102
    %s104 = ssub.s32 %s16, %s28
    %p105 = scmp.eq.s32.totalorder %s104, 0
    %s107 = sadd.s32 %s106, 1
    %s108 = scalar_select %p105, %s106, %s107
    %p111 = pneg %p105
    %p112 = scmp.eq.s32.totalorder %s9, 1
    %p113 = por %p111, %p112
    %p114 = scmp.ne.s32.totalorder %s106, %s109
    %p115 = scmp.eq.s32.totalorder %s9, 0
    %p116 = por %p114, %p115
    %p117 = scmp.ne.s32.totalorder %s106, %s109
    %p118 = scmp.eq.s32.totalorder %s14, 1
    %p119 = por %p117, %p118
    %p120 = scmp.ne.s32.totalorder %s109, %s110
    %p121 = scmp.eq.s32.totalorder %s14, 0
    %p122 = por %p120, %p121
    %p123 = scmp.ne.s32.totalorder %s109, %s110
    %p124 = scmp.eq.s32.totalorder %s15, 1
    %p125 = por %p123, %p124
    %p127 = scmp.ne.s32.totalorder %s110, %s126
    %p128 = scmp.eq.s32.totalorder %s15, 0
    %p129 = por %p127, %p128
    %p130 = scmp.le.s32.totalorder 1, %s9
    %p131 = scmp.lt.s32.totalorder %s9, 3
    %p132 = pnand %p130, %p131
    %p133 = pneg %p132
    // Predicated region
    $region9: #{bottleneck_forward.3} parent=5 // pred_check
      _
    $region10: #{bottleneck_forward.3} parent=5 // pred_check_branch
      %135 = sbr.rel (%p132) target = $region12
    $region11: #{bottleneck_forward.3} parent=5 // pred_region
      %s136 = ssub.s32 %s9, 1
      // Predicated region
      $region13: #{bottleneck_forward.3} parent=11 // pred_check
        %p137 = pneg %p75
      $region14: #{bottleneck_forward.3} parent=11 // pred_check_branch
        %139 = sbr.rel (%p137) target = $region16
      $region15: #{bottleneck_forward.3} parent=11 // pred_region
        %s140 = smul.u32 16, %s19
        %p141 = scmp.lt.s32.totalorder %s140, 15
        %s142 = scalar_select %p141, %s140, 15
        %s143 = smul.addr %s142, 4
        %s144 = scalar_lea.vmem %s1, %s143
        %s145 = smul.u32 16, %s19
      $region16: #{bottleneck_forward.3} parent=11 // pred_fallthru
        _
      // Predicated region
      $region17: #{bottleneck_forward.3} parent=11 // pred_check
        %p146 = pneg %p96
      $region18: #{bottleneck_forward.3} parent=11 // pred_check_branch
        %148 = sbr.rel (%p146) target = $region20
      $region19: #{bottleneck_forward.3} parent=11 // pred_region
        _
      $region20: #{bottleneck_forward.3} parent=11 // pred_fallthru
        _
    $region12: #{bottleneck_forward.3} parent=5 // pred_fallthru
      _
    %p149 = scmp.lt.s32.totalorder %s9, 2
    // Predicated region
    $region21: #{bottleneck_forward.3} parent=5 // pred_check
      %p150 = pneg %p149
    $region22: #{bottleneck_forward.3} parent=5 // pred_check_branch
      %152 = sbr.rel (%p150) target = $region24
    $region23: #{bottleneck_forward.3} parent=5 // pred_region
      // Predicated region
      $region25: #{bottleneck_forward.3} parent=23 // pred_check
        %p153 = pneg %p43
      $region26: #{bottleneck_forward.3} parent=23 // pred_check_branch
        %155 = sbr.rel (%p153) target = $region28
      $region27: #{bottleneck_forward.3} parent=23 // pred_region
        %s156 = smul.u32 64, %s16
        %p157 = scmp.lt.s32.totalorder %s156, 127
        %s158 = scalar_select %p157, %s156, 127
        %p159 = scmp.lt.s32.totalorder %s17, 0
        %s160 = scalar_select %p159, %s17, 0
        %s161 = sadd.s32 %s160, %s158
        %s162 = smul.addr %s161, 4
        %s163 = scalar_lea.vmem %s0, %s162
        %s164 = smul.u32 64, %s16
      $region28: #{bottleneck_forward.3} parent=23 // pred_fallthru
        _
    $region24: #{bottleneck_forward.3} parent=5 // pred_fallthru
      _
    %p165 = scmp.le.s32.totalorder 1, %s9
    %p166 = scmp.lt.s32.totalorder %s9, 3
    %p167 = pnand %p165, %p166
    %p168 = pneg %p167
    // Predicated region
    $region29: #{bottleneck_forward.3} parent=5 // pred_check
      _
    $region30: #{bottleneck_forward.3} parent=5 // pred_check_branch
      %170 = sbr.rel (%p167) target = $region32
    $region31: #{bottleneck_forward.3} parent=5 // pred_region
      %s171 = ssub.s32 %s9, 1
      %s172 = smul.u32 64, %s18
      %p173 = scmp.lt.s32.totalorder %s172, 127
      %s174 = scalar_select %p173, %s172, 127
      %p175 = scmp.lt.s32.totalorder %s19, 0
      %s176 = scalar_select %p175, %s19, 0
      %s177 = sadd.s32 %s176, %s174
      %s178 = smul.addr %s177, 4
      %s179 = scalar_lea.vmem %s0, %s178
      %p180 = pneg %p49
      %p181 = pneg %p46
      %s182 = smul.u32 16, %s19
      %p183 = scmp.lt.s32.totalorder %s182, 15
      %s184 = scalar_select %p183, %s182, 15
      %s185 = smul.addr %s184, 4
      %s186 = scalar_lea.vmem %s1, %s185
      %p187 = pneg %p75
      %p188 = pneg %p72
      %p189 = pneg %p96
      %p190 = pneg %p93
      %p191 = pneg %p122
      %p192 = pneg %p119
      %s193 = smul.u32 64, %s18
      %p194 = scmp.lt.s32.totalorder %s193, 127
      %s195 = scalar_select %p194, %s193, 127
      %s196 = smul.addr %s195, 4
      %s197 = scalar_lea.vmem %s3, %s196
      %s198 = smul.u32 64, %s18
      %p199 = scmp.lt.s32.totalorder %s198, 127
      %s200 = scalar_select %p199, %s198, 127
      %p201 = scmp.lt.s32.totalorder %s19, 0
      %s202 = scalar_select %p201, %s19, 0
      %s203 = sadd.s32 %s202, %s200
      %s204 = smul.addr %s203, 4
      %s205 = scalar_lea.vmem %s0, %s204
      %s206 = smul.u32 64, %s18
      %s207 = smul.u32 16, %s19
      %p208 = scmp.lt.s32.totalorder %s207, 15
      %s209 = scalar_select %p208, %s207, 15
      %s210 = smul.addr %s209, 4
      %s211 = scalar_lea.vmem %s1, %s210
      %s212 = smul.u32 16, %s19
      %s213 = smul.u32 64, %s18
      %p214 = scmp.lt.s32.totalorder %s213, 127
      %s215 = scalar_select %p214, %s213, 127
      %s216 = smul.addr %s215, 4
      %s217 = scalar_lea.vmem %s3, %s216
      %s218 = smul.u32 64, %s18
      %p220 = scmp.eq.s32.totalorder %s19, 0
      // Predicated region
      $region33: #{bottleneck_forward.3} parent=31 // pred_check
        %p221 = pneg %p220
      $region34: #{bottleneck_forward.3} parent=31 // pred_check_branch
        %223 = sbr.rel (%p221) target = $region36
      $region35: #{bottleneck_forward.3} parent=31 // pred_region
        %224 = vst [vmem:[#allocation2] sm:$0xff] 0.0
        %225 = vst [vmem:[#allocation2 + $0x8] sm:$0xff] 0.0
        %226 = vst [vmem:[#allocation2 + $0x10] sm:$0xff] 0.0
        %227 = vst [vmem:[#allocation2 + $0x18] sm:$0xff] 0.0
        %228 = vst [vmem:[#allocation2 + $0x20] sm:$0xff] 0.0
        %229 = vst [vmem:[#allocation2 + $0x28] sm:$0xff] 0.0
        %230 = vst [vmem:[#allocation2 + $0x30] sm:$0xff] 0.0
        %231 = vst [vmem:[#allocation2 + $0x38] sm:$0xff] 0.0
        %232 = vst [vmem:[#allocation2 + $0x40] sm:$0xff] 0.0
        %233 = vst [vmem:[#allocation2 + $0x48] sm:$0xff] 0.0
        %234 = vst [vmem:[#allocation2 + $0x50] sm:$0xff] 0.0
        %235 = vst [vmem:[#allocation2 + $0x58] sm:$0xff] 0.0
        %236 = vst [vmem:[#allocation2 + $0x60] sm:$0xff] 0.0
        %237 = vst [vmem:[#allocation2 + $0x68] sm:$0xff] 0.0
        %238 = vst [vmem:[#allocation2 + $0x70] sm:$0xff] 0.0
        %239 = vst [vmem:[#allocation2 + $0x78] sm:$0xff] 0.0
        %240 = vst [vmem:[#allocation2 + $0x80] sm:$0xff] 0.0
        %241 = vst [vmem:[#allocation2 + $0x88] sm:$0xff] 0.0
        %242 = vst [vmem:[#allocation2 + $0x90] sm:$0xff] 0.0
        %243 = vst [vmem:[#allocation2 + $0x98] sm:$0xff] 0.0
        %244 = vst [vmem:[#allocation2 + $0xa0] sm:$0xff] 0.0
        %245 = vst [vmem:[#allocation2 + $0xa8] sm:$0xff] 0.0
        %246 = vst [vmem:[#allocation2 + $0xb0] sm:$0xff] 0.0
        %247 = vst [vmem:[#allocation2 + $0xb8] sm:$0xff] 0.0
        %248 = vst [vmem:[#allocation2 + $0xc0] sm:$0xff] 0.0
        %249 = vst [vmem:[#allocation2 + $0xc8] sm:$0xff] 0.0
        %250 = vst [vmem:[#allocation2 + $0xd0] sm:$0xff] 0.0
        %251 = vst [vmem:[#allocation2 + $0xd8] sm:$0xff] 0.0
        %252 = vst [vmem:[#allocation2 + $0xe0] sm:$0xff] 0.0
        %253 = vst [vmem:[#allocation2 + $0xe8] sm:$0xff] 0.0
        %254 = vst [vmem:[#allocation2 + $0xf0] sm:$0xff] 0.0
        %255 = vst [vmem:[#allocation2 + $0xf8] sm:$0xff] 0.0
        %256 = vst [vmem:[#allocation2 + $0x100] sm:$0xff] 0.0
        %257 = vst [vmem:[#allocation2 + $0x108] sm:$0xff] 0.0
        %258 = vst [vmem:[#allocation2 + $0x110] sm:$0xff] 0.0
        %259 = vst [vmem:[#allocation2 + $0x118] sm:$0xff] 0.0
        %260 = vst [vmem:[#allocation2 + $0x120] sm:$0xff] 0.0
        %261 = vst [vmem:[#allocation2 + $0x128] sm:$0xff] 0.0
        %262 = vst [vmem:[#allocation2 + $0x130] sm:$0xff] 0.0
        %263 = vst [vmem:[#allocation2 + $0x138] sm:$0xff] 0.0
        %264 = vst [vmem:[#allocation2 + $0x140] sm:$0xff] 0.0
        %265 = vst [vmem:[#allocation2 + $0x148] sm:$0xff] 0.0
        %266 = vst [vmem:[#allocation2 + $0x150] sm:$0xff] 0.0
        %267 = vst [vmem:[#allocation2 + $0x158] sm:$0xff] 0.0
        %268 = vst [vmem:[#allocation2 + $0x160] sm:$0xff] 0.0
        %269 = vst [vmem:[#allocation2 + $0x168] sm:$0xff] 0.0
        %270 = vst [vmem:[#allocation2 + $0x170] sm:$0xff] 0.0
        %271 = vst [vmem:[#allocation2 + $0x178] sm:$0xff] 0.0
        %272 = vst [vmem:[#allocation2 + $0x180] sm:$0xff] 0.0
        %273 = vst [vmem:[#allocation2 + $0x188] sm:$0xff] 0.0
        %274 = vst [vmem:[#allocation2 + $0x190] sm:$0xff] 0.0
        %275 = vst [vmem:[#allocation2 + $0x198] sm:$0xff] 0.0
        %276 = vst [vmem:[#allocation2 + $0x1a0] sm:$0xff] 0.0
        %277 = vst [vmem:[#allocation2 + $0x1a8] sm:$0xff] 0.0
        %278 = vst [vmem:[#allocation2 + $0x1b0] sm:$0xff] 0.0
        %279 = vst [vmem:[#allocation2 + $0x1b8] sm:$0xff] 0.0
        %280 = vst [vmem:[#allocation2 + $0x1c0] sm:$0xff] 0.0
        %281 = vst [vmem:[#allocation2 + $0x1c8] sm:$0xff] 0.0
        %282 = vst [vmem:[#allocation2 + $0x1d0] sm:$0xff] 0.0
        %283 = vst [vmem:[#allocation2 + $0x1d8] sm:$0xff] 0.0
        %284 = vst [vmem:[#allocation2 + $0x1e0] sm:$0xff] 0.0
        %285 = vst [vmem:[#allocation2 + $0x1e8] sm:$0xff] 0.0
        %286 = vst [vmem:[#allocation2 + $0x1f0] sm:$0xff] 0.0
        %287 = vst [vmem:[#allocation2 + $0x1f8] sm:$0xff] 0.0
      $region36: #{bottleneck_forward.3} parent=31 // pred_fallthru
        _
      %v288 = vld [vmem:[#allocation2] sm:$0xff]
      %v289 = vld [vmem:[#allocation2 + $0x8] sm:$0xff]
      %v290 = vld [vmem:[#allocation2 + $0x10] sm:$0xff]
      %v291 = vld [vmem:[#allocation2 + $0x18] sm:$0xff]
      %v292 = vld [vmem:[#allocation2 + $0x20] sm:$0xff]
      %v293 = vld [vmem:[#allocation2 + $0x28] sm:$0xff]
      %v294 = vld [vmem:[#allocation2 + $0x30] sm:$0xff]
      %v295 = vld [vmem:[#allocation2 + $0x38] sm:$0xff]
      %v296 = vld [vmem:[#allocation2 + $0x40] sm:$0xff]
      %v297 = vld [vmem:[#allocation2 + $0x48] sm:$0xff]
      %v298 = vld [vmem:[#allocation2 + $0x50] sm:$0xff]
      %v299 = vld [vmem:[#allocation2 + $0x58] sm:$0xff]
      %v300 = vld [vmem:[#allocation2 + $0x60] sm:$0xff]
      %v301 = vld [vmem:[#allocation2 + $0x68] sm:$0xff]
      %v302 = vld [vmem:[#allocation2 + $0x70] sm:$0xff]
      %v303 = vld [vmem:[#allocation2 + $0x78] sm:$0xff]
      %v304 = vld [vmem:[#allocation2 + $0x80] sm:$0xff]
      %v305 = vld [vmem:[#allocation2 + $0x88] sm:$0xff]
      %v306 = vld [vmem:[#allocation2 + $0x90] sm:$0xff]
      %v307 = vld [vmem:[#allocation2 + $0x98] sm:$0xff]
      %v308 = vld [vmem:[#allocation2 + $0xa0] sm:$0xff]
      %v309 = vld [vmem:[#allocation2 + $0xa8] sm:$0xff]
      %v310 = vld [vmem:[#allocation2 + $0xb0] sm:$0xff]
      %v311 = vld [vmem:[#allocation2 + $0xb8] sm:$0xff]
      %v312 = vld [vmem:[#allocation2 + $0xc0] sm:$0xff]
      %v313 = vld [vmem:[#allocation2 + $0xc8] sm:$0xff]
      %v314 = vld [vmem:[#allocation2 + $0xd0] sm:$0xff]
      %v315 = vld [vmem:[#allocation2 + $0xd8] sm:$0xff]
      %v316 = vld [vmem:[#allocation2 + $0xe0] sm:$0xff]
      %v317 = vld [vmem:[#allocation2 + $0xe8] sm:$0xff]
      %v318 = vld [vmem:[#allocation2 + $0xf0] sm:$0xff]
      %v319 = vld [vmem:[#allocation2 + $0xf8] sm:$0xff]
      %v320 = vld [vmem:[#allocation2 + $0x100] sm:$0xff]
      %v321 = vld [vmem:[#allocation2 + $0x108] sm:$0xff]
      %v322 = vld [vmem:[#allocation2 + $0x110] sm:$0xff]
      %v323 = vld [vmem:[#allocation2 + $0x118] sm:$0xff]
      %v324 = vld [vmem:[#allocation2 + $0x120] sm:$0xff]
      %v325 = vld [vmem:[#allocation2 + $0x128] sm:$0xff]
      %v326 = vld [vmem:[#allocation2 + $0x130] sm:$0xff]
      %v327 = vld [vmem:[#allocation2 + $0x138] sm:$0xff]
      %v328 = vld [vmem:[#allocation2 + $0x140] sm:$0xff]
      %v329 = vld [vmem:[#allocation2 + $0x148] sm:$0xff]
      %v330 = vld [vmem:[#allocation2 + $0x150] sm:$0xff]
      %v331 = vld [vmem:[#allocation2 + $0x158] sm:$0xff]
      %v332 = vld [vmem:[#allocation2 + $0x160] sm:$0xff]
      %v333 = vld [vmem:[#allocation2 + $0x168] sm:$0xff]
      %v334 = vld [vmem:[#allocation2 + $0x170] sm:$0xff]
      %v335 = vld [vmem:[#allocation2 + $0x178] sm:$0xff]
      %v336 = vld [vmem:[#allocation2 + $0x180] sm:$0xff]
      %v337 = vld [vmem:[#allocation2 + $0x188] sm:$0xff]
      %v338 = vld [vmem:[#allocation2 + $0x190] sm:$0xff]
      %v339 = vld [vmem:[#allocation2 + $0x198] sm:$0xff]
      %v340 = vld [vmem:[#allocation2 + $0x1a0] sm:$0xff]
      %v341 = vld [vmem:[#allocation2 + $0x1a8] sm:$0xff]
      %v342 = vld [vmem:[#allocation2 + $0x1b0] sm:$0xff]
      %v343 = vld [vmem:[#allocation2 + $0x1b8] sm:$0xff]
      %v344 = vld [vmem:[#allocation2 + $0x1c0] sm:$0xff]
      %v345 = vld [vmem:[#allocation2 + $0x1c8] sm:$0xff]
      %v346 = vld [vmem:[#allocation2 + $0x1d0] sm:$0xff]
      %v347 = vld [vmem:[#allocation2 + $0x1d8] sm:$0xff]
      %v348 = vld [vmem:[#allocation2 + $0x1e0] sm:$0xff]
      %v349 = vld [vmem:[#allocation2 + $0x1e8] sm:$0xff]
      %v350 = vld [vmem:[#allocation2 + $0x1f0] sm:$0xff]
      %v351 = vld [vmem:[#allocation2 + $0x1f8] sm:$0xff]
      %v352 = vld [vmem:[%s205] sm:$0xf]
      %v353 = vld [vmem:[%s205 + $0x4] sm:$0xf]
      %v354 = vld [vmem:[%s205 + $0x8] sm:$0xf]
      %v355 = vld [vmem:[%s205 + $0xc] sm:$0xf]
      %v356 = vld [vmem:[%s205 + $0x10] sm:$0xf]
      %v357 = vld [vmem:[%s205 + $0x14] sm:$0xf]
      %v358 = vld [vmem:[%s205 + $0x18] sm:$0xf]
      %v359 = vld [vmem:[%s205 + $0x1c] sm:$0xf]
      %v360 = vld [vmem:[%s205 + $0x20] sm:$0xf]
      %v361 = vld [vmem:[%s205 + $0x24] sm:$0xf]
      %v362 = vld [vmem:[%s205 + $0x28] sm:$0xf]
      %v363 = vld [vmem:[%s205 + $0x2c] sm:$0xf]
      %v364 = vld [vmem:[%s205 + $0x30] sm:$0xf]
      %v365 = vld [vmem:[%s205 + $0x34] sm:$0xf]
      %v366 = vld [vmem:[%s205 + $0x38] sm:$0xf]
      %v367 = vld [vmem:[%s205 + $0x3c] sm:$0xf]
      %v368 = vld [vmem:[%s205 + $0x40] sm:$0xf]
      %v369 = vld [vmem:[%s205 + $0x44] sm:$0xf]
      %v370 = vld [vmem:[%s205 + $0x48] sm:$0xf]
      %v371 = vld [vmem:[%s205 + $0x4c] sm:$0xf]
      %v372 = vld [vmem:[%s205 + $0x50] sm:$0xf]
      %v373 = vld [vmem:[%s205 + $0x54] sm:$0xf]
      %v374 = vld [vmem:[%s205 + $0x58] sm:$0xf]
      %v375 = vld [vmem:[%s205 + $0x5c] sm:$0xf]
      %v376 = vld [vmem:[%s205 + $0x60] sm:$0xf]
      %v377 = vld [vmem:[%s205 + $0x64] sm:$0xf]
      %v378 = vld [vmem:[%s205 + $0x68] sm:$0xf]
      %v379 = vld [vmem:[%s205 + $0x6c] sm:$0xf]
      %v380 = vld [vmem:[%s205 + $0x70] sm:$0xf]
      %v381 = vld [vmem:[%s205 + $0x74] sm:$0xf]
      %v382 = vld [vmem:[%s205 + $0x78] sm:$0xf]
      %v383 = vld [vmem:[%s205 + $0x7c] sm:$0xf]
      %v384 = vld [vmem:[%s205 + $0x80] sm:$0xf]
      %v385 = vld [vmem:[%s205 + $0x84] sm:$0xf]
      %v386 = vld [vmem:[%s205 + $0x88] sm:$0xf]
      %v387 = vld [vmem:[%s205 + $0x8c] sm:$0xf]
      %v388 = vld [vmem:[%s205 + $0x90] sm:$0xf]
      %v389 = vld [vmem:[%s205 + $0x94] sm:$0xf]
      %v390 = vld [vmem:[%s205 + $0x98] sm:$0xf]
      %v391 = vld [vmem:[%s205 + $0x9c] sm:$0xf]
      %v392 = vld [vmem:[%s205 + $0xa0] sm:$0xf]
      %v393 = vld [vmem:[%s205 + $0xa4] sm:$0xf]
      %v394 = vld [vmem:[%s205 + $0xa8] sm:$0xf]
      %v395 = vld [vmem:[%s205 + $0xac] sm:$0xf]
      %v396 = vld [vmem:[%s205 + $0xb0] sm:$0xf]
      %v397 = vld [vmem:[%s205 + $0xb4] sm:$0xf]
      %v398 = vld [vmem:[%s205 + $0xb8] sm:$0xf]
      %v399 = vld [vmem:[%s205 + $0xbc] sm:$0xf]
      %v400 = vld [vmem:[%s205 + $0xc0] sm:$0xf]
      %v401 = vld [vmem:[%s205 + $0xc4] sm:$0xf]
      %v402 = vld [vmem:[%s205 + $0xc8] sm:$0xf]
      %v403 = vld [vmem:[%s205 + $0xcc] sm:$0xf]
      %v404 = vld [vmem:[%s205 + $0xd0] sm:$0xf]
      %v405 = vld [vmem:[%s205 + $0xd4] sm:$0xf]
      %v406 = vld [vmem:[%s205 + $0xd8] sm:$0xf]
      %v407 = vld [vmem:[%s205 + $0xdc] sm:$0xf]
      %v408 = vld [vmem:[%s205 + $0xe0] sm:$0xf]
      %v409 = vld [vmem:[%s205 + $0xe4] sm:$0xf]
      %v410 = vld [vmem:[%s205 + $0xe8] sm:$0xf]
      %v411 = vld [vmem:[%s205 + $0xec] sm:$0xf]
      %v412 = vld [vmem:[%s205 + $0xf0] sm:$0xf]
      %v413 = vld [vmem:[%s205 + $0xf4] sm:$0xf]
      %v414 = vld [vmem:[%s205 + $0xf8] sm:$0xf]
      %v415 = vld [vmem:[%s205 + $0xfc] sm:$0xf]
      %v416 = vld [vmem:[%s211] sm:$0xf]
      %v417 = vld [vmem:[%s211 + $0x4] sm:$0xf]
      %v418 = vld [vmem:[%s211 + $0x8] sm:$0xf]
      %v419 = vld [vmem:[%s211 + $0xc] sm:$0xf]
      %v420 = vld [vmem:[%s211 + $0x10] sm:$0xf]
      %v421 = vld [vmem:[%s211 + $0x14] sm:$0xf]
      %v422 = vld [vmem:[%s211 + $0x18] sm:$0xf]
      %v423 = vld [vmem:[%s211 + $0x1c] sm:$0xf]
      %v424 = vld [vmem:[%s211 + $0x20] sm:$0xf]
      %v425 = vld [vmem:[%s211 + $0x24] sm:$0xf]
      %v426 = vld [vmem:[%s211 + $0x28] sm:$0xf]
      %v427 = vld [vmem:[%s211 + $0x2c] sm:$0xf]
      %v428 = vld [vmem:[%s211 + $0x30] sm:$0xf]
      %v429 = vld [vmem:[%s211 + $0x34] sm:$0xf]
      %v430 = vld [vmem:[%s211 + $0x38] sm:$0xf]
      %v431 = vld [vmem:[%s211 + $0x3c] sm:$0xf]
      %v496 = vunpack.c.l.b16 %v352
      %v497 = vunpack.c.l.b16 %v353
      %v498 = vunpack.c.l.b16 %v354
      %v499 = vunpack.c.l.b16 %v355
      %v500 = vunpack.c.l.b16 %v356
      %v501 = vunpack.c.l.b16 %v357
      %v502 = vunpack.c.l.b16 %v358
      %v503 = vunpack.c.l.b16 %v359
      %v504 = vunpack.c.l.b16 %v360
      %v505 = vunpack.c.l.b16 %v361
      %v506 = vunpack.c.l.b16 %v362
      %v507 = vunpack.c.l.b16 %v363
      %v508 = vunpack.c.l.b16 %v364
      %v509 = vunpack.c.l.b16 %v365
      %v510 = vunpack.c.l.b16 %v366
      %v511 = vunpack.c.l.b16 %v367
      %v512 = vunpack.c.l.b16 %v368
      %v513 = vunpack.c.l.b16 %v369
      %v514 = vunpack.c.l.b16 %v370
      %v515 = vunpack.c.l.b16 %v371
      %v516 = vunpack.c.l.b16 %v372
      %v517 = vunpack.c.l.b16 %v373
      %v518 = vunpack.c.l.b16 %v374
      %v519 = vunpack.c.l.b16 %v375
      %v520 = vunpack.c.l.b16 %v376
      %v521 = vunpack.c.l.b16 %v377
      %v522 = vunpack.c.l.b16 %v378
      %v523 = vunpack.c.l.b16 %v379
      %v524 = vunpack.c.l.b16 %v380
      %v525 = vunpack.c.l.b16 %v381
      %v526 = vunpack.c.l.b16 %v382
      %v527 = vunpack.c.l.b16 %v383
      %v528 = vunpack.c.l.b16 %v384
      %v529 = vunpack.c.l.b16 %v385
      %v530 = vunpack.c.l.b16 %v386
      %v531 = vunpack.c.l.b16 %v387
      %v532 = vunpack.c.l.b16 %v388
      %v533 = vunpack.c.l.b16 %v389
      %v534 = vunpack.c.l.b16 %v390
      %v535 = vunpack.c.l.b16 %v391
      %v536 = vunpack.c.l.b16 %v392
      %v537 = vunpack.c.l.b16 %v393
      %v538 = vunpack.c.l.b16 %v394
      %v539 = vunpack.c.l.b16 %v395
      %v540 = vunpack.c.l.b16 %v396
      %v541 = vunpack.c.l.b16 %v397
      %v542 = vunpack.c.l.b16 %v398
      %v543 = vunpack.c.l.b16 %v399
      %v544 = vunpack.c.l.b16 %v400
      %v545 = vunpack.c.l.b16 %v401
      %v546 = vunpack.c.l.b16 %v402
      %v547 = vunpack.c.l.b16 %v403
      %v548 = vunpack.c.l.b16 %v404
      %v549 = vunpack.c.l.b16 %v405
      %v550 = vunpack.c.l.b16 %v406
      %v551 = vunpack.c.l.b16 %v407
      %v552 = vunpack.c.l.b16 %v408
      %v553 = vunpack.c.l.b16 %v409
      %v554 = vunpack.c.l.b16 %v410
      %v555 = vunpack.c.l.b16 %v411
      %v556 = vunpack.c.l.b16 %v412
      %v557 = vunpack.c.l.b16 %v413
      %v558 = vunpack.c.l.b16 %v414
      %v559 = vunpack.c.l.b16 %v415
      %v560 = vpack.c.b16 %v497, %v496
      %v561 = vpack.c.b16 %v499, %v498
      %v562 = vpack.c.b16 %v501, %v500
      %v563 = vpack.c.b16 %v503, %v502
      %v564 = vpack.c.b16 %v505, %v504
      %v565 = vpack.c.b16 %v507, %v506
      %v566 = vpack.c.b16 %v509, %v508
      %v567 = vpack.c.b16 %v511, %v510
      %v568 = vpack.c.b16 %v513, %v512
      %v569 = vpack.c.b16 %v515, %v514
      %v570 = vpack.c.b16 %v517, %v516
      %v571 = vpack.c.b16 %v519, %v518
      %v572 = vpack.c.b16 %v521, %v520
      %v573 = vpack.c.b16 %v523, %v522
      %v574 = vpack.c.b16 %v525, %v524
      %v575 = vpack.c.b16 %v527, %v526
      %v576 = vpack.c.b16 %v529, %v528
      %v577 = vpack.c.b16 %v531, %v530
      %v578 = vpack.c.b16 %v533, %v532
      %v579 = vpack.c.b16 %v535, %v534
      %v580 = vpack.c.b16 %v537, %v536
      %v581 = vpack.c.b16 %v539, %v538
      %v582 = vpack.c.b16 %v541, %v540
      %v583 = vpack.c.b16 %v543, %v542
      %v584 = vpack.c.b16 %v545, %v544
      %v585 = vpack.c.b16 %v547, %v546
      %v586 = vpack.c.b16 %v549, %v548
      %v587 = vpack.c.b16 %v551, %v550
      %v588 = vpack.c.b16 %v553, %v552
      %v589 = vpack.c.b16 %v555, %v554
      %v590 = vpack.c.b16 %v557, %v556
      %v591 = vpack.c.b16 %v559, %v558
      %v640 = vunpack.c.l.b16 %v416
      %v641 = vunpack.c.l.b16 %v417
      %v642 = vunpack.c.l.b16 %v418
      %v643 = vunpack.c.l.b16 %v419
      %v644 = vunpack.c.l.b16 %v420
      %v645 = vunpack.c.l.b16 %v421
      %v646 = vunpack.c.l.b16 %v422
      %v647 = vunpack.c.l.b16 %v423
      %v648 = vunpack.c.l.b16 %v424
      %v649 = vunpack.c.l.b16 %v425
      %v650 = vunpack.c.l.b16 %v426
      %v651 = vunpack.c.l.b16 %v427
      %v652 = vunpack.c.l.b16 %v428
      %v653 = vunpack.c.l.b16 %v429
      %v654 = vunpack.c.l.b16 %v430
      %v655 = vunpack.c.l.b16 %v431
      %v656 = vpack.c.b16 %v641, %v640
      %v657 = vpack.c.b16 %v643, %v642
      %v658 = vpack.c.b16 %v645, %v644
      %v659 = vpack.c.b16 %v647, %v646
      %v660 = vpack.c.b16 %v649, %v648
      %v661 = vpack.c.b16 %v651, %v650
      %v662 = vpack.c.b16 %v653, %v652
      %v663 = vpack.c.b16 %v655, %v654
      %672 = vmatprep.subr.bf16.mxu0 0
      %673 = vmatpush1.bf16.msra.mxu0 %v656
      %674 = vmatprep.subr.bf16.mxu0 0
      %675 = vmatpush1.bf16.msra.mxu0 %v657
      %676 = vmatprep.subr.bf16.mxu0 0
      %677 = vmatpush1.bf16.msra.mxu0 %v658
      %678 = vmatprep.subr.bf16.mxu0 0
      %679 = vmatpush1.bf16.msra.mxu0 %v659
      %680 = vmatprep.subr.bf16.mxu0 0
      %681 = vmatpush1.bf16.msra.mxu0 %v660
      %682 = vmatprep.subr.bf16.mxu0 0
      %683 = vmatpush1.bf16.msra.mxu0 %v661
      %684 = vmatprep.subr.bf16.mxu0 0
      %685 = vmatpush1.bf16.msra.mxu0 %v662
      %686 = vmatprep.subr.bf16.mxu0 0
      %687 = vmatpush1.bf16.msra.mxu0 %v663
      %688 = vmatprep.subr.bf16.mxu0 0
      %689 = vmatpush1.bf16.msra.mxu0 0
      %690 = vmatprep.subr.bf16.mxu0 0
      %691 = vmatpush1.bf16.msra.mxu0 0
      %692 = vmatprep.subr.bf16.mxu0 0
      %693 = vmatpush1.bf16.msra.mxu0 0
      %694 = vmatprep.subr.bf16.mxu0 0
      %695 = vmatpush1.bf16.msra.mxu0 0
      %696 = vmatprep.subr.bf16.mxu0 0
      %697 = vmatpush1.bf16.msra.mxu0 0
      %698 = vmatprep.subr.bf16.mxu0 0
      %699 = vmatpush1.bf16.msra.mxu0 0
      %700 = vmatprep.subr.bf16.mxu0 0
      %701 = vmatpush1.bf16.msra.mxu0 0
      %702 = vmatprep.subr.bf16.mxu0 0
      %703 = vmatpush1.bf16.msra.mxu0 0
      %704 = vmatprep.mubr.bf16.mxu0 0
      %705 = vmatmul.mubr.bf16.gmra.mrb[0].mxu0 %v560
      %v706 = vpop.f32.mrb[0].mxu0
      %v707 = vadd.f32 0.0, %v706
      %v708 = vpop.f32.mrb[0].mxu0
      %v709 = vpop.f32.mrb[0].mxu0
      %v710 = vadd.f32 0.0, %v709
      %v711 = vpop.f32.mrb[0].mxu0
      %712 = vmatprep.mubr.bf16.mxu0 0
      %713 = vmatmul.mubr.bf16.gmra.mrb[0].mxu0 %v561
      %v714 = vpop.f32.mrb[0].mxu0
      %v715 = vadd.f32 0.0, %v714
      %v716 = vpop.f32.mrb[0].mxu0
      %v717 = vpop.f32.mrb[0].mxu0
      %v718 = vadd.f32 0.0, %v717
      %v719 = vpop.f32.mrb[0].mxu0
      %720 = vmatprep.mubr.bf16.mxu0 0
      %721 = vmatmul.mubr.bf16.gmra.mrb[0].mxu0 %v562
      %v722 = vpop.f32.mrb[0].mxu0
      %v723 = vadd.f32 0.0, %v722
      %v724 = vpop.f32.mrb[0].mxu0
      %v725 = vpop.f32.mrb[0].mxu0
      %v726 = vadd.f32 0.0, %v725
      %v727 = vpop.f32.mrb[0].mxu0
      %728 = vmatprep.mubr.bf16.mxu0 0
      %729 = vmatmul.mubr.bf16.gmra.mrb[0].mxu0 %v563
      %v730 = vpop.f32.mrb[0].mxu0
      %v731 = vadd.f32 0.0, %v730
      %v732 = vpop.f32.mrb[0].mxu0
      %v733 = vpop.f32.mrb[0].mxu0
      %v734 = vadd.f32 0.0, %v733
      %v735 = vpop.f32.mrb[0].mxu0
      %736 = vmatprep.mubr.bf16.mxu0 0
      %737 = vmatmul.mubr.bf16.gmra.mrb[0].mxu0 %v564
      %v738 = vpop.f32.mrb[0].mxu0
      %v739 = vadd.f32 0.0, %v738
      %v740 = vpop.f32.mrb[0].mxu0
      %v741 = vpop.f32.mrb[0].mxu0
      %v742 = vadd.f32 0.0, %v741
      %v743 = vpop.f32.mrb[0].mxu0
      %744 = vmatprep.mubr.bf16.mxu0 0
      %745 = vmatmul.mubr.bf16.gmra.mrb[0].mxu0 %v565
      %v746 = vpop.f32.mrb[0].mxu0
      %v747 = vadd.f32 0.0, %v746
      %v748 = vpop.f32.mrb[0].mxu0
      %v749 = vpop.f32.mrb[0].mxu0
      %v750 = vadd.f32 0.0, %v749
      %v751 = vpop.f32.mrb[0].mxu0
      %752 = vmatprep.mubr.bf16.mxu0 0
      %753 = vmatmul.mubr.bf16.gmra.mrb[0].mxu0 %v566
      %v754 = vpop.f32.mrb[0].mxu0
      %v755 = vadd.f32 0.0, %v754
      %v756 = vpop.f32.mrb[0].mxu0
      %v757 = vpop.f32.mrb[0].mxu0
      %v758 = vadd.f32 0.0, %v757
      %v759 = vpop.f32.mrb[0].mxu0
      %760 = vmatprep.mubr.bf16.mxu0 0
      %761 = vmatmul.mubr.bf16.gmra.mrb[0].mxu0 %v567
      %v762 = vpop.f32.mrb[0].mxu0
      %v763 = vadd.f32 0.0, %v762
      %v764 = vpop.f32.mrb[0].mxu0
      %v765 = vpop.f32.mrb[0].mxu0
      %v766 = vadd.f32 0.0, %v765
      %v767 = vpop.f32.mrb[0].mxu0
      %768 = vmatprep.mubr.bf16.mxu0 0
      %769 = vmatmul.mubr.bf16.gmra.mrb[0].mxu0 %v568
      %v770 = vpop.f32.mrb[0].mxu0
      %v771 = vadd.f32 0.0, %v770
      %v772 = vpop.f32.mrb[0].mxu0
      %v773 = vpop.f32.mrb[0].mxu0
      %v774 = vadd.f32 0.0, %v773
      %v775 = vpop.f32.mrb[0].mxu0
      %776 = vmatprep.mubr.bf16.mxu0 0
      %777 = vmatmul.mubr.bf16.gmra.mrb[0].mxu0 %v569
      %v778 = vpop.f32.mrb[0].mxu0
      %v779 = vadd.f32 0.0, %v778
      %v780 = vpop.f32.mrb[0].mxu0
      %v781 = vpop.f32.mrb[0].mxu0
      %v782 = vadd.f32 0.0, %v781
      %v783 = vpop.f32.mrb[0].mxu0
      %784 = vmatprep.mubr.bf16.mxu0 0
      %785 = vmatmul.mubr.bf16.gmra.mrb[0].mxu0 %v570
      %v786 = vpop.f32.mrb[0].mxu0
      %v787 = vadd.f32 0.0, %v786
      %v788 = vpop.f32.mrb[0].mxu0
      %v789 = vpop.f32.mrb[0].mxu0
      %v790 = vadd.f32 0.0, %v789
      %v791 = vpop.f32.mrb[0].mxu0
      %792 = vmatprep.mubr.bf16.mxu0 0
      %793 = vmatmul.mubr.bf16.gmra.mrb[0].mxu0 %v571
      %v794 = vpop.f32.mrb[0].mxu0
      %v795 = vadd.f32 0.0, %v794
      %v796 = vpop.f32.mrb[0].mxu0
      %v797 = vpop.f32.mrb[0].mxu0
      %v798 = vadd.f32 0.0, %v797
      %v799 = vpop.f32.mrb[0].mxu0
      %800 = vmatprep.mubr.bf16.mxu0 0
      %801 = vmatmul.mubr.bf16.gmra.mrb[0].mxu0 %v572
      %v802 = vpop.f32.mrb[0].mxu0
      %v803 = vadd.f32 0.0, %v802
      %v804 = vpop.f32.mrb[0].mxu0
      %v805 = vpop.f32.mrb[0].mxu0
      %v806 = vadd.f32 0.0, %v805
      %v807 = vpop.f32.mrb[0].mxu0
      %808 = vmatprep.mubr.bf16.mxu0 0
      %809 = vmatmul.mubr.bf16.gmra.mrb[0].mxu0 %v573
      %v810 = vpop.f32.mrb[0].mxu0
      %v811 = vadd.f32 0.0, %v810
      %v812 = vpop.f32.mrb[0].mxu0
      %v813 = vpop.f32.mrb[0].mxu0
      %v814 = vadd.f32 0.0, %v813
      %v815 = vpop.f32.mrb[0].mxu0
      %816 = vmatprep.mubr.bf16.mxu0 0
      %817 = vmatmul.mubr.bf16.gmra.mrb[0].mxu0 %v574
      %v818 = vpop.f32.mrb[0].mxu0
      %v819 = vadd.f32 0.0, %v818
      %v820 = vpop.f32.mrb[0].mxu0
      %v821 = vpop.f32.mrb[0].mxu0
      %v822 = vadd.f32 0.0, %v821
      %v823 = vpop.f32.mrb[0].mxu0
      %824 = vmatprep.mubr.bf16.mxu0 0
      %825 = vmatmul.mubr.bf16.gmra.mrb[0].mxu0 %v575
      %v826 = vpop.f32.mrb[0].mxu0
      %v827 = vadd.f32 0.0, %v826
      %v828 = vpop.f32.mrb[0].mxu0
      %v829 = vpop.f32.mrb[0].mxu0
      %v830 = vadd.f32 0.0, %v829
      %v831 = vpop.f32.mrb[0].mxu0
      %832 = vmatprep.mubr.bf16.mxu0 0
      %833 = vmatmul.mubr.bf16.gmra.mrb[0].mxu0 %v576
      %v834 = vpop.f32.mrb[0].mxu0
      %v835 = vadd.f32 0.0, %v834
      %v836 = vpop.f32.mrb[0].mxu0
      %v837 = vpop.f32.mrb[0].mxu0
      %v838 = vadd.f32 0.0, %v837
      %v839 = vpop.f32.mrb[0].mxu0
      %840 = vmatprep.mubr.bf16.mxu0 0
      %841 = vmatmul.mubr.bf16.gmra.mrb[0].mxu0 %v577
      %v842 = vpop.f32.mrb[0].mxu0
      %v843 = vadd.f32 0.0, %v842
      %v844 = vpop.f32.mrb[0].mxu0
      %v845 = vpop.f32.mrb[0].mxu0
      %v846 = vadd.f32 0.0, %v845
      %v847 = vpop.f32.mrb[0].mxu0
      %848 = vmatprep.mubr.bf16.mxu0 0
      %849 = vmatmul.mubr.bf16.gmra.mrb[0].mxu0 %v578
      %v850 = vpop.f32.mrb[0].mxu0
      %v851 = vadd.f32 0.0, %v850
      %v852 = vpop.f32.mrb[0].mxu0
      %v853 = vpop.f32.mrb[0].mxu0
      %v854 = vadd.f32 0.0, %v853
      %v855 = vpop.f32.mrb[0].mxu0
      %856 = vmatprep.mubr.bf16.mxu0 0
      %857 = vmatmul.mubr.bf16.gmra.mrb[0].mxu0 %v579
      %v858 = vpop.f32.mrb[0].mxu0
      %v859 = vadd.f32 0.0, %v858
      %v860 = vpop.f32.mrb[0].mxu0
      %v861 = vpop.f32.mrb[0].mxu0
      %v862 = vadd.f32 0.0, %v861
      %v863 = vpop.f32.mrb[0].mxu0
      %864 = vmatprep.mubr.bf16.mxu0 0
      %865 = vmatmul.mubr.bf16.gmra.mrb[0].mxu0 %v580
      %v866 = vpop.f32.mrb[0].mxu0
      %v867 = vadd.f32 0.0, %v866
      %v868 = vpop.f32.mrb[0].mxu0
      %v869 = vpop.f32.mrb[0].mxu0
      %v870 = vadd.f32 0.0, %v869
      %v871 = vpop.f32.mrb[0].mxu0
      %872 = vmatprep.mubr.bf16.mxu0 0
      %873 = vmatmul.mubr.bf16.gmra.mrb[0].mxu0 %v581
      %v874 = vpop.f32.mrb[0].mxu0
      %v875 = vadd.f32 0.0, %v874
      %v876 = vpop.f32.mrb[0].mxu0
      %v877 = vpop.f32.mrb[0].mxu0
      %v878 = vadd.f32 0.0, %v877
      %v879 = vpop.f32.mrb[0].mxu0
      %880 = vmatprep.mubr.bf16.mxu0 0
      %881 = vmatmul.mubr.bf16.gmra.mrb[0].mxu0 %v582
      %v882 = vpop.f32.mrb[0].mxu0
      %v883 = vadd.f32 0.0, %v882
      %v884 = vpop.f32.mrb[0].mxu0
      %v885 = vpop.f32.mrb[0].mxu0
      %v886 = vadd.f32 0.0, %v885
      %v887 = vpop.f32.mrb[0].mxu0
      %888 = vmatprep.mubr.bf16.mxu0 0
      %889 = vmatmul.mubr.bf16.gmra.mrb[0].mxu0 %v583
      %v890 = vpop.f32.mrb[0].mxu0
      %v891 = vadd.f32 0.0, %v890
      %v892 = vpop.f32.mrb[0].mxu0
      %v893 = vpop.f32.mrb[0].mxu0
      %v894 = vadd.f32 0.0, %v893
      %v895 = vpop.f32.mrb[0].mxu0
      %896 = vmatprep.mubr.bf16.mxu0 0
      %897 = vmatmul.mubr.bf16.gmra.mrb[0].mxu0 %v584
      %v898 = vpop.f32.mrb[0].mxu0
      %v899 = vadd.f32 0.0, %v898
      %v900 = vpop.f32.mrb[0].mxu0
      %v901 = vpop.f32.mrb[0].mxu0
      %v902 = vadd.f32 0.0, %v901
      %v903 = vpop.f32.mrb[0].mxu0
      %904 = vmatprep.mubr.bf16.mxu0 0
      %905 = vmatmul.mubr.bf16.gmra.mrb[0].mxu0 %v585
      %v906 = vpop.f32.mrb[0].mxu0
      %v907 = vadd.f32 0.0, %v906
      %v908 = vpop.f32.mrb[0].mxu0
      %v909 = vpop.f32.mrb[0].mxu0
      %v910 = vadd.f32 0.0, %v909
      %v911 = vpop.f32.mrb[0].mxu0
      %912 = vmatprep.mubr.bf16.mxu0 0
      %913 = vmatmul.mubr.bf16.gmra.mrb[0].mxu0 %v586
      %v914 = vpop.f32.mrb[0].mxu0
      %v915 = vadd.f32 0.0, %v914
      %v916 = vpop.f32.mrb[0].mxu0
      %v917 = vpop.f32.mrb[0].mxu0
      %v918 = vadd.f32 0.0, %v917
      %v919 = vpop.f32.mrb[0].mxu0
      %920 = vmatprep.mubr.bf16.mxu0 0
      %921 = vmatmul.mubr.bf16.gmra.mrb[0].mxu0 %v587
      %v922 = vpop.f32.mrb[0].mxu0
      %v923 = vadd.f32 0.0, %v922
      %v924 = vpop.f32.mrb[0].mxu0
      %v925 = vpop.f32.mrb[0].mxu0
      %v926 = vadd.f32 0.0, %v925
      %v927 = vpop.f32.mrb[0].mxu0
      %928 = vmatprep.mubr.bf16.mxu0 0
      %929 = vmatmul.mubr.bf16.gmra.mrb[0].mxu0 %v588
      %v930 = vpop.f32.mrb[0].mxu0
      %v931 = vadd.f32 0.0, %v930
      %v932 = vpop.f32.mrb[0].mxu0
      %v933 = vpop.f32.mrb[0].mxu0
      %v934 = vadd.f32 0.0, %v933
      %v935 = vpop.f32.mrb[0].mxu0
      %936 = vmatprep.mubr.bf16.mxu0 0
      %937 = vmatmul.mubr.bf16.gmra.mrb[0].mxu0 %v589
      %v938 = vpop.f32.mrb[0].mxu0
      %v939 = vadd.f32 0.0, %v938
      %v940 = vpop.f32.mrb[0].mxu0
      %v941 = vpop.f32.mrb[0].mxu0
      %v942 = vadd.f32 0.0, %v941
      %v943 = vpop.f32.mrb[0].mxu0
      %944 = vmatprep.mubr.bf16.mxu0 0
      %945 = vmatmul.mubr.bf16.gmra.mrb[0].mxu0 %v590
      %v946 = vpop.f32.mrb[0].mxu0
      %v947 = vadd.f32 0.0, %v946
      %v948 = vpop.f32.mrb[0].mxu0
      %v949 = vpop.f32.mrb[0].mxu0
      %v950 = vadd.f32 0.0, %v949
      %v951 = vpop.f32.mrb[0].mxu0
      %952 = vmatprep.mubr.bf16.mxu0 0
      %953 = vmatmul.mubr.bf16.gmra.mrb[0].mxu0 %v591
      %v954 = vpop.f32.mrb[0].mxu0
      %v955 = vadd.f32 0.0, %v954
      %v956 = vpop.f32.mrb[0].mxu0
      %v957 = vpop.f32.mrb[0].mxu0
      %v958 = vadd.f32 0.0, %v957
      %v959 = vpop.f32.mrb[0].mxu0
      %960 = vdwg.mxu0
      %v961 = vadd.f32 %v288, %v707
      %v962 = vadd.f32 %v289, %v710
      %v963 = vadd.f32 %v290, %v715
      %v964 = vadd.f32 %v291, %v718
      %v965 = vadd.f32 %v292, %v723
      %v966 = vadd.f32 %v293, %v726
      %v967 = vadd.f32 %v294, %v731
      %v968 = vadd.f32 %v295, %v734
      %v969 = vadd.f32 %v296, %v739
      %v970 = vadd.f32 %v297, %v742
      %v971 = vadd.f32 %v298, %v747
      %v972 = vadd.f32 %v299, %v750
      %v973 = vadd.f32 %v300, %v755
      %v974 = vadd.f32 %v301, %v758
      %v975 = vadd.f32 %v302, %v763
      %v976 = vadd.f32 %v303, %v766
      %v977 = vadd.f32 %v304, %v771
      %v978 = vadd.f32 %v305, %v774
      %v979 = vadd.f32 %v306, %v779
      %v980 = vadd.f32 %v307, %v782
      %v981 = vadd.f32 %v308, %v787
      %v982 = vadd.f32 %v309, %v790
      %v983 = vadd.f32 %v310, %v795
      %v984 = vadd.f32 %v311, %v798
      %v985 = vadd.f32 %v312, %v803
      %v986 = vadd.f32 %v313, %v806
      %v987 = vadd.f32 %v314, %v811
      %v988 = vadd.f32 %v315, %v814
      %v989 = vadd.f32 %v316, %v819
      %v990 = vadd.f32 %v317, %v822
      %v991 = vadd.f32 %v318, %v827
      %v992 = vadd.f32 %v319, %v830
      %v993 = vadd.f32 %v320, %v835
      %v994 = vadd.f32 %v321, %v838
      %v995 = vadd.f32 %v322, %v843
      %v996 = vadd.f32 %v323, %v846
      %v997 = vadd.f32 %v324, %v851
      %v998 = vadd.f32 %v325, %v854
      %v999 = vadd.f32 %v326, %v859
      %v1000 = vadd.f32 %v327, %v862
      %v1001 = vadd.f32 %v328, %v867
      %v1002 = vadd.f32 %v329, %v870
      %v1003 = vadd.f32 %v330, %v875
      %v1004 = vadd.f32 %v331, %v878
      %v1005 = vadd.f32 %v332, %v883
      %v1006 = vadd.f32 %v333, %v886
      %v1007 = vadd.f32 %v334, %v891
      %v1008 = vadd.f32 %v335, %v894
      %v1009 = vadd.f32 %v336, %v899
      %v1010 = vadd.f32 %v337, %v902
      %v1011 = vadd.f32 %v338, %v907
      %v1012 = vadd.f32 %v339, %v910
      %v1013 = vadd.f32 %v340, %v915
      %v1014 = vadd.f32 %v341, %v918
      %v1015 = vadd.f32 %v342, %v923
      %v1016 = vadd.f32 %v343, %v926
      %v1017 = vadd.f32 %v344, %v931
      %v1018 = vadd.f32 %v345, %v934
      %v1019 = vadd.f32 %v346, %v939
      %v1020 = vadd.f32 %v347, %v942
      %v1021 = vadd.f32 %v348, %v947
      %v1022 = vadd.f32 %v349, %v950
      %v1023 = vadd.f32 %v350, %v955
      %v1024 = vadd.f32 %v351, %v958
      %1025 = vst [vmem:[#allocation2] sm:$0xff] %v961
      %1026 = vst [vmem:[#allocation2 + $0x8] sm:$0xff] %v962
      %1027 = vst [vmem:[#allocation2 + $0x10] sm:$0xff] %v963
      %1028 = vst [vmem:[#allocation2 + $0x18] sm:$0xff] %v964
      %1029 = vst [vmem:[#allocation2 + $0x20] sm:$0xff] %v965
      %1030 = vst [vmem:[#allocation2 + $0x28] sm:$0xff] %v966
      %1031 = vst [vmem:[#allocation2 + $0x30] sm:$0xff] %v967
      %1032 = vst [vmem:[#allocation2 + $0x38] sm:$0xff] %v968
      %1033 = vst [vmem:[#allocation2 + $0x40] sm:$0xff] %v969
      %1034 = vst [vmem:[#allocation2 + $0x48] sm:$0xff] %v970
      %1035 = vst [vmem:[#allocation2 + $0x50] sm:$0xff] %v971
      %1036 = vst [vmem:[#allocation2 + $0x58] sm:$0xff] %v972
      %1037 = vst [vmem:[#allocation2 + $0x60] sm:$0xff] %v973
      %1038 = vst [vmem:[#allocation2 + $0x68] sm:$0xff] %v974
      %1039 = vst [vmem:[#allocation2 + $0x70] sm:$0xff] %v975
      %1040 = vst [vmem:[#allocation2 + $0x78] sm:$0xff] %v976
      %1041 = vst [vmem:[#allocation2 + $0x80] sm:$0xff] %v977
      %1042 = vst [vmem:[#allocation2 + $0x88] sm:$0xff] %v978
      %1043 = vst [vmem:[#allocation2 + $0x90] sm:$0xff] %v979
      %1044 = vst [vmem:[#allocation2 + $0x98] sm:$0xff] %v980
      %1045 = vst [vmem:[#allocation2 + $0xa0] sm:$0xff] %v981
      %1046 = vst [vmem:[#allocation2 + $0xa8] sm:$0xff] %v982
      %1047 = vst [vmem:[#allocation2 + $0xb0] sm:$0xff] %v983
      %1048 = vst [vmem:[#allocation2 + $0xb8] sm:$0xff] %v984
      %1049 = vst [vmem:[#allocation2 + $0xc0] sm:$0xff] %v985
      %1050 = vst [vmem:[#allocation2 + $0xc8] sm:$0xff] %v986
      %1051 = vst [vmem:[#allocation2 + $0xd0] sm:$0xff] %v987
      %1052 = vst [vmem:[#allocation2 + $0xd8] sm:$0xff] %v988
      %1053 = vst [vmem:[#allocation2 + $0xe0] sm:$0xff] %v989
      %1054 = vst [vmem:[#allocation2 + $0xe8] sm:$0xff] %v990
      %1055 = vst [vmem:[#allocation2 + $0xf0] sm:$0xff] %v991
      %1056 = vst [vmem:[#allocation2 + $0xf8] sm:$0xff] %v992
      %1057 = vst [vmem:[#allocation2 + $0x100] sm:$0xff] %v993
      %1058 = vst [vmem:[#allocation2 + $0x108] sm:$0xff] %v994
      %1059 = vst [vmem:[#allocation2 + $0x110] sm:$0xff] %v995
      %1060 = vst [vmem:[#allocation2 + $0x118] sm:$0xff] %v996
      %1061 = vst [vmem:[#allocation2 + $0x120] sm:$0xff] %v997
      %1062 = vst [vmem:[#allocation2 + $0x128] sm:$0xff] %v998
      %1063 = vst [vmem:[#allocation2 + $0x130] sm:$0xff] %v999
      %1064 = vst [vmem:[#allocation2 + $0x138] sm:$0xff] %v1000
      %1065 = vst [vmem:[#allocation2 + $0x140] sm:$0xff] %v1001
      %1066 = vst [vmem:[#allocation2 + $0x148] sm:$0xff] %v1002
      %1067 = vst [vmem:[#allocation2 + $0x150] sm:$0xff] %v1003
      %1068 = vst [vmem:[#allocation2 + $0x158] sm:$0xff] %v1004
      %1069 = vst [vmem:[#allocation2 + $0x160] sm:$0xff] %v1005
      %1070 = vst [vmem:[#allocation2 + $0x168] sm:$0xff] %v1006
      %1071 = vst [vmem:[#allocation2 + $0x170] sm:$0xff] %v1007
      %1072 = vst [vmem:[#allocation2 + $0x178] sm:$0xff] %v1008
      %1073 = vst [vmem:[#allocation2 + $0x180] sm:$0xff] %v1009
      %1074 = vst [vmem:[#allocation2 + $0x188] sm:$0xff] %v1010
      %1075 = vst [vmem:[#allocation2 + $0x190] sm:$0xff] %v1011
      %1076 = vst [vmem:[#allocation2 + $0x198] sm:$0xff] %v1012
      %1077 = vst [vmem:[#allocation2 + $0x1a0] sm:$0xff] %v1013
      %1078 = vst [vmem:[#allocation2 + $0x1a8] sm:$0xff] %v1014
      %1079 = vst [vmem:[#allocation2 + $0x1b0] sm:$0xff] %v1015
      %1080 = vst [vmem:[#allocation2 + $0x1b8] sm:$0xff] %v1016
      %1081 = vst [vmem:[#allocation2 + $0x1c0] sm:$0xff] %v1017
      %1082 = vst [vmem:[#allocation2 + $0x1c8] sm:$0xff] %v1018
      %1083 = vst [vmem:[#allocation2 + $0x1d0] sm:$0xff] %v1019
      %1084 = vst [vmem:[#allocation2 + $0x1d8] sm:$0xff] %v1020
      %1085 = vst [vmem:[#allocation2 + $0x1e0] sm:$0xff] %v1021
      %1086 = vst [vmem:[#allocation2 + $0x1e8] sm:$0xff] %v1022
      %1087 = vst [vmem:[#allocation2 + $0x1f0] sm:$0xff] %v1023
      %1088 = vst [vmem:[#allocation2 + $0x1f8] sm:$0xff] %v1024
      // Predicated region
      $region37: #{bottleneck_forward.3} parent=31 // pred_check
        %p1089 = pneg %p220
      $region38: #{bottleneck_forward.3} parent=31 // pred_check_branch
        %1091 = sbr.rel (%p1089) target = $region40
      $region39: #{bottleneck_forward.3} parent=31 // pred_region
        %v1092 = vld [vmem:[#allocation2] sm:$0xff]
        %v1093 = vld [vmem:[#allocation2 + $0x8] sm:$0xff]
        %v1094 = vld [vmem:[#allocation2 + $0x10] sm:$0xff]
        %v1095 = vld [vmem:[#allocation2 + $0x18] sm:$0xff]
        %v1096 = vld [vmem:[#allocation2 + $0x20] sm:$0xff]
        %v1097 = vld [vmem:[#allocation2 + $0x28] sm:$0xff]
        %v1098 = vld [vmem:[#allocation2 + $0x30] sm:$0xff]
        %v1099 = vld [vmem:[#allocation2 + $0x38] sm:$0xff]
        %v1100 = vld [vmem:[#allocation2 + $0x40] sm:$0xff]
        %v1101 = vld [vmem:[#allocation2 + $0x48] sm:$0xff]
        %v1102 = vld [vmem:[#allocation2 + $0x50] sm:$0xff]
        %v1103 = vld [vmem:[#allocation2 + $0x58] sm:$0xff]
        %v1104 = vld [vmem:[#allocation2 + $0x60] sm:$0xff]
        %v1105 = vld [vmem:[#allocation2 + $0x68] sm:$0xff]
        %v1106 = vld [vmem:[#allocation2 + $0x70] sm:$0xff]
        %v1107 = vld [vmem:[#allocation2 + $0x78] sm:$0xff]
        %v1108 = vld [vmem:[#allocation2 + $0x80] sm:$0xff]
        %v1109 = vld [vmem:[#allocation2 + $0x88] sm:$0xff]
        %v1110 = vld [vmem:[#allocation2 + $0x90] sm:$0xff]
        %v1111 = vld [vmem:[#allocation2 + $0x98] sm:$0xff]
        %v1112 = vld [vmem:[#allocation2 + $0xa0] sm:$0xff]
        %v1113 = vld [vmem:[#allocation2 + $0xa8] sm:$0xff]
        %v1114 = vld [vmem:[#allocation2 + $0xb0] sm:$0xff]
        %v1115 = vld [vmem:[#allocation2 + $0xb8] sm:$0xff]
        %v1116 = vld [vmem:[#allocation2 + $0xc0] sm:$0xff]
        %v1117 = vld [vmem:[#allocation2 + $0xc8] sm:$0xff]
        %v1118 = vld [vmem:[#allocation2 + $0xd0] sm:$0xff]
        %v1119 = vld [vmem:[#allocation2 + $0xd8] sm:$0xff]
        %v1120 = vld [vmem:[#allocation2 + $0xe0] sm:$0xff]
        %v1121 = vld [vmem:[#allocation2 + $0xe8] sm:$0xff]
        %v1122 = vld [vmem:[#allocation2 + $0xf0] sm:$0xff]
        %v1123 = vld [vmem:[#allocation2 + $0xf8] sm:$0xff]
        %v1124 = vld [vmem:[#allocation2 + $0x100] sm:$0xff]
        %v1125 = vld [vmem:[#allocation2 + $0x108] sm:$0xff]
        %v1126 = vld [vmem:[#allocation2 + $0x110] sm:$0xff]
        %v1127 = vld [vmem:[#allocation2 + $0x118] sm:$0xff]
        %v1128 = vld [vmem:[#allocation2 + $0x120] sm:$0xff]
        %v1129 = vld [vmem:[#allocation2 + $0x128] sm:$0xff]
        %v1130 = vld [vmem:[#allocation2 + $0x130] sm:$0xff]
        %v1131 = vld [vmem:[#allocation2 + $0x138] sm:$0xff]
        %v1132 = vld [vmem:[#allocation2 + $0x140] sm:$0xff]
        %v1133 = vld [vmem:[#allocation2 + $0x148] sm:$0xff]
        %v1134 = vld [vmem:[#allocation2 + $0x150] sm:$0xff]
        %v1135 = vld [vmem:[#allocation2 + $0x158] sm:$0xff]
        %v1136 = vld [vmem:[#allocation2 + $0x160] sm:$0xff]
        %v1137 = vld [vmem:[#allocation2 + $0x168] sm:$0xff]
        %v1138 = vld [vmem:[#allocation2 + $0x170] sm:$0xff]
        %v1139 = vld [vmem:[#allocation2 + $0x178] sm:$0xff]
        %v1140 = vld [vmem:[#allocation2 + $0x180] sm:$0xff]
        %v1141 = vld [vmem:[#allocation2 + $0x188] sm:$0xff]
        %v1142 = vld [vmem:[#allocation2 + $0x190] sm:$0xff]
        %v1143 = vld [vmem:[#allocation2 + $0x198] sm:$0xff]
        %v1144 = vld [vmem:[#allocation2 + $0x1a0] sm:$0xff]
        %v1145 = vld [vmem:[#allocation2 + $0x1a8] sm:$0xff]
        %v1146 = vld [vmem:[#allocation2 + $0x1b0] sm:$0xff]
        %v1147 = vld [vmem:[#allocation2 + $0x1b8] sm:$0xff]
        %v1148 = vld [vmem:[#allocation2 + $0x1c0] sm:$0xff]
        %v1149 = vld [vmem:[#allocation2 + $0x1c8] sm:$0xff]
        %v1150 = vld [vmem:[#allocation2 + $0x1d0] sm:$0xff]
        %v1151 = vld [vmem:[#allocation2 + $0x1d8] sm:$0xff]
        %v1152 = vld [vmem:[#allocation2 + $0x1e0] sm:$0xff]
        %v1153 = vld [vmem:[#allocation2 + $0x1e8] sm:$0xff]
        %v1154 = vld [vmem:[#allocation2 + $0x1f0] sm:$0xff]
        %v1155 = vld [vmem:[#allocation2 + $0x1f8] sm:$0xff]
        %v1156 = vld [vmem:[%s2] sm:$0x1]
        %v1157 = vlaneseq
        %v1158 = vshrl.u32 %v1157, 7
        %v1159 = vsub.s32 0, %v1158
        %v1160 = vrot.slane %v1156, %v1159
        %v1161 = vmul.f32 %v1092, %v1160
        %v1162 = vmul.f32 %v1093, %v1160
        %v1163 = vmul.f32 %v1094, %v1160
        %v1164 = vmul.f32 %v1095, %v1160
        %v1165 = vmul.f32 %v1096, %v1160
        %v1166 = vmul.f32 %v1097, %v1160
        %v1167 = vmul.f32 %v1098, %v1160
        %v1168 = vmul.f32 %v1099, %v1160
        %v1169 = vmul.f32 %v1100, %v1160
        %v1170 = vmul.f32 %v1101, %v1160
        %v1171 = vmul.f32 %v1102, %v1160
        %v1172 = vmul.f32 %v1103, %v1160
        %v1173 = vmul.f32 %v1104, %v1160
        %v1174 = vmul.f32 %v1105, %v1160
        %v1175 = vmul.f32 %v1106, %v1160
        %v1176 = vmul.f32 %v1107, %v1160
        %v1177 = vmul.f32 %v1108, %v1160
        %v1178 = vmul.f32 %v1109, %v1160
        %v1179 = vmul.f32 %v1110, %v1160
        %v1180 = vmul.f32 %v1111, %v1160
        %v1181 = vmul.f32 %v1112, %v1160
        %v1182 = vmul.f32 %v1113, %v1160
        %v1183 = vmul.f32 %v1114, %v1160
        %v1184 = vmul.f32 %v1115, %v1160
        %v1185 = vmul.f32 %v1116, %v1160
        %v1186 = vmul.f32 %v1117, %v1160
        %v1187 = vmul.f32 %v1118, %v1160
        %v1188 = vmul.f32 %v1119, %v1160
        %v1189 = vmul.f32 %v1120, %v1160
        %v1190 = vmul.f32 %v1121, %v1160
        %v1191 = vmul.f32 %v1122, %v1160
        %v1192 = vmul.f32 %v1123, %v1160
        %v1193 = vmul.f32 %v1124, %v1160
        %v1194 = vmul.f32 %v1125, %v1160
        %v1195 = vmul.f32 %v1126, %v1160
        %v1196 = vmul.f32 %v1127, %v1160
        %v1197 = vmul.f32 %v1128, %v1160
        %v1198 = vmul.f32 %v1129, %v1160
        %v1199 = vmul.f32 %v1130, %v1160
        %v1200 = vmul.f32 %v1131, %v1160
        %v1201 = vmul.f32 %v1132, %v1160
        %v1202 = vmul.f32 %v1133, %v1160
        %v1203 = vmul.f32 %v1134, %v1160
        %v1204 = vmul.f32 %v1135, %v1160
        %v1205 = vmul.f32 %v1136, %v1160
        %v1206 = vmul.f32 %v1137, %v1160
        %v1207 = vmul.f32 %v1138, %v1160
        %v1208 = vmul.f32 %v1139, %v1160
        %v1209 = vmul.f32 %v1140, %v1160
        %v1210 = vmul.f32 %v1141, %v1160
        %v1211 = vmul.f32 %v1142, %v1160
        %v1212 = vmul.f32 %v1143, %v1160
        %v1213 = vmul.f32 %v1144, %v1160
        %v1214 = vmul.f32 %v1145, %v1160
        %v1215 = vmul.f32 %v1146, %v1160
        %v1216 = vmul.f32 %v1147, %v1160
        %v1217 = vmul.f32 %v1148, %v1160
        %v1218 = vmul.f32 %v1149, %v1160
        %v1219 = vmul.f32 %v1150, %v1160
        %v1220 = vmul.f32 %v1151, %v1160
        %v1221 = vmul.f32 %v1152, %v1160
        %v1222 = vmul.f32 %v1153, %v1160
        %v1223 = vmul.f32 %v1154, %v1160
        %v1224 = vmul.f32 %v1155, %v1160
        %v1225 = vld [vmem:[%s2 + $0x1] sm:$0x1]
        %v1226 = vlaneseq
        %v1227 = vshrl.u32 %v1226, 7
        %v1228 = vsub.s32 0, %v1227
        %v1229 = vrot.slane %v1225, %v1228
        %v1230 = vadd.f32 %v1161, %v1229
        %v1231 = vadd.f32 %v1162, %v1229
        %v1232 = vadd.f32 %v1163, %v1229
        %v1233 = vadd.f32 %v1164, %v1229
        %v1234 = vadd.f32 %v1165, %v1229
        %v1235 = vadd.f32 %v1166, %v1229
        %v1236 = vadd.f32 %v1167, %v1229
        %v1237 = vadd.f32 %v1168, %v1229
        %v1238 = vadd.f32 %v1169, %v1229
        %v1239 = vadd.f32 %v1170, %v1229
        %v1240 = vadd.f32 %v1171, %v1229
        %v1241 = vadd.f32 %v1172, %v1229
        %v1242 = vadd.f32 %v1173, %v1229
        %v1243 = vadd.f32 %v1174, %v1229
        %v1244 = vadd.f32 %v1175, %v1229
        %v1245 = vadd.f32 %v1176, %v1229
        %v1246 = vadd.f32 %v1177, %v1229
        %v1247 = vadd.f32 %v1178, %v1229
        %v1248 = vadd.f32 %v1179, %v1229
        %v1249 = vadd.f32 %v1180, %v1229
        %v1250 = vadd.f32 %v1181, %v1229
        %v1251 = vadd.f32 %v1182, %v1229
        %v1252 = vadd.f32 %v1183, %v1229
        %v1253 = vadd.f32 %v1184, %v1229
        %v1254 = vadd.f32 %v1185, %v1229
        %v1255 = vadd.f32 %v1186, %v1229
        %v1256 = vadd.f32 %v1187, %v1229
        %v1257 = vadd.f32 %v1188, %v1229
        %v1258 = vadd.f32 %v1189, %v1229
        %v1259 = vadd.f32 %v1190, %v1229
        %v1260 = vadd.f32 %v1191, %v1229
        %v1261 = vadd.f32 %v1192, %v1229
        %v1262 = vadd.f32 %v1193, %v1229
        %v1263 = vadd.f32 %v1194, %v1229
        %v1264 = vadd.f32 %v1195, %v1229
        %v1265 = vadd.f32 %v1196, %v1229
        %v1266 = vadd.f32 %v1197, %v1229
        %v1267 = vadd.f32 %v1198, %v1229
        %v1268 = vadd.f32 %v1199, %v1229
        %v1269 = vadd.f32 %v1200, %v1229
        %v1270 = vadd.f32 %v1201, %v1229
        %v1271 = vadd.f32 %v1202, %v1229
        %v1272 = vadd.f32 %v1203, %v1229
        %v1273 = vadd.f32 %v1204, %v1229
        %v1274 = vadd.f32 %v1205, %v1229
        %v1275 = vadd.f32 %v1206, %v1229
        %v1276 = vadd.f32 %v1207, %v1229
        %v1277 = vadd.f32 %v1208, %v1229
        %v1278 = vadd.f32 %v1209, %v1229
        %v1279 = vadd.f32 %v1210, %v1229
        %v1280 = vadd.f32 %v1211, %v1229
        %v1281 = vadd.f32 %v1212, %v1229
        %v1282 = vadd.f32 %v1213, %v1229
        %v1283 = vadd.f32 %v1214, %v1229
        %v1284 = vadd.f32 %v1215, %v1229
        %v1285 = vadd.f32 %v1216, %v1229
        %v1286 = vadd.f32 %v1217, %v1229
        %v1287 = vadd.f32 %v1218, %v1229
        %v1288 = vadd.f32 %v1219, %v1229
        %v1289 = vadd.f32 %v1220, %v1229
        %v1290 = vadd.f32 %v1221, %v1229
        %v1291 = vadd.f32 %v1222, %v1229
        %v1292 = vadd.f32 %v1223, %v1229
        %v1293 = vadd.f32 %v1224, %v1229
        %v1294 = vmax.f32 %v1230, 0.0
        %v1295 = vmax.f32 %v1231, 0.0
        %v1296 = vmax.f32 %v1232, 0.0
        %v1297 = vmax.f32 %v1233, 0.0
        %v1298 = vmax.f32 %v1234, 0.0
        %v1299 = vmax.f32 %v1235, 0.0
        %v1300 = vmax.f32 %v1236, 0.0
        %v1301 = vmax.f32 %v1237, 0.0
        %v1302 = vmax.f32 %v1238, 0.0
        %v1303 = vmax.f32 %v1239, 0.0
        %v1304 = vmax.f32 %v1240, 0.0
        %v1305 = vmax.f32 %v1241, 0.0
        %v1306 = vmax.f32 %v1242, 0.0
        %v1307 = vmax.f32 %v1243, 0.0
        %v1308 = vmax.f32 %v1244, 0.0
        %v1309 = vmax.f32 %v1245, 0.0
        %v1310 = vmax.f32 %v1246, 0.0
        %v1311 = vmax.f32 %v1247, 0.0
        %v1312 = vmax.f32 %v1248, 0.0
        %v1313 = vmax.f32 %v1249, 0.0
        %v1314 = vmax.f32 %v1250, 0.0
        %v1315 = vmax.f32 %v1251, 0.0
        %v1316 = vmax.f32 %v1252, 0.0
        %v1317 = vmax.f32 %v1253, 0.0
        %v1318 = vmax.f32 %v1254, 0.0
        %v1319 = vmax.f32 %v1255, 0.0
        %v1320 = vmax.f32 %v1256, 0.0
        %v1321 = vmax.f32 %v1257, 0.0
        %v1322 = vmax.f32 %v1258, 0.0
        %v1323 = vmax.f32 %v1259, 0.0
        %v1324 = vmax.f32 %v1260, 0.0
        %v1325 = vmax.f32 %v1261, 0.0
        %v1326 = vmax.f32 %v1262, 0.0
        %v1327 = vmax.f32 %v1263, 0.0
        %v1328 = vmax.f32 %v1264, 0.0
        %v1329 = vmax.f32 %v1265, 0.0
        %v1330 = vmax.f32 %v1266, 0.0
        %v1331 = vmax.f32 %v1267, 0.0
        %v1332 = vmax.f32 %v1268, 0.0
        %v1333 = vmax.f32 %v1269, 0.0
        %v1334 = vmax.f32 %v1270, 0.0
        %v1335 = vmax.f32 %v1271, 0.0
        %v1336 = vmax.f32 %v1272, 0.0
        %v1337 = vmax.f32 %v1273, 0.0
        %v1338 = vmax.f32 %v1274, 0.0
        %v1339 = vmax.f32 %v1275, 0.0
        %v1340 = vmax.f32 %v1276, 0.0
        %v1341 = vmax.f32 %v1277, 0.0
        %v1342 = vmax.f32 %v1278, 0.0
        %v1343 = vmax.f32 %v1279, 0.0
        %v1344 = vmax.f32 %v1280, 0.0
        %v1345 = vmax.f32 %v1281, 0.0
        %v1346 = vmax.f32 %v1282, 0.0
        %v1347 = vmax.f32 %v1283, 0.0
        %v1348 = vmax.f32 %v1284, 0.0
        %v1349 = vmax.f32 %v1285, 0.0
        %v1350 = vmax.f32 %v1286, 0.0
        %v1351 = vmax.f32 %v1287, 0.0
        %v1352 = vmax.f32 %v1288, 0.0
        %v1353 = vmax.f32 %v1289, 0.0
        %v1354 = vmax.f32 %v1290, 0.0
        %v1355 = vmax.f32 %v1291, 0.0
        %v1356 = vmax.f32 %v1292, 0.0
        %v1357 = vmax.f32 %v1293, 0.0
        %v1358 = vpack.c.bf16 %v1295, %v1294
        %v1359 = vpack.c.bf16 %v1297, %v1296
        %v1360 = vpack.c.bf16 %v1299, %v1298
        %v1361 = vpack.c.bf16 %v1301, %v1300
        %v1362 = vpack.c.bf16 %v1303, %v1302
        %v1363 = vpack.c.bf16 %v1305, %v1304
        %v1364 = vpack.c.bf16 %v1307, %v1306
        %v1365 = vpack.c.bf16 %v1309, %v1308
        %v1366 = vpack.c.bf16 %v1311, %v1310
        %v1367 = vpack.c.bf16 %v1313, %v1312
        %v1368 = vpack.c.bf16 %v1315, %v1314
        %v1369 = vpack.c.bf16 %v1317, %v1316
        %v1370 = vpack.c.bf16 %v1319, %v1318
        %v1371 = vpack.c.bf16 %v1321, %v1320
        %v1372 = vpack.c.bf16 %v1323, %v1322
        %v1373 = vpack.c.bf16 %v1325, %v1324
        %v1374 = vpack.c.bf16 %v1327, %v1326
        %v1375 = vpack.c.bf16 %v1329, %v1328
        %v1376 = vpack.c.bf16 %v1331, %v1330
        %v1377 = vpack.c.bf16 %v1333, %v1332
        %v1378 = vpack.c.bf16 %v1335, %v1334
        %v1379 = vpack.c.bf16 %v1337, %v1336
        %v1380 = vpack.c.bf16 %v1339, %v1338
        %v1381 = vpack.c.bf16 %v1341, %v1340
        %v1382 = vpack.c.bf16 %v1343, %v1342
        %v1383 = vpack.c.bf16 %v1345, %v1344
        %v1384 = vpack.c.bf16 %v1347, %v1346
        %v1385 = vpack.c.bf16 %v1349, %v1348
        %v1386 = vpack.c.bf16 %v1351, %v1350
        %v1387 = vpack.c.bf16 %v1353, %v1352
        %v1388 = vpack.c.bf16 %v1355, %v1354
        %v1389 = vpack.c.bf16 %v1357, %v1356
        %v1422 = vunpack.c.l.b16 %v1358
        %v1423 = vunpack.c.h.b16 %v1358
        %v1424 = vunpack.c.l.b16 %v1359
        %v1425 = vunpack.c.h.b16 %v1359
        %v1426 = vunpack.c.l.b16 %v1360
        %v1427 = vunpack.c.h.b16 %v1360
        %v1428 = vunpack.c.l.b16 %v1361
        %v1429 = vunpack.c.h.b16 %v1361
        %v1430 = vunpack.c.l.b16 %v1362
        %v1431 = vunpack.c.h.b16 %v1362
        %v1432 = vunpack.c.l.b16 %v1363
        %v1433 = vunpack.c.h.b16 %v1363
        %v1434 = vunpack.c.l.b16 %v1364
        %v1435 = vunpack.c.h.b16 %v1364
        %v1436 = vunpack.c.l.b16 %v1365
        %v1437 = vunpack.c.h.b16 %v1365
        %v1438 = vunpack.c.l.b16 %v1366
        %v1439 = vunpack.c.h.b16 %v1366
        %v1440 = vunpack.c.l.b16 %v1367
        %v1441 = vunpack.c.h.b16 %v1367
        %v1442 = vunpack.c.l.b16 %v1368
        %v1443 = vunpack.c.h.b16 %v1368
        %v1444 = vunpack.c.l.b16 %v1369
        %v1445 = vunpack.c.h.b16 %v1369
        %v1446 = vunpack.c.l.b16 %v1370
        %v1447 = vunpack.c.h.b16 %v1370
        %v1448 = vunpack.c.l.b16 %v1371
        %v1449 = vunpack.c.h.b16 %v1371
        %v1450 = vunpack.c.l.b16 %v1372
        %v1451 = vunpack.c.h.b16 %v1372
        %v1452 = vunpack.c.l.b16 %v1373
        %v1453 = vunpack.c.h.b16 %v1373
        %v1454 = vunpack.c.l.b16 %v1374
        %v1455 = vunpack.c.h.b16 %v1374
        %v1456 = vunpack.c.l.b16 %v1375
        %v1457 = vunpack.c.h.b16 %v1375
        %v1458 = vunpack.c.l.b16 %v1376
        %v1459 = vunpack.c.h.b16 %v1376
        %v1460 = vunpack.c.l.b16 %v1377
        %v1461 = vunpack.c.h.b16 %v1377
        %v1462 = vunpack.c.l.b16 %v1378
        %v1463 = vunpack.c.h.b16 %v1378
        %v1464 = vunpack.c.l.b16 %v1379
        %v1465 = vunpack.c.h.b16 %v1379
        %v1466 = vunpack.c.l.b16 %v1380
        %v1467 = vunpack.c.h.b16 %v1380
        %v1468 = vunpack.c.l.b16 %v1381
        %v1469 = vunpack.c.h.b16 %v1381
        %v1470 = vunpack.c.l.b16 %v1382
        %v1471 = vunpack.c.h.b16 %v1382
        %v1472 = vunpack.c.l.b16 %v1383
        %v1473 = vunpack.c.h.b16 %v1383
        %v1474 = vunpack.c.l.b16 %v1384
        %v1475 = vunpack.c.h.b16 %v1384
        %v1476 = vunpack.c.l.b16 %v1385
        %v1477 = vunpack.c.h.b16 %v1385
        %v1478 = vunpack.c.l.b16 %v1386
        %v1479 = vunpack.c.h.b16 %v1386
        %v1480 = vunpack.c.l.b16 %v1387
        %v1481 = vunpack.c.h.b16 %v1387
        %v1482 = vunpack.c.l.b16 %v1388
        %v1483 = vunpack.c.h.b16 %v1388
        %v1484 = vunpack.c.l.b16 %v1389
        %v1485 = vunpack.c.h.b16 %v1389
        %v1486 = vpack.c.b16 %v1422, %v1422
        %v1487 = vpack.c.b16 %v1423, %v1423
        %v1488 = vpack.c.b16 %v1424, %v1424
        %v1489 = vpack.c.b16 %v1425, %v1425
        %v1490 = vpack.c.b16 %v1426, %v1426
        %v1491 = vpack.c.b16 %v1427, %v1427
        %v1492 = vpack.c.b16 %v1428, %v1428
        %v1493 = vpack.c.b16 %v1429, %v1429
        %v1494 = vpack.c.b16 %v1430, %v1430
        %v1495 = vpack.c.b16 %v1431, %v1431
        %v1496 = vpack.c.b16 %v1432, %v1432
        %v1497 = vpack.c.b16 %v1433, %v1433
        %v1498 = vpack.c.b16 %v1434, %v1434
        %v1499 = vpack.c.b16 %v1435, %v1435
        %v1500 = vpack.c.b16 %v1436, %v1436
        %v1501 = vpack.c.b16 %v1437, %v1437
        %v1502 = vpack.c.b16 %v1438, %v1438
        %v1503 = vpack.c.b16 %v1439, %v1439
        %v1504 = vpack.c.b16 %v1440, %v1440
        %v1505 = vpack.c.b16 %v1441, %v1441
        %v1506 = vpack.c.b16 %v1442, %v1442
        %v1507 = vpack.c.b16 %v1443, %v1443
        %v1508 = vpack.c.b16 %v1444, %v1444
        %v1509 = vpack.c.b16 %v1445, %v1445
        %v1510 = vpack.c.b16 %v1446, %v1446
        %v1511 = vpack.c.b16 %v1447, %v1447
        %v1512 = vpack.c.b16 %v1448, %v1448
        %v1513 = vpack.c.b16 %v1449, %v1449
        %v1514 = vpack.c.b16 %v1450, %v1450
        %v1515 = vpack.c.b16 %v1451, %v1451
        %v1516 = vpack.c.b16 %v1452, %v1452
        %v1517 = vpack.c.b16 %v1453, %v1453
        %v1518 = vpack.c.b16 %v1454, %v1454
        %v1519 = vpack.c.b16 %v1455, %v1455
        %v1520 = vpack.c.b16 %v1456, %v1456
        %v1521 = vpack.c.b16 %v1457, %v1457
        %v1522 = vpack.c.b16 %v1458, %v1458
        %v1523 = vpack.c.b16 %v1459, %v1459
        %v1524 = vpack.c.b16 %v1460, %v1460
        %v1525 = vpack.c.b16 %v1461, %v1461
        %v1526 = vpack.c.b16 %v1462, %v1462
        %v1527 = vpack.c.b16 %v1463, %v1463
        %v1528 = vpack.c.b16 %v1464, %v1464
        %v1529 = vpack.c.b16 %v1465, %v1465
        %v1530 = vpack.c.b16 %v1466, %v1466
        %v1531 = vpack.c.b16 %v1467, %v1467
        %v1532 = vpack.c.b16 %v1468, %v1468
        %v1533 = vpack.c.b16 %v1469, %v1469
        %v1534 = vpack.c.b16 %v1470, %v1470
        %v1535 = vpack.c.b16 %v1471, %v1471
        %v1536 = vpack.c.b16 %v1472, %v1472
        %v1537 = vpack.c.b16 %v1473, %v1473
        %v1538 = vpack.c.b16 %v1474, %v1474
        %v1539 = vpack.c.b16 %v1475, %v1475
        %v1540 = vpack.c.b16 %v1476, %v1476
        %v1541 = vpack.c.b16 %v1477, %v1477
        %v1542 = vpack.c.b16 %v1478, %v1478
        %v1543 = vpack.c.b16 %v1479, %v1479
        %v1544 = vpack.c.b16 %v1480, %v1480
        %v1545 = vpack.c.b16 %v1481, %v1481
        %v1546 = vpack.c.b16 %v1482, %v1482
        %v1547 = vpack.c.b16 %v1483, %v1483
        %v1548 = vpack.c.b16 %v1484, %v1484
        %v1549 = vpack.c.b16 %v1485, %v1485
        %1614 = vst [vmem:[%s217] sm:$0xf] %v1486
        %1615 = vst [vmem:[%s217 + $0x4] sm:$0xf] %v1487
        %1616 = vst [vmem:[%s217 + $0x8] sm:$0xf] %v1488
        %1617 = vst [vmem:[%s217 + $0xc] sm:$0xf] %v1489
        %1618 = vst [vmem:[%s217 + $0x10] sm:$0xf] %v1490
        %1619 = vst [vmem:[%s217 + $0x14] sm:$0xf] %v1491
        %1620 = vst [vmem:[%s217 + $0x18] sm:$0xf] %v1492
        %1621 = vst [vmem:[%s217 + $0x1c] sm:$0xf] %v1493
        %1622 = vst [vmem:[%s217 + $0x20] sm:$0xf] %v1494
        %1623 = vst [vmem:[%s217 + $0x24] sm:$0xf] %v1495
        %1624 = vst [vmem:[%s217 + $0x28] sm:$0xf] %v1496
        %1625 = vst [vmem:[%s217 + $0x2c] sm:$0xf] %v1497
        %1626 = vst [vmem:[%s217 + $0x30] sm:$0xf] %v1498
        %1627 = vst [vmem:[%s217 + $0x34] sm:$0xf] %v1499
        %1628 = vst [vmem:[%s217 + $0x38] sm:$0xf] %v1500
        %1629 = vst [vmem:[%s217 + $0x3c] sm:$0xf] %v1501
        %1630 = vst [vmem:[%s217 + $0x40] sm:$0xf] %v1502
        %1631 = vst [vmem:[%s217 + $0x44] sm:$0xf] %v1503
        %1632 = vst [vmem:[%s217 + $0x48] sm:$0xf] %v1504
        %1633 = vst [vmem:[%s217 + $0x4c] sm:$0xf] %v1505
        %1634 = vst [vmem:[%s217 + $0x50] sm:$0xf] %v1506
        %1635 = vst [vmem:[%s217 + $0x54] sm:$0xf] %v1507
        %1636 = vst [vmem:[%s217 + $0x58] sm:$0xf] %v1508
        %1637 = vst [vmem:[%s217 + $0x5c] sm:$0xf] %v1509
        %1638 = vst [vmem:[%s217 + $0x60] sm:$0xf] %v1510
        %1639 = vst [vmem:[%s217 + $0x64] sm:$0xf] %v1511
        %1640 = vst [vmem:[%s217 + $0x68] sm:$0xf] %v1512
        %1641 = vst [vmem:[%s217 + $0x6c] sm:$0xf] %v1513
        %1642 = vst [vmem:[%s217 + $0x70] sm:$0xf] %v1514
        %1643 = vst [vmem:[%s217 + $0x74] sm:$0xf] %v1515
        %1644 = vst [vmem:[%s217 + $0x78] sm:$0xf] %v1516
        %1645 = vst [vmem:[%s217 + $0x7c] sm:$0xf] %v1517
        %1646 = vst [vmem:[%s217 + $0x80] sm:$0xf] %v1518
        %1647 = vst [vmem:[%s217 + $0x84] sm:$0xf] %v1519
        %1648 = vst [vmem:[%s217 + $0x88] sm:$0xf] %v1520
        %1649 = vst [vmem:[%s217 + $0x8c] sm:$0xf] %v1521
        %1650 = vst [vmem:[%s217 + $0x90] sm:$0xf] %v1522
        %1651 = vst [vmem:[%s217 + $0x94] sm:$0xf] %v1523
        %1652 = vst [vmem:[%s217 + $0x98] sm:$0xf] %v1524
        %1653 = vst [vmem:[%s217 + $0x9c] sm:$0xf] %v1525
        %1654 = vst [vmem:[%s217 + $0xa0] sm:$0xf] %v1526
        %1655 = vst [vmem:[%s217 + $0xa4] sm:$0xf] %v1527
        %1656 = vst [vmem:[%s217 + $0xa8] sm:$0xf] %v1528
        %1657 = vst [vmem:[%s217 + $0xac] sm:$0xf] %v1529
        %1658 = vst [vmem:[%s217 + $0xb0] sm:$0xf] %v1530
        %1659 = vst [vmem:[%s217 + $0xb4] sm:$0xf] %v1531
        %1660 = vst [vmem:[%s217 + $0xb8] sm:$0xf] %v1532
        %1661 = vst [vmem:[%s217 + $0xbc] sm:$0xf] %v1533
        %1662 = vst [vmem:[%s217 + $0xc0] sm:$0xf] %v1534
        %1663 = vst [vmem:[%s217 + $0xc4] sm:$0xf] %v1535
        %1664 = vst [vmem:[%s217 + $0xc8] sm:$0xf] %v1536
        %1665 = vst [vmem:[%s217 + $0xcc] sm:$0xf] %v1537
        %1666 = vst [vmem:[%s217 + $0xd0] sm:$0xf] %v1538
        %1667 = vst [vmem:[%s217 + $0xd4] sm:$0xf] %v1539
        %1668 = vst [vmem:[%s217 + $0xd8] sm:$0xf] %v1540
        %1669 = vst [vmem:[%s217 + $0xdc] sm:$0xf] %v1541
        %1670 = vst [vmem:[%s217 + $0xe0] sm:$0xf] %v1542
        %1671 = vst [vmem:[%s217 + $0xe4] sm:$0xf] %v1543
        %1672 = vst [vmem:[%s217 + $0xe8] sm:$0xf] %v1544
        %1673 = vst [vmem:[%s217 + $0xec] sm:$0xf] %v1545
        %1674 = vst [vmem:[%s217 + $0xf0] sm:$0xf] %v1546
        %1675 = vst [vmem:[%s217 + $0xf4] sm:$0xf] %v1547
        %1676 = vst [vmem:[%s217 + $0xf8] sm:$0xf] %v1548
        %1677 = vst [vmem:[%s217 + $0xfc] sm:$0xf] %v1549
      $region40: #{bottleneck_forward.3} parent=31 // pred_fallthru
        _
      %s1678 = smul.u32 64, %s18
      %p1679 = scmp.lt.s32.totalorder %s1678, 127
      %s1680 = scalar_select %p1679, %s1678, 127
      %s1681 = smul.addr %s1680, 4
      %s1682 = scalar_lea.vmem %s3, %s1681
      // Predicated region
      $region41: #{bottleneck_forward.3} parent=31 // pred_check
        %p1683 = pneg %p119
      $region42: #{bottleneck_forward.3} parent=31 // pred_check_branch
        %1685 = sbr.rel (%p1683) target = $region44
      $region43: #{bottleneck_forward.3} parent=31 // pred_region
        %s1686 = smul.u32 64, %s18
      $region44: #{bottleneck_forward.3} parent=31 // pred_fallthru
        _
    $region32: #{bottleneck_forward.3} parent=5 // pred_fallthru
      _
    %p1687 = scmp.le.s32.totalorder 2, %s9
    // Predicated region
    $region45: #{bottleneck_forward.3} parent=5 // pred_check
      %p1688 = pneg %p1687
    $region46: #{bottleneck_forward.3} parent=5 // pred_check_branch
      %1690 = sbr.rel (%p1688) target = $region48
    $region47: #{bottleneck_forward.3} parent=5 // pred_region
      %s1691 = ssub.s32 %s9, 2
      // Predicated region
      $region49: #{bottleneck_forward.3} parent=47 // pred_check
        %p1692 = pneg %p125
      $region50: #{bottleneck_forward.3} parent=47 // pred_check_branch
        %1694 = sbr.rel (%p1692) target = $region52
      $region51: #{bottleneck_forward.3} parent=47 // pred_region
        %s1695 = smul.u32 64, %s20
        %p1696 = scmp.lt.s32.totalorder %s1695, 127
        %s1697 = scalar_select %p1696, %s1695, 127
        %s1698 = smul.addr %s1697, 4
        %s1699 = scalar_lea.vmem %s3, %s1698
      $region52: #{bottleneck_forward.3} parent=47 // pred_fallthru
        _
    $region48: #{bottleneck_forward.3} parent=5 // pred_fallthru
      _
  $region6: #{bottleneck_forward.3} parent=0 // loop_footer
    %s13 = sadd.s32 1, %s9
  $region7: #{bottleneck_forward.3} parent=0 // loop_footer_branch
    %8 = sbr.rel target = $region3
  $region8: #{bottleneck_forward.3} parent=0 // loop_exit
    _

// kernel: bottleneck_forward.5
$region0: #{bottleneck_forward.5}
  #allocation0 [shape = 'u32[]', space=smem, size = 0x4, offset = 0x4, fixed_abs, tag = 'smem constant byte address 0x4 - core index']
  #allocation1 [shape = 'u32[144,128]{1,0:T(1,128)}', space=vmem, size = 0x12000, scoped, tag = 'internal scratch']
  #allocation2 [shape = 'f32[512,128]{1,0:T(8,128)}', space=vmem, size = 0x40000, scoped, tag = 'scratch operand']
  %s0 = inlined_call_operand.vmem [shape: bf16[1024,128], index: 0, kind: input, shape index: {}]
  %s1 = inlined_call_operand.vmem [shape: bf16[128,128], index: 1, kind: input, shape index: {}]
  %s2 = inlined_call_operand.vmem [shape: f32[2,128], index: 2, kind: input, shape index: {}]
  %s3 = inlined_call_operand.vmem [shape: bf16[1024,128], index: 3, kind: input, shape index: {}]
  %s4 = inlined_call_operand.vmem [shape: f32[1024,128], index: 4, kind: output, shape index: {}]
  %s5 = sld [smem:[#allocation0]]
  $region57: #{bottleneck_forward.5} parent=0
    _
  %s7 = ssub.s32 1, %s5
  %s8 = scalar_select 0, %s7, %s5
  loop: start=0, step=1, limit=4
  $region2: #{bottleneck_forward.5} parent=0 // loop_pre_header
    _
  $region3: #{bottleneck_forward.5} parent=0 // loop_header
    %s10 = sphi 0, %s14
    %p11 = scmp.ge.s32.totalorder %s10, 4
    %s17 = sphi 0, %s29
    %s18 = sphi 0, %s25
    %s19 = sphi 0, %s17
    %s20 = sphi 0, %s18
    %s21 = sphi 0, %s19
    %s22 = sphi 0, %s20
    %s34 = sphi 0, %s36
    %s37 = sphi 0, %s34
    %s38 = sphi 0, %s37
    %s54 = sphi 0, %s38
    %s60 = sphi 0, %s62
    %s63 = sphi 0, %s60
    %s64 = sphi 0, %s63
    %s80 = sphi 0, %s64
    %s84 = sphi 0, %s84
    %s86 = sphi 0, %s84
    %s87 = sphi 0, %s86
    %s101 = sphi 0, %s87
    %s107 = sphi 0, %s109
    %s110 = sphi 0, %s107
    %s111 = sphi 0, %s110
    %s127 = sphi 0, %s111
    %s133 = sphi 0, %s135
    %s136 = sphi 0, %s133
    %s137 = sphi 0, %s136
    %s153 = sphi 0, %s137
  $region4: #{bottleneck_forward.5} parent=0 // loop_header_branch
    %13 = sbr.rel (%p11) target = $region8
  $region5: #{bottleneck_forward.5} parent=0 // loop_body
    %s15 = ssub.s32 %s10, 1
    %s16 = ssub.s32 %s10, 2
    %s23 = sadd.s32 1, %s18
    %p24 = scmp.ge.s32.totalorder %s23, 1
    %s25 = scalar_select %p24, 0, %s23
    %s26 = sadd.s32 1, %s17
    %s27 = scalar_select %p24, %s26, %s17
    %p28 = scmp.ge.s32.totalorder %s27, 2
    %s29 = scalar_select %p28, 0, %s27
    %s30 = ssub.s32 %s17, %s29
    %s31 = ssub.s32 %s18, %s25
    %s32 = sor.u32 %s30, %s31
    %p33 = scmp.eq.s32.totalorder %s32, 0
    %s35 = sadd.s32 %s34, 1
    %s36 = scalar_select %p33, %s34, %s35
    %p39 = pneg %p33
    %p40 = scmp.eq.s32.totalorder %s10, 1
    %p41 = por %p39, %p40
    %p42 = scmp.ne.s32.totalorder %s34, %s37
    %p43 = scmp.eq.s32.totalorder %s10, 0
    %p44 = por %p42, %p43
    %p45 = scmp.ne.s32.totalorder %s34, %s37
    %p46 = scmp.eq.s32.totalorder %s15, 1
    %p47 = por %p45, %p46
    %p48 = scmp.ne.s32.totalorder %s37, %s38
    %p49 = scmp.eq.s32.totalorder %s15, 0
    %p50 = por %p48, %p49
    %p51 = scmp.ne.s32.totalorder %s37, %s38
    %p52 = scmp.eq.s32.totalorder %s16, 1
    %p53 = por %p51, %p52
    %p55 = scmp.ne.s32.totalorder %s38, %s54
    %p56 = scmp.eq.s32.totalorder %s16, 0
    %p57 = por %p55, %p56
    %s58 = ssub.s32 %s18, %s25
    %p59 = scmp.eq.s32.totalorder %s58, 0
    %s61 = sadd.s32 %s60, 1
    %s62 = scalar_select %p59, %s60, %s61
    %p65 = pneg %p59
    %p66 = scmp.eq.s32.totalorder %s10, 1
    %p67 = por %p65, %p66
    %p68 = scmp.ne.s32.totalorder %s60, %s63
    %p69 = scmp.eq.s32.totalorder %s10, 0
    %p70 = por %p68, %p69
    %p71 = scmp.ne.s32.totalorder %s60, %s63
    %p72 = scmp.eq.s32.totalorder %s15, 1
    %p73 = por %p71, %p72
    %p74 = scmp.ne.s32.totalorder %s63, %s64
    %p75 = scmp.eq.s32.totalorder %s15, 0
    %p76 = por %p74, %p75
    %p77 = scmp.ne.s32.totalorder %s63, %s64
    %p78 = scmp.eq.s32.totalorder %s16, 1
    %p79 = por %p77, %p78
    %p81 = scmp.ne.s32.totalorder %s64, %s80
    %p82 = scmp.eq.s32.totalorder %s16, 0
    %p83 = por %p81, %p82
    %s85 = sadd.s32 %s84, 1
    %p88 = scmp.eq.s32.totalorder %s10, 1
    %p89 = scmp.ne.s32.totalorder %s84, %s86
    %p90 = scmp.eq.s32.totalorder %s10, 0
    %p91 = por %p89, %p90
    %p92 = scmp.ne.s32.totalorder %s84, %s86
    %p93 = scmp.eq.s32.totalorder %s15, 1
    %p94 = por %p92, %p93
    %p95 = scmp.ne.s32.totalorder %s86, %s87
    %p96 = scmp.eq.s32.totalorder %s15, 0
    %p97 = por %p95, %p96
    %p98 = scmp.ne.s32.totalorder %s86, %s87
    %p99 = scmp.eq.s32.totalorder %s16, 1
    %p100 = por %p98, %p99
    %p102 = scmp.ne.s32.totalorder %s87, %s101
    %p103 = scmp.eq.s32.totalorder %s16, 0
    %p104 = por %p102, %p103
    %s105 = ssub.s32 %s17, %s29
    %p106 = scmp.eq.s32.totalorder %s105, 0
    %s108 = sadd.s32 %s107, 1
    %s109 = scalar_select %p106, %s107, %s108
    %p112 = pneg %p106
    %p113 = scmp.eq.s32.totalorder %s10, 1
    %p114 = por %p112, %p113
    %p115 = scmp.ne.s32.totalorder %s107, %s110
    %p116 = scmp.eq.s32.totalorder %s10, 0
    %p117 = por %p115, %p116
    %p118 = scmp.ne.s32.totalorder %s107, %s110
    %p119 = scmp.eq.s32.totalorder %s15, 1
    %p120 = por %p118, %p119
    %p121 = scmp.ne.s32.totalorder %s110, %s111
    %p122 = scmp.eq.s32.totalorder %s15, 0
    %p123 = por %p121, %p122
    %p124 = scmp.ne.s32.totalorder %s110, %s111
    %p125 = scmp.eq.s32.totalorder %s16, 1
    %p126 = por %p124, %p125
    %p128 = scmp.ne.s32.totalorder %s111, %s127
    %p129 = scmp.eq.s32.totalorder %s16, 0
    %p130 = por %p128, %p129
    %s131 = ssub.s32 %s17, %s29
    %p132 = scmp.eq.s32.totalorder %s131, 0
    %s134 = sadd.s32 %s133, 1
    %s135 = scalar_select %p132, %s133, %s134
    %p138 = pneg %p132
    %p139 = scmp.eq.s32.totalorder %s10, 1
    %p140 = por %p138, %p139
    %p141 = scmp.ne.s32.totalorder %s133, %s136
    %p142 = scmp.eq.s32.totalorder %s10, 0
    %p143 = por %p141, %p142
    %p144 = scmp.ne.s32.totalorder %s133, %s136
    %p145 = scmp.eq.s32.totalorder %s15, 1
    %p146 = por %p144, %p145
    %p147 = scmp.ne.s32.totalorder %s136, %s137
    %p148 = scmp.eq.s32.totalorder %s15, 0
    %p149 = por %p147, %p148
    %p150 = scmp.ne.s32.totalorder %s136, %s137
    %p151 = scmp.eq.s32.totalorder %s16, 1
    %p152 = por %p150, %p151
    %p154 = scmp.ne.s32.totalorder %s137, %s153
    %p155 = scmp.eq.s32.totalorder %s16, 0
    %p156 = por %p154, %p155
    %p157 = scmp.le.s32.totalorder 1, %s10
    %p158 = scmp.lt.s32.totalorder %s10, 3
    %p159 = pnand %p157, %p158
    %p160 = pneg %p159
    // Predicated region
    $region9: #{bottleneck_forward.5} parent=5 // pred_check
      _
    $region10: #{bottleneck_forward.5} parent=5 // pred_check_branch
      %162 = sbr.rel (%p159) target = $region12
    $region11: #{bottleneck_forward.5} parent=5 // pred_region
      %s163 = ssub.s32 %s10, 1
      // Predicated region
      $region13: #{bottleneck_forward.5} parent=11 // pred_check
        %p164 = pneg %p76
      $region14: #{bottleneck_forward.5} parent=11 // pred_check_branch
        %166 = sbr.rel (%p164) target = $region16
      $region15: #{bottleneck_forward.5} parent=11 // pred_region
        %s167 = smul.u32 16, %s20
        %p168 = scmp.lt.s32.totalorder %s167, 15
        %s169 = scalar_select %p168, %s167, 15
        %s170 = smul.addr %s169, 4
        %s171 = scalar_lea.vmem %s1, %s170
        %s172 = smul.u32 16, %s20
      $region16: #{bottleneck_forward.5} parent=11 // pred_fallthru
        _
      // Predicated region
      $region17: #{bottleneck_forward.5} parent=11 // pred_check
        %p173 = pneg %p97
      $region18: #{bottleneck_forward.5} parent=11 // pred_check_branch
        %175 = sbr.rel (%p173) target = $region20
      $region19: #{bottleneck_forward.5} parent=11 // pred_region
        _
      $region20: #{bottleneck_forward.5} parent=11 // pred_fallthru
        _
    $region12: #{bottleneck_forward.5} parent=5 // pred_fallthru
      _
    %p176 = scmp.lt.s32.totalorder %s10, 2
    // Predicated region
    $region21: #{bottleneck_forward.5} parent=5 // pred_check
      %p177 = pneg %p176
    $region22: #{bottleneck_forward.5} parent=5 // pred_check_branch
      %179 = sbr.rel (%p177) target = $region24
    $region23: #{bottleneck_forward.5} parent=5 // pred_region
      // Predicated region
      $region25: #{bottleneck_forward.5} parent=23 // pred_check
        %p180 = pneg %p44
      $region26: #{bottleneck_forward.5} parent=23 // pred_check_branch
        %182 = sbr.rel (%p180) target = $region28
      $region27: #{bottleneck_forward.5} parent=23 // pred_region
        %s183 = smul.u32 64, %s17
        %p184 = scmp.lt.s32.totalorder %s183, 127
        %s185 = scalar_select %p184, %s183, 127
        %p186 = scmp.lt.s32.totalorder %s18, 0
        %s187 = scalar_select %p186, %s18, 0
        %s188 = sadd.s32 %s187, %s185
        %s189 = smul.addr %s188, 4
        %s190 = scalar_lea.vmem %s0, %s189
        %s191 = smul.u32 64, %s17
      $region28: #{bottleneck_forward.5} parent=23 // pred_fallthru
        _
      // Predicated region
      $region29: #{bottleneck_forward.5} parent=23 // pred_check
        %p192 = pneg %p117
      $region30: #{bottleneck_forward.5} parent=23 // pred_check_branch
        %194 = sbr.rel (%p192) target = $region32
      $region31: #{bottleneck_forward.5} parent=23 // pred_region
        %s195 = smul.u32 64, %s17
        %p196 = scmp.lt.s32.totalorder %s195, 127
        %s197 = scalar_select %p196, %s195, 127
        %s198 = smul.addr %s197, 4
        %s199 = scalar_lea.vmem %s3, %s198
        %s200 = smul.u32 64, %s17
      $region32: #{bottleneck_forward.5} parent=23 // pred_fallthru
        _
    $region24: #{bottleneck_forward.5} parent=5 // pred_fallthru
      _
    %p201 = scmp.le.s32.totalorder 1, %s10
    %p202 = scmp.lt.s32.totalorder %s10, 3
    %p203 = pnand %p201, %p202
    %p204 = pneg %p203
    // Predicated region
    $region33: #{bottleneck_forward.5} parent=5 // pred_check
      _
    $region34: #{bottleneck_forward.5} parent=5 // pred_check_branch
      %206 = sbr.rel (%p203) target = $region36
    $region35: #{bottleneck_forward.5} parent=5 // pred_region
      %s207 = ssub.s32 %s10, 1
      %s208 = smul.u32 64, %s19
      %p209 = scmp.lt.s32.totalorder %s208, 127
      %s210 = scalar_select %p209, %s208, 127
      %p211 = scmp.lt.s32.totalorder %s20, 0
      %s212 = scalar_select %p211, %s20, 0
      %s213 = sadd.s32 %s212, %s210
      %s214 = smul.addr %s213, 4
      %s215 = scalar_lea.vmem %s0, %s214
      %p216 = pneg %p50
      %p217 = pneg %p47
      %s218 = smul.u32 16, %s20
      %p219 = scmp.lt.s32.totalorder %s218, 15
      %s220 = scalar_select %p219, %s218, 15
      %s221 = smul.addr %s220, 4
      %s222 = scalar_lea.vmem %s1, %s221
      %p223 = pneg %p76
      %p224 = pneg %p73
      %p225 = pneg %p97
      %p226 = pneg %p94
      %s227 = smul.u32 64, %s19
      %p228 = scmp.lt.s32.totalorder %s227, 127
      %s229 = scalar_select %p228, %s227, 127
      %s230 = smul.addr %s229, 4
      %s231 = scalar_lea.vmem %s3, %s230
      %p232 = pneg %p123
      %p233 = pneg %p120
      %p234 = pneg %p149
      %p235 = pneg %p146
      %s236 = smul.u32 64, %s19
      %p237 = scmp.lt.s32.totalorder %s236, 127
      %s238 = scalar_select %p237, %s236, 127
      %s239 = smul.addr %s238, 8
      %s240 = scalar_lea.vmem %s4, %s239
      %s241 = smul.u32 64, %s19
      %p242 = scmp.lt.s32.totalorder %s241, 127
      %s243 = scalar_select %p242, %s241, 127
      %p244 = scmp.lt.s32.totalorder %s20, 0
      %s245 = scalar_select %p244, %s20, 0
      %s246 = sadd.s32 %s245, %s243
      %s247 = smul.addr %s246, 4
      %s248 = scalar_lea.vmem %s0, %s247
      %s249 = smul.u32 64, %s19
      %s250 = smul.u32 16, %s20
      %p251 = scmp.lt.s32.totalorder %s250, 15
      %s252 = scalar_select %p251, %s250, 15
      %s253 = smul.addr %s252, 4
      %s254 = scalar_lea.vmem %s1, %s253
      %s255 = smul.u32 16, %s20
      %s256 = smul.u32 64, %s19
      %p257 = scmp.lt.s32.totalorder %s256, 127
      %s258 = scalar_select %p257, %s256, 127
      %s259 = smul.addr %s258, 4
      %s260 = scalar_lea.vmem %s3, %s259
      %s261 = smul.u32 64, %s19
      %s262 = smul.u32 64, %s19
      %p263 = scmp.lt.s32.totalorder %s262, 127
      %s264 = scalar_select %p263, %s262, 127
      %s265 = smul.addr %s264, 8
      %s266 = scalar_lea.vmem %s4, %s265
      %s267 = smul.u32 64, %s19
      %p269 = scmp.eq.s32.totalorder %s20, 0
      // Predicated region
      $region37: #{bottleneck_forward.5} parent=35 // pred_check
        %p270 = pneg %p269
      $region38: #{bottleneck_forward.5} parent=35 // pred_check_branch
        %272 = sbr.rel (%p270) target = $region40
      $region39: #{bottleneck_forward.5} parent=35 // pred_region
        %273 = vst [vmem:[#allocation2] sm:$0xff] 0.0
        %274 = vst [vmem:[#allocation2 + $0x8] sm:$0xff] 0.0
        %275 = vst [vmem:[#allocation2 + $0x10] sm:$0xff] 0.0
        %276 = vst [vmem:[#allocation2 + $0x18] sm:$0xff] 0.0
        %277 = vst [vmem:[#allocation2 + $0x20] sm:$0xff] 0.0
        %278 = vst [vmem:[#allocation2 + $0x28] sm:$0xff] 0.0
        %279 = vst [vmem:[#allocation2 + $0x30] sm:$0xff] 0.0
        %280 = vst [vmem:[#allocation2 + $0x38] sm:$0xff] 0.0
        %281 = vst [vmem:[#allocation2 + $0x40] sm:$0xff] 0.0
        %282 = vst [vmem:[#allocation2 + $0x48] sm:$0xff] 0.0
        %283 = vst [vmem:[#allocation2 + $0x50] sm:$0xff] 0.0
        %284 = vst [vmem:[#allocation2 + $0x58] sm:$0xff] 0.0
        %285 = vst [vmem:[#allocation2 + $0x60] sm:$0xff] 0.0
        %286 = vst [vmem:[#allocation2 + $0x68] sm:$0xff] 0.0
        %287 = vst [vmem:[#allocation2 + $0x70] sm:$0xff] 0.0
        %288 = vst [vmem:[#allocation2 + $0x78] sm:$0xff] 0.0
        %289 = vst [vmem:[#allocation2 + $0x80] sm:$0xff] 0.0
        %290 = vst [vmem:[#allocation2 + $0x88] sm:$0xff] 0.0
        %291 = vst [vmem:[#allocation2 + $0x90] sm:$0xff] 0.0
        %292 = vst [vmem:[#allocation2 + $0x98] sm:$0xff] 0.0
        %293 = vst [vmem:[#allocation2 + $0xa0] sm:$0xff] 0.0
        %294 = vst [vmem:[#allocation2 + $0xa8] sm:$0xff] 0.0
        %295 = vst [vmem:[#allocation2 + $0xb0] sm:$0xff] 0.0
        %296 = vst [vmem:[#allocation2 + $0xb8] sm:$0xff] 0.0
        %297 = vst [vmem:[#allocation2 + $0xc0] sm:$0xff] 0.0
        %298 = vst [vmem:[#allocation2 + $0xc8] sm:$0xff] 0.0
        %299 = vst [vmem:[#allocation2 + $0xd0] sm:$0xff] 0.0
        %300 = vst [vmem:[#allocation2 + $0xd8] sm:$0xff] 0.0
        %301 = vst [vmem:[#allocation2 + $0xe0] sm:$0xff] 0.0
        %302 = vst [vmem:[#allocation2 + $0xe8] sm:$0xff] 0.0
        %303 = vst [vmem:[#allocation2 + $0xf0] sm:$0xff] 0.0
        %304 = vst [vmem:[#allocation2 + $0xf8] sm:$0xff] 0.0
        %305 = vst [vmem:[#allocation2 + $0x100] sm:$0xff] 0.0
        %306 = vst [vmem:[#allocation2 + $0x108] sm:$0xff] 0.0
        %307 = vst [vmem:[#allocation2 + $0x110] sm:$0xff] 0.0
        %308 = vst [vmem:[#allocation2 + $0x118] sm:$0xff] 0.0
        %309 = vst [vmem:[#allocation2 + $0x120] sm:$0xff] 0.0
        %310 = vst [vmem:[#allocation2 + $0x128] sm:$0xff] 0.0
        %311 = vst [vmem:[#allocation2 + $0x130] sm:$0xff] 0.0
        %312 = vst [vmem:[#allocation2 + $0x138] sm:$0xff] 0.0
        %313 = vst [vmem:[#allocation2 + $0x140] sm:$0xff] 0.0
        %314 = vst [vmem:[#allocation2 + $0x148] sm:$0xff] 0.0
        %315 = vst [vmem:[#allocation2 + $0x150] sm:$0xff] 0.0
        %316 = vst [vmem:[#allocation2 + $0x158] sm:$0xff] 0.0
        %317 = vst [vmem:[#allocation2 + $0x160] sm:$0xff] 0.0
        %318 = vst [vmem:[#allocation2 + $0x168] sm:$0xff] 0.0
        %319 = vst [vmem:[#allocation2 + $0x170] sm:$0xff] 0.0
        %320 = vst [vmem:[#allocation2 + $0x178] sm:$0xff] 0.0
        %321 = vst [vmem:[#allocation2 + $0x180] sm:$0xff] 0.0
        %322 = vst [vmem:[#allocation2 + $0x188] sm:$0xff] 0.0
        %323 = vst [vmem:[#allocation2 + $0x190] sm:$0xff] 0.0
        %324 = vst [vmem:[#allocation2 + $0x198] sm:$0xff] 0.0
        %325 = vst [vmem:[#allocation2 + $0x1a0] sm:$0xff] 0.0
        %326 = vst [vmem:[#allocation2 + $0x1a8] sm:$0xff] 0.0
        %327 = vst [vmem:[#allocation2 + $0x1b0] sm:$0xff] 0.0
        %328 = vst [vmem:[#allocation2 + $0x1b8] sm:$0xff] 0.0
        %329 = vst [vmem:[#allocation2 + $0x1c0] sm:$0xff] 0.0
        %330 = vst [vmem:[#allocation2 + $0x1c8] sm:$0xff] 0.0
        %331 = vst [vmem:[#allocation2 + $0x1d0] sm:$0xff] 0.0
        %332 = vst [vmem:[#allocation2 + $0x1d8] sm:$0xff] 0.0
        %333 = vst [vmem:[#allocation2 + $0x1e0] sm:$0xff] 0.0
        %334 = vst [vmem:[#allocation2 + $0x1e8] sm:$0xff] 0.0
        %335 = vst [vmem:[#allocation2 + $0x1f0] sm:$0xff] 0.0
        %336 = vst [vmem:[#allocation2 + $0x1f8] sm:$0xff] 0.0
      $region40: #{bottleneck_forward.5} parent=35 // pred_fallthru
        _
      %v337 = vld [vmem:[#allocation2] sm:$0xff]
      %v338 = vld [vmem:[#allocation2 + $0x8] sm:$0xff]
      %v339 = vld [vmem:[#allocation2 + $0x10] sm:$0xff]
      %v340 = vld [vmem:[#allocation2 + $0x18] sm:$0xff]
      %v341 = vld [vmem:[#allocation2 + $0x20] sm:$0xff]
      %v342 = vld [vmem:[#allocation2 + $0x28] sm:$0xff]
      %v343 = vld [vmem:[#allocation2 + $0x30] sm:$0xff]
      %v344 = vld [vmem:[#allocation2 + $0x38] sm:$0xff]
      %v345 = vld [vmem:[#allocation2 + $0x40] sm:$0xff]
      %v346 = vld [vmem:[#allocation2 + $0x48] sm:$0xff]
      %v347 = vld [vmem:[#allocation2 + $0x50] sm:$0xff]
      %v348 = vld [vmem:[#allocation2 + $0x58] sm:$0xff]
      %v349 = vld [vmem:[#allocation2 + $0x60] sm:$0xff]
      %v350 = vld [vmem:[#allocation2 + $0x68] sm:$0xff]
      %v351 = vld [vmem:[#allocation2 + $0x70] sm:$0xff]
      %v352 = vld [vmem:[#allocation2 + $0x78] sm:$0xff]
      %v353 = vld [vmem:[#allocation2 + $0x80] sm:$0xff]
      %v354 = vld [vmem:[#allocation2 + $0x88] sm:$0xff]
      %v355 = vld [vmem:[#allocation2 + $0x90] sm:$0xff]
      %v356 = vld [vmem:[#allocation2 + $0x98] sm:$0xff]
      %v357 = vld [vmem:[#allocation2 + $0xa0] sm:$0xff]
      %v358 = vld [vmem:[#allocation2 + $0xa8] sm:$0xff]
      %v359 = vld [vmem:[#allocation2 + $0xb0] sm:$0xff]
      %v360 = vld [vmem:[#allocation2 + $0xb8] sm:$0xff]
      %v361 = vld [vmem:[#allocation2 + $0xc0] sm:$0xff]
      %v362 = vld [vmem:[#allocation2 + $0xc8] sm:$0xff]
      %v363 = vld [vmem:[#allocation2 + $0xd0] sm:$0xff]
      %v364 = vld [vmem:[#allocation2 + $0xd8] sm:$0xff]
      %v365 = vld [vmem:[#allocation2 + $0xe0] sm:$0xff]
      %v366 = vld [vmem:[#allocation2 + $0xe8] sm:$0xff]
      %v367 = vld [vmem:[#allocation2 + $0xf0] sm:$0xff]
      %v368 = vld [vmem:[#allocation2 + $0xf8] sm:$0xff]
      %v369 = vld [vmem:[#allocation2 + $0x100] sm:$0xff]
      %v370 = vld [vmem:[#allocation2 + $0x108] sm:$0xff]
      %v371 = vld [vmem:[#allocation2 + $0x110] sm:$0xff]
      %v372 = vld [vmem:[#allocation2 + $0x118] sm:$0xff]
      %v373 = vld [vmem:[#allocation2 + $0x120] sm:$0xff]
      %v374 = vld [vmem:[#allocation2 + $0x128] sm:$0xff]
      %v375 = vld [vmem:[#allocation2 + $0x130] sm:$0xff]
      %v376 = vld [vmem:[#allocation2 + $0x138] sm:$0xff]
      %v377 = vld [vmem:[#allocation2 + $0x140] sm:$0xff]
      %v378 = vld [vmem:[#allocation2 + $0x148] sm:$0xff]
      %v379 = vld [vmem:[#allocation2 + $0x150] sm:$0xff]
      %v380 = vld [vmem:[#allocation2 + $0x158] sm:$0xff]
      %v381 = vld [vmem:[#allocation2 + $0x160] sm:$0xff]
      %v382 = vld [vmem:[#allocation2 + $0x168] sm:$0xff]
      %v383 = vld [vmem:[#allocation2 + $0x170] sm:$0xff]
      %v384 = vld [vmem:[#allocation2 + $0x178] sm:$0xff]
      %v385 = vld [vmem:[#allocation2 + $0x180] sm:$0xff]
      %v386 = vld [vmem:[#allocation2 + $0x188] sm:$0xff]
      %v387 = vld [vmem:[#allocation2 + $0x190] sm:$0xff]
      %v388 = vld [vmem:[#allocation2 + $0x198] sm:$0xff]
      %v389 = vld [vmem:[#allocation2 + $0x1a0] sm:$0xff]
      %v390 = vld [vmem:[#allocation2 + $0x1a8] sm:$0xff]
      %v391 = vld [vmem:[#allocation2 + $0x1b0] sm:$0xff]
      %v392 = vld [vmem:[#allocation2 + $0x1b8] sm:$0xff]
      %v393 = vld [vmem:[#allocation2 + $0x1c0] sm:$0xff]
      %v394 = vld [vmem:[#allocation2 + $0x1c8] sm:$0xff]
      %v395 = vld [vmem:[#allocation2 + $0x1d0] sm:$0xff]
      %v396 = vld [vmem:[#allocation2 + $0x1d8] sm:$0xff]
      %v397 = vld [vmem:[#allocation2 + $0x1e0] sm:$0xff]
      %v398 = vld [vmem:[#allocation2 + $0x1e8] sm:$0xff]
      %v399 = vld [vmem:[#allocation2 + $0x1f0] sm:$0xff]
      %v400 = vld [vmem:[#allocation2 + $0x1f8] sm:$0xff]
      %v401 = vld [vmem:[%s248] sm:$0xf]
      %v402 = vld [vmem:[%s248 + $0x4] sm:$0xf]
      %v403 = vld [vmem:[%s248 + $0x8] sm:$0xf]
      %v404 = vld [vmem:[%s248 + $0xc] sm:$0xf]
      %v405 = vld [vmem:[%s248 + $0x10] sm:$0xf]
      %v406 = vld [vmem:[%s248 + $0x14] sm:$0xf]
      %v407 = vld [vmem:[%s248 + $0x18] sm:$0xf]
      %v408 = vld [vmem:[%s248 + $0x1c] sm:$0xf]
      %v409 = vld [vmem:[%s248 + $0x20] sm:$0xf]
      %v410 = vld [vmem:[%s248 + $0x24] sm:$0xf]
      %v411 = vld [vmem:[%s248 + $0x28] sm:$0xf]
      %v412 = vld [vmem:[%s248 + $0x2c] sm:$0xf]
      %v413 = vld [vmem:[%s248 + $0x30] sm:$0xf]
      %v414 = vld [vmem:[%s248 + $0x34] sm:$0xf]
      %v415 = vld [vmem:[%s248 + $0x38] sm:$0xf]
      %v416 = vld [vmem:[%s248 + $0x3c] sm:$0xf]
      %v417 = vld [vmem:[%s248 + $0x40] sm:$0xf]
      %v418 = vld [vmem:[%s248 + $0x44] sm:$0xf]
      %v419 = vld [vmem:[%s248 + $0x48] sm:$0xf]
      %v420 = vld [vmem:[%s248 + $0x4c] sm:$0xf]
      %v421 = vld [vmem:[%s248 + $0x50] sm:$0xf]
      %v422 = vld [vmem:[%s248 + $0x54] sm:$0xf]
      %v423 = vld [vmem:[%s248 + $0x58] sm:$0xf]
      %v424 = vld [vmem:[%s248 + $0x5c] sm:$0xf]
      %v425 = vld [vmem:[%s248 + $0x60] sm:$0xf]
      %v426 = vld [vmem:[%s248 + $0x64] sm:$0xf]
      %v427 = vld [vmem:[%s248 + $0x68] sm:$0xf]
      %v428 = vld [vmem:[%s248 + $0x6c] sm:$0xf]
      %v429 = vld [vmem:[%s248 + $0x70] sm:$0xf]
      %v430 = vld [vmem:[%s248 + $0x74] sm:$0xf]
      %v431 = vld [vmem:[%s248 + $0x78] sm:$0xf]
      %v432 = vld [vmem:[%s248 + $0x7c] sm:$0xf]
      %v433 = vld [vmem:[%s248 + $0x80] sm:$0xf]
      %v434 = vld [vmem:[%s248 + $0x84] sm:$0xf]
      %v435 = vld [vmem:[%s248 + $0x88] sm:$0xf]
      %v436 = vld [vmem:[%s248 + $0x8c] sm:$0xf]
      %v437 = vld [vmem:[%s248 + $0x90] sm:$0xf]
      %v438 = vld [vmem:[%s248 + $0x94] sm:$0xf]
      %v439 = vld [vmem:[%s248 + $0x98] sm:$0xf]
      %v440 = vld [vmem:[%s248 + $0x9c] sm:$0xf]
      %v441 = vld [vmem:[%s248 + $0xa0] sm:$0xf]
      %v442 = vld [vmem:[%s248 + $0xa4] sm:$0xf]
      %v443 = vld [vmem:[%s248 + $0xa8] sm:$0xf]
      %v444 = vld [vmem:[%s248 + $0xac] sm:$0xf]
      %v445 = vld [vmem:[%s248 + $0xb0] sm:$0xf]
      %v446 = vld [vmem:[%s248 + $0xb4] sm:$0xf]
      %v447 = vld [vmem:[%s248 + $0xb8] sm:$0xf]
      %v448 = vld [vmem:[%s248 + $0xbc] sm:$0xf]
      %v449 = vld [vmem:[%s248 + $0xc0] sm:$0xf]
      %v450 = vld [vmem:[%s248 + $0xc4] sm:$0xf]
      %v451 = vld [vmem:[%s248 + $0xc8] sm:$0xf]
      %v452 = vld [vmem:[%s248 + $0xcc] sm:$0xf]
      %v453 = vld [vmem:[%s248 + $0xd0] sm:$0xf]
      %v454 = vld [vmem:[%s248 + $0xd4] sm:$0xf]
      %v455 = vld [vmem:[%s248 + $0xd8] sm:$0xf]
      %v456 = vld [vmem:[%s248 + $0xdc] sm:$0xf]
      %v457 = vld [vmem:[%s248 + $0xe0] sm:$0xf]
      %v458 = vld [vmem:[%s248 + $0xe4] sm:$0xf]
      %v459 = vld [vmem:[%s248 + $0xe8] sm:$0xf]
      %v460 = vld [vmem:[%s248 + $0xec] sm:$0xf]
      %v461 = vld [vmem:[%s248 + $0xf0] sm:$0xf]
      %v462 = vld [vmem:[%s248 + $0xf4] sm:$0xf]
      %v463 = vld [vmem:[%s248 + $0xf8] sm:$0xf]
      %v464 = vld [vmem:[%s248 + $0xfc] sm:$0xf]
      %v465 = vld [vmem:[%s254] sm:$0xf]
      %v466 = vld [vmem:[%s254 + $0x4] sm:$0xf]
      %v467 = vld [vmem:[%s254 + $0x8] sm:$0xf]
      %v468 = vld [vmem:[%s254 + $0xc] sm:$0xf]
      %v469 = vld [vmem:[%s254 + $0x10] sm:$0xf]
      %v470 = vld [vmem:[%s254 + $0x14] sm:$0xf]
      %v471 = vld [vmem:[%s254 + $0x18] sm:$0xf]
      %v472 = vld [vmem:[%s254 + $0x1c] sm:$0xf]
      %v473 = vld [vmem:[%s254 + $0x20] sm:$0xf]
      %v474 = vld [vmem:[%s254 + $0x24] sm:$0xf]
      %v475 = vld [vmem:[%s254 + $0x28] sm:$0xf]
      %v476 = vld [vmem:[%s254 + $0x2c] sm:$0xf]
      %v477 = vld [vmem:[%s254 + $0x30] sm:$0xf]
      %v478 = vld [vmem:[%s254 + $0x34] sm:$0xf]
      %v479 = vld [vmem:[%s254 + $0x38] sm:$0xf]
      %v480 = vld [vmem:[%s254 + $0x3c] sm:$0xf]
      %v545 = vunpack.c.l.b16 %v401
      %v546 = vunpack.c.l.b16 %v402
      %v547 = vunpack.c.l.b16 %v403
      %v548 = vunpack.c.l.b16 %v404
      %v549 = vunpack.c.l.b16 %v405
      %v550 = vunpack.c.l.b16 %v406
      %v551 = vunpack.c.l.b16 %v407
      %v552 = vunpack.c.l.b16 %v408
      %v553 = vunpack.c.l.b16 %v409
      %v554 = vunpack.c.l.b16 %v410
      %v555 = vunpack.c.l.b16 %v411
      %v556 = vunpack.c.l.b16 %v412
      %v557 = vunpack.c.l.b16 %v413
      %v558 = vunpack.c.l.b16 %v414
      %v559 = vunpack.c.l.b16 %v415
      %v560 = vunpack.c.l.b16 %v416
      %v561 = vunpack.c.l.b16 %v417
      %v562 = vunpack.c.l.b16 %v418
      %v563 = vunpack.c.l.b16 %v419
      %v564 = vunpack.c.l.b16 %v420
      %v565 = vunpack.c.l.b16 %v421
      %v566 = vunpack.c.l.b16 %v422
      %v567 = vunpack.c.l.b16 %v423
      %v568 = vunpack.c.l.b16 %v424
      %v569 = vunpack.c.l.b16 %v425
      %v570 = vunpack.c.l.b16 %v426
      %v571 = vunpack.c.l.b16 %v427
      %v572 = vunpack.c.l.b16 %v428
      %v573 = vunpack.c.l.b16 %v429
      %v574 = vunpack.c.l.b16 %v430
      %v575 = vunpack.c.l.b16 %v431
      %v576 = vunpack.c.l.b16 %v432
      %v577 = vunpack.c.l.b16 %v433
      %v578 = vunpack.c.l.b16 %v434
      %v579 = vunpack.c.l.b16 %v435
      %v580 = vunpack.c.l.b16 %v436
      %v581 = vunpack.c.l.b16 %v437
      %v582 = vunpack.c.l.b16 %v438
      %v583 = vunpack.c.l.b16 %v439
      %v584 = vunpack.c.l.b16 %v440
      %v585 = vunpack.c.l.b16 %v441
      %v586 = vunpack.c.l.b16 %v442
      %v587 = vunpack.c.l.b16 %v443
      %v588 = vunpack.c.l.b16 %v444
      %v589 = vunpack.c.l.b16 %v445
      %v590 = vunpack.c.l.b16 %v446
      %v591 = vunpack.c.l.b16 %v447
      %v592 = vunpack.c.l.b16 %v448
      %v593 = vunpack.c.l.b16 %v449
      %v594 = vunpack.c.l.b16 %v450
      %v595 = vunpack.c.l.b16 %v451
      %v596 = vunpack.c.l.b16 %v452
      %v597 = vunpack.c.l.b16 %v453
      %v598 = vunpack.c.l.b16 %v454
      %v599 = vunpack.c.l.b16 %v455
      %v600 = vunpack.c.l.b16 %v456
      %v601 = vunpack.c.l.b16 %v457
      %v602 = vunpack.c.l.b16 %v458
      %v603 = vunpack.c.l.b16 %v459
      %v604 = vunpack.c.l.b16 %v460
      %v605 = vunpack.c.l.b16 %v461
      %v606 = vunpack.c.l.b16 %v462
      %v607 = vunpack.c.l.b16 %v463
      %v608 = vunpack.c.l.b16 %v464
      %v609 = vpack.c.b16 %v546, %v545
      %v610 = vpack.c.b16 %v548, %v547
      %v611 = vpack.c.b16 %v550, %v549
      %v612 = vpack.c.b16 %v552, %v551
      %v613 = vpack.c.b16 %v554, %v553
      %v614 = vpack.c.b16 %v556, %v555
      %v615 = vpack.c.b16 %v558, %v557
      %v616 = vpack.c.b16 %v560, %v559
      %v617 = vpack.c.b16 %v562, %v561
      %v618 = vpack.c.b16 %v564, %v563
      %v619 = vpack.c.b16 %v566, %v565
      %v620 = vpack.c.b16 %v568, %v567
      %v621 = vpack.c.b16 %v570, %v569
      %v622 = vpack.c.b16 %v572, %v571
      %v623 = vpack.c.b16 %v574, %v573
      %v624 = vpack.c.b16 %v576, %v575
      %v625 = vpack.c.b16 %v578, %v577
      %v626 = vpack.c.b16 %v580, %v579
      %v627 = vpack.c.b16 %v582, %v581
      %v628 = vpack.c.b16 %v584, %v583
      %v629 = vpack.c.b16 %v586, %v585
      %v630 = vpack.c.b16 %v588, %v587
      %v631 = vpack.c.b16 %v590, %v589
      %v632 = vpack.c.b16 %v592, %v591
      %v633 = vpack.c.b16 %v594, %v593
      %v634 = vpack.c.b16 %v596, %v595
      %v635 = vpack.c.b16 %v598, %v597
      %v636 = vpack.c.b16 %v600, %v599
      %v637 = vpack.c.b16 %v602, %v601
      %v638 = vpack.c.b16 %v604, %v603
      %v639 = vpack.c.b16 %v606, %v605
      %v640 = vpack.c.b16 %v608, %v607
      %v689 = vunpack.c.l.b16 %v465
      %v690 = vunpack.c.l.b16 %v466
      %v691 = vunpack.c.l.b16 %v467
      %v692 = vunpack.c.l.b16 %v468
      %v693 = vunpack.c.l.b16 %v469
      %v694 = vunpack.c.l.b16 %v470
      %v695 = vunpack.c.l.b16 %v471
      %v696 = vunpack.c.l.b16 %v472
      %v697 = vunpack.c.l.b16 %v473
      %v698 = vunpack.c.l.b16 %v474
      %v699 = vunpack.c.l.b16 %v475
      %v700 = vunpack.c.l.b16 %v476
      %v701 = vunpack.c.l.b16 %v477
      %v702 = vunpack.c.l.b16 %v478
      %v703 = vunpack.c.l.b16 %v479
      %v704 = vunpack.c.l.b16 %v480
      %v705 = vpack.c.b16 %v690, %v689
      %v706 = vpack.c.b16 %v692, %v691
      %v707 = vpack.c.b16 %v694, %v693
      %v708 = vpack.c.b16 %v696, %v695
      %v709 = vpack.c.b16 %v698, %v697
      %v710 = vpack.c.b16 %v700, %v699
      %v711 = vpack.c.b16 %v702, %v701
      %v712 = vpack.c.b16 %v704, %v703
      %721 = vmatprep.subr.bf16.mxu0 0
      %722 = vmatpush1.bf16.msra.mxu0 %v705
      %723 = vmatprep.subr.bf16.mxu0 0
      %724 = vmatpush1.bf16.msra.mxu0 %v706
      %725 = vmatprep.subr.bf16.mxu0 0
      %726 = vmatpush1.bf16.msra.mxu0 %v707
      %727 = vmatprep.subr.bf16.mxu0 0
      %728 = vmatpush1.bf16.msra.mxu0 %v708
      %729 = vmatprep.subr.bf16.mxu0 0
      %730 = vmatpush1.bf16.msra.mxu0 %v709
      %731 = vmatprep.subr.bf16.mxu0 0
      %732 = vmatpush1.bf16.msra.mxu0 %v710
      %733 = vmatprep.subr.bf16.mxu0 0
      %734 = vmatpush1.bf16.msra.mxu0 %v711
      %735 = vmatprep.subr.bf16.mxu0 0
      %736 = vmatpush1.bf16.msra.mxu0 %v712
      %737 = vmatprep.subr.bf16.mxu0 0
      %738 = vmatpush1.bf16.msra.mxu0 0
      %739 = vmatprep.subr.bf16.mxu0 0
      %740 = vmatpush1.bf16.msra.mxu0 0
      %741 = vmatprep.subr.bf16.mxu0 0
      %742 = vmatpush1.bf16.msra.mxu0 0
      %743 = vmatprep.subr.bf16.mxu0 0
      %744 = vmatpush1.bf16.msra.mxu0 0
      %745 = vmatprep.subr.bf16.mxu0 0
      %746 = vmatpush1.bf16.msra.mxu0 0
      %747 = vmatprep.subr.bf16.mxu0 0
      %748 = vmatpush1.bf16.msra.mxu0 0
      %749 = vmatprep.subr.bf16.mxu0 0
      %750 = vmatpush1.bf16.msra.mxu0 0
      %751 = vmatprep.subr.bf16.mxu0 0
      %752 = vmatpush1.bf16.msra.mxu0 0
      %753 = vmatprep.mubr.bf16.mxu0 0
      %754 = vmatmul.mubr.bf16.gmra.mrb[0].mxu0 %v609
      %v755 = vpop.f32.mrb[0].mxu0
      %v756 = vadd.f32 0.0, %v755
      %v757 = vpop.f32.mrb[0].mxu0
      %v758 = vpop.f32.mrb[0].mxu0
      %v759 = vadd.f32 0.0, %v758
      %v760 = vpop.f32.mrb[0].mxu0
      %761 = vmatprep.mubr.bf16.mxu0 0
      %762 = vmatmul.mubr.bf16.gmra.mrb[0].mxu0 %v610
      %v763 = vpop.f32.mrb[0].mxu0
      %v764 = vadd.f32 0.0, %v763
      %v765 = vpop.f32.mrb[0].mxu0
      %v766 = vpop.f32.mrb[0].mxu0
      %v767 = vadd.f32 0.0, %v766
      %v768 = vpop.f32.mrb[0].mxu0
      %769 = vmatprep.mubr.bf16.mxu0 0
      %770 = vmatmul.mubr.bf16.gmra.mrb[0].mxu0 %v611
      %v771 = vpop.f32.mrb[0].mxu0
      %v772 = vadd.f32 0.0, %v771
      %v773 = vpop.f32.mrb[0].mxu0
      %v774 = vpop.f32.mrb[0].mxu0
      %v775 = vadd.f32 0.0, %v774
      %v776 = vpop.f32.mrb[0].mxu0
      %777 = vmatprep.mubr.bf16.mxu0 0
      %778 = vmatmul.mubr.bf16.gmra.mrb[0].mxu0 %v612
      %v779 = vpop.f32.mrb[0].mxu0
      %v780 = vadd.f32 0.0, %v779
      %v781 = vpop.f32.mrb[0].mxu0
      %v782 = vpop.f32.mrb[0].mxu0
      %v783 = vadd.f32 0.0, %v782
      %v784 = vpop.f32.mrb[0].mxu0
      %785 = vmatprep.mubr.bf16.mxu0 0
      %786 = vmatmul.mubr.bf16.gmra.mrb[0].mxu0 %v613
      %v787 = vpop.f32.mrb[0].mxu0
      %v788 = vadd.f32 0.0, %v787
      %v789 = vpop.f32.mrb[0].mxu0
      %v790 = vpop.f32.mrb[0].mxu0
      %v791 = vadd.f32 0.0, %v790
      %v792 = vpop.f32.mrb[0].mxu0
      %793 = vmatprep.mubr.bf16.mxu0 0
      %794 = vmatmul.mubr.bf16.gmra.mrb[0].mxu0 %v614
      %v795 = vpop.f32.mrb[0].mxu0
      %v796 = vadd.f32 0.0, %v795
      %v797 = vpop.f32.mrb[0].mxu0
      %v798 = vpop.f32.mrb[0].mxu0
      %v799 = vadd.f32 0.0, %v798
      %v800 = vpop.f32.mrb[0].mxu0
      %801 = vmatprep.mubr.bf16.mxu0 0
      %802 = vmatmul.mubr.bf16.gmra.mrb[0].mxu0 %v615
      %v803 = vpop.f32.mrb[0].mxu0
      %v804 = vadd.f32 0.0, %v803
      %v805 = vpop.f32.mrb[0].mxu0
      %v806 = vpop.f32.mrb[0].mxu0
      %v807 = vadd.f32 0.0, %v806
      %v808 = vpop.f32.mrb[0].mxu0
      %809 = vmatprep.mubr.bf16.mxu0 0
      %810 = vmatmul.mubr.bf16.gmra.mrb[0].mxu0 %v616
      %v811 = vpop.f32.mrb[0].mxu0
      %v812 = vadd.f32 0.0, %v811
      %v813 = vpop.f32.mrb[0].mxu0
      %v814 = vpop.f32.mrb[0].mxu0
      %v815 = vadd.f32 0.0, %v814
      %v816 = vpop.f32.mrb[0].mxu0
      %817 = vmatprep.mubr.bf16.mxu0 0
      %818 = vmatmul.mubr.bf16.gmra.mrb[0].mxu0 %v617
      %v819 = vpop.f32.mrb[0].mxu0
      %v820 = vadd.f32 0.0, %v819
      %v821 = vpop.f32.mrb[0].mxu0
      %v822 = vpop.f32.mrb[0].mxu0
      %v823 = vadd.f32 0.0, %v822
      %v824 = vpop.f32.mrb[0].mxu0
      %825 = vmatprep.mubr.bf16.mxu0 0
      %826 = vmatmul.mubr.bf16.gmra.mrb[0].mxu0 %v618
      %v827 = vpop.f32.mrb[0].mxu0
      %v828 = vadd.f32 0.0, %v827
      %v829 = vpop.f32.mrb[0].mxu0
      %v830 = vpop.f32.mrb[0].mxu0
      %v831 = vadd.f32 0.0, %v830
      %v832 = vpop.f32.mrb[0].mxu0
      %833 = vmatprep.mubr.bf16.mxu0 0
      %834 = vmatmul.mubr.bf16.gmra.mrb[0].mxu0 %v619
      %v835 = vpop.f32.mrb[0].mxu0
      %v836 = vadd.f32 0.0, %v835
      %v837 = vpop.f32.mrb[0].mxu0
      %v838 = vpop.f32.mrb[0].mxu0
      %v839 = vadd.f32 0.0, %v838
      %v840 = vpop.f32.mrb[0].mxu0
      %841 = vmatprep.mubr.bf16.mxu0 0
      %842 = vmatmul.mubr.bf16.gmra.mrb[0].mxu0 %v620
      %v843 = vpop.f32.mrb[0].mxu0
      %v844 = vadd.f32 0.0, %v843
      %v845 = vpop.f32.mrb[0].mxu0
      %v846 = vpop.f32.mrb[0].mxu0
      %v847 = vadd.f32 0.0, %v846
      %v848 = vpop.f32.mrb[0].mxu0
      %849 = vmatprep.mubr.bf16.mxu0 0
      %850 = vmatmul.mubr.bf16.gmra.mrb[0].mxu0 %v621
      %v851 = vpop.f32.mrb[0].mxu0
      %v852 = vadd.f32 0.0, %v851
      %v853 = vpop.f32.mrb[0].mxu0
      %v854 = vpop.f32.mrb[0].mxu0
      %v855 = vadd.f32 0.0, %v854
      %v856 = vpop.f32.mrb[0].mxu0
      %857 = vmatprep.mubr.bf16.mxu0 0
      %858 = vmatmul.mubr.bf16.gmra.mrb[0].mxu0 %v622
      %v859 = vpop.f32.mrb[0].mxu0
      %v860 = vadd.f32 0.0, %v859
      %v861 = vpop.f32.mrb[0].mxu0
      %v862 = vpop.f32.mrb[0].mxu0
      %v863 = vadd.f32 0.0, %v862
      %v864 = vpop.f32.mrb[0].mxu0
      %865 = vmatprep.mubr.bf16.mxu0 0
      %866 = vmatmul.mubr.bf16.gmra.mrb[0].mxu0 %v623
      %v867 = vpop.f32.mrb[0].mxu0
      %v868 = vadd.f32 0.0, %v867
      %v869 = vpop.f32.mrb[0].mxu0
      %v870 = vpop.f32.mrb[0].mxu0
      %v871 = vadd.f32 0.0, %v870
      %v872 = vpop.f32.mrb[0].mxu0
      %873 = vmatprep.mubr.bf16.mxu0 0
      %874 = vmatmul.mubr.bf16.gmra.mrb[0].mxu0 %v624
      %v875 = vpop.f32.mrb[0].mxu0
      %v876 = vadd.f32 0.0, %v875
      %v877 = vpop.f32.mrb[0].mxu0
      %v878 = vpop.f32.mrb[0].mxu0
      %v879 = vadd.f32 0.0, %v878
      %v880 = vpop.f32.mrb[0].mxu0
      %881 = vmatprep.mubr.bf16.mxu0 0
      %882 = vmatmul.mubr.bf16.gmra.mrb[0].mxu0 %v625
      %v883 = vpop.f32.mrb[0].mxu0
      %v884 = vadd.f32 0.0, %v883
      %v885 = vpop.f32.mrb[0].mxu0
      %v886 = vpop.f32.mrb[0].mxu0
      %v887 = vadd.f32 0.0, %v886
      %v888 = vpop.f32.mrb[0].mxu0
      %889 = vmatprep.mubr.bf16.mxu0 0
      %890 = vmatmul.mubr.bf16.gmra.mrb[0].mxu0 %v626
      %v891 = vpop.f32.mrb[0].mxu0
      %v892 = vadd.f32 0.0, %v891
      %v893 = vpop.f32.mrb[0].mxu0
      %v894 = vpop.f32.mrb[0].mxu0
      %v895 = vadd.f32 0.0, %v894
      %v896 = vpop.f32.mrb[0].mxu0
      %897 = vmatprep.mubr.bf16.mxu0 0
      %898 = vmatmul.mubr.bf16.gmra.mrb[0].mxu0 %v627
      %v899 = vpop.f32.mrb[0].mxu0
      %v900 = vadd.f32 0.0, %v899
      %v901 = vpop.f32.mrb[0].mxu0
      %v902 = vpop.f32.mrb[0].mxu0
      %v903 = vadd.f32 0.0, %v902
      %v904 = vpop.f32.mrb[0].mxu0
      %905 = vmatprep.mubr.bf16.mxu0 0
      %906 = vmatmul.mubr.bf16.gmra.mrb[0].mxu0 %v628
      %v907 = vpop.f32.mrb[0].mxu0
      %v908 = vadd.f32 0.0, %v907
      %v909 = vpop.f32.mrb[0].mxu0
      %v910 = vpop.f32.mrb[0].mxu0
      %v911 = vadd.f32 0.0, %v910
      %v912 = vpop.f32.mrb[0].mxu0
      %913 = vmatprep.mubr.bf16.mxu0 0
      %914 = vmatmul.mubr.bf16.gmra.mrb[0].mxu0 %v629
      %v915 = vpop.f32.mrb[0].mxu0
      %v916 = vadd.f32 0.0, %v915
      %v917 = vpop.f32.mrb[0].mxu0
      %v918 = vpop.f32.mrb[0].mxu0
      %v919 = vadd.f32 0.0, %v918
      %v920 = vpop.f32.mrb[0].mxu0
      %921 = vmatprep.mubr.bf16.mxu0 0
      %922 = vmatmul.mubr.bf16.gmra.mrb[0].mxu0 %v630
      %v923 = vpop.f32.mrb[0].mxu0
      %v924 = vadd.f32 0.0, %v923
      %v925 = vpop.f32.mrb[0].mxu0
      %v926 = vpop.f32.mrb[0].mxu0
      %v927 = vadd.f32 0.0, %v926
      %v928 = vpop.f32.mrb[0].mxu0
      %929 = vmatprep.mubr.bf16.mxu0 0
      %930 = vmatmul.mubr.bf16.gmra.mrb[0].mxu0 %v631
      %v931 = vpop.f32.mrb[0].mxu0
      %v932 = vadd.f32 0.0, %v931
      %v933 = vpop.f32.mrb[0].mxu0
      %v934 = vpop.f32.mrb[0].mxu0
      %v935 = vadd.f32 0.0, %v934
      %v936 = vpop.f32.mrb[0].mxu0
      %937 = vmatprep.mubr.bf16.mxu0 0
      %938 = vmatmul.mubr.bf16.gmra.mrb[0].mxu0 %v632
      %v939 = vpop.f32.mrb[0].mxu0
      %v940 = vadd.f32 0.0, %v939
      %v941 = vpop.f32.mrb[0].mxu0
      %v942 = vpop.f32.mrb[0].mxu0
      %v943 = vadd.f32 0.0, %v942
      %v944 = vpop.f32.mrb[0].mxu0
      %945 = vmatprep.mubr.bf16.mxu0 0
      %946 = vmatmul.mubr.bf16.gmra.mrb[0].mxu0 %v633
      %v947 = vpop.f32.mrb[0].mxu0
      %v948 = vadd.f32 0.0, %v947
      %v949 = vpop.f32.mrb[0].mxu0
      %v950 = vpop.f32.mrb[0].mxu0
      %v951 = vadd.f32 0.0, %v950
      %v952 = vpop.f32.mrb[0].mxu0
      %953 = vmatprep.mubr.bf16.mxu0 0
      %954 = vmatmul.mubr.bf16.gmra.mrb[0].mxu0 %v634
      %v955 = vpop.f32.mrb[0].mxu0
      %v956 = vadd.f32 0.0, %v955
      %v957 = vpop.f32.mrb[0].mxu0
      %v958 = vpop.f32.mrb[0].mxu0
      %v959 = vadd.f32 0.0, %v958
      %v960 = vpop.f32.mrb[0].mxu0
      %961 = vmatprep.mubr.bf16.mxu0 0
      %962 = vmatmul.mubr.bf16.gmra.mrb[0].mxu0 %v635
      %v963 = vpop.f32.mrb[0].mxu0
      %v964 = vadd.f32 0.0, %v963
      %v965 = vpop.f32.mrb[0].mxu0
      %v966 = vpop.f32.mrb[0].mxu0
      %v967 = vadd.f32 0.0, %v966
      %v968 = vpop.f32.mrb[0].mxu0
      %969 = vmatprep.mubr.bf16.mxu0 0
      %970 = vmatmul.mubr.bf16.gmra.mrb[0].mxu0 %v636
      %v971 = vpop.f32.mrb[0].mxu0
      %v972 = vadd.f32 0.0, %v971
      %v973 = vpop.f32.mrb[0].mxu0
      %v974 = vpop.f32.mrb[0].mxu0
      %v975 = vadd.f32 0.0, %v974
      %v976 = vpop.f32.mrb[0].mxu0
      %977 = vmatprep.mubr.bf16.mxu0 0
      %978 = vmatmul.mubr.bf16.gmra.mrb[0].mxu0 %v637
      %v979 = vpop.f32.mrb[0].mxu0
      %v980 = vadd.f32 0.0, %v979
      %v981 = vpop.f32.mrb[0].mxu0
      %v982 = vpop.f32.mrb[0].mxu0
      %v983 = vadd.f32 0.0, %v982
      %v984 = vpop.f32.mrb[0].mxu0
      %985 = vmatprep.mubr.bf16.mxu0 0
      %986 = vmatmul.mubr.bf16.gmra.mrb[0].mxu0 %v638
      %v987 = vpop.f32.mrb[0].mxu0
      %v988 = vadd.f32 0.0, %v987
      %v989 = vpop.f32.mrb[0].mxu0
      %v990 = vpop.f32.mrb[0].mxu0
      %v991 = vadd.f32 0.0, %v990
      %v992 = vpop.f32.mrb[0].mxu0
      %993 = vmatprep.mubr.bf16.mxu0 0
      %994 = vmatmul.mubr.bf16.gmra.mrb[0].mxu0 %v639
      %v995 = vpop.f32.mrb[0].mxu0
      %v996 = vadd.f32 0.0, %v995
      %v997 = vpop.f32.mrb[0].mxu0
      %v998 = vpop.f32.mrb[0].mxu0
      %v999 = vadd.f32 0.0, %v998
      %v1000 = vpop.f32.mrb[0].mxu0
      %1001 = vmatprep.mubr.bf16.mxu0 0
      %1002 = vmatmul.mubr.bf16.gmra.mrb[0].mxu0 %v640
      %v1003 = vpop.f32.mrb[0].mxu0
      %v1004 = vadd.f32 0.0, %v1003
      %v1005 = vpop.f32.mrb[0].mxu0
      %v1006 = vpop.f32.mrb[0].mxu0
      %v1007 = vadd.f32 0.0, %v1006
      %v1008 = vpop.f32.mrb[0].mxu0
      %1009 = vdwg.mxu0
      %v1010 = vadd.f32 %v337, %v756
      %v1011 = vadd.f32 %v338, %v759
      %v1012 = vadd.f32 %v339, %v764
      %v1013 = vadd.f32 %v340, %v767
      %v1014 = vadd.f32 %v341, %v772
      %v1015 = vadd.f32 %v342, %v775
      %v1016 = vadd.f32 %v343, %v780
      %v1017 = vadd.f32 %v344, %v783
      %v1018 = vadd.f32 %v345, %v788
      %v1019 = vadd.f32 %v346, %v791
      %v1020 = vadd.f32 %v347, %v796
      %v1021 = vadd.f32 %v348, %v799
      %v1022 = vadd.f32 %v349, %v804
      %v1023 = vadd.f32 %v350, %v807
      %v1024 = vadd.f32 %v351, %v812
      %v1025 = vadd.f32 %v352, %v815
      %v1026 = vadd.f32 %v353, %v820
      %v1027 = vadd.f32 %v354, %v823
      %v1028 = vadd.f32 %v355, %v828
      %v1029 = vadd.f32 %v356, %v831
      %v1030 = vadd.f32 %v357, %v836
      %v1031 = vadd.f32 %v358, %v839
      %v1032 = vadd.f32 %v359, %v844
      %v1033 = vadd.f32 %v360, %v847
      %v1034 = vadd.f32 %v361, %v852
      %v1035 = vadd.f32 %v362, %v855
      %v1036 = vadd.f32 %v363, %v860
      %v1037 = vadd.f32 %v364, %v863
      %v1038 = vadd.f32 %v365, %v868
      %v1039 = vadd.f32 %v366, %v871
      %v1040 = vadd.f32 %v367, %v876
      %v1041 = vadd.f32 %v368, %v879
      %v1042 = vadd.f32 %v369, %v884
      %v1043 = vadd.f32 %v370, %v887
      %v1044 = vadd.f32 %v371, %v892
      %v1045 = vadd.f32 %v372, %v895
      %v1046 = vadd.f32 %v373, %v900
      %v1047 = vadd.f32 %v374, %v903
      %v1048 = vadd.f32 %v375, %v908
      %v1049 = vadd.f32 %v376, %v911
      %v1050 = vadd.f32 %v377, %v916
      %v1051 = vadd.f32 %v378, %v919
      %v1052 = vadd.f32 %v379, %v924
      %v1053 = vadd.f32 %v380, %v927
      %v1054 = vadd.f32 %v381, %v932
      %v1055 = vadd.f32 %v382, %v935
      %v1056 = vadd.f32 %v383, %v940
      %v1057 = vadd.f32 %v384, %v943
      %v1058 = vadd.f32 %v385, %v948
      %v1059 = vadd.f32 %v386, %v951
      %v1060 = vadd.f32 %v387, %v956
      %v1061 = vadd.f32 %v388, %v959
      %v1062 = vadd.f32 %v389, %v964
      %v1063 = vadd.f32 %v390, %v967
      %v1064 = vadd.f32 %v391, %v972
      %v1065 = vadd.f32 %v392, %v975
      %v1066 = vadd.f32 %v393, %v980
      %v1067 = vadd.f32 %v394, %v983
      %v1068 = vadd.f32 %v395, %v988
      %v1069 = vadd.f32 %v396, %v991
      %v1070 = vadd.f32 %v397, %v996
      %v1071 = vadd.f32 %v398, %v999
      %v1072 = vadd.f32 %v399, %v1004
      %v1073 = vadd.f32 %v400, %v1007
      %1074 = vst [vmem:[#allocation2] sm:$0xff] %v1010
      %1075 = vst [vmem:[#allocation2 + $0x8] sm:$0xff] %v1011
      %1076 = vst [vmem:[#allocation2 + $0x10] sm:$0xff] %v1012
      %1077 = vst [vmem:[#allocation2 + $0x18] sm:$0xff] %v1013
      %1078 = vst [vmem:[#allocation2 + $0x20] sm:$0xff] %v1014
      %1079 = vst [vmem:[#allocation2 + $0x28] sm:$0xff] %v1015
      %1080 = vst [vmem:[#allocation2 + $0x30] sm:$0xff] %v1016
      %1081 = vst [vmem:[#allocation2 + $0x38] sm:$0xff] %v1017
      %1082 = vst [vmem:[#allocation2 + $0x40] sm:$0xff] %v1018
      %1083 = vst [vmem:[#allocation2 + $0x48] sm:$0xff] %v1019
      %1084 = vst [vmem:[#allocation2 + $0x50] sm:$0xff] %v1020
      %1085 = vst [vmem:[#allocation2 + $0x58] sm:$0xff] %v1021
      %1086 = vst [vmem:[#allocation2 + $0x60] sm:$0xff] %v1022
      %1087 = vst [vmem:[#allocation2 + $0x68] sm:$0xff] %v1023
      %1088 = vst [vmem:[#allocation2 + $0x70] sm:$0xff] %v1024
      %1089 = vst [vmem:[#allocation2 + $0x78] sm:$0xff] %v1025
      %1090 = vst [vmem:[#allocation2 + $0x80] sm:$0xff] %v1026
      %1091 = vst [vmem:[#allocation2 + $0x88] sm:$0xff] %v1027
      %1092 = vst [vmem:[#allocation2 + $0x90] sm:$0xff] %v1028
      %1093 = vst [vmem:[#allocation2 + $0x98] sm:$0xff] %v1029
      %1094 = vst [vmem:[#allocation2 + $0xa0] sm:$0xff] %v1030
      %1095 = vst [vmem:[#allocation2 + $0xa8] sm:$0xff] %v1031
      %1096 = vst [vmem:[#allocation2 + $0xb0] sm:$0xff] %v1032
      %1097 = vst [vmem:[#allocation2 + $0xb8] sm:$0xff] %v1033
      %1098 = vst [vmem:[#allocation2 + $0xc0] sm:$0xff] %v1034
      %1099 = vst [vmem:[#allocation2 + $0xc8] sm:$0xff] %v1035
      %1100 = vst [vmem:[#allocation2 + $0xd0] sm:$0xff] %v1036
      %1101 = vst [vmem:[#allocation2 + $0xd8] sm:$0xff] %v1037
      %1102 = vst [vmem:[#allocation2 + $0xe0] sm:$0xff] %v1038
      %1103 = vst [vmem:[#allocation2 + $0xe8] sm:$0xff] %v1039
      %1104 = vst [vmem:[#allocation2 + $0xf0] sm:$0xff] %v1040
      %1105 = vst [vmem:[#allocation2 + $0xf8] sm:$0xff] %v1041
      %1106 = vst [vmem:[#allocation2 + $0x100] sm:$0xff] %v1042
      %1107 = vst [vmem:[#allocation2 + $0x108] sm:$0xff] %v1043
      %1108 = vst [vmem:[#allocation2 + $0x110] sm:$0xff] %v1044
      %1109 = vst [vmem:[#allocation2 + $0x118] sm:$0xff] %v1045
      %1110 = vst [vmem:[#allocation2 + $0x120] sm:$0xff] %v1046
      %1111 = vst [vmem:[#allocation2 + $0x128] sm:$0xff] %v1047
      %1112 = vst [vmem:[#allocation2 + $0x130] sm:$0xff] %v1048
      %1113 = vst [vmem:[#allocation2 + $0x138] sm:$0xff] %v1049
      %1114 = vst [vmem:[#allocation2 + $0x140] sm:$0xff] %v1050
      %1115 = vst [vmem:[#allocation2 + $0x148] sm:$0xff] %v1051
      %1116 = vst [vmem:[#allocation2 + $0x150] sm:$0xff] %v1052
      %1117 = vst [vmem:[#allocation2 + $0x158] sm:$0xff] %v1053
      %1118 = vst [vmem:[#allocation2 + $0x160] sm:$0xff] %v1054
      %1119 = vst [vmem:[#allocation2 + $0x168] sm:$0xff] %v1055
      %1120 = vst [vmem:[#allocation2 + $0x170] sm:$0xff] %v1056
      %1121 = vst [vmem:[#allocation2 + $0x178] sm:$0xff] %v1057
      %1122 = vst [vmem:[#allocation2 + $0x180] sm:$0xff] %v1058
      %1123 = vst [vmem:[#allocation2 + $0x188] sm:$0xff] %v1059
      %1124 = vst [vmem:[#allocation2 + $0x190] sm:$0xff] %v1060
      %1125 = vst [vmem:[#allocation2 + $0x198] sm:$0xff] %v1061
      %1126 = vst [vmem:[#allocation2 + $0x1a0] sm:$0xff] %v1062
      %1127 = vst [vmem:[#allocation2 + $0x1a8] sm:$0xff] %v1063
      %1128 = vst [vmem:[#allocation2 + $0x1b0] sm:$0xff] %v1064
      %1129 = vst [vmem:[#allocation2 + $0x1b8] sm:$0xff] %v1065
      %1130 = vst [vmem:[#allocation2 + $0x1c0] sm:$0xff] %v1066
      %1131 = vst [vmem:[#allocation2 + $0x1c8] sm:$0xff] %v1067
      %1132 = vst [vmem:[#allocation2 + $0x1d0] sm:$0xff] %v1068
      %1133 = vst [vmem:[#allocation2 + $0x1d8] sm:$0xff] %v1069
      %1134 = vst [vmem:[#allocation2 + $0x1e0] sm:$0xff] %v1070
      %1135 = vst [vmem:[#allocation2 + $0x1e8] sm:$0xff] %v1071
      %1136 = vst [vmem:[#allocation2 + $0x1f0] sm:$0xff] %v1072
      %1137 = vst [vmem:[#allocation2 + $0x1f8] sm:$0xff] %v1073
      // Predicated region
      $region41: #{bottleneck_forward.5} parent=35 // pred_check
        %p1138 = pneg %p269
      $region42: #{bottleneck_forward.5} parent=35 // pred_check_branch
        %1140 = sbr.rel (%p1138) target = $region44
      $region43: #{bottleneck_forward.5} parent=35 // pred_region
        %v1141 = vld [vmem:[#allocation2] sm:$0xff]
        %v1142 = vld [vmem:[#allocation2 + $0x8] sm:$0xff]
        %v1143 = vld [vmem:[#allocation2 + $0x10] sm:$0xff]
        %v1144 = vld [vmem:[#allocation2 + $0x18] sm:$0xff]
        %v1145 = vld [vmem:[#allocation2 + $0x20] sm:$0xff]
        %v1146 = vld [vmem:[#allocation2 + $0x28] sm:$0xff]
        %v1147 = vld [vmem:[#allocation2 + $0x30] sm:$0xff]
        %v1148 = vld [vmem:[#allocation2 + $0x38] sm:$0xff]
        %v1149 = vld [vmem:[#allocation2 + $0x40] sm:$0xff]
        %v1150 = vld [vmem:[#allocation2 + $0x48] sm:$0xff]
        %v1151 = vld [vmem:[#allocation2 + $0x50] sm:$0xff]
        %v1152 = vld [vmem:[#allocation2 + $0x58] sm:$0xff]
        %v1153 = vld [vmem:[#allocation2 + $0x60] sm:$0xff]
        %v1154 = vld [vmem:[#allocation2 + $0x68] sm:$0xff]
        %v1155 = vld [vmem:[#allocation2 + $0x70] sm:$0xff]
        %v1156 = vld [vmem:[#allocation2 + $0x78] sm:$0xff]
        %v1157 = vld [vmem:[#allocation2 + $0x80] sm:$0xff]
        %v1158 = vld [vmem:[#allocation2 + $0x88] sm:$0xff]
        %v1159 = vld [vmem:[#allocation2 + $0x90] sm:$0xff]
        %v1160 = vld [vmem:[#allocation2 + $0x98] sm:$0xff]
        %v1161 = vld [vmem:[#allocation2 + $0xa0] sm:$0xff]
        %v1162 = vld [vmem:[#allocation2 + $0xa8] sm:$0xff]
        %v1163 = vld [vmem:[#allocation2 + $0xb0] sm:$0xff]
        %v1164 = vld [vmem:[#allocation2 + $0xb8] sm:$0xff]
        %v1165 = vld [vmem:[#allocation2 + $0xc0] sm:$0xff]
        %v1166 = vld [vmem:[#allocation2 + $0xc8] sm:$0xff]
        %v1167 = vld [vmem:[#allocation2 + $0xd0] sm:$0xff]
        %v1168 = vld [vmem:[#allocation2 + $0xd8] sm:$0xff]
        %v1169 = vld [vmem:[#allocation2 + $0xe0] sm:$0xff]
        %v1170 = vld [vmem:[#allocation2 + $0xe8] sm:$0xff]
        %v1171 = vld [vmem:[#allocation2 + $0xf0] sm:$0xff]
        %v1172 = vld [vmem:[#allocation2 + $0xf8] sm:$0xff]
        %v1173 = vld [vmem:[#allocation2 + $0x100] sm:$0xff]
        %v1174 = vld [vmem:[#allocation2 + $0x108] sm:$0xff]
        %v1175 = vld [vmem:[#allocation2 + $0x110] sm:$0xff]
        %v1176 = vld [vmem:[#allocation2 + $0x118] sm:$0xff]
        %v1177 = vld [vmem:[#allocation2 + $0x120] sm:$0xff]
        %v1178 = vld [vmem:[#allocation2 + $0x128] sm:$0xff]
        %v1179 = vld [vmem:[#allocation2 + $0x130] sm:$0xff]
        %v1180 = vld [vmem:[#allocation2 + $0x138] sm:$0xff]
        %v1181 = vld [vmem:[#allocation2 + $0x140] sm:$0xff]
        %v1182 = vld [vmem:[#allocation2 + $0x148] sm:$0xff]
        %v1183 = vld [vmem:[#allocation2 + $0x150] sm:$0xff]
        %v1184 = vld [vmem:[#allocation2 + $0x158] sm:$0xff]
        %v1185 = vld [vmem:[#allocation2 + $0x160] sm:$0xff]
        %v1186 = vld [vmem:[#allocation2 + $0x168] sm:$0xff]
        %v1187 = vld [vmem:[#allocation2 + $0x170] sm:$0xff]
        %v1188 = vld [vmem:[#allocation2 + $0x178] sm:$0xff]
        %v1189 = vld [vmem:[#allocation2 + $0x180] sm:$0xff]
        %v1190 = vld [vmem:[#allocation2 + $0x188] sm:$0xff]
        %v1191 = vld [vmem:[#allocation2 + $0x190] sm:$0xff]
        %v1192 = vld [vmem:[#allocation2 + $0x198] sm:$0xff]
        %v1193 = vld [vmem:[#allocation2 + $0x1a0] sm:$0xff]
        %v1194 = vld [vmem:[#allocation2 + $0x1a8] sm:$0xff]
        %v1195 = vld [vmem:[#allocation2 + $0x1b0] sm:$0xff]
        %v1196 = vld [vmem:[#allocation2 + $0x1b8] sm:$0xff]
        %v1197 = vld [vmem:[#allocation2 + $0x1c0] sm:$0xff]
        %v1198 = vld [vmem:[#allocation2 + $0x1c8] sm:$0xff]
        %v1199 = vld [vmem:[#allocation2 + $0x1d0] sm:$0xff]
        %v1200 = vld [vmem:[#allocation2 + $0x1d8] sm:$0xff]
        %v1201 = vld [vmem:[#allocation2 + $0x1e0] sm:$0xff]
        %v1202 = vld [vmem:[#allocation2 + $0x1e8] sm:$0xff]
        %v1203 = vld [vmem:[#allocation2 + $0x1f0] sm:$0xff]
        %v1204 = vld [vmem:[#allocation2 + $0x1f8] sm:$0xff]
        %v1205 = vld [vmem:[%s2] sm:$0x1]
        %v1206 = vlaneseq
        %v1207 = vshrl.u32 %v1206, 7
        %v1208 = vsub.s32 0, %v1207
        %v1209 = vrot.slane %v1205, %v1208
        %v1210 = vmul.f32 %v1141, %v1209
        %v1211 = vmul.f32 %v1142, %v1209
        %v1212 = vmul.f32 %v1143, %v1209
        %v1213 = vmul.f32 %v1144, %v1209
        %v1214 = vmul.f32 %v1145, %v1209
        %v1215 = vmul.f32 %v1146, %v1209
        %v1216 = vmul.f32 %v1147, %v1209
        %v1217 = vmul.f32 %v1148, %v1209
        %v1218 = vmul.f32 %v1149, %v1209
        %v1219 = vmul.f32 %v1150, %v1209
        %v1220 = vmul.f32 %v1151, %v1209
        %v1221 = vmul.f32 %v1152, %v1209
        %v1222 = vmul.f32 %v1153, %v1209
        %v1223 = vmul.f32 %v1154, %v1209
        %v1224 = vmul.f32 %v1155, %v1209
        %v1225 = vmul.f32 %v1156, %v1209
        %v1226 = vmul.f32 %v1157, %v1209
        %v1227 = vmul.f32 %v1158, %v1209
        %v1228 = vmul.f32 %v1159, %v1209
        %v1229 = vmul.f32 %v1160, %v1209
        %v1230 = vmul.f32 %v1161, %v1209
        %v1231 = vmul.f32 %v1162, %v1209
        %v1232 = vmul.f32 %v1163, %v1209
        %v1233 = vmul.f32 %v1164, %v1209
        %v1234 = vmul.f32 %v1165, %v1209
        %v1235 = vmul.f32 %v1166, %v1209
        %v1236 = vmul.f32 %v1167, %v1209
        %v1237 = vmul.f32 %v1168, %v1209
        %v1238 = vmul.f32 %v1169, %v1209
        %v1239 = vmul.f32 %v1170, %v1209
        %v1240 = vmul.f32 %v1171, %v1209
        %v1241 = vmul.f32 %v1172, %v1209
        %v1242 = vmul.f32 %v1173, %v1209
        %v1243 = vmul.f32 %v1174, %v1209
        %v1244 = vmul.f32 %v1175, %v1209
        %v1245 = vmul.f32 %v1176, %v1209
        %v1246 = vmul.f32 %v1177, %v1209
        %v1247 = vmul.f32 %v1178, %v1209
        %v1248 = vmul.f32 %v1179, %v1209
        %v1249 = vmul.f32 %v1180, %v1209
        %v1250 = vmul.f32 %v1181, %v1209
        %v1251 = vmul.f32 %v1182, %v1209
        %v1252 = vmul.f32 %v1183, %v1209
        %v1253 = vmul.f32 %v1184, %v1209
        %v1254 = vmul.f32 %v1185, %v1209
        %v1255 = vmul.f32 %v1186, %v1209
        %v1256 = vmul.f32 %v1187, %v1209
        %v1257 = vmul.f32 %v1188, %v1209
        %v1258 = vmul.f32 %v1189, %v1209
        %v1259 = vmul.f32 %v1190, %v1209
        %v1260 = vmul.f32 %v1191, %v1209
        %v1261 = vmul.f32 %v1192, %v1209
        %v1262 = vmul.f32 %v1193, %v1209
        %v1263 = vmul.f32 %v1194, %v1209
        %v1264 = vmul.f32 %v1195, %v1209
        %v1265 = vmul.f32 %v1196, %v1209
        %v1266 = vmul.f32 %v1197, %v1209
        %v1267 = vmul.f32 %v1198, %v1209
        %v1268 = vmul.f32 %v1199, %v1209
        %v1269 = vmul.f32 %v1200, %v1209
        %v1270 = vmul.f32 %v1201, %v1209
        %v1271 = vmul.f32 %v1202, %v1209
        %v1272 = vmul.f32 %v1203, %v1209
        %v1273 = vmul.f32 %v1204, %v1209
        %v1274 = vld [vmem:[%s2 + $0x1] sm:$0x1]
        %v1275 = vlaneseq
        %v1276 = vshrl.u32 %v1275, 7
        %v1277 = vsub.s32 0, %v1276
        %v1278 = vrot.slane %v1274, %v1277
        %v1279 = vadd.f32 %v1210, %v1278
        %v1280 = vadd.f32 %v1211, %v1278
        %v1281 = vadd.f32 %v1212, %v1278
        %v1282 = vadd.f32 %v1213, %v1278
        %v1283 = vadd.f32 %v1214, %v1278
        %v1284 = vadd.f32 %v1215, %v1278
        %v1285 = vadd.f32 %v1216, %v1278
        %v1286 = vadd.f32 %v1217, %v1278
        %v1287 = vadd.f32 %v1218, %v1278
        %v1288 = vadd.f32 %v1219, %v1278
        %v1289 = vadd.f32 %v1220, %v1278
        %v1290 = vadd.f32 %v1221, %v1278
        %v1291 = vadd.f32 %v1222, %v1278
        %v1292 = vadd.f32 %v1223, %v1278
        %v1293 = vadd.f32 %v1224, %v1278
        %v1294 = vadd.f32 %v1225, %v1278
        %v1295 = vadd.f32 %v1226, %v1278
        %v1296 = vadd.f32 %v1227, %v1278
        %v1297 = vadd.f32 %v1228, %v1278
        %v1298 = vadd.f32 %v1229, %v1278
        %v1299 = vadd.f32 %v1230, %v1278
        %v1300 = vadd.f32 %v1231, %v1278
        %v1301 = vadd.f32 %v1232, %v1278
        %v1302 = vadd.f32 %v1233, %v1278
        %v1303 = vadd.f32 %v1234, %v1278
        %v1304 = vadd.f32 %v1235, %v1278
        %v1305 = vadd.f32 %v1236, %v1278
        %v1306 = vadd.f32 %v1237, %v1278
        %v1307 = vadd.f32 %v1238, %v1278
        %v1308 = vadd.f32 %v1239, %v1278
        %v1309 = vadd.f32 %v1240, %v1278
        %v1310 = vadd.f32 %v1241, %v1278
        %v1311 = vadd.f32 %v1242, %v1278
        %v1312 = vadd.f32 %v1243, %v1278
        %v1313 = vadd.f32 %v1244, %v1278
        %v1314 = vadd.f32 %v1245, %v1278
        %v1315 = vadd.f32 %v1246, %v1278
        %v1316 = vadd.f32 %v1247, %v1278
        %v1317 = vadd.f32 %v1248, %v1278
        %v1318 = vadd.f32 %v1249, %v1278
        %v1319 = vadd.f32 %v1250, %v1278
        %v1320 = vadd.f32 %v1251, %v1278
        %v1321 = vadd.f32 %v1252, %v1278
        %v1322 = vadd.f32 %v1253, %v1278
        %v1323 = vadd.f32 %v1254, %v1278
        %v1324 = vadd.f32 %v1255, %v1278
        %v1325 = vadd.f32 %v1256, %v1278
        %v1326 = vadd.f32 %v1257, %v1278
        %v1327 = vadd.f32 %v1258, %v1278
        %v1328 = vadd.f32 %v1259, %v1278
        %v1329 = vadd.f32 %v1260, %v1278
        %v1330 = vadd.f32 %v1261, %v1278
        %v1331 = vadd.f32 %v1262, %v1278
        %v1332 = vadd.f32 %v1263, %v1278
        %v1333 = vadd.f32 %v1264, %v1278
        %v1334 = vadd.f32 %v1265, %v1278
        %v1335 = vadd.f32 %v1266, %v1278
        %v1336 = vadd.f32 %v1267, %v1278
        %v1337 = vadd.f32 %v1268, %v1278
        %v1338 = vadd.f32 %v1269, %v1278
        %v1339 = vadd.f32 %v1270, %v1278
        %v1340 = vadd.f32 %v1271, %v1278
        %v1341 = vadd.f32 %v1272, %v1278
        %v1342 = vadd.f32 %v1273, %v1278
        %v1343 = vld [vmem:[%s260] sm:$0xf]
        %v1344 = vld [vmem:[%s260 + $0x4] sm:$0xf]
        %v1345 = vld [vmem:[%s260 + $0x8] sm:$0xf]
        %v1346 = vld [vmem:[%s260 + $0xc] sm:$0xf]
        %v1347 = vld [vmem:[%s260 + $0x10] sm:$0xf]
        %v1348 = vld [vmem:[%s260 + $0x14] sm:$0xf]
        %v1349 = vld [vmem:[%s260 + $0x18] sm:$0xf]
        %v1350 = vld [vmem:[%s260 + $0x1c] sm:$0xf]
        %v1351 = vld [vmem:[%s260 + $0x20] sm:$0xf]
        %v1352 = vld [vmem:[%s260 + $0x24] sm:$0xf]
        %v1353 = vld [vmem:[%s260 + $0x28] sm:$0xf]
        %v1354 = vld [vmem:[%s260 + $0x2c] sm:$0xf]
        %v1355 = vld [vmem:[%s260 + $0x30] sm:$0xf]
        %v1356 = vld [vmem:[%s260 + $0x34] sm:$0xf]
        %v1357 = vld [vmem:[%s260 + $0x38] sm:$0xf]
        %v1358 = vld [vmem:[%s260 + $0x3c] sm:$0xf]
        %v1359 = vld [vmem:[%s260 + $0x40] sm:$0xf]
        %v1360 = vld [vmem:[%s260 + $0x44] sm:$0xf]
        %v1361 = vld [vmem:[%s260 + $0x48] sm:$0xf]
        %v1362 = vld [vmem:[%s260 + $0x4c] sm:$0xf]
        %v1363 = vld [vmem:[%s260 + $0x50] sm:$0xf]
        %v1364 = vld [vmem:[%s260 + $0x54] sm:$0xf]
        %v1365 = vld [vmem:[%s260 + $0x58] sm:$0xf]
        %v1366 = vld [vmem:[%s260 + $0x5c] sm:$0xf]
        %v1367 = vld [vmem:[%s260 + $0x60] sm:$0xf]
        %v1368 = vld [vmem:[%s260 + $0x64] sm:$0xf]
        %v1369 = vld [vmem:[%s260 + $0x68] sm:$0xf]
        %v1370 = vld [vmem:[%s260 + $0x6c] sm:$0xf]
        %v1371 = vld [vmem:[%s260 + $0x70] sm:$0xf]
        %v1372 = vld [vmem:[%s260 + $0x74] sm:$0xf]
        %v1373 = vld [vmem:[%s260 + $0x78] sm:$0xf]
        %v1374 = vld [vmem:[%s260 + $0x7c] sm:$0xf]
        %v1375 = vld [vmem:[%s260 + $0x80] sm:$0xf]
        %v1376 = vld [vmem:[%s260 + $0x84] sm:$0xf]
        %v1377 = vld [vmem:[%s260 + $0x88] sm:$0xf]
        %v1378 = vld [vmem:[%s260 + $0x8c] sm:$0xf]
        %v1379 = vld [vmem:[%s260 + $0x90] sm:$0xf]
        %v1380 = vld [vmem:[%s260 + $0x94] sm:$0xf]
        %v1381 = vld [vmem:[%s260 + $0x98] sm:$0xf]
        %v1382 = vld [vmem:[%s260 + $0x9c] sm:$0xf]
        %v1383 = vld [vmem:[%s260 + $0xa0] sm:$0xf]
        %v1384 = vld [vmem:[%s260 + $0xa4] sm:$0xf]
        %v1385 = vld [vmem:[%s260 + $0xa8] sm:$0xf]
        %v1386 = vld [vmem:[%s260 + $0xac] sm:$0xf]
        %v1387 = vld [vmem:[%s260 + $0xb0] sm:$0xf]
        %v1388 = vld [vmem:[%s260 + $0xb4] sm:$0xf]
        %v1389 = vld [vmem:[%s260 + $0xb8] sm:$0xf]
        %v1390 = vld [vmem:[%s260 + $0xbc] sm:$0xf]
        %v1391 = vld [vmem:[%s260 + $0xc0] sm:$0xf]
        %v1392 = vld [vmem:[%s260 + $0xc4] sm:$0xf]
        %v1393 = vld [vmem:[%s260 + $0xc8] sm:$0xf]
        %v1394 = vld [vmem:[%s260 + $0xcc] sm:$0xf]
        %v1395 = vld [vmem:[%s260 + $0xd0] sm:$0xf]
        %v1396 = vld [vmem:[%s260 + $0xd4] sm:$0xf]
        %v1397 = vld [vmem:[%s260 + $0xd8] sm:$0xf]
        %v1398 = vld [vmem:[%s260 + $0xdc] sm:$0xf]
        %v1399 = vld [vmem:[%s260 + $0xe0] sm:$0xf]
        %v1400 = vld [vmem:[%s260 + $0xe4] sm:$0xf]
        %v1401 = vld [vmem:[%s260 + $0xe8] sm:$0xf]
        %v1402 = vld [vmem:[%s260 + $0xec] sm:$0xf]
        %v1403 = vld [vmem:[%s260 + $0xf0] sm:$0xf]
        %v1404 = vld [vmem:[%s260 + $0xf4] sm:$0xf]
        %v1405 = vld [vmem:[%s260 + $0xf8] sm:$0xf]
        %v1406 = vld [vmem:[%s260 + $0xfc] sm:$0xf]
        %v1407 = vunpack.c.l.bf16 %v1343
        %v1408 = vunpack.c.l.bf16 %v1344
        %v1409 = vunpack.c.l.bf16 %v1345
        %v1410 = vunpack.c.l.bf16 %v1346
        %v1411 = vunpack.c.l.bf16 %v1347
        %v1412 = vunpack.c.l.bf16 %v1348
        %v1413 = vunpack.c.l.bf16 %v1349
        %v1414 = vunpack.c.l.bf16 %v1350
        %v1415 = vunpack.c.l.bf16 %v1351
        %v1416 = vunpack.c.l.bf16 %v1352
        %v1417 = vunpack.c.l.bf16 %v1353
        %v1418 = vunpack.c.l.bf16 %v1354
        %v1419 = vunpack.c.l.bf16 %v1355
        %v1420 = vunpack.c.l.bf16 %v1356
        %v1421 = vunpack.c.l.bf16 %v1357
        %v1422 = vunpack.c.l.bf16 %v1358
        %v1423 = vunpack.c.l.bf16 %v1359
        %v1424 = vunpack.c.l.bf16 %v1360
        %v1425 = vunpack.c.l.bf16 %v1361
        %v1426 = vunpack.c.l.bf16 %v1362
        %v1427 = vunpack.c.l.bf16 %v1363
        %v1428 = vunpack.c.l.bf16 %v1364
        %v1429 = vunpack.c.l.bf16 %v1365
        %v1430 = vunpack.c.l.bf16 %v1366
        %v1431 = vunpack.c.l.bf16 %v1367
        %v1432 = vunpack.c.l.bf16 %v1368
        %v1433 = vunpack.c.l.bf16 %v1369
        %v1434 = vunpack.c.l.bf16 %v1370
        %v1435 = vunpack.c.l.bf16 %v1371
        %v1436 = vunpack.c.l.bf16 %v1372
        %v1437 = vunpack.c.l.bf16 %v1373
        %v1438 = vunpack.c.l.bf16 %v1374
        %v1439 = vunpack.c.l.bf16 %v1375
        %v1440 = vunpack.c.l.bf16 %v1376
        %v1441 = vunpack.c.l.bf16 %v1377
        %v1442 = vunpack.c.l.bf16 %v1378
        %v1443 = vunpack.c.l.bf16 %v1379
        %v1444 = vunpack.c.l.bf16 %v1380
        %v1445 = vunpack.c.l.bf16 %v1381
        %v1446 = vunpack.c.l.bf16 %v1382
        %v1447 = vunpack.c.l.bf16 %v1383
        %v1448 = vunpack.c.l.bf16 %v1384
        %v1449 = vunpack.c.l.bf16 %v1385
        %v1450 = vunpack.c.l.bf16 %v1386
        %v1451 = vunpack.c.l.bf16 %v1387
        %v1452 = vunpack.c.l.bf16 %v1388
        %v1453 = vunpack.c.l.bf16 %v1389
        %v1454 = vunpack.c.l.bf16 %v1390
        %v1455 = vunpack.c.l.bf16 %v1391
        %v1456 = vunpack.c.l.bf16 %v1392
        %v1457 = vunpack.c.l.bf16 %v1393
        %v1458 = vunpack.c.l.bf16 %v1394
        %v1459 = vunpack.c.l.bf16 %v1395
        %v1460 = vunpack.c.l.bf16 %v1396
        %v1461 = vunpack.c.l.bf16 %v1397
        %v1462 = vunpack.c.l.bf16 %v1398
        %v1463 = vunpack.c.l.bf16 %v1399
        %v1464 = vunpack.c.l.bf16 %v1400
        %v1465 = vunpack.c.l.bf16 %v1401
        %v1466 = vunpack.c.l.bf16 %v1402
        %v1467 = vunpack.c.l.bf16 %v1403
        %v1468 = vunpack.c.l.bf16 %v1404
        %v1469 = vunpack.c.l.bf16 %v1405
        %v1470 = vunpack.c.l.bf16 %v1406
        %v1471 = vadd.f32 %v1279, %v1407
        %v1472 = vadd.f32 %v1280, %v1408
        %v1473 = vadd.f32 %v1281, %v1409
        %v1474 = vadd.f32 %v1282, %v1410
        %v1475 = vadd.f32 %v1283, %v1411
        %v1476 = vadd.f32 %v1284, %v1412
        %v1477 = vadd.f32 %v1285, %v1413
        %v1478 = vadd.f32 %v1286, %v1414
        %v1479 = vadd.f32 %v1287, %v1415
        %v1480 = vadd.f32 %v1288, %v1416
        %v1481 = vadd.f32 %v1289, %v1417
        %v1482 = vadd.f32 %v1290, %v1418
        %v1483 = vadd.f32 %v1291, %v1419
        %v1484 = vadd.f32 %v1292, %v1420
        %v1485 = vadd.f32 %v1293, %v1421
        %v1486 = vadd.f32 %v1294, %v1422
        %v1487 = vadd.f32 %v1295, %v1423
        %v1488 = vadd.f32 %v1296, %v1424
        %v1489 = vadd.f32 %v1297, %v1425
        %v1490 = vadd.f32 %v1298, %v1426
        %v1491 = vadd.f32 %v1299, %v1427
        %v1492 = vadd.f32 %v1300, %v1428
        %v1493 = vadd.f32 %v1301, %v1429
        %v1494 = vadd.f32 %v1302, %v1430
        %v1495 = vadd.f32 %v1303, %v1431
        %v1496 = vadd.f32 %v1304, %v1432
        %v1497 = vadd.f32 %v1305, %v1433
        %v1498 = vadd.f32 %v1306, %v1434
        %v1499 = vadd.f32 %v1307, %v1435
        %v1500 = vadd.f32 %v1308, %v1436
        %v1501 = vadd.f32 %v1309, %v1437
        %v1502 = vadd.f32 %v1310, %v1438
        %v1503 = vadd.f32 %v1311, %v1439
        %v1504 = vadd.f32 %v1312, %v1440
        %v1505 = vadd.f32 %v1313, %v1441
        %v1506 = vadd.f32 %v1314, %v1442
        %v1507 = vadd.f32 %v1315, %v1443
        %v1508 = vadd.f32 %v1316, %v1444
        %v1509 = vadd.f32 %v1317, %v1445
        %v1510 = vadd.f32 %v1318, %v1446
        %v1511 = vadd.f32 %v1319, %v1447
        %v1512 = vadd.f32 %v1320, %v1448
        %v1513 = vadd.f32 %v1321, %v1449
        %v1514 = vadd.f32 %v1322, %v1450
        %v1515 = vadd.f32 %v1323, %v1451
        %v1516 = vadd.f32 %v1324, %v1452
        %v1517 = vadd.f32 %v1325, %v1453
        %v1518 = vadd.f32 %v1326, %v1454
        %v1519 = vadd.f32 %v1327, %v1455
        %v1520 = vadd.f32 %v1328, %v1456
        %v1521 = vadd.f32 %v1329, %v1457
        %v1522 = vadd.f32 %v1330, %v1458
        %v1523 = vadd.f32 %v1331, %v1459
        %v1524 = vadd.f32 %v1332, %v1460
        %v1525 = vadd.f32 %v1333, %v1461
        %v1526 = vadd.f32 %v1334, %v1462
        %v1527 = vadd.f32 %v1335, %v1463
        %v1528 = vadd.f32 %v1336, %v1464
        %v1529 = vadd.f32 %v1337, %v1465
        %v1530 = vadd.f32 %v1338, %v1466
        %v1531 = vadd.f32 %v1339, %v1467
        %v1532 = vadd.f32 %v1340, %v1468
        %v1533 = vadd.f32 %v1341, %v1469
        %v1534 = vadd.f32 %v1342, %v1470
        %v1535 = vmax.f32 %v1471, 0.0
        %v1536 = vmax.f32 %v1472, 0.0
        %v1537 = vmax.f32 %v1473, 0.0
        %v1538 = vmax.f32 %v1474, 0.0
        %v1539 = vmax.f32 %v1475, 0.0
        %v1540 = vmax.f32 %v1476, 0.0
        %v1541 = vmax.f32 %v1477, 0.0
        %v1542 = vmax.f32 %v1478, 0.0
        %v1543 = vmax.f32 %v1479, 0.0
        %v1544 = vmax.f32 %v1480, 0.0
        %v1545 = vmax.f32 %v1481, 0.0
        %v1546 = vmax.f32 %v1482, 0.0
        %v1547 = vmax.f32 %v1483, 0.0
        %v1548 = vmax.f32 %v1484, 0.0
        %v1549 = vmax.f32 %v1485, 0.0
        %v1550 = vmax.f32 %v1486, 0.0
        %v1551 = vmax.f32 %v1487, 0.0
        %v1552 = vmax.f32 %v1488, 0.0
        %v1553 = vmax.f32 %v1489, 0.0
        %v1554 = vmax.f32 %v1490, 0.0
        %v1555 = vmax.f32 %v1491, 0.0
        %v1556 = vmax.f32 %v1492, 0.0
        %v1557 = vmax.f32 %v1493, 0.0
        %v1558 = vmax.f32 %v1494, 0.0
        %v1559 = vmax.f32 %v1495, 0.0
        %v1560 = vmax.f32 %v1496, 0.0
        %v1561 = vmax.f32 %v1497, 0.0
        %v1562 = vmax.f32 %v1498, 0.0
        %v1563 = vmax.f32 %v1499, 0.0
        %v1564 = vmax.f32 %v1500, 0.0
        %v1565 = vmax.f32 %v1501, 0.0
        %v1566 = vmax.f32 %v1502, 0.0
        %v1567 = vmax.f32 %v1503, 0.0
        %v1568 = vmax.f32 %v1504, 0.0
        %v1569 = vmax.f32 %v1505, 0.0
        %v1570 = vmax.f32 %v1506, 0.0
        %v1571 = vmax.f32 %v1507, 0.0
        %v1572 = vmax.f32 %v1508, 0.0
        %v1573 = vmax.f32 %v1509, 0.0
        %v1574 = vmax.f32 %v1510, 0.0
        %v1575 = vmax.f32 %v1511, 0.0
        %v1576 = vmax.f32 %v1512, 0.0
        %v1577 = vmax.f32 %v1513, 0.0
        %v1578 = vmax.f32 %v1514, 0.0
        %v1579 = vmax.f32 %v1515, 0.0
        %v1580 = vmax.f32 %v1516, 0.0
        %v1581 = vmax.f32 %v1517, 0.0
        %v1582 = vmax.f32 %v1518, 0.0
        %v1583 = vmax.f32 %v1519, 0.0
        %v1584 = vmax.f32 %v1520, 0.0
        %v1585 = vmax.f32 %v1521, 0.0
        %v1586 = vmax.f32 %v1522, 0.0
        %v1587 = vmax.f32 %v1523, 0.0
        %v1588 = vmax.f32 %v1524, 0.0
        %v1589 = vmax.f32 %v1525, 0.0
        %v1590 = vmax.f32 %v1526, 0.0
        %v1591 = vmax.f32 %v1527, 0.0
        %v1592 = vmax.f32 %v1528, 0.0
        %v1593 = vmax.f32 %v1529, 0.0
        %v1594 = vmax.f32 %v1530, 0.0
        %v1595 = vmax.f32 %v1531, 0.0
        %v1596 = vmax.f32 %v1532, 0.0
        %v1597 = vmax.f32 %v1533, 0.0
        %v1598 = vmax.f32 %v1534, 0.0
        %1599 = vst [vmem:[%s266] sm:$0xff] %v1535
        %1600 = vst [vmem:[%s266 + $0x8] sm:$0xff] %v1536
        %1601 = vst [vmem:[%s266 + $0x10] sm:$0xff] %v1537
        %1602 = vst [vmem:[%s266 + $0x18] sm:$0xff] %v1538
        %1603 = vst [vmem:[%s266 + $0x20] sm:$0xff] %v1539
        %1604 = vst [vmem:[%s266 + $0x28] sm:$0xff] %v1540
        %1605 = vst [vmem:[%s266 + $0x30] sm:$0xff] %v1541
        %1606 = vst [vmem:[%s266 + $0x38] sm:$0xff] %v1542
        %1607 = vst [vmem:[%s266 + $0x40] sm:$0xff] %v1543
        %1608 = vst [vmem:[%s266 + $0x48] sm:$0xff] %v1544
        %1609 = vst [vmem:[%s266 + $0x50] sm:$0xff] %v1545
        %1610 = vst [vmem:[%s266 + $0x58] sm:$0xff] %v1546
        %1611 = vst [vmem:[%s266 + $0x60] sm:$0xff] %v1547
        %1612 = vst [vmem:[%s266 + $0x68] sm:$0xff] %v1548
        %1613 = vst [vmem:[%s266 + $0x70] sm:$0xff] %v1549
        %1614 = vst [vmem:[%s266 + $0x78] sm:$0xff] %v1550
        %1615 = vst [vmem:[%s266 + $0x80] sm:$0xff] %v1551
        %1616 = vst [vmem:[%s266 + $0x88] sm:$0xff] %v1552
        %1617 = vst [vmem:[%s266 + $0x90] sm:$0xff] %v1553
        %1618 = vst [vmem:[%s266 + $0x98] sm:$0xff] %v1554
        %1619 = vst [vmem:[%s266 + $0xa0] sm:$0xff] %v1555
        %1620 = vst [vmem:[%s266 + $0xa8] sm:$0xff] %v1556
        %1621 = vst [vmem:[%s266 + $0xb0] sm:$0xff] %v1557
        %1622 = vst [vmem:[%s266 + $0xb8] sm:$0xff] %v1558
        %1623 = vst [vmem:[%s266 + $0xc0] sm:$0xff] %v1559
        %1624 = vst [vmem:[%s266 + $0xc8] sm:$0xff] %v1560
        %1625 = vst [vmem:[%s266 + $0xd0] sm:$0xff] %v1561
        %1626 = vst [vmem:[%s266 + $0xd8] sm:$0xff] %v1562
        %1627 = vst [vmem:[%s266 + $0xe0] sm:$0xff] %v1563
        %1628 = vst [vmem:[%s266 + $0xe8] sm:$0xff] %v1564
        %1629 = vst [vmem:[%s266 + $0xf0] sm:$0xff] %v1565
        %1630 = vst [vmem:[%s266 + $0xf8] sm:$0xff] %v1566
        %1631 = vst [vmem:[%s266 + $0x100] sm:$0xff] %v1567
        %1632 = vst [vmem:[%s266 + $0x108] sm:$0xff] %v1568
        %1633 = vst [vmem:[%s266 + $0x110] sm:$0xff] %v1569
        %1634 = vst [vmem:[%s266 + $0x118] sm:$0xff] %v1570
        %1635 = vst [vmem:[%s266 + $0x120] sm:$0xff] %v1571
        %1636 = vst [vmem:[%s266 + $0x128] sm:$0xff] %v1572
        %1637 = vst [vmem:[%s266 + $0x130] sm:$0xff] %v1573
        %1638 = vst [vmem:[%s266 + $0x138] sm:$0xff] %v1574
        %1639 = vst [vmem:[%s266 + $0x140] sm:$0xff] %v1575
        %1640 = vst [vmem:[%s266 + $0x148] sm:$0xff] %v1576
        %1641 = vst [vmem:[%s266 + $0x150] sm:$0xff] %v1577
        %1642 = vst [vmem:[%s266 + $0x158] sm:$0xff] %v1578
        %1643 = vst [vmem:[%s266 + $0x160] sm:$0xff] %v1579
        %1644 = vst [vmem:[%s266 + $0x168] sm:$0xff] %v1580
        %1645 = vst [vmem:[%s266 + $0x170] sm:$0xff] %v1581
        %1646 = vst [vmem:[%s266 + $0x178] sm:$0xff] %v1582
        %1647 = vst [vmem:[%s266 + $0x180] sm:$0xff] %v1583
        %1648 = vst [vmem:[%s266 + $0x188] sm:$0xff] %v1584
        %1649 = vst [vmem:[%s266 + $0x190] sm:$0xff] %v1585
        %1650 = vst [vmem:[%s266 + $0x198] sm:$0xff] %v1586
        %1651 = vst [vmem:[%s266 + $0x1a0] sm:$0xff] %v1587
        %1652 = vst [vmem:[%s266 + $0x1a8] sm:$0xff] %v1588
        %1653 = vst [vmem:[%s266 + $0x1b0] sm:$0xff] %v1589
        %1654 = vst [vmem:[%s266 + $0x1b8] sm:$0xff] %v1590
        %1655 = vst [vmem:[%s266 + $0x1c0] sm:$0xff] %v1591
        %1656 = vst [vmem:[%s266 + $0x1c8] sm:$0xff] %v1592
        %1657 = vst [vmem:[%s266 + $0x1d0] sm:$0xff] %v1593
        %1658 = vst [vmem:[%s266 + $0x1d8] sm:$0xff] %v1594
        %1659 = vst [vmem:[%s266 + $0x1e0] sm:$0xff] %v1595
        %1660 = vst [vmem:[%s266 + $0x1e8] sm:$0xff] %v1596
        %1661 = vst [vmem:[%s266 + $0x1f0] sm:$0xff] %v1597
        %1662 = vst [vmem:[%s266 + $0x1f8] sm:$0xff] %v1598
      $region44: #{bottleneck_forward.5} parent=35 // pred_fallthru
        _
      %s1663 = smul.u32 64, %s19
      %p1664 = scmp.lt.s32.totalorder %s1663, 127
      %s1665 = scalar_select %p1664, %s1663, 127
      %s1666 = smul.addr %s1665, 8
      %s1667 = scalar_lea.vmem %s4, %s1666
      // Predicated region
      $region45: #{bottleneck_forward.5} parent=35 // pred_check
        %p1668 = pneg %p146
      $region46: #{bottleneck_forward.5} parent=35 // pred_check_branch
        %1670 = sbr.rel (%p1668) target = $region48
      $region47: #{bottleneck_forward.5} parent=35 // pred_region
        %s1671 = smul.u32 64, %s19
      $region48: #{bottleneck_forward.5} parent=35 // pred_fallthru
        _
    $region36: #{bottleneck_forward.5} parent=5 // pred_fallthru
      _
    %p1672 = scmp.le.s32.totalorder 2, %s10
    // Predicated region
    $region49: #{bottleneck_forward.5} parent=5 // pred_check
      %p1673 = pneg %p1672
    $region50: #{bottleneck_forward.5} parent=5 // pred_check_branch
      %1675 = sbr.rel (%p1673) target = $region52
    $region51: #{bottleneck_forward.5} parent=5 // pred_region
      %s1676 = ssub.s32 %s10, 2
      // Predicated region
      $region53: #{bottleneck_forward.5} parent=51 // pred_check
        %p1677 = pneg %p152
      $region54: #{bottleneck_forward.5} parent=51 // pred_check_branch
        %1679 = sbr.rel (%p1677) target = $region56
      $region55: #{bottleneck_forward.5} parent=51 // pred_region
        %s1680 = smul.u32 64, %s21
        %p1681 = scmp.lt.s32.totalorder %s1680, 127
        %s1682 = scalar_select %p1681, %s1680, 127
        %s1683 = smul.addr %s1682, 8
        %s1684 = scalar_lea.vmem %s4, %s1683
      $region56: #{bottleneck_forward.5} parent=51 // pred_fallthru
        _
    $region52: #{bottleneck_forward.5} parent=5 // pred_fallthru
      _
  $region6: #{bottleneck_forward.5} parent=0 // loop_footer
    %s14 = sadd.s32 1, %s10
  $region7: #{bottleneck_forward.5} parent=0 // loop_footer_branch
    %9 = sbr.rel target = $region3
  $region8: #{bottleneck_forward.5} parent=0 // loop_exit
    _

// kernel: bottleneck_forward.4
$region0: #{bottleneck_forward.4}
  #allocation0 [shape = 'u32[]', space=smem, size = 0x4, offset = 0x4, fixed_abs, tag = 'smem constant byte address 0x4 - core index']
  #allocation1 [shape = 'u32[144,128]{1,0:T(1,128)}', space=vmem, size = 0x12000, scoped, tag = 'internal scratch']
  #allocation2 [shape = 'f32[64,128]{1,0:T(8,128)}', space=vmem, size = 0x8000, scoped, tag = 'scratch operand']
  %s0 = inlined_call_operand.vmem [shape: bf16[2,10,10,10,128], index: 0, kind: input, shape index: {}, may-alias: {0,1,2}]
  %s1 = inlined_call_operand.vmem [shape: bf16[2,10,10,10,128], index: 1, kind: input, shape index: {}, may-alias: {0,1,2}]
  %s2 = inlined_call_operand.vmem [shape: bf16[2,10,10,10,128], index: 2, kind: input, shape index: {}, may-alias: {0,1,2}]
  %s3 = inlined_call_operand.vmem [shape: bf16[9,384,128], index: 3, kind: input, shape index: {}]
  %s4 = inlined_call_operand.vmem [shape: f32[2,128], index: 4, kind: input, shape index: {}]
  %s5 = inlined_call_operand.vmem [shape: bf16[2,8,64,128], index: 5, kind: output, shape index: {}]
  %s6 = sld [smem:[#allocation0]]
  $region53: #{bottleneck_forward.4} parent=0
    _
  %s8 = ssub.s32 1, %s6
  %s9 = scalar_select 0, %s8, %s6
  loop: start=0, step=1, limit=18
  $region2: #{bottleneck_forward.4} parent=0 // loop_pre_header
    _
  $region3: #{bottleneck_forward.4} parent=0 // loop_header
    %s11 = sphi 0, %s15
    %p12 = scmp.ge.s32.totalorder %s11, 18
    %s18 = sphi 0, %s30
    %s19 = sphi 0, %s26
    %s20 = sphi 0, %s18
    %s21 = sphi 0, %s19
    %s22 = sphi 0, %s20
    %s23 = sphi 0, %s21
    %s35 = sphi 0, %s37
    %s38 = sphi 0, %s35
    %s39 = sphi 0, %s38
    %s55 = sphi 0, %s39
    %s65 = sphi 0, %s67
    %s68 = sphi 0, %s65
    %s69 = sphi 0, %s68
    %s85 = sphi 0, %s69
    %s95 = sphi 0, %s97
    %s98 = sphi 0, %s95
    %s99 = sphi 0, %s98
    %s115 = sphi 0, %s99
    %s119 = sphi 0, %s119
    %s121 = sphi 0, %s119
    %s122 = sphi 0, %s121
    %s136 = sphi 0, %s122
    %s140 = sphi 0, %s140
    %s142 = sphi 0, %s140
    %s143 = sphi 0, %s142
    %s157 = sphi 0, %s143
    %s165 = sphi 0, %s167
    %s168 = sphi 0, %s165
    %s169 = sphi 0, %s168
    %s185 = sphi 0, %s169
  $region4: #{bottleneck_forward.4} parent=0 // loop_header_branch
    %14 = sbr.rel (%p12) target = $region8
  $region5: #{bottleneck_forward.4} parent=0 // loop_body
    %s16 = ssub.s32 %s11, 1
    %s17 = ssub.s32 %s11, 2
    %s24 = sadd.s32 1, %s19
    %p25 = scmp.ge.s32.totalorder %s24, 8
    %s26 = scalar_select %p25, 0, %s24
    %s27 = sadd.s32 1, %s18
    %s28 = scalar_select %p25, %s27, %s18
    %p29 = scmp.ge.s32.totalorder %s28, 2
    %s30 = scalar_select %p29, 0, %s28
    %s31 = ssub.s32 %s18, %s30
    %s32 = ssub.s32 %s19, %s26
    %s33 = sor.u32 %s31, %s32
    %p34 = scmp.eq.s32.totalorder %s33, 0
    %s36 = sadd.s32 %s35, 1
    %s37 = scalar_select %p34, %s35, %s36
    %p40 = pneg %p34
    %p41 = scmp.eq.s32.totalorder %s11, 15
    %p42 = por %p40, %p41
    %p43 = scmp.ne.s32.totalorder %s35, %s38
    %p44 = scmp.eq.s32.totalorder %s11, 0
    %p45 = por %p43, %p44
    %p46 = scmp.ne.s32.totalorder %s35, %s38
    %p47 = scmp.eq.s32.totalorder %s16, 15
    %p48 = por %p46, %p47
    %p49 = scmp.ne.s32.totalorder %s38, %s39
    %p50 = scmp.eq.s32.totalorder %s16, 0
    %p51 = por %p49, %p50
    %p52 = scmp.ne.s32.totalorder %s38, %s39
    %p53 = scmp.eq.s32.totalorder %s17, 15
    %p54 = por %p52, %p53
    %p56 = scmp.ne.s32.totalorder %s39, %s55
    %p57 = scmp.eq.s32.totalorder %s17, 0
    %p58 = por %p56, %p57
    %s59 = sadd.s32 %s19, 1
    %s60 = sadd.s32 %s26, 1
    %s61 = ssub.s32 %s18, %s30
    %s62 = ssub.s32 %s59, %s60
    %s63 = sor.u32 %s61, %s62
    %p64 = scmp.eq.s32.totalorder %s63, 0
    %s66 = sadd.s32 %s65, 1
    %s67 = scalar_select %p64, %s65, %s66
    %p70 = pneg %p64
    %p71 = scmp.eq.s32.totalorder %s11, 15
    %p72 = por %p70, %p71
    %p73 = scmp.ne.s32.totalorder %s65, %s68
    %p74 = scmp.eq.s32.totalorder %s11, 0
    %p75 = por %p73, %p74
    %p76 = scmp.ne.s32.totalorder %s65, %s68
    %p77 = scmp.eq.s32.totalorder %s16, 15
    %p78 = por %p76, %p77
    %p79 = scmp.ne.s32.totalorder %s68, %s69
    %p80 = scmp.eq.s32.totalorder %s16, 0
    %p81 = por %p79, %p80
    %p82 = scmp.ne.s32.totalorder %s68, %s69
    %p83 = scmp.eq.s32.totalorder %s17, 15
    %p84 = por %p82, %p83
    %p86 = scmp.ne.s32.totalorder %s69, %s85
    %p87 = scmp.eq.s32.totalorder %s17, 0
    %p88 = por %p86, %p87
    %s89 = sadd.s32 %s19, 2
    %s90 = sadd.s32 %s26, 2
    %s91 = ssub.s32 %s18, %s30
    %s92 = ssub.s32 %s89, %s90
    %s93 = sor.u32 %s91, %s92
    %p94 = scmp.eq.s32.totalorder %s93, 0
    %s96 = sadd.s32 %s95, 1
    %s97 = scalar_select %p94, %s95, %s96
    %p100 = pneg %p94
    %p101 = scmp.eq.s32.totalorder %s11, 15
    %p102 = por %p100, %p101
    %p103 = scmp.ne.s32.totalorder %s95, %s98
    %p104 = scmp.eq.s32.totalorder %s11, 0
    %p105 = por %p103, %p104
    %p106 = scmp.ne.s32.totalorder %s95, %s98
    %p107 = scmp.eq.s32.totalorder %s16, 15
    %p108 = por %p106, %p107
    %p109 = scmp.ne.s32.totalorder %s98, %s99
    %p110 = scmp.eq.s32.totalorder %s16, 0
    %p111 = por %p109, %p110
    %p112 = scmp.ne.s32.totalorder %s98, %s99
    %p113 = scmp.eq.s32.totalorder %s17, 15
    %p114 = por %p112, %p113
    %p116 = scmp.ne.s32.totalorder %s99, %s115
    %p117 = scmp.eq.s32.totalorder %s17, 0
    %p118 = por %p116, %p117
    %s120 = sadd.s32 %s119, 1
    %p123 = scmp.eq.s32.totalorder %s11, 15
    %p124 = scmp.ne.s32.totalorder %s119, %s121
    %p125 = scmp.eq.s32.totalorder %s11, 0
    %p126 = por %p124, %p125
    %p127 = scmp.ne.s32.totalorder %s119, %s121
    %p128 = scmp.eq.s32.totalorder %s16, 15
    %p129 = por %p127, %p128
    %p130 = scmp.ne.s32.totalorder %s121, %s122
    %p131 = scmp.eq.s32.totalorder %s16, 0
    %p132 = por %p130, %p131
    %p133 = scmp.ne.s32.totalorder %s121, %s122
    %p134 = scmp.eq.s32.totalorder %s17, 15
    %p135 = por %p133, %p134
    %p137 = scmp.ne.s32.totalorder %s122, %s136
    %p138 = scmp.eq.s32.totalorder %s17, 0
    %p139 = por %p137, %p138
    %s141 = sadd.s32 %s140, 1
    %p144 = scmp.eq.s32.totalorder %s11, 15
    %p145 = scmp.ne.s32.totalorder %s140, %s142
    %p146 = scmp.eq.s32.totalorder %s11, 0
    %p147 = por %p145, %p146
    %p148 = scmp.ne.s32.totalorder %s140, %s142
    %p149 = scmp.eq.s32.totalorder %s16, 15
    %p150 = por %p148, %p149
    %p151 = scmp.ne.s32.totalorder %s142, %s143
    %p152 = scmp.eq.s32.totalorder %s16, 0
    %p153 = por %p151, %p152
    %p154 = scmp.ne.s32.totalorder %s142, %s143
    %p155 = scmp.eq.s32.totalorder %s17, 15
    %p156 = por %p154, %p155
    %p158 = scmp.ne.s32.totalorder %s143, %s157
    %p159 = scmp.eq.s32.totalorder %s17, 0
    %p160 = por %p158, %p159
    %s161 = ssub.s32 %s18, %s30
    %s162 = ssub.s32 %s19, %s26
    %s163 = sor.u32 %s161, %s162
    %p164 = scmp.eq.s32.totalorder %s163, 0
    %s166 = sadd.s32 %s165, 1
    %s167 = scalar_select %p164, %s165, %s166
    %p170 = pneg %p164
    %p171 = scmp.eq.s32.totalorder %s11, 15
    %p172 = por %p170, %p171
    %p173 = scmp.ne.s32.totalorder %s165, %s168
    %p174 = scmp.eq.s32.totalorder %s11, 0
    %p175 = por %p173, %p174
    %p176 = scmp.ne.s32.totalorder %s165, %s168
    %p177 = scmp.eq.s32.totalorder %s16, 15
    %p178 = por %p176, %p177
    %p179 = scmp.ne.s32.totalorder %s168, %s169
    %p180 = scmp.eq.s32.totalorder %s16, 0
    %p181 = por %p179, %p180
    %p182 = scmp.ne.s32.totalorder %s168, %s169
    %p183 = scmp.eq.s32.totalorder %s17, 15
    %p184 = por %p182, %p183
    %p186 = scmp.ne.s32.totalorder %s169, %s185
    %p187 = scmp.eq.s32.totalorder %s17, 0
    %p188 = por %p186, %p187
    %p189 = scmp.le.s32.totalorder 1, %s11
    %p190 = scmp.lt.s32.totalorder %s11, 17
    %p191 = pnand %p189, %p190
    %p192 = pneg %p191
    // Predicated region
    $region9: #{bottleneck_forward.4} parent=5 // pred_check
      _
    $region10: #{bottleneck_forward.4} parent=5 // pred_check_branch
      %194 = sbr.rel (%p191) target = $region12
    $region11: #{bottleneck_forward.4} parent=5 // pred_region
      %s195 = ssub.s32 %s11, 1
      // Predicated region
      $region13: #{bottleneck_forward.4} parent=11 // pred_check
        %p196 = pneg %p132
      $region14: #{bottleneck_forward.4} parent=11 // pred_check_branch
        %198 = sbr.rel (%p196) target = $region16
      $region15: #{bottleneck_forward.4} parent=11 // pred_region
        _
      $region16: #{bottleneck_forward.4} parent=11 // pred_fallthru
        _
      // Predicated region
      $region17: #{bottleneck_forward.4} parent=11 // pred_check
        %p199 = pneg %p153
      $region18: #{bottleneck_forward.4} parent=11 // pred_check_branch
        %201 = sbr.rel (%p199) target = $region20
      $region19: #{bottleneck_forward.4} parent=11 // pred_region
        _
      $region20: #{bottleneck_forward.4} parent=11 // pred_fallthru
        _
    $region12: #{bottleneck_forward.4} parent=5 // pred_fallthru
      _
    %p202 = scmp.lt.s32.totalorder %s11, 16
    // Predicated region
    $region21: #{bottleneck_forward.4} parent=5 // pred_check
      %p203 = pneg %p202
    $region22: #{bottleneck_forward.4} parent=5 // pred_check_branch
      %205 = sbr.rel (%p203) target = $region24
    $region23: #{bottleneck_forward.4} parent=5 // pred_region
      // Predicated region
      $region25: #{bottleneck_forward.4} parent=23 // pred_check
        %p206 = pneg %p45
      $region26: #{bottleneck_forward.4} parent=23 // pred_check_branch
        %208 = sbr.rel (%p206) target = $region28
      $region27: #{bottleneck_forward.4} parent=23 // pred_region
        %p209 = scmp.lt.s32.totalorder %s18, 1
        %s210 = scalar_select %p209, %s18, 1
        %p211 = scmp.lt.s32.totalorder %s19, 9
        %s212 = scalar_select %p211, %s19, 9
        %s213 = smul.addr %s212, 20
        %s214 = smul.addr %s210, 200
        %s215 = sadd.s32 %s213, %s214
        %s216 = smul.addr %s215, 4
        %s217 = scalar_lea.vmem %s0, %s216
      $region28: #{bottleneck_forward.4} parent=23 // pred_fallthru
        _
      // Predicated region
      $region29: #{bottleneck_forward.4} parent=23 // pred_check
        %p218 = pneg %p75
      $region30: #{bottleneck_forward.4} parent=23 // pred_check_branch
        %220 = sbr.rel (%p218) target = $region32
      $region31: #{bottleneck_forward.4} parent=23 // pred_region
        %s221 = sadd.s32 %s19, 1
        %p222 = scmp.lt.s32.totalorder %s18, 1
        %s223 = scalar_select %p222, %s18, 1
        %p224 = scmp.lt.s32.totalorder %s221, 9
        %s225 = scalar_select %p224, %s221, 9
        %s226 = smul.addr %s225, 20
        %s227 = smul.addr %s223, 200
        %s228 = sadd.s32 %s226, %s227
        %s229 = smul.addr %s228, 4
        %s230 = scalar_lea.vmem %s1, %s229
        %s231 = sadd.s32 %s19, 1
      $region32: #{bottleneck_forward.4} parent=23 // pred_fallthru
        _
      // Predicated region
      $region33: #{bottleneck_forward.4} parent=23 // pred_check
        %p232 = pneg %p105
      $region34: #{bottleneck_forward.4} parent=23 // pred_check_branch
        %234 = sbr.rel (%p232) target = $region36
      $region35: #{bottleneck_forward.4} parent=23 // pred_region
        %s235 = sadd.s32 %s19, 2
        %p236 = scmp.lt.s32.totalorder %s18, 1
        %s237 = scalar_select %p236, %s18, 1
        %p238 = scmp.lt.s32.totalorder %s235, 9
        %s239 = scalar_select %p238, %s235, 9
        %s240 = smul.addr %s239, 20
        %s241 = smul.addr %s237, 200
        %s242 = sadd.s32 %s240, %s241
        %s243 = smul.addr %s242, 4
        %s244 = scalar_lea.vmem %s2, %s243
        %s245 = sadd.s32 %s19, 2
      $region36: #{bottleneck_forward.4} parent=23 // pred_fallthru
        _
    $region24: #{bottleneck_forward.4} parent=5 // pred_fallthru
      _
    %p246 = scmp.le.s32.totalorder 1, %s11
    %p247 = scmp.lt.s32.totalorder %s11, 17
    %p248 = pnand %p246, %p247
    %p249 = pneg %p248
    // Predicated region
    $region37: #{bottleneck_forward.4} parent=5 // pred_check
      _
    $region38: #{bottleneck_forward.4} parent=5 // pred_check_branch
      %251 = sbr.rel (%p248) target = $region40
    $region39: #{bottleneck_forward.4} parent=5 // pred_region
      %s252 = ssub.s32 %s11, 1
      %p253 = scmp.lt.s32.totalorder %s20, 1
      %s254 = scalar_select %p253, %s20, 1
      %p255 = scmp.lt.s32.totalorder %s21, 9
      %s256 = scalar_select %p255, %s21, 9
      %s257 = smul.addr %s256, 20
      %s258 = smul.addr %s254, 200
      %s259 = sadd.s32 %s257, %s258
      %s260 = smul.addr %s259, 4
      %s261 = scalar_lea.vmem %s0, %s260
      %p262 = pneg %p51
      %p263 = pneg %p48
      %s264 = sadd.s32 %s21, 1
      %p265 = scmp.lt.s32.totalorder %s20, 1
      %s266 = scalar_select %p265, %s20, 1
      %p267 = scmp.lt.s32.totalorder %s264, 9
      %s268 = scalar_select %p267, %s264, 9
      %s269 = smul.addr %s268, 20
      %s270 = smul.addr %s266, 200
      %s271 = sadd.s32 %s269, %s270
      %s272 = smul.addr %s271, 4
      %s273 = scalar_lea.vmem %s1, %s272
      %p274 = pneg %p81
      %p275 = pneg %p78
      %s276 = sadd.s32 %s21, 2
      %p277 = scmp.lt.s32.totalorder %s20, 1
      %s278 = scalar_select %p277, %s20, 1
      %p279 = scmp.lt.s32.totalorder %s276, 9
      %s280 = scalar_select %p279, %s276, 9
      %s281 = smul.addr %s280, 20
      %s282 = smul.addr %s278, 200
      %s283 = sadd.s32 %s281, %s282
      %s284 = smul.addr %s283, 4
      %s285 = scalar_lea.vmem %s2, %s284
      %p286 = pneg %p111
      %p287 = pneg %p108
      %p288 = pneg %p132
      %p289 = pneg %p129
      %p290 = pneg %p153
      %p291 = pneg %p150
      %p292 = pneg %p181
      %p293 = pneg %p178
      %p294 = scmp.lt.s32.totalorder %s20, 1
      %s295 = scalar_select %p294, %s20, 1
      %p296 = scmp.lt.s32.totalorder %s21, 7
      %s297 = scalar_select %p296, %s21, 7
      %s298 = smul.addr %s297, 8
      %s299 = smul.addr %s295, 64
      %s300 = sadd.s32 %s298, %s299
      %s301 = smul.addr %s300, 4
      %s302 = scalar_lea.vmem %s5, %s301
      %p303 = scmp.lt.s32.totalorder %s20, 1
      %s304 = scalar_select %p303, %s20, 1
      %p305 = scmp.lt.s32.totalorder %s21, 9
      %s306 = scalar_select %p305, %s21, 9
      %s307 = smul.addr %s306, 20
      %s308 = smul.addr %s304, 200
      %s309 = sadd.s32 %s307, %s308
      %s310 = smul.addr %s309, 4
      %s311 = scalar_lea.vmem %s0, %s310
      %s312 = sadd.s32 %s21, 1
      %p313 = scmp.lt.s32.totalorder %s20, 1
      %s314 = scalar_select %p313, %s20, 1
      %p315 = scmp.lt.s32.totalorder %s312, 9
      %s316 = scalar_select %p315, %s312, 9
      %s317 = smul.addr %s316, 20
      %s318 = smul.addr %s314, 200
      %s319 = sadd.s32 %s317, %s318
      %s320 = smul.addr %s319, 4
      %s321 = scalar_lea.vmem %s1, %s320
      %s322 = sadd.s32 %s21, 1
      %s323 = sadd.s32 %s21, 2
      %p324 = scmp.lt.s32.totalorder %s20, 1
      %s325 = scalar_select %p324, %s20, 1
      %p326 = scmp.lt.s32.totalorder %s323, 9
      %s327 = scalar_select %p326, %s323, 9
      %s328 = smul.addr %s327, 20
      %s329 = smul.addr %s325, 200
      %s330 = sadd.s32 %s328, %s329
      %s331 = smul.addr %s330, 4
      %s332 = scalar_lea.vmem %s2, %s331
      %s333 = sadd.s32 %s21, 2
      %p334 = scmp.lt.s32.totalorder %s20, 1
      %s335 = scalar_select %p334, %s20, 1
      %p336 = scmp.lt.s32.totalorder %s21, 7
      %s337 = scalar_select %p336, %s21, 7
      %s338 = smul.addr %s337, 8
      %s339 = smul.addr %s335, 64
      %s340 = sadd.s32 %s338, %s339
      %s341 = smul.addr %s340, 4
      %s342 = scalar_lea.vmem %s5, %s341
      %344 = vst [vmem:[#allocation2] sm:$0xff] 0.0
      %345 = vst [vmem:[#allocation2 + $0x8] sm:$0xff] 0.0
      %346 = vst [vmem:[#allocation2 + $0x10] sm:$0xff] 0.0
      %347 = vst [vmem:[#allocation2 + $0x18] sm:$0xff] 0.0
      %348 = vst [vmem:[#allocation2 + $0x20] sm:$0xff] 0.0
      %349 = vst [vmem:[#allocation2 + $0x28] sm:$0xff] 0.0
      %350 = vst [vmem:[#allocation2 + $0x30] sm:$0xff] 0.0
      %351 = vst [vmem:[#allocation2 + $0x38] sm:$0xff] 0.0
      %v352 = vld [vmem:[%s311] sm:$0xf]
      %v353 = vld [vmem:[%s311 + $0x4] sm:$0x1]
      %v354 = vld [vmem:[%s311 + $0x8] sm:$0xf]
      %v355 = vld [vmem:[%s311 + $0xc] sm:$0x1]
      %v356 = vld [vmem:[%s311 + $0x10] sm:$0xf]
      %v357 = vld [vmem:[%s311 + $0x14] sm:$0x1]
      %v358 = vld [vmem:[%s311 + $0x18] sm:$0xf]
      %v359 = vld [vmem:[%s311 + $0x1c] sm:$0x1]
      %v360 = vld [vmem:[%s311 + $0x20] sm:$0xf]
      %v361 = vld [vmem:[%s311 + $0x24] sm:$0x1]
      %v362 = vld [vmem:[%s311 + $0x28] sm:$0xf]
      %v363 = vld [vmem:[%s311 + $0x2c] sm:$0x1]
      %v364 = vld [vmem:[%s311 + $0x30] sm:$0xf]
      %v365 = vld [vmem:[%s311 + $0x34] sm:$0x1]
      %v366 = vld [vmem:[%s311 + $0x38] sm:$0xf]
      %v367 = vld [vmem:[%s311 + $0x3c] sm:$0x1]
      %v368 = vld [vmem:[%s311 + $0x40] sm:$0xf]
      %v369 = vld [vmem:[%s311 + $0x44] sm:$0x1]
      %v370 = vld [vmem:[%s311 + $0x48] sm:$0xf]
      %v371 = vld [vmem:[%s311 + $0x4c] sm:$0x1]
      %v388 = vunpack.c.l.b16 %v352
      %v389 = vunpack.c.l.b16 %v353
      %v390 = vunpack.c.l.b16 %v354
      %v391 = vunpack.c.l.b16 %v355
      %v392 = vunpack.c.l.b16 %v356
      %v393 = vunpack.c.l.b16 %v357
      %v394 = vunpack.c.l.b16 %v358
      %v395 = vunpack.c.l.b16 %v359
      %v396 = vunpack.c.l.b16 %v360
      %v397 = vunpack.c.l.b16 %v361
      %v398 = vunpack.c.l.b16 %v362
      %v399 = vunpack.c.l.b16 %v363
      %v400 = vunpack.c.l.b16 %v364
      %v401 = vunpack.c.l.b16 %v365
      %v402 = vunpack.c.l.b16 %v366
      %v403 = vunpack.c.l.b16 %v367
      %v404 = vpack.c.b16 %v389, %v388
      %v405 = vpack.c.b16 %v391, %v390
      %v406 = vpack.c.b16 %v393, %v392
      %v407 = vpack.c.b16 %v395, %v394
      %v408 = vpack.c.b16 %v397, %v396
      %v409 = vpack.c.b16 %v399, %v398
      %v410 = vpack.c.b16 %v401, %v400
      %v411 = vpack.c.b16 %v403, %v402
      %v413 = vshrl.u32 %v404, 16
      %v415 = vshll.u32 %v404, 16
      %v417 = vrot.slane %v415, 1
      %v418 = vor.u32 %v413, %v417
      %v420 = vshrl.u32 %v405, 16
      %v422 = vshll.u32 %v405, 16
      %v424 = vrot.slane %v422, 1
      %v425 = vor.u32 %v420, %v424
      %v427 = vshrl.u32 %v406, 16
      %v429 = vshll.u32 %v406, 16
      %v431 = vrot.slane %v429, 1
      %v432 = vor.u32 %v427, %v431
      %v434 = vshrl.u32 %v407, 16
      %v436 = vshll.u32 %v407, 16
      %v438 = vrot.slane %v436, 1
      %v439 = vor.u32 %v434, %v438
      %v441 = vshrl.u32 %v408, 16
      %v443 = vshll.u32 %v408, 16
      %v445 = vrot.slane %v443, 1
      %v446 = vor.u32 %v441, %v445
      %v448 = vshrl.u32 %v409, 16
      %v450 = vshll.u32 %v409, 16
      %v452 = vrot.slane %v450, 1
      %v453 = vor.u32 %v448, %v452
      %v455 = vshrl.u32 %v410, 16
      %v457 = vshll.u32 %v410, 16
      %v459 = vrot.slane %v457, 1
      %v460 = vor.u32 %v455, %v459
      %v462 = vshrl.u32 %v411, 16
      %v464 = vshll.u32 %v411, 16
      %v466 = vrot.slane %v464, 1
      %v467 = vor.u32 %v462, %v466
      %v468 = vrot.slane %v404, 1
      %v469 = vrot.slane %v405, 1
      %v470 = vrot.slane %v406, 1
      %v471 = vrot.slane %v407, 1
      %v472 = vrot.slane %v408, 1
      %v473 = vrot.slane %v409, 1
      %v474 = vrot.slane %v410, 1
      %v475 = vrot.slane %v411, 1
      %v476 = vunpack.c.l.b16 %v418
      %v477 = vunpack.c.l.b16 %v468
      %v478 = vunpack.c.l.b16 %v425
      %v479 = vunpack.c.l.b16 %v469
      %v480 = vunpack.c.l.b16 %v432
      %v481 = vunpack.c.l.b16 %v470
      %v482 = vunpack.c.l.b16 %v439
      %v483 = vunpack.c.l.b16 %v471
      %v484 = vunpack.c.l.b16 %v446
      %v485 = vunpack.c.l.b16 %v472
      %v486 = vunpack.c.l.b16 %v453
      %v487 = vunpack.c.l.b16 %v473
      %v488 = vunpack.c.l.b16 %v460
      %v489 = vunpack.c.l.b16 %v474
      %v490 = vunpack.c.l.b16 %v467
      %v491 = vunpack.c.l.b16 %v475
      %v492 = vld [vmem:[#allocation2] sm:$0xff]
      %v493 = vld [vmem:[#allocation2 + $0x8] sm:$0xff]
      %v494 = vld [vmem:[#allocation2 + $0x10] sm:$0xff]
      %v495 = vld [vmem:[#allocation2 + $0x18] sm:$0xff]
      %v496 = vld [vmem:[#allocation2 + $0x20] sm:$0xff]
      %v497 = vld [vmem:[#allocation2 + $0x28] sm:$0xff]
      %v498 = vld [vmem:[#allocation2 + $0x30] sm:$0xff]
      %v499 = vld [vmem:[#allocation2 + $0x38] sm:$0xff]
      %v500 = vld [vmem:[%s3] sm:$0xf]
      %v501 = vld [vmem:[%s3 + $0x4] sm:$0xf]
      %v502 = vld [vmem:[%s3 + $0x8] sm:$0xf]
      %v503 = vld [vmem:[%s3 + $0xc] sm:$0xf]
      %v504 = vld [vmem:[%s3 + $0x10] sm:$0xf]
      %v505 = vld [vmem:[%s3 + $0x14] sm:$0xf]
      %v506 = vld [vmem:[%s3 + $0x18] sm:$0xf]
      %v507 = vld [vmem:[%s3 + $0x1c] sm:$0xf]
      %v508 = vld [vmem:[%s3 + $0x20] sm:$0xf]
      %v509 = vld [vmem:[%s3 + $0x24] sm:$0xf]
      %v510 = vld [vmem:[%s3 + $0x28] sm:$0xf]
      %v511 = vld [vmem:[%s3 + $0x2c] sm:$0xf]
      %v512 = vld [vmem:[%s3 + $0x30] sm:$0xf]
      %v513 = vld [vmem:[%s3 + $0x34] sm:$0xf]
      %v514 = vld [vmem:[%s3 + $0x38] sm:$0xf]
      %v515 = vld [vmem:[%s3 + $0x3c] sm:$0xf]
      %v516 = vld [vmem:[%s3 + $0x40] sm:$0xf]
      %v517 = vld [vmem:[%s3 + $0x44] sm:$0xf]
      %v518 = vld [vmem:[%s3 + $0x48] sm:$0xf]
      %v519 = vld [vmem:[%s3 + $0x4c] sm:$0xf]
      %v520 = vld [vmem:[%s3 + $0x50] sm:$0xf]
      %v521 = vld [vmem:[%s3 + $0x54] sm:$0xf]
      %v522 = vld [vmem:[%s3 + $0x58] sm:$0xf]
      %v523 = vld [vmem:[%s3 + $0x5c] sm:$0xf]
      %v524 = vld [vmem:[%s3 + $0x60] sm:$0xf]
      %v525 = vld [vmem:[%s3 + $0x64] sm:$0xf]
      %v526 = vld [vmem:[%s3 + $0x68] sm:$0xf]
      %v527 = vld [vmem:[%s3 + $0x6c] sm:$0xf]
      %v528 = vld [vmem:[%s3 + $0x70] sm:$0xf]
      %v529 = vld [vmem:[%s3 + $0x74] sm:$0xf]
      %v530 = vld [vmem:[%s3 + $0x78] sm:$0xf]
      %v531 = vld [vmem:[%s3 + $0x7c] sm:$0xf]
      %v532 = vld [vmem:[%s3 + $0x80] sm:$0xf]
      %v533 = vld [vmem:[%s3 + $0x84] sm:$0xf]
      %v534 = vld [vmem:[%s3 + $0x88] sm:$0xf]
      %v535 = vld [vmem:[%s3 + $0x8c] sm:$0xf]
      %v536 = vld [vmem:[%s3 + $0x90] sm:$0xf]
      %v537 = vld [vmem:[%s3 + $0x94] sm:$0xf]
      %v538 = vld [vmem:[%s3 + $0x98] sm:$0xf]
      %v539 = vld [vmem:[%s3 + $0x9c] sm:$0xf]
      %v540 = vld [vmem:[%s3 + $0xa0] sm:$0xf]
      %v541 = vld [vmem:[%s3 + $0xa4] sm:$0xf]
      %v542 = vld [vmem:[%s3 + $0xa8] sm:$0xf]
      %v543 = vld [vmem:[%s3 + $0xac] sm:$0xf]
      %v544 = vld [vmem:[%s3 + $0xb0] sm:$0xf]
      %v545 = vld [vmem:[%s3 + $0xb4] sm:$0xf]
      %v546 = vld [vmem:[%s3 + $0xb8] sm:$0xf]
      %v547 = vld [vmem:[%s3 + $0xbc] sm:$0xf]
      %v548 = vpack.c.b16 %v390, %v388
      %v549 = vpack.c.b16 %v478, %v476
      %v550 = vpack.c.b16 %v479, %v477
      %v551 = vpack.c.b16 %v394, %v392
      %v552 = vpack.c.b16 %v482, %v480
      %v553 = vpack.c.b16 %v483, %v481
      %v554 = vpack.c.b16 %v398, %v396
      %v555 = vpack.c.b16 %v486, %v484
      %v556 = vpack.c.b16 %v487, %v485
      %v557 = vpack.c.b16 %v402, %v400
      %v558 = vpack.c.b16 %v490, %v488
      %v559 = vpack.c.b16 %v491, %v489
      %v620 = vunpack.c.l.b16 %v500
      %v621 = vunpack.c.l.b16 %v501
      %v622 = vunpack.c.l.b16 %v502
      %v623 = vunpack.c.l.b16 %v503
      %v624 = vunpack.c.l.b16 %v504
      %v625 = vunpack.c.l.b16 %v505
      %v626 = vunpack.c.l.b16 %v506
      %v627 = vunpack.c.l.b16 %v507
      %v628 = vunpack.c.l.b16 %v508
      %v629 = vunpack.c.l.b16 %v509
      %v630 = vunpack.c.l.b16 %v510
      %v631 = vunpack.c.l.b16 %v511
      %v632 = vunpack.c.l.b16 %v512
      %v633 = vunpack.c.l.b16 %v513
      %v634 = vunpack.c.l.b16 %v514
      %v635 = vunpack.c.l.b16 %v515
      %v636 = vunpack.c.l.b16 %v516
      %v637 = vunpack.c.l.b16 %v517
      %v638 = vunpack.c.l.b16 %v518
      %v639 = vunpack.c.l.b16 %v519
      %v640 = vunpack.c.l.b16 %v520
      %v641 = vunpack.c.l.b16 %v521
      %v642 = vunpack.c.l.b16 %v522
      %v643 = vunpack.c.l.b16 %v523
      %v644 = vunpack.c.l.b16 %v524
      %v645 = vunpack.c.l.b16 %v525
      %v646 = vunpack.c.l.b16 %v526
      %v647 = vunpack.c.l.b16 %v527
      %v648 = vunpack.c.l.b16 %v528
      %v649 = vunpack.c.l.b16 %v529
      %v650 = vunpack.c.l.b16 %v530
      %v651 = vunpack.c.l.b16 %v531
      %v652 = vunpack.c.l.b16 %v532
      %v653 = vunpack.c.l.b16 %v533
      %v654 = vunpack.c.l.b16 %v534
      %v655 = vunpack.c.l.b16 %v535
      %v656 = vunpack.c.l.b16 %v536
      %v657 = vunpack.c.l.b16 %v537
      %v658 = vunpack.c.l.b16 %v538
      %v659 = vunpack.c.l.b16 %v539
      %v660 = vunpack.c.l.b16 %v540
      %v661 = vunpack.c.l.b16 %v541
      %v662 = vunpack.c.l.b16 %v542
      %v663 = vunpack.c.l.b16 %v543
      %v664 = vunpack.c.l.b16 %v544
      %v665 = vunpack.c.l.b16 %v545
      %v666 = vunpack.c.l.b16 %v546
      %v667 = vunpack.c.l.b16 %v547
      %v668 = vpack.c.b16 %v621, %v620
      %v669 = vpack.c.b16 %v623, %v622
      %v670 = vpack.c.b16 %v625, %v624
      %v671 = vpack.c.b16 %v627, %v626
      %v672 = vpack.c.b16 %v629, %v628
      %v673 = vpack.c.b16 %v631, %v630
      %v674 = vpack.c.b16 %v633, %v632
      %v675 = vpack.c.b16 %v635, %v634
      %v676 = vpack.c.b16 %v637, %v636
      %v677 = vpack.c.b16 %v639, %v638
      %v678 = vpack.c.b16 %v641, %v640
      %v679 = vpack.c.b16 %v643, %v642
      %v680 = vpack.c.b16 %v645, %v644
      %v681 = vpack.c.b16 %v647, %v646
      %v682 = vpack.c.b16 %v649, %v648
      %v683 = vpack.c.b16 %v651, %v650
      %v684 = vpack.c.b16 %v653, %v652
      %v685 = vpack.c.b16 %v655, %v654
      %v686 = vpack.c.b16 %v657, %v656
      %v687 = vpack.c.b16 %v659, %v658
      %v688 = vpack.c.b16 %v661, %v660
      %v689 = vpack.c.b16 %v663, %v662
      %v690 = vpack.c.b16 %v665, %v664
      %v691 = vpack.c.b16 %v667, %v666
      %716 = vmatprep.subr.bf16.mxu0 0
      %717 = vmatpush1.bf16.msra.mxu0 %v668
      %718 = vmatprep.subr.bf16.mxu0 0
      %719 = vmatpush1.bf16.msra.mxu0 %v669
      %720 = vmatprep.subr.bf16.mxu0 0
      %721 = vmatpush1.bf16.msra.mxu0 %v670
      %722 = vmatprep.subr.bf16.mxu0 0
      %723 = vmatpush1.bf16.msra.mxu0 %v671
      %724 = vmatprep.subr.bf16.mxu0 0
      %725 = vmatpush1.bf16.msra.mxu0 %v672
      %726 = vmatprep.subr.bf16.mxu0 0
      %727 = vmatpush1.bf16.msra.mxu0 %v673
      %728 = vmatprep.subr.bf16.mxu0 0
      %729 = vmatpush1.bf16.msra.mxu0 %v674
      %730 = vmatprep.subr.bf16.mxu0 0
      %731 = vmatpush1.bf16.msra.mxu0 %v675
      %732 = vmatprep.subr.bf16.mxu0 0
      %733 = vmatpush1.bf16.msra.mxu0 %v676
      %734 = vmatprep.subr.bf16.mxu0 0
      %735 = vmatpush1.bf16.msra.mxu0 %v677
      %736 = vmatprep.subr.bf16.mxu0 0
      %737 = vmatpush1.bf16.msra.mxu0 %v678
      %738 = vmatprep.subr.bf16.mxu0 0
      %739 = vmatpush1.bf16.msra.mxu0 %v679
      %740 = vmatprep.subr.bf16.mxu0 0
      %741 = vmatpush1.bf16.msra.mxu0 %v680
      %742 = vmatprep.subr.bf16.mxu0 0
      %743 = vmatpush1.bf16.msra.mxu0 %v681
      %744 = vmatprep.subr.bf16.mxu0 0
      %745 = vmatpush1.bf16.msra.mxu0 %v682
      %746 = vmatprep.subr.bf16.mxu0 0
      %747 = vmatpush1.bf16.msra.mxu0 %v683
      %748 = vmatprep.mubr.bf16.mxu0 %v549
      %749 = vmatmul.mubr.bf16.gmra.mrb[0].mxu0 %v548
      %v750 = vpop.f32.mrb[0].mxu0
      %v751 = vadd.f32 0.0, %v750
      %v752 = vpop.f32.mrb[0].mxu0
      %v753 = vpop.f32.mrb[0].mxu0
      %v754 = vadd.f32 0.0, %v753
      %v755 = vpop.f32.mrb[0].mxu0
      %756 = vmatprep.mubr.bf16.mxu0 %v552
      %757 = vmatmul.mubr.bf16.gmra.mrb[0].mxu0 %v551
      %v758 = vpop.f32.mrb[0].mxu0
      %v759 = vadd.f32 0.0, %v758
      %v760 = vpop.f32.mrb[0].mxu0
      %v761 = vpop.f32.mrb[0].mxu0
      %v762 = vadd.f32 0.0, %v761
      %v763 = vpop.f32.mrb[0].mxu0
      %764 = vmatprep.mubr.bf16.mxu0 %v555
      %765 = vmatmul.mubr.bf16.gmra.mrb[0].mxu0 %v554
      %v766 = vpop.f32.mrb[0].mxu0
      %v767 = vadd.f32 0.0, %v766
      %v768 = vpop.f32.mrb[0].mxu0
      %v769 = vpop.f32.mrb[0].mxu0
      %v770 = vadd.f32 0.0, %v769
      %v771 = vpop.f32.mrb[0].mxu0
      %772 = vmatprep.mubr.bf16.mxu0 %v558
      %773 = vmatmul.mubr.bf16.gmra.mrb[0].mxu0 %v557
      %v774 = vpop.f32.mrb[0].mxu0
      %v775 = vadd.f32 0.0, %v774
      %v776 = vpop.f32.mrb[0].mxu0
      %v777 = vpop.f32.mrb[0].mxu0
      %v778 = vadd.f32 0.0, %v777
      %v779 = vpop.f32.mrb[0].mxu0
      %780 = vdwg.mxu0
      %781 = vmatprep.subr.bf16.mxu0 0
      %782 = vmatpush1.bf16.msra.mxu0 %v684
      %783 = vmatprep.subr.bf16.mxu0 0
      %784 = vmatpush1.bf16.msra.mxu0 %v685
      %785 = vmatprep.subr.bf16.mxu0 0
      %786 = vmatpush1.bf16.msra.mxu0 %v686
      %787 = vmatprep.subr.bf16.mxu0 0
      %788 = vmatpush1.bf16.msra.mxu0 %v687
      %789 = vmatprep.subr.bf16.mxu0 0
      %790 = vmatpush1.bf16.msra.mxu0 %v688
      %791 = vmatprep.subr.bf16.mxu0 0
      %792 = vmatpush1.bf16.msra.mxu0 %v689
      %793 = vmatprep.subr.bf16.mxu0 0
      %794 = vmatpush1.bf16.msra.mxu0 %v690
      %795 = vmatprep.subr.bf16.mxu0 0
      %796 = vmatpush1.bf16.msra.mxu0 %v691
      %797 = vmatprep.subr.bf16.mxu0 0
      %798 = vmatpush1.bf16.msra.mxu0 0
      %799 = vmatprep.subr.bf16.mxu0 0
      %800 = vmatpush1.bf16.msra.mxu0 0
      %801 = vmatprep.subr.bf16.mxu0 0
      %802 = vmatpush1.bf16.msra.mxu0 0
      %803 = vmatprep.subr.bf16.mxu0 0
      %804 = vmatpush1.bf16.msra.mxu0 0
      %805 = vmatprep.subr.bf16.mxu0 0
      %806 = vmatpush1.bf16.msra.mxu0 0
      %807 = vmatprep.subr.bf16.mxu0 0
      %808 = vmatpush1.bf16.msra.mxu0 0
      %809 = vmatprep.subr.bf16.mxu0 0
      %810 = vmatpush1.bf16.msra.mxu0 0
      %811 = vmatprep.subr.bf16.mxu0 0
      %812 = vmatpush1.bf16.msra.mxu0 0
      %813 = vmatprep.mubr.bf16.mxu0 0
      %814 = vmatmul.mubr.bf16.gmra.mrb[0].mxu0 %v550
      %v815 = vpop.f32.mrb[0].mxu0
      %v816 = vadd.f32 %v751, %v815
      %v817 = vpop.f32.mrb[0].mxu0
      %v818 = vpop.f32.mrb[0].mxu0
      %v819 = vadd.f32 %v754, %v818
      %v820 = vpop.f32.mrb[0].mxu0
      %821 = vmatprep.mubr.bf16.mxu0 0
      %822 = vmatmul.mubr.bf16.gmra.mrb[0].mxu0 %v553
      %v823 = vpop.f32.mrb[0].mxu0
      %v824 = vadd.f32 %v759, %v823
      %v825 = vpop.f32.mrb[0].mxu0
      %v826 = vpop.f32.mrb[0].mxu0
      %v827 = vadd.f32 %v762, %v826
      %v828 = vpop.f32.mrb[0].mxu0
      %829 = vmatprep.mubr.bf16.mxu0 0
      %830 = vmatmul.mubr.bf16.gmra.mrb[0].mxu0 %v556
      %v831 = vpop.f32.mrb[0].mxu0
      %v832 = vadd.f32 %v767, %v831
      %v833 = vpop.f32.mrb[0].mxu0
      %v834 = vpop.f32.mrb[0].mxu0
      %v835 = vadd.f32 %v770, %v834
      %v836 = vpop.f32.mrb[0].mxu0
      %837 = vmatprep.mubr.bf16.mxu0 0
      %838 = vmatmul.mubr.bf16.gmra.mrb[0].mxu0 %v559
      %v839 = vpop.f32.mrb[0].mxu0
      %v840 = vadd.f32 %v775, %v839
      %v841 = vpop.f32.mrb[0].mxu0
      %v842 = vpop.f32.mrb[0].mxu0
      %v843 = vadd.f32 %v778, %v842
      %v844 = vpop.f32.mrb[0].mxu0
      %845 = vdwg.mxu0
      %v846 = vadd.f32 %v492, %v816
      %v847 = vadd.f32 %v493, %v819
      %v848 = vadd.f32 %v494, %v824
      %v849 = vadd.f32 %v495, %v827
      %v850 = vadd.f32 %v496, %v832
      %v851 = vadd.f32 %v497, %v835
      %v852 = vadd.f32 %v498, %v840
      %v853 = vadd.f32 %v499, %v843
      %854 = vst [vmem:[#allocation2] sm:$0xff] %v846
      %855 = vst [vmem:[#allocation2 + $0x8] sm:$0xff] %v847
      %856 = vst [vmem:[#allocation2 + $0x10] sm:$0xff] %v848
      %857 = vst [vmem:[#allocation2 + $0x18] sm:$0xff] %v849
      %858 = vst [vmem:[#allocation2 + $0x20] sm:$0xff] %v850
      %859 = vst [vmem:[#allocation2 + $0x28] sm:$0xff] %v851
      %860 = vst [vmem:[#allocation2 + $0x30] sm:$0xff] %v852
      %861 = vst [vmem:[#allocation2 + $0x38] sm:$0xff] %v853
      %v864 = vunpack.c.l.b16 %v368
      %v865 = vunpack.c.l.b16 %v369
      %v866 = vpack.c.b16 %v865, %v864
      %v868 = vshrl.u32 %v866, 16
      %v870 = vshll.u32 %v866, 16
      %v872 = vrot.slane %v870, 1
      %v873 = vor.u32 %v868, %v872
      %v874 = vrot.slane %v866, 1
      %v875 = vunpack.c.l.b16 %v873
      %v876 = vunpack.c.l.b16 %v874
      %v877 = vld [vmem:[#allocation2] sm:$0xff]
      %v878 = vld [vmem:[#allocation2 + $0x8] sm:$0xff]
      %v879 = vld [vmem:[#allocation2 + $0x10] sm:$0xff]
      %v880 = vld [vmem:[#allocation2 + $0x18] sm:$0xff]
      %v881 = vld [vmem:[#allocation2 + $0x20] sm:$0xff]
      %v882 = vld [vmem:[#allocation2 + $0x28] sm:$0xff]
      %v883 = vld [vmem:[#allocation2 + $0x30] sm:$0xff]
      %v884 = vld [vmem:[#allocation2 + $0x38] sm:$0xff]
      %s885 = scalar_lea.vmem %s3, 192
      %v886 = vld [vmem:[%s885] sm:$0xf]
      %v887 = vld [vmem:[%s885 + $0x4] sm:$0xf]
      %v888 = vld [vmem:[%s885 + $0x8] sm:$0xf]
      %v889 = vld [vmem:[%s885 + $0xc] sm:$0xf]
      %v890 = vld [vmem:[%s885 + $0x10] sm:$0xf]
      %v891 = vld [vmem:[%s885 + $0x14] sm:$0xf]
      %v892 = vld [vmem:[%s885 + $0x18] sm:$0xf]
      %v893 = vld [vmem:[%s885 + $0x1c] sm:$0xf]
      %v894 = vld [vmem:[%s885 + $0x20] sm:$0xf]
      %v895 = vld [vmem:[%s885 + $0x24] sm:$0xf]
      %v896 = vld [vmem:[%s885 + $0x28] sm:$0xf]
      %v897 = vld [vmem:[%s885 + $0x2c] sm:$0xf]
      %v898 = vld [vmem:[%s885 + $0x30] sm:$0xf]
      %v899 = vld [vmem:[%s885 + $0x34] sm:$0xf]
      %v900 = vld [vmem:[%s885 + $0x38] sm:$0xf]
      %v901 = vld [vmem:[%s885 + $0x3c] sm:$0xf]
      %v902 = vld [vmem:[%s885 + $0x40] sm:$0xf]
      %v903 = vld [vmem:[%s885 + $0x44] sm:$0xf]
      %v904 = vld [vmem:[%s885 + $0x48] sm:$0xf]
      %v905 = vld [vmem:[%s885 + $0x4c] sm:$0xf]
      %v906 = vld [vmem:[%s885 + $0x50] sm:$0xf]
      %v907 = vld [vmem:[%s885 + $0x54] sm:$0xf]
      %v908 = vld [vmem:[%s885 + $0x58] sm:$0xf]
      %v909 = vld [vmem:[%s885 + $0x5c] sm:$0xf]
      %v910 = vld [vmem:[%s885 + $0x60] sm:$0xf]
      %v911 = vld [vmem:[%s885 + $0x64] sm:$0xf]
      %v912 = vld [vmem:[%s885 + $0x68] sm:$0xf]
      %v913 = vld [vmem:[%s885 + $0x6c] sm:$0xf]
      %v914 = vld [vmem:[%s885 + $0x70] sm:$0xf]
      %v915 = vld [vmem:[%s885 + $0x74] sm:$0xf]
      %v916 = vld [vmem:[%s885 + $0x78] sm:$0xf]
      %v917 = vld [vmem:[%s885 + $0x7c] sm:$0xf]
      %v918 = vld [vmem:[%s885 + $0x80] sm:$0xf]
      %v919 = vld [vmem:[%s885 + $0x84] sm:$0xf]
      %v920 = vld [vmem:[%s885 + $0x88] sm:$0xf]
      %v921 = vld [vmem:[%s885 + $0x8c] sm:$0xf]
      %v922 = vld [vmem:[%s885 + $0x90] sm:$0xf]
      %v923 = vld [vmem:[%s885 + $0x94] sm:$0xf]
      %v924 = vld [vmem:[%s885 + $0x98] sm:$0xf]
      %v925 = vld [vmem:[%s885 + $0x9c] sm:$0xf]
      %v926 = vld [vmem:[%s885 + $0xa0] sm:$0xf]
      %v927 = vld [vmem:[%s885 + $0xa4] sm:$0xf]
      %v928 = vld [vmem:[%s885 + $0xa8] sm:$0xf]
      %v929 = vld [vmem:[%s885 + $0xac] sm:$0xf]
      %v930 = vld [vmem:[%s885 + $0xb0] sm:$0xf]
      %v931 = vld [vmem:[%s885 + $0xb4] sm:$0xf]
      %v932 = vld [vmem:[%s885 + $0xb8] sm:$0xf]
      %v933 = vld [vmem:[%s885 + $0xbc] sm:$0xf]
      %v934 = vpack.c.b16 %v392, %v390
      %v935 = vpack.c.b16 %v480, %v478
      %v936 = vpack.c.b16 %v481, %v479
      %v937 = vpack.c.b16 %v396, %v394
      %v938 = vpack.c.b16 %v484, %v482
      %v939 = vpack.c.b16 %v485, %v483
      %v940 = vpack.c.b16 %v400, %v398
      %v941 = vpack.c.b16 %v488, %v486
      %v942 = vpack.c.b16 %v489, %v487
      %v943 = vpack.c.b16 %v864, %v402
      %v944 = vpack.c.b16 %v875, %v490
      %v945 = vpack.c.b16 %v876, %v491
      %v1006 = vunpack.c.l.b16 %v886
      %v1007 = vunpack.c.l.b16 %v887
      %v1008 = vunpack.c.l.b16 %v888
      %v1009 = vunpack.c.l.b16 %v889
      %v1010 = vunpack.c.l.b16 %v890
      %v1011 = vunpack.c.l.b16 %v891
      %v1012 = vunpack.c.l.b16 %v892
      %v1013 = vunpack.c.l.b16 %v893
      %v1014 = vunpack.c.l.b16 %v894
      %v1015 = vunpack.c.l.b16 %v895
      %v1016 = vunpack.c.l.b16 %v896
      %v1017 = vunpack.c.l.b16 %v897
      %v1018 = vunpack.c.l.b16 %v898
      %v1019 = vunpack.c.l.b16 %v899
      %v1020 = vunpack.c.l.b16 %v900
      %v1021 = vunpack.c.l.b16 %v901
      %v1022 = vunpack.c.l.b16 %v902
      %v1023 = vunpack.c.l.b16 %v903
      %v1024 = vunpack.c.l.b16 %v904
      %v1025 = vunpack.c.l.b16 %v905
      %v1026 = vunpack.c.l.b16 %v906
      %v1027 = vunpack.c.l.b16 %v907
      %v1028 = vunpack.c.l.b16 %v908
      %v1029 = vunpack.c.l.b16 %v909
      %v1030 = vunpack.c.l.b16 %v910
      %v1031 = vunpack.c.l.b16 %v911
      %v1032 = vunpack.c.l.b16 %v912
      %v1033 = vunpack.c.l.b16 %v913
      %v1034 = vunpack.c.l.b16 %v914
      %v1035 = vunpack.c.l.b16 %v915
      %v1036 = vunpack.c.l.b16 %v916
      %v1037 = vunpack.c.l.b16 %v917
      %v1038 = vunpack.c.l.b16 %v918
      %v1039 = vunpack.c.l.b16 %v919
      %v1040 = vunpack.c.l.b16 %v920
      %v1041 = vunpack.c.l.b16 %v921
      %v1042 = vunpack.c.l.b16 %v922
      %v1043 = vunpack.c.l.b16 %v923
      %v1044 = vunpack.c.l.b16 %v924
      %v1045 = vunpack.c.l.b16 %v925
      %v1046 = vunpack.c.l.b16 %v926
      %v1047 = vunpack.c.l.b16 %v927
      %v1048 = vunpack.c.l.b16 %v928
      %v1049 = vunpack.c.l.b16 %v929
      %v1050 = vunpack.c.l.b16 %v930
      %v1051 = vunpack.c.l.b16 %v931
      %v1052 = vunpack.c.l.b16 %v932
      %v1053 = vunpack.c.l.b16 %v933
      %v1054 = vpack.c.b16 %v1007, %v1006
      %v1055 = vpack.c.b16 %v1009, %v1008
      %v1056 = vpack.c.b16 %v1011, %v1010
      %v1057 = vpack.c.b16 %v1013, %v1012
      %v1058 = vpack.c.b16 %v1015, %v1014
      %v1059 = vpack.c.b16 %v1017, %v1016
      %v1060 = vpack.c.b16 %v1019, %v1018
      %v1061 = vpack.c.b16 %v1021, %v1020
      %v1062 = vpack.c.b16 %v1023, %v1022
      %v1063 = vpack.c.b16 %v1025, %v1024
      %v1064 = vpack.c.b16 %v1027, %v1026
      %v1065 = vpack.c.b16 %v1029, %v1028
      %v1066 = vpack.c.b16 %v1031, %v1030
      %v1067 = vpack.c.b16 %v1033, %v1032
      %v1068 = vpack.c.b16 %v1035, %v1034
      %v1069 = vpack.c.b16 %v1037, %v1036
      %v1070 = vpack.c.b16 %v1039, %v1038
      %v1071 = vpack.c.b16 %v1041, %v1040
      %v1072 = vpack.c.b16 %v1043, %v1042
      %v1073 = vpack.c.b16 %v1045, %v1044
      %v1074 = vpack.c.b16 %v1047, %v1046
      %v1075 = vpack.c.b16 %v1049, %v1048
      %v1076 = vpack.c.b16 %v1051, %v1050
      %v1077 = vpack.c.b16 %v1053, %v1052
      %1102 = vmatprep.subr.bf16.mxu0 0
      %1103 = vmatpush1.bf16.msra.mxu0 %v1054
      %1104 = vmatprep.subr.bf16.mxu0 0
      %1105 = vmatpush1.bf16.msra.mxu0 %v1055
      %1106 = vmatprep.subr.bf16.mxu0 0
      %1107 = vmatpush1.bf16.msra.mxu0 %v1056
      %1108 = vmatprep.subr.bf16.mxu0 0
      %1109 = vmatpush1.bf16.msra.mxu0 %v1057
      %1110 = vmatprep.subr.bf16.mxu0 0
      %1111 = vmatpush1.bf16.msra.mxu0 %v1058
      %1112 = vmatprep.subr.bf16.mxu0 0
      %1113 = vmatpush1.bf16.msra.mxu0 %v1059
      %1114 = vmatprep.subr.bf16.mxu0 0
      %1115 = vmatpush1.bf16.msra.mxu0 %v1060
      %1116 = vmatprep.subr.bf16.mxu0 0
      %1117 = vmatpush1.bf16.msra.mxu0 %v1061
      %1118 = vmatprep.subr.bf16.mxu0 0
      %1119 = vmatpush1.bf16.msra.mxu0 %v1062
      %1120 = vmatprep.subr.bf16.mxu0 0
      %1121 = vmatpush1.bf16.msra.mxu0 %v1063
      %1122 = vmatprep.subr.bf16.mxu0 0
      %1123 = vmatpush1.bf16.msra.mxu0 %v1064
      %1124 = vmatprep.subr.bf16.mxu0 0
      %1125 = vmatpush1.bf16.msra.mxu0 %v1065
      %1126 = vmatprep.subr.bf16.mxu0 0
      %1127 = vmatpush1.bf16.msra.mxu0 %v1066
      %1128 = vmatprep.subr.bf16.mxu0 0
      %1129 = vmatpush1.bf16.msra.mxu0 %v1067
      %1130 = vmatprep.subr.bf16.mxu0 0
      %1131 = vmatpush1.bf16.msra.mxu0 %v1068
      %1132 = vmatprep.subr.bf16.mxu0 0
      %1133 = vmatpush1.bf16.msra.mxu0 %v1069
      %1134 = vmatprep.mubr.bf16.mxu0 %v935
      %1135 = vmatmul.mubr.bf16.gmra.mrb[0].mxu0 %v934
      %v1136 = vpop.f32.mrb[0].mxu0
      %v1137 = vadd.f32 0.0, %v1136
      %v1138 = vpop.f32.mrb[0].mxu0
      %v1139 = vpop.f32.mrb[0].mxu0
      %v1140 = vadd.f32 0.0, %v1139
      %v1141 = vpop.f32.mrb[0].mxu0
      %1142 = vmatprep.mubr.bf16.mxu0 %v938
      %1143 = vmatmul.mubr.bf16.gmra.mrb[0].mxu0 %v937
      %v1144 = vpop.f32.mrb[0].mxu0
      %v1145 = vadd.f32 0.0, %v1144
      %v1146 = vpop.f32.mrb[0].mxu0
      %v1147 = vpop.f32.mrb[0].mxu0
      %v1148 = vadd.f32 0.0, %v1147
      %v1149 = vpop.f32.mrb[0].mxu0
      %1150 = vmatprep.mubr.bf16.mxu0 %v941
      %1151 = vmatmul.mubr.bf16.gmra.mrb[0].mxu0 %v940
      %v1152 = vpop.f32.mrb[0].mxu0
      %v1153 = vadd.f32 0.0, %v1152
      %v1154 = vpop.f32.mrb[0].mxu0
      %v1155 = vpop.f32.mrb[0].mxu0
      %v1156 = vadd.f32 0.0, %v1155
      %v1157 = vpop.f32.mrb[0].mxu0
      %1158 = vmatprep.mubr.bf16.mxu0 %v944
      %1159 = vmatmul.mubr.bf16.gmra.mrb[0].mxu0 %v943
      %v1160 = vpop.f32.mrb[0].mxu0
      %v1161 = vadd.f32 0.0, %v1160
      %v1162 = vpop.f32.mrb[0].mxu0
      %v1163 = vpop.f32.mrb[0].mxu0
      %v1164 = vadd.f32 0.0, %v1163
      %v1165 = vpop.f32.mrb[0].mxu0
      %1166 = vdwg.mxu0
      %1167 = vmatprep.subr.bf16.mxu0 0
      %1168 = vmatpush1.bf16.msra.mxu0 %v1070
      %1169 = vmatprep.subr.bf16.mxu0 0
      %1170 = vmatpush1.bf16.msra.mxu0 %v1071
      %1171 = vmatprep.subr.bf16.mxu0 0
      %1172 = vmatpush1.bf16.msra.mxu0 %v1072
      %1173 = vmatprep.subr.bf16.mxu0 0
      %1174 = vmatpush1.bf16.msra.mxu0 %v1073
      %1175 = vmatprep.subr.bf16.mxu0 0
      %1176 = vmatpush1.bf16.msra.mxu0 %v1074
      %1177 = vmatprep.subr.bf16.mxu0 0
      %1178 = vmatpush1.bf16.msra.mxu0 %v1075
      %1179 = vmatprep.subr.bf16.mxu0 0
      %1180 = vmatpush1.bf16.msra.mxu0 %v1076
      %1181 = vmatprep.subr.bf16.mxu0 0
      %1182 = vmatpush1.bf16.msra.mxu0 %v1077
      %1183 = vmatprep.subr.bf16.mxu0 0
      %1184 = vmatpush1.bf16.msra.mxu0 0
      %1185 = vmatprep.subr.bf16.mxu0 0
      %1186 = vmatpush1.bf16.msra.mxu0 0
      %1187 = vmatprep.subr.bf16.mxu0 0
      %1188 = vmatpush1.bf16.msra.mxu0 0
      %1189 = vmatprep.subr.bf16.mxu0 0
      %1190 = vmatpush1.bf16.msra.mxu0 0
      %1191 = vmatprep.subr.bf16.mxu0 0
      %1192 = vmatpush1.bf16.msra.mxu0 0
      %1193 = vmatprep.subr.bf16.mxu0 0
      %1194 = vmatpush1.bf16.msra.mxu0 0
      %1195 = vmatprep.subr.bf16.mxu0 0
      %1196 = vmatpush1.bf16.msra.mxu0 0
      %1197 = vmatprep.subr.bf16.mxu0 0
      %1198 = vmatpush1.bf16.msra.mxu0 0
      %1199 = vmatprep.mubr.bf16.mxu0 0
      %1200 = vmatmul.mubr.bf16.gmra.mrb[0].mxu0 %v936
      %v1201 = vpop.f32.mrb[0].mxu0
      %v1202 = vadd.f32 %v1137, %v1201
      %v1203 = vpop.f32.mrb[0].mxu0
      %v1204 = vpop.f32.mrb[0].mxu0
      %v1205 = vadd.f32 %v1140, %v1204
      %v1206 = vpop.f32.mrb[0].mxu0
      %1207 = vmatprep.mubr.bf16.mxu0 0
      %1208 = vmatmul.mubr.bf16.gmra.mrb[0].mxu0 %v939
      %v1209 = vpop.f32.mrb[0].mxu0
      %v1210 = vadd.f32 %v1145, %v1209
      %v1211 = vpop.f32.mrb[0].mxu0
      %v1212 = vpop.f32.mrb[0].mxu0
      %v1213 = vadd.f32 %v1148, %v1212
      %v1214 = vpop.f32.mrb[0].mxu0
      %1215 = vmatprep.mubr.bf16.mxu0 0
      %1216 = vmatmul.mubr.bf16.gmra.mrb[0].mxu0 %v942
      %v1217 = vpop.f32.mrb[0].mxu0
      %v1218 = vadd.f32 %v1153, %v1217
      %v1219 = vpop.f32.mrb[0].mxu0
      %v1220 = vpop.f32.mrb[0].mxu0
      %v1221 = vadd.f32 %v1156, %v1220
      %v1222 = vpop.f32.mrb[0].mxu0
      %1223 = vmatprep.mubr.bf16.mxu0 0
      %1224 = vmatmul.mubr.bf16.gmra.mrb[0].mxu0 %v945
      %v1225 = vpop.f32.mrb[0].mxu0
      %v1226 = vadd.f32 %v1161, %v1225
      %v1227 = vpop.f32.mrb[0].mxu0
      %v1228 = vpop.f32.mrb[0].mxu0
      %v1229 = vadd.f32 %v1164, %v1228
      %v1230 = vpop.f32.mrb[0].mxu0
      %1231 = vdwg.mxu0
      %v1232 = vadd.f32 %v877, %v1202
      %v1233 = vadd.f32 %v878, %v1205
      %v1234 = vadd.f32 %v879, %v1210
      %v1235 = vadd.f32 %v880, %v1213
      %v1236 = vadd.f32 %v881, %v1218
      %v1237 = vadd.f32 %v882, %v1221
      %v1238 = vadd.f32 %v883, %v1226
      %v1239 = vadd.f32 %v884, %v1229
      %1240 = vst [vmem:[#allocation2] sm:$0xff] %v1232
      %1241 = vst [vmem:[#allocation2 + $0x8] sm:$0xff] %v1233
      %1242 = vst [vmem:[#allocation2 + $0x10] sm:$0xff] %v1234
      %1243 = vst [vmem:[#allocation2 + $0x18] sm:$0xff] %v1235
      %1244 = vst [vmem:[#allocation2 + $0x20] sm:$0xff] %v1236
      %1245 = vst [vmem:[#allocation2 + $0x28] sm:$0xff] %v1237
      %1246 = vst [vmem:[#allocation2 + $0x30] sm:$0xff] %v1238
      %1247 = vst [vmem:[#allocation2 + $0x38] sm:$0xff] %v1239
      %v1250 = vunpack.c.l.b16 %v370
      %v1251 = vunpack.c.l.b16 %v371
      %v1252 = vpack.c.b16 %v1251, %v1250
      %v1254 = vshrl.u32 %v1252, 16
      %v1256 = vshll.u32 %v1252, 16
      %v1258 = vrot.slane %v1256, 1
      %v1259 = vor.u32 %v1254, %v1258
      %v1260 = vrot.slane %v1252, 1
      %v1261 = vunpack.c.l.b16 %v1259
      %v1262 = vunpack.c.l.b16 %v1260
      %v1263 = vld [vmem:[#allocation2] sm:$0xff]
      %v1264 = vld [vmem:[#allocation2 + $0x8] sm:$0xff]
      %v1265 = vld [vmem:[#allocation2 + $0x10] sm:$0xff]
      %v1266 = vld [vmem:[#allocation2 + $0x18] sm:$0xff]
      %v1267 = vld [vmem:[#allocation2 + $0x20] sm:$0xff]
      %v1268 = vld [vmem:[#allocation2 + $0x28] sm:$0xff]
      %v1269 = vld [vmem:[#allocation2 + $0x30] sm:$0xff]
      %v1270 = vld [vmem:[#allocation2 + $0x38] sm:$0xff]
      %s1271 = scalar_lea.vmem %s3, 384
      %v1272 = vld [vmem:[%s1271] sm:$0xf]
      %v1273 = vld [vmem:[%s1271 + $0x4] sm:$0xf]
      %v1274 = vld [vmem:[%s1271 + $0x8] sm:$0xf]
      %v1275 = vld [vmem:[%s1271 + $0xc] sm:$0xf]
      %v1276 = vld [vmem:[%s1271 + $0x10] sm:$0xf]
      %v1277 = vld [vmem:[%s1271 + $0x14] sm:$0xf]
      %v1278 = vld [vmem:[%s1271 + $0x18] sm:$0xf]
      %v1279 = vld [vmem:[%s1271 + $0x1c] sm:$0xf]
      %v1280 = vld [vmem:[%s1271 + $0x20] sm:$0xf]
      %v1281 = vld [vmem:[%s1271 + $0x24] sm:$0xf]
      %v1282 = vld [vmem:[%s1271 + $0x28] sm:$0xf]
      %v1283 = vld [vmem:[%s1271 + $0x2c] sm:$0xf]
      %v1284 = vld [vmem:[%s1271 + $0x30] sm:$0xf]
      %v1285 = vld [vmem:[%s1271 + $0x34] sm:$0xf]
      %v1286 = vld [vmem:[%s1271 + $0x38] sm:$0xf]
      %v1287 = vld [vmem:[%s1271 + $0x3c] sm:$0xf]
      %v1288 = vld [vmem:[%s1271 + $0x40] sm:$0xf]
      %v1289 = vld [vmem:[%s1271 + $0x44] sm:$0xf]
      %v1290 = vld [vmem:[%s1271 + $0x48] sm:$0xf]
      %v1291 = vld [vmem:[%s1271 + $0x4c] sm:$0xf]
      %v1292 = vld [vmem:[%s1271 + $0x50] sm:$0xf]
      %v1293 = vld [vmem:[%s1271 + $0x54] sm:$0xf]
      %v1294 = vld [vmem:[%s1271 + $0x58] sm:$0xf]
      %v1295 = vld [vmem:[%s1271 + $0x5c] sm:$0xf]
      %v1296 = vld [vmem:[%s1271 + $0x60] sm:$0xf]
      %v1297 = vld [vmem:[%s1271 + $0x64] sm:$0xf]
      %v1298 = vld [vmem:[%s1271 + $0x68] sm:$0xf]
      %v1299 = vld [vmem:[%s1271 + $0x6c] sm:$0xf]
      %v1300 = vld [vmem:[%s1271 + $0x70] sm:$0xf]
      %v1301 = vld [vmem:[%s1271 + $0x74] sm:$0xf]
      %v1302 = vld [vmem:[%s1271 + $0x78] sm:$0xf]
      %v1303 = vld [vmem:[%s1271 + $0x7c] sm:$0xf]
      %v1304 = vld [vmem:[%s1271 + $0x80] sm:$0xf]
      %v1305 = vld [vmem:[%s1271 + $0x84] sm:$0xf]
      %v1306 = vld [vmem:[%s1271 + $0x88] sm:$0xf]
      %v1307 = vld [vmem:[%s1271 + $0x8c] sm:$0xf]
      %v1308 = vld [vmem:[%s1271 + $0x90] sm:$0xf]
      %v1309 = vld [vmem:[%s1271 + $0x94] sm:$0xf]
      %v1310 = vld [vmem:[%s1271 + $0x98] sm:$0xf]
      %v1311 = vld [vmem:[%s1271 + $0x9c] sm:$0xf]
      %v1312 = vld [vmem:[%s1271 + $0xa0] sm:$0xf]
      %v1313 = vld [vmem:[%s1271 + $0xa4] sm:$0xf]
      %v1314 = vld [vmem:[%s1271 + $0xa8] sm:$0xf]
      %v1315 = vld [vmem:[%s1271 + $0xac] sm:$0xf]
      %v1316 = vld [vmem:[%s1271 + $0xb0] sm:$0xf]
      %v1317 = vld [vmem:[%s1271 + $0xb4] sm:$0xf]
      %v1318 = vld [vmem:[%s1271 + $0xb8] sm:$0xf]
      %v1319 = vld [vmem:[%s1271 + $0xbc] sm:$0xf]
      %v1320 = vpack.c.b16 %v1250, %v864
      %v1321 = vpack.c.b16 %v1261, %v875
      %v1322 = vpack.c.b16 %v1262, %v876
      %v1374 = vunpack.c.l.b16 %v1272
      %v1375 = vunpack.c.l.b16 %v1273
      %v1376 = vunpack.c.l.b16 %v1274
      %v1377 = vunpack.c.l.b16 %v1275
      %v1378 = vunpack.c.l.b16 %v1276
      %v1379 = vunpack.c.l.b16 %v1277
      %v1380 = vunpack.c.l.b16 %v1278
      %v1381 = vunpack.c.l.b16 %v1279
      %v1382 = vunpack.c.l.b16 %v1280
      %v1383 = vunpack.c.l.b16 %v1281
      %v1384 = vunpack.c.l.b16 %v1282
      %v1385 = vunpack.c.l.b16 %v1283
      %v1386 = vunpack.c.l.b16 %v1284
      %v1387 = vunpack.c.l.b16 %v1285
      %v1388 = vunpack.c.l.b16 %v1286
      %v1389 = vunpack.c.l.b16 %v1287
      %v1390 = vunpack.c.l.b16 %v1288
      %v1391 = vunpack.c.l.b16 %v1289
      %v1392 = vunpack.c.l.b16 %v1290
      %v1393 = vunpack.c.l.b16 %v1291
      %v1394 = vunpack.c.l.b16 %v1292
      %v1395 = vunpack.c.l.b16 %v1293
      %v1396 = vunpack.c.l.b16 %v1294
      %v1397 = vunpack.c.l.b16 %v1295
      %v1398 = vunpack.c.l.b16 %v1296
      %v1399 = vunpack.c.l.b16 %v1297
      %v1400 = vunpack.c.l.b16 %v1298
      %v1401 = vunpack.c.l.b16 %v1299
      %v1402 = vunpack.c.l.b16 %v1300
      %v1403 = vunpack.c.l.b16 %v1301
      %v1404 = vunpack.c.l.b16 %v1302
      %v1405 = vunpack.c.l.b16 %v1303
      %v1406 = vunpack.c.l.b16 %v1304
      %v1407 = vunpack.c.l.b16 %v1305
      %v1408 = vunpack.c.l.b16 %v1306
      %v1409 = vunpack.c.l.b16 %v1307
      %v1410 = vunpack.c.l.b16 %v1308
      %v1411 = vunpack.c.l.b16 %v1309
      %v1412 = vunpack.c.l.b16 %v1310
      %v1413 = vunpack.c.l.b16 %v1311
      %v1414 = vunpack.c.l.b16 %v1312
      %v1415 = vunpack.c.l.b16 %v1313
      %v1416 = vunpack.c.l.b16 %v1314
      %v1417 = vunpack.c.l.b16 %v1315
      %v1418 = vunpack.c.l.b16 %v1316
      %v1419 = vunpack.c.l.b16 %v1317
      %v1420 = vunpack.c.l.b16 %v1318
      %v1421 = vunpack.c.l.b16 %v1319
      %v1422 = vpack.c.b16 %v1375, %v1374
      %v1423 = vpack.c.b16 %v1377, %v1376
      %v1424 = vpack.c.b16 %v1379, %v1378
      %v1425 = vpack.c.b16 %v1381, %v1380
      %v1426 = vpack.c.b16 %v1383, %v1382
      %v1427 = vpack.c.b16 %v1385, %v1384
      %v1428 = vpack.c.b16 %v1387, %v1386
      %v1429 = vpack.c.b16 %v1389, %v1388
      %v1430 = vpack.c.b16 %v1391, %v1390
      %v1431 = vpack.c.b16 %v1393, %v1392
      %v1432 = vpack.c.b16 %v1395, %v1394
      %v1433 = vpack.c.b16 %v1397, %v1396
      %v1434 = vpack.c.b16 %v1399, %v1398
      %v1435 = vpack.c.b16 %v1401, %v1400
      %v1436 = vpack.c.b16 %v1403, %v1402
      %v1437 = vpack.c.b16 %v1405, %v1404
      %v1438 = vpack.c.b16 %v1407, %v1406
      %v1439 = vpack.c.b16 %v1409, %v1408
      %v1440 = vpack.c.b16 %v1411, %v1410
      %v1441 = vpack.c.b16 %v1413, %v1412
      %v1442 = vpack.c.b16 %v1415, %v1414
      %v1443 = vpack.c.b16 %v1417, %v1416
      %v1444 = vpack.c.b16 %v1419, %v1418
      %v1445 = vpack.c.b16 %v1421, %v1420
      %1470 = vmatprep.subr.bf16.mxu0 0
      %1471 = vmatpush1.bf16.msra.mxu0 %v1422
      %1472 = vmatprep.subr.bf16.mxu0 0
      %1473 = vmatpush1.bf16.msra.mxu0 %v1423
      %1474 = vmatprep.subr.bf16.mxu0 0
      %1475 = vmatpush1.bf16.msra.mxu0 %v1424
      %1476 = vmatprep.subr.bf16.mxu0 0
      %1477 = vmatpush1.bf16.msra.mxu0 %v1425
      %1478 = vmatprep.subr.bf16.mxu0 0
      %1479 = vmatpush1.bf16.msra.mxu0 %v1426
      %1480 = vmatprep.subr.bf16.mxu0 0
      %1481 = vmatpush1.bf16.msra.mxu0 %v1427
      %1482 = vmatprep.subr.bf16.mxu0 0
      %1483 = vmatpush1.bf16.msra.mxu0 %v1428
      %1484 = vmatprep.subr.bf16.mxu0 0
      %1485 = vmatpush1.bf16.msra.mxu0 %v1429
      %1486 = vmatprep.subr.bf16.mxu0 0
      %1487 = vmatpush1.bf16.msra.mxu0 %v1430
      %1488 = vmatprep.subr.bf16.mxu0 0
      %1489 = vmatpush1.bf16.msra.mxu0 %v1431
      %1490 = vmatprep.subr.bf16.mxu0 0
      %1491 = vmatpush1.bf16.msra.mxu0 %v1432
      %1492 = vmatprep.subr.bf16.mxu0 0
      %1493 = vmatpush1.bf16.msra.mxu0 %v1433
      %1494 = vmatprep.subr.bf16.mxu0 0
      %1495 = vmatpush1.bf16.msra.mxu0 %v1434
      %1496 = vmatprep.subr.bf16.mxu0 0
      %1497 = vmatpush1.bf16.msra.mxu0 %v1435
      %1498 = vmatprep.subr.bf16.mxu0 0
      %1499 = vmatpush1.bf16.msra.mxu0 %v1436
      %1500 = vmatprep.subr.bf16.mxu0 0
      %1501 = vmatpush1.bf16.msra.mxu0 %v1437
      %1502 = vmatprep.mubr.bf16.mxu0 %v552
      %1503 = vmatmul.mubr.bf16.gmra.mrb[0].mxu0 %v551
      %v1504 = vpop.f32.mrb[0].mxu0
      %v1505 = vadd.f32 0.0, %v1504
      %v1506 = vpop.f32.mrb[0].mxu0
      %v1507 = vpop.f32.mrb[0].mxu0
      %v1508 = vadd.f32 0.0, %v1507
      %v1509 = vpop.f32.mrb[0].mxu0
      %1510 = vmatprep.mubr.bf16.mxu0 %v555
      %1511 = vmatmul.mubr.bf16.gmra.mrb[0].mxu0 %v554
      %v1512 = vpop.f32.mrb[0].mxu0
      %v1513 = vadd.f32 0.0, %v1512
      %v1514 = vpop.f32.mrb[0].mxu0
      %v1515 = vpop.f32.mrb[0].mxu0
      %v1516 = vadd.f32 0.0, %v1515
      %v1517 = vpop.f32.mrb[0].mxu0
      %1518 = vmatprep.mubr.bf16.mxu0 %v558
      %1519 = vmatmul.mubr.bf16.gmra.mrb[0].mxu0 %v557
      %v1520 = vpop.f32.mrb[0].mxu0
      %v1521 = vadd.f32 0.0, %v1520
      %v1522 = vpop.f32.mrb[0].mxu0
      %v1523 = vpop.f32.mrb[0].mxu0
      %v1524 = vadd.f32 0.0, %v1523
      %v1525 = vpop.f32.mrb[0].mxu0
      %1526 = vmatprep.mubr.bf16.mxu0 %v1321
      %1527 = vmatmul.mubr.bf16.gmra.mrb[0].mxu0 %v1320
      %v1528 = vpop.f32.mrb[0].mxu0
      %v1529 = vadd.f32 0.0, %v1528
      %v1530 = vpop.f32.mrb[0].mxu0
      %v1531 = vpop.f32.mrb[0].mxu0
      %v1532 = vadd.f32 0.0, %v1531
      %v1533 = vpop.f32.mrb[0].mxu0
      %1534 = vdwg.mxu0
      %1535 = vmatprep.subr.bf16.mxu0 0
      %1536 = vmatpush1.bf16.msra.mxu0 %v1438
      %1537 = vmatprep.subr.bf16.mxu0 0
      %1538 = vmatpush1.bf16.msra.mxu0 %v1439
      %1539 = vmatprep.subr.bf16.mxu0 0
      %1540 = vmatpush1.bf16.msra.mxu0 %v1440
      %1541 = vmatprep.subr.bf16.mxu0 0
      %1542 = vmatpush1.bf16.msra.mxu0 %v1441
      %1543 = vmatprep.subr.bf16.mxu0 0
      %1544 = vmatpush1.bf16.msra.mxu0 %v1442
      %1545 = vmatprep.subr.bf16.mxu0 0
      %1546 = vmatpush1.bf16.msra.mxu0 %v1443
      %1547 = vmatprep.subr.bf16.mxu0 0
      %1548 = vmatpush1.bf16.msra.mxu0 %v1444
      %1549 = vmatprep.subr.bf16.mxu0 0
      %1550 = vmatpush1.bf16.msra.mxu0 %v1445
      %1551 = vmatprep.subr.bf16.mxu0 0
      %1552 = vmatpush1.bf16.msra.mxu0 0
      %1553 = vmatprep.subr.bf16.mxu0 0
      %1554 = vmatpush1.bf16.msra.mxu0 0
      %1555 = vmatprep.subr.bf16.mxu0 0
      %1556 = vmatpush1.bf16.msra.mxu0 0
      %1557 = vmatprep.subr.bf16.mxu0 0
      %1558 = vmatpush1.bf16.msra.mxu0 0
      %1559 = vmatprep.subr.bf16.mxu0 0
      %1560 = vmatpush1.bf16.msra.mxu0 0
      %1561 = vmatprep.subr.bf16.mxu0 0
      %1562 = vmatpush1.bf16.msra.mxu0 0
      %1563 = vmatprep.subr.bf16.mxu0 0
      %1564 = vmatpush1.bf16.msra.mxu0 0
      %1565 = vmatprep.subr.bf16.mxu0 0
      %1566 = vmatpush1.bf16.msra.mxu0 0
      %1567 = vmatprep.mubr.bf16.mxu0 0
      %1568 = vmatmul.mubr.bf16.gmra.mrb[0].mxu0 %v553
      %v1569 = vpop.f32.mrb[0].mxu0
      %v1570 = vadd.f32 %v1505, %v1569
      %v1571 = vpop.f32.mrb[0].mxu0
      %v1572 = vpop.f32.mrb[0].mxu0
      %v1573 = vadd.f32 %v1508, %v1572
      %v1574 = vpop.f32.mrb[0].mxu0
      %1575 = vmatprep.mubr.bf16.mxu0 0
      %1576 = vmatmul.mubr.bf16.gmra.mrb[0].mxu0 %v556
      %v1577 = vpop.f32.mrb[0].mxu0
      %v1578 = vadd.f32 %v1513, %v1577
      %v1579 = vpop.f32.mrb[0].mxu0
      %v1580 = vpop.f32.mrb[0].mxu0
      %v1581 = vadd.f32 %v1516, %v1580
      %v1582 = vpop.f32.mrb[0].mxu0
      %1583 = vmatprep.mubr.bf16.mxu0 0
      %1584 = vmatmul.mubr.bf16.gmra.mrb[0].mxu0 %v559
      %v1585 = vpop.f32.mrb[0].mxu0
      %v1586 = vadd.f32 %v1521, %v1585
      %v1587 = vpop.f32.mrb[0].mxu0
      %v1588 = vpop.f32.mrb[0].mxu0
      %v1589 = vadd.f32 %v1524, %v1588
      %v1590 = vpop.f32.mrb[0].mxu0
      %1591 = vmatprep.mubr.bf16.mxu0 0
      %1592 = vmatmul.mubr.bf16.gmra.mrb[0].mxu0 %v1322
      %v1593 = vpop.f32.mrb[0].mxu0
      %v1594 = vadd.f32 %v1529, %v1593
      %v1595 = vpop.f32.mrb[0].mxu0
      %v1596 = vpop.f32.mrb[0].mxu0
      %v1597 = vadd.f32 %v1532, %v1596
      %v1598 = vpop.f32.mrb[0].mxu0
      %1599 = vdwg.mxu0
      %v1600 = vadd.f32 %v1263, %v1570
      %v1601 = vadd.f32 %v1264, %v1573
      %v1602 = vadd.f32 %v1265, %v1578
      %v1603 = vadd.f32 %v1266, %v1581
      %v1604 = vadd.f32 %v1267, %v1586
      %v1605 = vadd.f32 %v1268, %v1589
      %v1606 = vadd.f32 %v1269, %v1594
      %v1607 = vadd.f32 %v1270, %v1597
      %1608 = vst [vmem:[#allocation2] sm:$0xff] %v1600
      %1609 = vst [vmem:[#allocation2 + $0x8] sm:$0xff] %v1601
      %1610 = vst [vmem:[#allocation2 + $0x10] sm:$0xff] %v1602
      %1611 = vst [vmem:[#allocation2 + $0x18] sm:$0xff] %v1603
      %1612 = vst [vmem:[#allocation2 + $0x20] sm:$0xff] %v1604
      %1613 = vst [vmem:[#allocation2 + $0x28] sm:$0xff] %v1605
      %1614 = vst [vmem:[#allocation2 + $0x30] sm:$0xff] %v1606
      %1615 = vst [vmem:[#allocation2 + $0x38] sm:$0xff] %v1607
      %v1616 = vld [vmem:[%s321] sm:$0xf]
      %v1617 = vld [vmem:[%s321 + $0x4] sm:$0x1]
      %v1618 = vld [vmem:[%s321 + $0x8] sm:$0xf]
      %v1619 = vld [vmem:[%s321 + $0xc] sm:$0x1]
      %v1620 = vld [vmem:[%s321 + $0x10] sm:$0xf]
      %v1621 = vld [vmem:[%s321 + $0x14] sm:$0x1]
      %v1622 = vld [vmem:[%s321 + $0x18] sm:$0xf]
      %v1623 = vld [vmem:[%s321 + $0x1c] sm:$0x1]
      %v1624 = vld [vmem:[%s321 + $0x20] sm:$0xf]
      %v1625 = vld [vmem:[%s321 + $0x24] sm:$0x1]
      %v1626 = vld [vmem:[%s321 + $0x28] sm:$0xf]
      %v1627 = vld [vmem:[%s321 + $0x2c] sm:$0x1]
      %v1628 = vld [vmem:[%s321 + $0x30] sm:$0xf]
      %v1629 = vld [vmem:[%s321 + $0x34] sm:$0x1]
      %v1630 = vld [vmem:[%s321 + $0x38] sm:$0xf]
      %v1631 = vld [vmem:[%s321 + $0x3c] sm:$0x1]
      %v1632 = vld [vmem:[%s321 + $0x40] sm:$0xf]
      %v1633 = vld [vmem:[%s321 + $0x44] sm:$0x1]
      %v1634 = vld [vmem:[%s321 + $0x48] sm:$0xf]
      %v1635 = vld [vmem:[%s321 + $0x4c] sm:$0x1]
      %v1652 = vunpack.c.l.b16 %v1616
      %v1653 = vunpack.c.l.b16 %v1617
      %v1654 = vunpack.c.l.b16 %v1618
      %v1655 = vunpack.c.l.b16 %v1619
      %v1656 = vunpack.c.l.b16 %v1620
      %v1657 = vunpack.c.l.b16 %v1621
      %v1658 = vunpack.c.l.b16 %v1622
      %v1659 = vunpack.c.l.b16 %v1623
      %v1660 = vunpack.c.l.b16 %v1624
      %v1661 = vunpack.c.l.b16 %v1625
      %v1662 = vunpack.c.l.b16 %v1626
      %v1663 = vunpack.c.l.b16 %v1627
      %v1664 = vunpack.c.l.b16 %v1628
      %v1665 = vunpack.c.l.b16 %v1629
      %v1666 = vunpack.c.l.b16 %v1630
      %v1667 = vunpack.c.l.b16 %v1631
      %v1668 = vpack.c.b16 %v1653, %v1652
      %v1669 = vpack.c.b16 %v1655, %v1654
      %v1670 = vpack.c.b16 %v1657, %v1656
      %v1671 = vpack.c.b16 %v1659, %v1658
      %v1672 = vpack.c.b16 %v1661, %v1660
      %v1673 = vpack.c.b16 %v1663, %v1662
      %v1674 = vpack.c.b16 %v1665, %v1664
      %v1675 = vpack.c.b16 %v1667, %v1666
      %v1677 = vshrl.u32 %v1668, 16
      %v1679 = vshll.u32 %v1668, 16
      %v1681 = vrot.slane %v1679, 1
      %v1682 = vor.u32 %v1677, %v1681
      %v1684 = vshrl.u32 %v1669, 16
      %v1686 = vshll.u32 %v1669, 16
      %v1688 = vrot.slane %v1686, 1
      %v1689 = vor.u32 %v1684, %v1688
      %v1691 = vshrl.u32 %v1670, 16
      %v1693 = vshll.u32 %v1670, 16
      %v1695 = vrot.slane %v1693, 1
      %v1696 = vor.u32 %v1691, %v1695
      %v1698 = vshrl.u32 %v1671, 16
      %v1700 = vshll.u32 %v1671, 16
      %v1702 = vrot.slane %v1700, 1
      %v1703 = vor.u32 %v1698, %v1702
      %v1705 = vshrl.u32 %v1672, 16
      %v1707 = vshll.u32 %v1672, 16
      %v1709 = vrot.slane %v1707, 1
      %v1710 = vor.u32 %v1705, %v1709
      %v1712 = vshrl.u32 %v1673, 16
      %v1714 = vshll.u32 %v1673, 16
      %v1716 = vrot.slane %v1714, 1
      %v1717 = vor.u32 %v1712, %v1716
      %v1719 = vshrl.u32 %v1674, 16
      %v1721 = vshll.u32 %v1674, 16
      %v1723 = vrot.slane %v1721, 1
      %v1724 = vor.u32 %v1719, %v1723
      %v1726 = vshrl.u32 %v1675, 16
      %v1728 = vshll.u32 %v1675, 16
      %v1730 = vrot.slane %v1728, 1
      %v1731 = vor.u32 %v1726, %v1730
      %v1732 = vrot.slane %v1668, 1
      %v1733 = vrot.slane %v1669, 1
      %v1734 = vrot.slane %v1670, 1
      %v1735 = vrot.slane %v1671, 1
      %v1736 = vrot.slane %v1672, 1
      %v1737 = vrot.slane %v1673, 1
      %v1738 = vrot.slane %v1674, 1
      %v1739 = vrot.slane %v1675, 1
      %v1740 = vunpack.c.l.b16 %v1682
      %v1741 = vunpack.c.l.b16 %v1732
      %v1742 = vunpack.c.l.b16 %v1689
      %v1743 = vunpack.c.l.b16 %v1733
      %v1744 = vunpack.c.l.b16 %v1696
      %v1745 = vunpack.c.l.b16 %v1734
      %v1746 = vunpack.c.l.b16 %v1703
      %v1747 = vunpack.c.l.b16 %v1735
      %v1748 = vunpack.c.l.b16 %v1710
      %v1749 = vunpack.c.l.b16 %v1736
      %v1750 = vunpack.c.l.b16 %v1717
      %v1751 = vunpack.c.l.b16 %v1737
      %v1752 = vunpack.c.l.b16 %v1724
      %v1753 = vunpack.c.l.b16 %v1738
      %v1754 = vunpack.c.l.b16 %v1731
      %v1755 = vunpack.c.l.b16 %v1739
      %v1756 = vld [vmem:[#allocation2] sm:$0xff]
      %v1757 = vld [vmem:[#allocation2 + $0x8] sm:$0xff]
      %v1758 = vld [vmem:[#allocation2 + $0x10] sm:$0xff]
      %v1759 = vld [vmem:[#allocation2 + $0x18] sm:$0xff]
      %v1760 = vld [vmem:[#allocation2 + $0x20] sm:$0xff]
      %v1761 = vld [vmem:[#allocation2 + $0x28] sm:$0xff]
      %v1762 = vld [vmem:[#allocation2 + $0x30] sm:$0xff]
      %v1763 = vld [vmem:[#allocation2 + $0x38] sm:$0xff]
      %s1764 = scalar_lea.vmem %s3, 576
      %v1765 = vld [vmem:[%s1764] sm:$0xf]
      %v1766 = vld [vmem:[%s1764 + $0x4] sm:$0xf]
      %v1767 = vld [vmem:[%s1764 + $0x8] sm:$0xf]
      %v1768 = vld [vmem:[%s1764 + $0xc] sm:$0xf]
      %v1769 = vld [vmem:[%s1764 + $0x10] sm:$0xf]
      %v1770 = vld [vmem:[%s1764 + $0x14] sm:$0xf]
      %v1771 = vld [vmem:[%s1764 + $0x18] sm:$0xf]
      %v1772 = vld [vmem:[%s1764 + $0x1c] sm:$0xf]
      %v1773 = vld [vmem:[%s1764 + $0x20] sm:$0xf]
      %v1774 = vld [vmem:[%s1764 + $0x24] sm:$0xf]
      %v1775 = vld [vmem:[%s1764 + $0x28] sm:$0xf]
      %v1776 = vld [vmem:[%s1764 + $0x2c] sm:$0xf]
      %v1777 = vld [vmem:[%s1764 + $0x30] sm:$0xf]
      %v1778 = vld [vmem:[%s1764 + $0x34] sm:$0xf]
      %v1779 = vld [vmem:[%s1764 + $0x38] sm:$0xf]
      %v1780 = vld [vmem:[%s1764 + $0x3c] sm:$0xf]
      %v1781 = vld [vmem:[%s1764 + $0x40] sm:$0xf]
      %v1782 = vld [vmem:[%s1764 + $0x44] sm:$0xf]
      %v1783 = vld [vmem:[%s1764 + $0x48] sm:$0xf]
      %v1784 = vld [vmem:[%s1764 + $0x4c] sm:$0xf]
      %v1785 = vld [vmem:[%s1764 + $0x50] sm:$0xf]
      %v1786 = vld [vmem:[%s1764 + $0x54] sm:$0xf]
      %v1787 = vld [vmem:[%s1764 + $0x58] sm:$0xf]
      %v1788 = vld [vmem:[%s1764 + $0x5c] sm:$0xf]
      %v1789 = vld [vmem:[%s1764 + $0x60] sm:$0xf]
      %v1790 = vld [vmem:[%s1764 + $0x64] sm:$0xf]
      %v1791 = vld [vmem:[%s1764 + $0x68] sm:$0xf]
      %v1792 = vld [vmem:[%s1764 + $0x6c] sm:$0xf]
      %v1793 = vld [vmem:[%s1764 + $0x70] sm:$0xf]
      %v1794 = vld [vmem:[%s1764 + $0x74] sm:$0xf]
      %v1795 = vld [vmem:[%s1764 + $0x78] sm:$0xf]
      %v1796 = vld [vmem:[%s1764 + $0x7c] sm:$0xf]
      %v1797 = vld [vmem:[%s1764 + $0x80] sm:$0xf]
      %v1798 = vld [vmem:[%s1764 + $0x84] sm:$0xf]
      %v1799 = vld [vmem:[%s1764 + $0x88] sm:$0xf]
      %v1800 = vld [vmem:[%s1764 + $0x8c] sm:$0xf]
      %v1801 = vld [vmem:[%s1764 + $0x90] sm:$0xf]
      %v1802 = vld [vmem:[%s1764 + $0x94] sm:$0xf]
      %v1803 = vld [vmem:[%s1764 + $0x98] sm:$0xf]
      %v1804 = vld [vmem:[%s1764 + $0x9c] sm:$0xf]
      %v1805 = vld [vmem:[%s1764 + $0xa0] sm:$0xf]
      %v1806 = vld [vmem:[%s1764 + $0xa4] sm:$0xf]
      %v1807 = vld [vmem:[%s1764 + $0xa8] sm:$0xf]
      %v1808 = vld [vmem:[%s1764 + $0xac] sm:$0xf]
      %v1809 = vld [vmem:[%s1764 + $0xb0] sm:$0xf]
      %v1810 = vld [vmem:[%s1764 + $0xb4] sm:$0xf]
      %v1811 = vld [vmem:[%s1764 + $0xb8] sm:$0xf]
      %v1812 = vld [vmem:[%s1764 + $0xbc] sm:$0xf]
      %v1813 = vpack.c.b16 %v1654, %v1652
      %v1814 = vpack.c.b16 %v1742, %v1740
      %v1815 = vpack.c.b16 %v1743, %v1741
      %v1816 = vpack.c.b16 %v1658, %v1656
      %v1817 = vpack.c.b16 %v1746, %v1744
      %v1818 = vpack.c.b16 %v1747, %v1745
      %v1819 = vpack.c.b16 %v1662, %v1660
      %v1820 = vpack.c.b16 %v1750, %v1748
      %v1821 = vpack.c.b16 %v1751, %v1749
      %v1822 = vpack.c.b16 %v1666, %v1664
      %v1823 = vpack.c.b16 %v1754, %v1752
      %v1824 = vpack.c.b16 %v1755, %v1753
      %v1885 = vunpack.c.l.b16 %v1765
      %v1886 = vunpack.c.l.b16 %v1766
      %v1887 = vunpack.c.l.b16 %v1767
      %v1888 = vunpack.c.l.b16 %v1768
      %v1889 = vunpack.c.l.b16 %v1769
      %v1890 = vunpack.c.l.b16 %v1770
      %v1891 = vunpack.c.l.b16 %v1771
      %v1892 = vunpack.c.l.b16 %v1772
      %v1893 = vunpack.c.l.b16 %v1773
      %v1894 = vunpack.c.l.b16 %v1774
      %v1895 = vunpack.c.l.b16 %v1775
      %v1896 = vunpack.c.l.b16 %v1776
      %v1897 = vunpack.c.l.b16 %v1777
      %v1898 = vunpack.c.l.b16 %v1778
      %v1899 = vunpack.c.l.b16 %v1779
      %v1900 = vunpack.c.l.b16 %v1780
      %v1901 = vunpack.c.l.b16 %v1781
      %v1902 = vunpack.c.l.b16 %v1782
      %v1903 = vunpack.c.l.b16 %v1783
      %v1904 = vunpack.c.l.b16 %v1784
      %v1905 = vunpack.c.l.b16 %v1785
      %v1906 = vunpack.c.l.b16 %v1786
      %v1907 = vunpack.c.l.b16 %v1787
      %v1908 = vunpack.c.l.b16 %v1788
      %v1909 = vunpack.c.l.b16 %v1789
      %v1910 = vunpack.c.l.b16 %v1790
      %v1911 = vunpack.c.l.b16 %v1791
      %v1912 = vunpack.c.l.b16 %v1792
      %v1913 = vunpack.c.l.b16 %v1793
      %v1914 = vunpack.c.l.b16 %v1794
      %v1915 = vunpack.c.l.b16 %v1795
      %v1916 = vunpack.c.l.b16 %v1796
      %v1917 = vunpack.c.l.b16 %v1797
      %v1918 = vunpack.c.l.b16 %v1798
      %v1919 = vunpack.c.l.b16 %v1799
      %v1920 = vunpack.c.l.b16 %v1800
      %v1921 = vunpack.c.l.b16 %v1801
      %v1922 = vunpack.c.l.b16 %v1802
      %v1923 = vunpack.c.l.b16 %v1803
      %v1924 = vunpack.c.l.b16 %v1804
      %v1925 = vunpack.c.l.b16 %v1805
      %v1926 = vunpack.c.l.b16 %v1806
      %v1927 = vunpack.c.l.b16 %v1807
      %v1928 = vunpack.c.l.b16 %v1808
      %v1929 = vunpack.c.l.b16 %v1809
      %v1930 = vunpack.c.l.b16 %v1810
      %v1931 = vunpack.c.l.b16 %v1811
      %v1932 = vunpack.c.l.b16 %v1812
      %v1933 = vpack.c.b16 %v1886, %v1885
      %v1934 = vpack.c.b16 %v1888, %v1887
      %v1935 = vpack.c.b16 %v1890, %v1889
      %v1936 = vpack.c.b16 %v1892, %v1891
      %v1937 = vpack.c.b16 %v1894, %v1893
      %v1938 = vpack.c.b16 %v1896, %v1895
      %v1939 = vpack.c.b16 %v1898, %v1897
      %v1940 = vpack.c.b16 %v1900, %v1899
      %v1941 = vpack.c.b16 %v1902, %v1901
      %v1942 = vpack.c.b16 %v1904, %v1903
      %v1943 = vpack.c.b16 %v1906, %v1905
      %v1944 = vpack.c.b16 %v1908, %v1907
      %v1945 = vpack.c.b16 %v1910, %v1909
      %v1946 = vpack.c.b16 %v1912, %v1911
      %v1947 = vpack.c.b16 %v1914, %v1913
      %v1948 = vpack.c.b16 %v1916, %v1915
      %v1949 = vpack.c.b16 %v1918, %v1917
      %v1950 = vpack.c.b16 %v1920, %v1919
      %v1951 = vpack.c.b16 %v1922, %v1921
      %v1952 = vpack.c.b16 %v1924, %v1923
      %v1953 = vpack.c.b16 %v1926, %v1925
      %v1954 = vpack.c.b16 %v1928, %v1927
      %v1955 = vpack.c.b16 %v1930, %v1929
      %v1956 = vpack.c.b16 %v1932, %v1931
      %1981 = vmatprep.subr.bf16.mxu0 0
      %1982 = vmatpush1.bf16.msra.mxu0 %v1933
      %1983 = vmatprep.subr.bf16.mxu0 0
      %1984 = vmatpush1.bf16.msra.mxu0 %v1934
      %1985 = vmatprep.subr.bf16.mxu0 0
      %1986 = vmatpush1.bf16.msra.mxu0 %v1935
      %1987 = vmatprep.subr.bf16.mxu0 0
      %1988 = vmatpush1.bf16.msra.mxu0 %v1936
      %1989 = vmatprep.subr.bf16.mxu0 0
      %1990 = vmatpush1.bf16.msra.mxu0 %v1937
      %1991 = vmatprep.subr.bf16.mxu0 0
      %1992 = vmatpush1.bf16.msra.mxu0 %v1938
      %1993 = vmatprep.subr.bf16.mxu0 0
      %1994 = vmatpush1.bf16.msra.mxu0 %v1939
      %1995 = vmatprep.subr.bf16.mxu0 0
      %1996 = vmatpush1.bf16.msra.mxu0 %v1940
      %1997 = vmatprep.subr.bf16.mxu0 0
      %1998 = vmatpush1.bf16.msra.mxu0 %v1941
      %1999 = vmatprep.subr.bf16.mxu0 0
      %2000 = vmatpush1.bf16.msra.mxu0 %v1942
      %2001 = vmatprep.subr.bf16.mxu0 0
      %2002 = vmatpush1.bf16.msra.mxu0 %v1943
      %2003 = vmatprep.subr.bf16.mxu0 0
      %2004 = vmatpush1.bf16.msra.mxu0 %v1944
      %2005 = vmatprep.subr.bf16.mxu0 0
      %2006 = vmatpush1.bf16.msra.mxu0 %v1945
      %2007 = vmatprep.subr.bf16.mxu0 0
      %2008 = vmatpush1.bf16.msra.mxu0 %v1946
      %2009 = vmatprep.subr.bf16.mxu0 0
      %2010 = vmatpush1.bf16.msra.mxu0 %v1947
      %2011 = vmatprep.subr.bf16.mxu0 0
      %2012 = vmatpush1.bf16.msra.mxu0 %v1948
      %2013 = vmatprep.mubr.bf16.mxu0 %v1814
      %2014 = vmatmul.mubr.bf16.gmra.mrb[0].mxu0 %v1813
      %v2015 = vpop.f32.mrb[0].mxu0
      %v2016 = vadd.f32 0.0, %v2015
      %v2017 = vpop.f32.mrb[0].mxu0
      %v2018 = vpop.f32.mrb[0].mxu0
      %v2019 = vadd.f32 0.0, %v2018
      %v2020 = vpop.f32.mrb[0].mxu0
      %2021 = vmatprep.mubr.bf16.mxu0 %v1817
      %2022 = vmatmul.mubr.bf16.gmra.mrb[0].mxu0 %v1816
      %v2023 = vpop.f32.mrb[0].mxu0
      %v2024 = vadd.f32 0.0, %v2023
      %v2025 = vpop.f32.mrb[0].mxu0
      %v2026 = vpop.f32.mrb[0].mxu0
      %v2027 = vadd.f32 0.0, %v2026
      %v2028 = vpop.f32.mrb[0].mxu0
      %2029 = vmatprep.mubr.bf16.mxu0 %v1820
      %2030 = vmatmul.mubr.bf16.gmra.mrb[0].mxu0 %v1819
      %v2031 = vpop.f32.mrb[0].mxu0
      %v2032 = vadd.f32 0.0, %v2031
      %v2033 = vpop.f32.mrb[0].mxu0
      %v2034 = vpop.f32.mrb[0].mxu0
      %v2035 = vadd.f32 0.0, %v2034
      %v2036 = vpop.f32.mrb[0].mxu0
      %2037 = vmatprep.mubr.bf16.mxu0 %v1823
      %2038 = vmatmul.mubr.bf16.gmra.mrb[0].mxu0 %v1822
      %v2039 = vpop.f32.mrb[0].mxu0
      %v2040 = vadd.f32 0.0, %v2039
      %v2041 = vpop.f32.mrb[0].mxu0
      %v2042 = vpop.f32.mrb[0].mxu0
      %v2043 = vadd.f32 0.0, %v2042
      %v2044 = vpop.f32.mrb[0].mxu0
      %2045 = vdwg.mxu0
      %2046 = vmatprep.subr.bf16.mxu0 0
      %2047 = vmatpush1.bf16.msra.mxu0 %v1949
      %2048 = vmatprep.subr.bf16.mxu0 0
      %2049 = vmatpush1.bf16.msra.mxu0 %v1950
      %2050 = vmatprep.subr.bf16.mxu0 0
      %2051 = vmatpush1.bf16.msra.mxu0 %v1951
      %2052 = vmatprep.subr.bf16.mxu0 0
      %2053 = vmatpush1.bf16.msra.mxu0 %v1952
      %2054 = vmatprep.subr.bf16.mxu0 0
      %2055 = vmatpush1.bf16.msra.mxu0 %v1953
      %2056 = vmatprep.subr.bf16.mxu0 0
      %2057 = vmatpush1.bf16.msra.mxu0 %v1954
      %2058 = vmatprep.subr.bf16.mxu0 0
      %2059 = vmatpush1.bf16.msra.mxu0 %v1955
      %2060 = vmatprep.subr.bf16.mxu0 0
      %2061 = vmatpush1.bf16.msra.mxu0 %v1956
      %2062 = vmatprep.subr.bf16.mxu0 0
      %2063 = vmatpush1.bf16.msra.mxu0 0
      %2064 = vmatprep.subr.bf16.mxu0 0
      %2065 = vmatpush1.bf16.msra.mxu0 0
      %2066 = vmatprep.subr.bf16.mxu0 0
      %2067 = vmatpush1.bf16.msra.mxu0 0
      %2068 = vmatprep.subr.bf16.mxu0 0
      %2069 = vmatpush1.bf16.msra.mxu0 0
      %2070 = vmatprep.subr.bf16.mxu0 0
      %2071 = vmatpush1.bf16.msra.mxu0 0
      %2072 = vmatprep.subr.bf16.mxu0 0
      %2073 = vmatpush1.bf16.msra.mxu0 0
      %2074 = vmatprep.subr.bf16.mxu0 0
      %2075 = vmatpush1.bf16.msra.mxu0 0
      %2076 = vmatprep.subr.bf16.mxu0 0
      %2077 = vmatpush1.bf16.msra.mxu0 0
      %2078 = vmatprep.mubr.bf16.mxu0 0
      %2079 = vmatmul.mubr.bf16.gmra.mrb[0].mxu0 %v1815
      %v2080 = vpop.f32.mrb[0].mxu0
      %v2081 = vadd.f32 %v2016, %v2080
      %v2082 = vpop.f32.mrb[0].mxu0
      %v2083 = vpop.f32.mrb[0].mxu0
      %v2084 = vadd.f32 %v2019, %v2083
      %v2085 = vpop.f32.mrb[0].mxu0
      %2086 = vmatprep.mubr.bf16.mxu0 0
      %2087 = vmatmul.mubr.bf16.gmra.mrb[0].mxu0 %v1818
      %v2088 = vpop.f32.mrb[0].mxu0
      %v2089 = vadd.f32 %v2024, %v2088
      %v2090 = vpop.f32.mrb[0].mxu0
      %v2091 = vpop.f32.mrb[0].mxu0
      %v2092 = vadd.f32 %v2027, %v2091
      %v2093 = vpop.f32.mrb[0].mxu0
      %2094 = vmatprep.mubr.bf16.mxu0 0
      %2095 = vmatmul.mubr.bf16.gmra.mrb[0].mxu0 %v1821
      %v2096 = vpop.f32.mrb[0].mxu0
      %v2097 = vadd.f32 %v2032, %v2096
      %v2098 = vpop.f32.mrb[0].mxu0
      %v2099 = vpop.f32.mrb[0].mxu0
      %v2100 = vadd.f32 %v2035, %v2099
      %v2101 = vpop.f32.mrb[0].mxu0
      %2102 = vmatprep.mubr.bf16.mxu0 0
      %2103 = vmatmul.mubr.bf16.gmra.mrb[0].mxu0 %v1824
      %v2104 = vpop.f32.mrb[0].mxu0
      %v2105 = vadd.f32 %v2040, %v2104
      %v2106 = vpop.f32.mrb[0].mxu0
      %v2107 = vpop.f32.mrb[0].mxu0
      %v2108 = vadd.f32 %v2043, %v2107
      %v2109 = vpop.f32.mrb[0].mxu0
      %2110 = vdwg.mxu0
      %v2111 = vadd.f32 %v1756, %v2081
      %v2112 = vadd.f32 %v1757, %v2084
      %v2113 = vadd.f32 %v1758, %v2089
      %v2114 = vadd.f32 %v1759, %v2092
      %v2115 = vadd.f32 %v1760, %v2097
      %v2116 = vadd.f32 %v1761, %v2100
      %v2117 = vadd.f32 %v1762, %v2105
      %v2118 = vadd.f32 %v1763, %v2108
      %2119 = vst [vmem:[#allocation2] sm:$0xff] %v2111
      %2120 = vst [vmem:[#allocation2 + $0x8] sm:$0xff] %v2112
      %2121 = vst [vmem:[#allocation2 + $0x10] sm:$0xff] %v2113
      %2122 = vst [vmem:[#allocation2 + $0x18] sm:$0xff] %v2114
      %2123 = vst [vmem:[#allocation2 + $0x20] sm:$0xff] %v2115
      %2124 = vst [vmem:[#allocation2 + $0x28] sm:$0xff] %v2116
      %2125 = vst [vmem:[#allocation2 + $0x30] sm:$0xff] %v2117
      %2126 = vst [vmem:[#allocation2 + $0x38] sm:$0xff] %v2118
      %v2129 = vunpack.c.l.b16 %v1632
      %v2130 = vunpack.c.l.b16 %v1633
      %v2131 = vpack.c.b16 %v2130, %v2129
      %v2133 = vshrl.u32 %v2131, 16
      %v2135 = vshll.u32 %v2131, 16
      %v2137 = vrot.slane %v2135, 1
      %v2138 = vor.u32 %v2133, %v2137
      %v2139 = vrot.slane %v2131, 1
      %v2140 = vunpack.c.l.b16 %v2138
      %v2141 = vunpack.c.l.b16 %v2139
      %v2142 = vld [vmem:[#allocation2] sm:$0xff]
      %v2143 = vld [vmem:[#allocation2 + $0x8] sm:$0xff]
      %v2144 = vld [vmem:[#allocation2 + $0x10] sm:$0xff]
      %v2145 = vld [vmem:[#allocation2 + $0x18] sm:$0xff]
      %v2146 = vld [vmem:[#allocation2 + $0x20] sm:$0xff]
      %v2147 = vld [vmem:[#allocation2 + $0x28] sm:$0xff]
      %v2148 = vld [vmem:[#allocation2 + $0x30] sm:$0xff]
      %v2149 = vld [vmem:[#allocation2 + $0x38] sm:$0xff]
      %s2150 = scalar_lea.vmem %s3, 768
      %v2151 = vld [vmem:[%s2150] sm:$0xf]
      %v2152 = vld [vmem:[%s2150 + $0x4] sm:$0xf]
      %v2153 = vld [vmem:[%s2150 + $0x8] sm:$0xf]
      %v2154 = vld [vmem:[%s2150 + $0xc] sm:$0xf]
      %v2155 = vld [vmem:[%s2150 + $0x10] sm:$0xf]
      %v2156 = vld [vmem:[%s2150 + $0x14] sm:$0xf]
      %v2157 = vld [vmem:[%s2150 + $0x18] sm:$0xf]
      %v2158 = vld [vmem:[%s2150 + $0x1c] sm:$0xf]
      %v2159 = vld [vmem:[%s2150 + $0x20] sm:$0xf]
      %v2160 = vld [vmem:[%s2150 + $0x24] sm:$0xf]
      %v2161 = vld [vmem:[%s2150 + $0x28] sm:$0xf]
      %v2162 = vld [vmem:[%s2150 + $0x2c] sm:$0xf]
      %v2163 = vld [vmem:[%s2150 + $0x30] sm:$0xf]
      %v2164 = vld [vmem:[%s2150 + $0x34] sm:$0xf]
      %v2165 = vld [vmem:[%s2150 + $0x38] sm:$0xf]
      %v2166 = vld [vmem:[%s2150 + $0x3c] sm:$0xf]
      %v2167 = vld [vmem:[%s2150 + $0x40] sm:$0xf]
      %v2168 = vld [vmem:[%s2150 + $0x44] sm:$0xf]
      %v2169 = vld [vmem:[%s2150 + $0x48] sm:$0xf]
      %v2170 = vld [vmem:[%s2150 + $0x4c] sm:$0xf]
      %v2171 = vld [vmem:[%s2150 + $0x50] sm:$0xf]
      %v2172 = vld [vmem:[%s2150 + $0x54] sm:$0xf]
      %v2173 = vld [vmem:[%s2150 + $0x58] sm:$0xf]
      %v2174 = vld [vmem:[%s2150 + $0x5c] sm:$0xf]
      %v2175 = vld [vmem:[%s2150 + $0x60] sm:$0xf]
      %v2176 = vld [vmem:[%s2150 + $0x64] sm:$0xf]
      %v2177 = vld [vmem:[%s2150 + $0x68] sm:$0xf]
      %v2178 = vld [vmem:[%s2150 + $0x6c] sm:$0xf]
      %v2179 = vld [vmem:[%s2150 + $0x70] sm:$0xf]
      %v2180 = vld [vmem:[%s2150 + $0x74] sm:$0xf]
      %v2181 = vld [vmem:[%s2150 + $0x78] sm:$0xf]
      %v2182 = vld [vmem:[%s2150 + $0x7c] sm:$0xf]
      %v2183 = vld [vmem:[%s2150 + $0x80] sm:$0xf]
      %v2184 = vld [vmem:[%s2150 + $0x84] sm:$0xf]
      %v2185 = vld [vmem:[%s2150 + $0x88] sm:$0xf]
      %v2186 = vld [vmem:[%s2150 + $0x8c] sm:$0xf]
      %v2187 = vld [vmem:[%s2150 + $0x90] sm:$0xf]
      %v2188 = vld [vmem:[%s2150 + $0x94] sm:$0xf]
      %v2189 = vld [vmem:[%s2150 + $0x98] sm:$0xf]
      %v2190 = vld [vmem:[%s2150 + $0x9c] sm:$0xf]
      %v2191 = vld [vmem:[%s2150 + $0xa0] sm:$0xf]
      %v2192 = vld [vmem:[%s2150 + $0xa4] sm:$0xf]
      %v2193 = vld [vmem:[%s2150 + $0xa8] sm:$0xf]
      %v2194 = vld [vmem:[%s2150 + $0xac] sm:$0xf]
      %v2195 = vld [vmem:[%s2150 + $0xb0] sm:$0xf]
      %v2196 = vld [vmem:[%s2150 + $0xb4] sm:$0xf]
      %v2197 = vld [vmem:[%s2150 + $0xb8] sm:$0xf]
      %v2198 = vld [vmem:[%s2150 + $0xbc] sm:$0xf]
      %v2199 = vpack.c.b16 %v1656, %v1654
      %v2200 = vpack.c.b16 %v1744, %v1742
      %v2201 = vpack.c.b16 %v1745, %v1743
      %v2202 = vpack.c.b16 %v1660, %v1658
      %v2203 = vpack.c.b16 %v1748, %v1746
      %v2204 = vpack.c.b16 %v1749, %v1747
      %v2205 = vpack.c.b16 %v1664, %v1662
      %v2206 = vpack.c.b16 %v1752, %v1750
      %v2207 = vpack.c.b16 %v1753, %v1751
      %v2208 = vpack.c.b16 %v2129, %v1666
      %v2209 = vpack.c.b16 %v2140, %v1754
      %v2210 = vpack.c.b16 %v2141, %v1755
      %v2271 = vunpack.c.l.b16 %v2151
      %v2272 = vunpack.c.l.b16 %v2152
      %v2273 = vunpack.c.l.b16 %v2153
      %v2274 = vunpack.c.l.b16 %v2154
      %v2275 = vunpack.c.l.b16 %v2155
      %v2276 = vunpack.c.l.b16 %v2156
      %v2277 = vunpack.c.l.b16 %v2157
      %v2278 = vunpack.c.l.b16 %v2158
      %v2279 = vunpack.c.l.b16 %v2159
      %v2280 = vunpack.c.l.b16 %v2160
      %v2281 = vunpack.c.l.b16 %v2161
      %v2282 = vunpack.c.l.b16 %v2162
      %v2283 = vunpack.c.l.b16 %v2163
      %v2284 = vunpack.c.l.b16 %v2164
      %v2285 = vunpack.c.l.b16 %v2165
      %v2286 = vunpack.c.l.b16 %v2166
      %v2287 = vunpack.c.l.b16 %v2167
      %v2288 = vunpack.c.l.b16 %v2168
      %v2289 = vunpack.c.l.b16 %v2169
      %v2290 = vunpack.c.l.b16 %v2170
      %v2291 = vunpack.c.l.b16 %v2171
      %v2292 = vunpack.c.l.b16 %v2172
      %v2293 = vunpack.c.l.b16 %v2173
      %v2294 = vunpack.c.l.b16 %v2174
      %v2295 = vunpack.c.l.b16 %v2175
      %v2296 = vunpack.c.l.b16 %v2176
      %v2297 = vunpack.c.l.b16 %v2177
      %v2298 = vunpack.c.l.b16 %v2178
      %v2299 = vunpack.c.l.b16 %v2179
      %v2300 = vunpack.c.l.b16 %v2180
      %v2301 = vunpack.c.l.b16 %v2181
      %v2302 = vunpack.c.l.b16 %v2182
      %v2303 = vunpack.c.l.b16 %v2183
      %v2304 = vunpack.c.l.b16 %v2184
      %v2305 = vunpack.c.l.b16 %v2185
      %v2306 = vunpack.c.l.b16 %v2186
      %v2307 = vunpack.c.l.b16 %v2187
      %v2308 = vunpack.c.l.b16 %v2188
      %v2309 = vunpack.c.l.b16 %v2189
      %v2310 = vunpack.c.l.b16 %v2190
      %v2311 = vunpack.c.l.b16 %v2191
      %v2312 = vunpack.c.l.b16 %v2192
      %v2313 = vunpack.c.l.b16 %v2193
      %v2314 = vunpack.c.l.b16 %v2194
      %v2315 = vunpack.c.l.b16 %v2195
      %v2316 = vunpack.c.l.b16 %v2196
      %v2317 = vunpack.c.l.b16 %v2197
      %v2318 = vunpack.c.l.b16 %v2198
      %v2319 = vpack.c.b16 %v2272, %v2271
      %v2320 = vpack.c.b16 %v2274, %v2273
      %v2321 = vpack.c.b16 %v2276, %v2275
      %v2322 = vpack.c.b16 %v2278, %v2277
      %v2323 = vpack.c.b16 %v2280, %v2279
      %v2324 = vpack.c.b16 %v2282, %v2281
      %v2325 = vpack.c.b16 %v2284, %v2283
      %v2326 = vpack.c.b16 %v2286, %v2285
      %v2327 = vpack.c.b16 %v2288, %v2287
      %v2328 = vpack.c.b16 %v2290, %v2289
      %v2329 = vpack.c.b16 %v2292, %v2291
      %v2330 = vpack.c.b16 %v2294, %v2293
      %v2331 = vpack.c.b16 %v2296, %v2295
      %v2332 = vpack.c.b16 %v2298, %v2297
      %v2333 = vpack.c.b16 %v2300, %v2299
      %v2334 = vpack.c.b16 %v2302, %v2301
      %v2335 = vpack.c.b16 %v2304, %v2303
      %v2336 = vpack.c.b16 %v2306, %v2305
      %v2337 = vpack.c.b16 %v2308, %v2307
      %v2338 = vpack.c.b16 %v2310, %v2309
      %v2339 = vpack.c.b16 %v2312, %v2311
      %v2340 = vpack.c.b16 %v2314, %v2313
      %v2341 = vpack.c.b16 %v2316, %v2315
      %v2342 = vpack.c.b16 %v2318, %v2317
      %2367 = vmatprep.subr.bf16.mxu0 0
      %2368 = vmatpush1.bf16.msra.mxu0 %v2319
      %2369 = vmatprep.subr.bf16.mxu0 0
      %2370 = vmatpush1.bf16.msra.mxu0 %v2320
      %2371 = vmatprep.subr.bf16.mxu0 0
      %2372 = vmatpush1.bf16.msra.mxu0 %v2321
      %2373 = vmatprep.subr.bf16.mxu0 0
      %2374 = vmatpush1.bf16.msra.mxu0 %v2322
      %2375 = vmatprep.subr.bf16.mxu0 0
      %2376 = vmatpush1.bf16.msra.mxu0 %v2323
      %2377 = vmatprep.subr.bf16.mxu0 0
      %2378 = vmatpush1.bf16.msra.mxu0 %v2324
      %2379 = vmatprep.subr.bf16.mxu0 0
      %2380 = vmatpush1.bf16.msra.mxu0 %v2325
      %2381 = vmatprep.subr.bf16.mxu0 0
      %2382 = vmatpush1.bf16.msra.mxu0 %v2326
      %2383 = vmatprep.subr.bf16.mxu0 0
      %2384 = vmatpush1.bf16.msra.mxu0 %v2327
      %2385 = vmatprep.subr.bf16.mxu0 0
      %2386 = vmatpush1.bf16.msra.mxu0 %v2328
      %2387 = vmatprep.subr.bf16.mxu0 0
      %2388 = vmatpush1.bf16.msra.mxu0 %v2329
      %2389 = vmatprep.subr.bf16.mxu0 0
      %2390 = vmatpush1.bf16.msra.mxu0 %v2330
      %2391 = vmatprep.subr.bf16.mxu0 0
      %2392 = vmatpush1.bf16.msra.mxu0 %v2331
      %2393 = vmatprep.subr.bf16.mxu0 0
      %2394 = vmatpush1.bf16.msra.mxu0 %v2332
      %2395 = vmatprep.subr.bf16.mxu0 0
      %2396 = vmatpush1.bf16.msra.mxu0 %v2333
      %2397 = vmatprep.subr.bf16.mxu0 0
      %2398 = vmatpush1.bf16.msra.mxu0 %v2334
      %2399 = vmatprep.mubr.bf16.mxu0 %v2200
      %2400 = vmatmul.mubr.bf16.gmra.mrb[0].mxu0 %v2199
      %v2401 = vpop.f32.mrb[0].mxu0
      %v2402 = vadd.f32 0.0, %v2401
      %v2403 = vpop.f32.mrb[0].mxu0
      %v2404 = vpop.f32.mrb[0].mxu0
      %v2405 = vadd.f32 0.0, %v2404
      %v2406 = vpop.f32.mrb[0].mxu0
      %2407 = vmatprep.mubr.bf16.mxu0 %v2203
      %2408 = vmatmul.mubr.bf16.gmra.mrb[0].mxu0 %v2202
      %v2409 = vpop.f32.mrb[0].mxu0
      %v2410 = vadd.f32 0.0, %v2409
      %v2411 = vpop.f32.mrb[0].mxu0
      %v2412 = vpop.f32.mrb[0].mxu0
      %v2413 = vadd.f32 0.0, %v2412
      %v2414 = vpop.f32.mrb[0].mxu0
      %2415 = vmatprep.mubr.bf16.mxu0 %v2206
      %2416 = vmatmul.mubr.bf16.gmra.mrb[0].mxu0 %v2205
      %v2417 = vpop.f32.mrb[0].mxu0
      %v2418 = vadd.f32 0.0, %v2417
      %v2419 = vpop.f32.mrb[0].mxu0
      %v2420 = vpop.f32.mrb[0].mxu0
      %v2421 = vadd.f32 0.0, %v2420
      %v2422 = vpop.f32.mrb[0].mxu0
      %2423 = vmatprep.mubr.bf16.mxu0 %v2209
      %2424 = vmatmul.mubr.bf16.gmra.mrb[0].mxu0 %v2208
      %v2425 = vpop.f32.mrb[0].mxu0
      %v2426 = vadd.f32 0.0, %v2425
      %v2427 = vpop.f32.mrb[0].mxu0
      %v2428 = vpop.f32.mrb[0].mxu0
      %v2429 = vadd.f32 0.0, %v2428
      %v2430 = vpop.f32.mrb[0].mxu0
      %2431 = vdwg.mxu0
      %2432 = vmatprep.subr.bf16.mxu0 0
      %2433 = vmatpush1.bf16.msra.mxu0 %v2335
      %2434 = vmatprep.subr.bf16.mxu0 0
      %2435 = vmatpush1.bf16.msra.mxu0 %v2336
      %2436 = vmatprep.subr.bf16.mxu0 0
      %2437 = vmatpush1.bf16.msra.mxu0 %v2337
      %2438 = vmatprep.subr.bf16.mxu0 0
      %2439 = vmatpush1.bf16.msra.mxu0 %v2338
      %2440 = vmatprep.subr.bf16.mxu0 0
      %2441 = vmatpush1.bf16.msra.mxu0 %v2339
      %2442 = vmatprep.subr.bf16.mxu0 0
      %2443 = vmatpush1.bf16.msra.mxu0 %v2340
      %2444 = vmatprep.subr.bf16.mxu0 0
      %2445 = vmatpush1.bf16.msra.mxu0 %v2341
      %2446 = vmatprep.subr.bf16.mxu0 0
      %2447 = vmatpush1.bf16.msra.mxu0 %v2342
      %2448 = vmatprep.subr.bf16.mxu0 0
      %2449 = vmatpush1.bf16.msra.mxu0 0
      %2450 = vmatprep.subr.bf16.mxu0 0
      %2451 = vmatpush1.bf16.msra.mxu0 0
      %2452 = vmatprep.subr.bf16.mxu0 0
      %2453 = vmatpush1.bf16.msra.mxu0 0
      %2454 = vmatprep.subr.bf16.mxu0 0
      %2455 = vmatpush1.bf16.msra.mxu0 0
      %2456 = vmatprep.subr.bf16.mxu0 0
      %2457 = vmatpush1.bf16.msra.mxu0 0
      %2458 = vmatprep.subr.bf16.mxu0 0
      %2459 = vmatpush1.bf16.msra.mxu0 0
      %2460 = vmatprep.subr.bf16.mxu0 0
      %2461 = vmatpush1.bf16.msra.mxu0 0
      %2462 = vmatprep.subr.bf16.mxu0 0
      %2463 = vmatpush1.bf16.msra.mxu0 0
      %2464 = vmatprep.mubr.bf16.mxu0 0
      %2465 = vmatmul.mubr.bf16.gmra.mrb[0].mxu0 %v2201
      %v2466 = vpop.f32.mrb[0].mxu0
      %v2467 = vadd.f32 %v2402, %v2466
      %v2468 = vpop.f32.mrb[0].mxu0
      %v2469 = vpop.f32.mrb[0].mxu0
      %v2470 = vadd.f32 %v2405, %v2469
      %v2471 = vpop.f32.mrb[0].mxu0
      %2472 = vmatprep.mubr.bf16.mxu0 0
      %2473 = vmatmul.mubr.bf16.gmra.mrb[0].mxu0 %v2204
      %v2474 = vpop.f32.mrb[0].mxu0
      %v2475 = vadd.f32 %v2410, %v2474
      %v2476 = vpop.f32.mrb[0].mxu0
      %v2477 = vpop.f32.mrb[0].mxu0
      %v2478 = vadd.f32 %v2413, %v2477
      %v2479 = vpop.f32.mrb[0].mxu0
      %2480 = vmatprep.mubr.bf16.mxu0 0
      %2481 = vmatmul.mubr.bf16.gmra.mrb[0].mxu0 %v2207
      %v2482 = vpop.f32.mrb[0].mxu0
      %v2483 = vadd.f32 %v2418, %v2482
      %v2484 = vpop.f32.mrb[0].mxu0
      %v2485 = vpop.f32.mrb[0].mxu0
      %v2486 = vadd.f32 %v2421, %v2485
      %v2487 = vpop.f32.mrb[0].mxu0
      %2488 = vmatprep.mubr.bf16.mxu0 0
      %2489 = vmatmul.mubr.bf16.gmra.mrb[0].mxu0 %v2210
      %v2490 = vpop.f32.mrb[0].mxu0
      %v2491 = vadd.f32 %v2426, %v2490
      %v2492 = vpop.f32.mrb[0].mxu0
      %v2493 = vpop.f32.mrb[0].mxu0
      %v2494 = vadd.f32 %v2429, %v2493
      %v2495 = vpop.f32.mrb[0].mxu0
      %2496 = vdwg.mxu0
      %v2497 = vadd.f32 %v2142, %v2467
      %v2498 = vadd.f32 %v2143, %v2470
      %v2499 = vadd.f32 %v2144, %v2475
      %v2500 = vadd.f32 %v2145, %v2478
      %v2501 = vadd.f32 %v2146, %v2483
      %v2502 = vadd.f32 %v2147, %v2486
      %v2503 = vadd.f32 %v2148, %v2491
      %v2504 = vadd.f32 %v2149, %v2494
      %2505 = vst [vmem:[#allocation2] sm:$0xff] %v2497
      %2506 = vst [vmem:[#allocation2 + $0x8] sm:$0xff] %v2498
      %2507 = vst [vmem:[#allocation2 + $0x10] sm:$0xff] %v2499
      %2508 = vst [vmem:[#allocation2 + $0x18] sm:$0xff] %v2500
      %2509 = vst [vmem:[#allocation2 + $0x20] sm:$0xff] %v2501
      %2510 = vst [vmem:[#allocation2 + $0x28] sm:$0xff] %v2502
      %2511 = vst [vmem:[#allocation2 + $0x30] sm:$0xff] %v2503
      %2512 = vst [vmem:[#allocation2 + $0x38] sm:$0xff] %v2504
      %v2515 = vunpack.c.l.b16 %v1634
      %v2516 = vunpack.c.l.b16 %v1635
      %v2517 = vpack.c.b16 %v2516, %v2515
      %v2519 = vshrl.u32 %v2517, 16
      %v2521 = vshll.u32 %v2517, 16
      %v2523 = vrot.slane %v2521, 1
      %v2524 = vor.u32 %v2519, %v2523
      %v2525 = vrot.slane %v2517, 1
      %v2526 = vunpack.c.l.b16 %v2524
      %v2527 = vunpack.c.l.b16 %v2525
      %v2528 = vld [vmem:[#allocation2] sm:$0xff]
      %v2529 = vld [vmem:[#allocation2 + $0x8] sm:$0xff]
      %v2530 = vld [vmem:[#allocation2 + $0x10] sm:$0xff]
      %v2531 = vld [vmem:[#allocation2 + $0x18] sm:$0xff]
      %v2532 = vld [vmem:[#allocation2 + $0x20] sm:$0xff]
      %v2533 = vld [vmem:[#allocation2 + $0x28] sm:$0xff]
      %v2534 = vld [vmem:[#allocation2 + $0x30] sm:$0xff]
      %v2535 = vld [vmem:[#allocation2 + $0x38] sm:$0xff]
      %s2536 = scalar_lea.vmem %s3, 960
      %v2537 = vld [vmem:[%s2536] sm:$0xf]
      %v2538 = vld [vmem:[%s2536 + $0x4] sm:$0xf]
      %v2539 = vld [vmem:[%s2536 + $0x8] sm:$0xf]
      %v2540 = vld [vmem:[%s2536 + $0xc] sm:$0xf]
      %v2541 = vld [vmem:[%s2536 + $0x10] sm:$0xf]
      %v2542 = vld [vmem:[%s2536 + $0x14] sm:$0xf]
      %v2543 = vld [vmem:[%s2536 + $0x18] sm:$0xf]
      %v2544 = vld [vmem:[%s2536 + $0x1c] sm:$0xf]
      %v2545 = vld [vmem:[%s2536 + $0x20] sm:$0xf]
      %v2546 = vld [vmem:[%s2536 + $0x24] sm:$0xf]
      %v2547 = vld [vmem:[%s2536 + $0x28] sm:$0xf]
      %v2548 = vld [vmem:[%s2536 + $0x2c] sm:$0xf]
      %v2549 = vld [vmem:[%s2536 + $0x30] sm:$0xf]
      %v2550 = vld [vmem:[%s2536 + $0x34] sm:$0xf]
      %v2551 = vld [vmem:[%s2536 + $0x38] sm:$0xf]
      %v2552 = vld [vmem:[%s2536 + $0x3c] sm:$0xf]
      %v2553 = vld [vmem:[%s2536 + $0x40] sm:$0xf]
      %v2554 = vld [vmem:[%s2536 + $0x44] sm:$0xf]
      %v2555 = vld [vmem:[%s2536 + $0x48] sm:$0xf]
      %v2556 = vld [vmem:[%s2536 + $0x4c] sm:$0xf]
      %v2557 = vld [vmem:[%s2536 + $0x50] sm:$0xf]
      %v2558 = vld [vmem:[%s2536 + $0x54] sm:$0xf]
      %v2559 = vld [vmem:[%s2536 + $0x58] sm:$0xf]
      %v2560 = vld [vmem:[%s2536 + $0x5c] sm:$0xf]
      %v2561 = vld [vmem:[%s2536 + $0x60] sm:$0xf]
      %v2562 = vld [vmem:[%s2536 + $0x64] sm:$0xf]
      %v2563 = vld [vmem:[%s2536 + $0x68] sm:$0xf]
      %v2564 = vld [vmem:[%s2536 + $0x6c] sm:$0xf]
      %v2565 = vld [vmem:[%s2536 + $0x70] sm:$0xf]
      %v2566 = vld [vmem:[%s2536 + $0x74] sm:$0xf]
      %v2567 = vld [vmem:[%s2536 + $0x78] sm:$0xf]
      %v2568 = vld [vmem:[%s2536 + $0x7c] sm:$0xf]
      %v2569 = vld [vmem:[%s2536 + $0x80] sm:$0xf]
      %v2570 = vld [vmem:[%s2536 + $0x84] sm:$0xf]
      %v2571 = vld [vmem:[%s2536 + $0x88] sm:$0xf]
      %v2572 = vld [vmem:[%s2536 + $0x8c] sm:$0xf]
      %v2573 = vld [vmem:[%s2536 + $0x90] sm:$0xf]
      %v2574 = vld [vmem:[%s2536 + $0x94] sm:$0xf]
      %v2575 = vld [vmem:[%s2536 + $0x98] sm:$0xf]
      %v2576 = vld [vmem:[%s2536 + $0x9c] sm:$0xf]
      %v2577 = vld [vmem:[%s2536 + $0xa0] sm:$0xf]
      %v2578 = vld [vmem:[%s2536 + $0xa4] sm:$0xf]
      %v2579 = vld [vmem:[%s2536 + $0xa8] sm:$0xf]
      %v2580 = vld [vmem:[%s2536 + $0xac] sm:$0xf]
      %v2581 = vld [vmem:[%s2536 + $0xb0] sm:$0xf]
      %v2582 = vld [vmem:[%s2536 + $0xb4] sm:$0xf]
      %v2583 = vld [vmem:[%s2536 + $0xb8] sm:$0xf]
      %v2584 = vld [vmem:[%s2536 + $0xbc] sm:$0xf]
      %v2585 = vpack.c.b16 %v2515, %v2129
      %v2586 = vpack.c.b16 %v2526, %v2140
      %v2587 = vpack.c.b16 %v2527, %v2141
      %v2639 = vunpack.c.l.b16 %v2537
      %v2640 = vunpack.c.l.b16 %v2538
      %v2641 = vunpack.c.l.b16 %v2539
      %v2642 = vunpack.c.l.b16 %v2540
      %v2643 = vunpack.c.l.b16 %v2541
      %v2644 = vunpack.c.l.b16 %v2542
      %v2645 = vunpack.c.l.b16 %v2543
      %v2646 = vunpack.c.l.b16 %v2544
      %v2647 = vunpack.c.l.b16 %v2545
      %v2648 = vunpack.c.l.b16 %v2546
      %v2649 = vunpack.c.l.b16 %v2547
      %v2650 = vunpack.c.l.b16 %v2548
      %v2651 = vunpack.c.l.b16 %v2549
      %v2652 = vunpack.c.l.b16 %v2550
      %v2653 = vunpack.c.l.b16 %v2551
      %v2654 = vunpack.c.l.b16 %v2552
      %v2655 = vunpack.c.l.b16 %v2553
      %v2656 = vunpack.c.l.b16 %v2554
      %v2657 = vunpack.c.l.b16 %v2555
      %v2658 = vunpack.c.l.b16 %v2556
      %v2659 = vunpack.c.l.b16 %v2557
      %v2660 = vunpack.c.l.b16 %v2558
      %v2661 = vunpack.c.l.b16 %v2559
      %v2662 = vunpack.c.l.b16 %v2560
      %v2663 = vunpack.c.l.b16 %v2561
      %v2664 = vunpack.c.l.b16 %v2562
      %v2665 = vunpack.c.l.b16 %v2563
      %v2666 = vunpack.c.l.b16 %v2564
      %v2667 = vunpack.c.l.b16 %v2565
      %v2668 = vunpack.c.l.b16 %v2566
      %v2669 = vunpack.c.l.b16 %v2567
      %v2670 = vunpack.c.l.b16 %v2568
      %v2671 = vunpack.c.l.b16 %v2569
      %v2672 = vunpack.c.l.b16 %v2570
      %v2673 = vunpack.c.l.b16 %v2571
      %v2674 = vunpack.c.l.b16 %v2572
      %v2675 = vunpack.c.l.b16 %v2573
      %v2676 = vunpack.c.l.b16 %v2574
      %v2677 = vunpack.c.l.b16 %v2575
      %v2678 = vunpack.c.l.b16 %v2576
      %v2679 = vunpack.c.l.b16 %v2577
      %v2680 = vunpack.c.l.b16 %v2578
      %v2681 = vunpack.c.l.b16 %v2579
      %v2682 = vunpack.c.l.b16 %v2580
      %v2683 = vunpack.c.l.b16 %v2581
      %v2684 = vunpack.c.l.b16 %v2582
      %v2685 = vunpack.c.l.b16 %v2583
      %v2686 = vunpack.c.l.b16 %v2584
      %v2687 = vpack.c.b16 %v2640, %v2639
      %v2688 = vpack.c.b16 %v2642, %v2641
      %v2689 = vpack.c.b16 %v2644, %v2643
      %v2690 = vpack.c.b16 %v2646, %v2645
      %v2691 = vpack.c.b16 %v2648, %v2647
      %v2692 = vpack.c.b16 %v2650, %v2649
      %v2693 = vpack.c.b16 %v2652, %v2651
      %v2694 = vpack.c.b16 %v2654, %v2653
      %v2695 = vpack.c.b16 %v2656, %v2655
      %v2696 = vpack.c.b16 %v2658, %v2657
      %v2697 = vpack.c.b16 %v2660, %v2659
      %v2698 = vpack.c.b16 %v2662, %v2661
      %v2699 = vpack.c.b16 %v2664, %v2663
      %v2700 = vpack.c.b16 %v2666, %v2665
      %v2701 = vpack.c.b16 %v2668, %v2667
      %v2702 = vpack.c.b16 %v2670, %v2669
      %v2703 = vpack.c.b16 %v2672, %v2671
      %v2704 = vpack.c.b16 %v2674, %v2673
      %v2705 = vpack.c.b16 %v2676, %v2675
      %v2706 = vpack.c.b16 %v2678, %v2677
      %v2707 = vpack.c.b16 %v2680, %v2679
      %v2708 = vpack.c.b16 %v2682, %v2681
      %v2709 = vpack.c.b16 %v2684, %v2683
      %v2710 = vpack.c.b16 %v2686, %v2685
      %2735 = vmatprep.subr.bf16.mxu0 0
      %2736 = vmatpush1.bf16.msra.mxu0 %v2687
      %2737 = vmatprep.subr.bf16.mxu0 0
      %2738 = vmatpush1.bf16.msra.mxu0 %v2688
      %2739 = vmatprep.subr.bf16.mxu0 0
      %2740 = vmatpush1.bf16.msra.mxu0 %v2689
      %2741 = vmatprep.subr.bf16.mxu0 0
      %2742 = vmatpush1.bf16.msra.mxu0 %v2690
      %2743 = vmatprep.subr.bf16.mxu0 0
      %2744 = vmatpush1.bf16.msra.mxu0 %v2691
      %2745 = vmatprep.subr.bf16.mxu0 0
      %2746 = vmatpush1.bf16.msra.mxu0 %v2692
      %2747 = vmatprep.subr.bf16.mxu0 0
      %2748 = vmatpush1.bf16.msra.mxu0 %v2693
      %2749 = vmatprep.subr.bf16.mxu0 0
      %2750 = vmatpush1.bf16.msra.mxu0 %v2694
      %2751 = vmatprep.subr.bf16.mxu0 0
      %2752 = vmatpush1.bf16.msra.mxu0 %v2695
      %2753 = vmatprep.subr.bf16.mxu0 0
      %2754 = vmatpush1.bf16.msra.mxu0 %v2696
      %2755 = vmatprep.subr.bf16.mxu0 0
      %2756 = vmatpush1.bf16.msra.mxu0 %v2697
      %2757 = vmatprep.subr.bf16.mxu0 0
      %2758 = vmatpush1.bf16.msra.mxu0 %v2698
      %2759 = vmatprep.subr.bf16.mxu0 0
      %2760 = vmatpush1.bf16.msra.mxu0 %v2699
      %2761 = vmatprep.subr.bf16.mxu0 0
      %2762 = vmatpush1.bf16.msra.mxu0 %v2700
      %2763 = vmatprep.subr.bf16.mxu0 0
      %2764 = vmatpush1.bf16.msra.mxu0 %v2701
      %2765 = vmatprep.subr.bf16.mxu0 0
      %2766 = vmatpush1.bf16.msra.mxu0 %v2702
      %2767 = vmatprep.mubr.bf16.mxu0 %v1817
      %2768 = vmatmul.mubr.bf16.gmra.mrb[0].mxu0 %v1816
      %v2769 = vpop.f32.mrb[0].mxu0
      %v2770 = vadd.f32 0.0, %v2769
      %v2771 = vpop.f32.mrb[0].mxu0
      %v2772 = vpop.f32.mrb[0].mxu0
      %v2773 = vadd.f32 0.0, %v2772
      %v2774 = vpop.f32.mrb[0].mxu0
      %2775 = vmatprep.mubr.bf16.mxu0 %v1820
      %2776 = vmatmul.mubr.bf16.gmra.mrb[0].mxu0 %v1819
      %v2777 = vpop.f32.mrb[0].mxu0
      %v2778 = vadd.f32 0.0, %v2777
      %v2779 = vpop.f32.mrb[0].mxu0
      %v2780 = vpop.f32.mrb[0].mxu0
      %v2781 = vadd.f32 0.0, %v2780
      %v2782 = vpop.f32.mrb[0].mxu0
      %2783 = vmatprep.mubr.bf16.mxu0 %v1823
      %2784 = vmatmul.mubr.bf16.gmra.mrb[0].mxu0 %v1822
      %v2785 = vpop.f32.mrb[0].mxu0
      %v2786 = vadd.f32 0.0, %v2785
      %v2787 = vpop.f32.mrb[0].mxu0
      %v2788 = vpop.f32.mrb[0].mxu0
      %v2789 = vadd.f32 0.0, %v2788
      %v2790 = vpop.f32.mrb[0].mxu0
      %2791 = vmatprep.mubr.bf16.mxu0 %v2586
      %2792 = vmatmul.mubr.bf16.gmra.mrb[0].mxu0 %v2585
      %v2793 = vpop.f32.mrb[0].mxu0
      %v2794 = vadd.f32 0.0, %v2793
      %v2795 = vpop.f32.mrb[0].mxu0
      %v2796 = vpop.f32.mrb[0].mxu0
      %v2797 = vadd.f32 0.0, %v2796
      %v2798 = vpop.f32.mrb[0].mxu0
      %2799 = vdwg.mxu0
      %2800 = vmatprep.subr.bf16.mxu0 0
      %2801 = vmatpush1.bf16.msra.mxu0 %v2703
      %2802 = vmatprep.subr.bf16.mxu0 0
      %2803 = vmatpush1.bf16.msra.mxu0 %v2704
      %2804 = vmatprep.subr.bf16.mxu0 0
      %2805 = vmatpush1.bf16.msra.mxu0 %v2705
      %2806 = vmatprep.subr.bf16.mxu0 0
      %2807 = vmatpush1.bf16.msra.mxu0 %v2706
      %2808 = vmatprep.subr.bf16.mxu0 0
      %2809 = vmatpush1.bf16.msra.mxu0 %v2707
      %2810 = vmatprep.subr.bf16.mxu0 0
      %2811 = vmatpush1.bf16.msra.mxu0 %v2708
      %2812 = vmatprep.subr.bf16.mxu0 0
      %2813 = vmatpush1.bf16.msra.mxu0 %v2709
      %2814 = vmatprep.subr.bf16.mxu0 0
      %2815 = vmatpush1.bf16.msra.mxu0 %v2710
      %2816 = vmatprep.subr.bf16.mxu0 0
      %2817 = vmatpush1.bf16.msra.mxu0 0
      %2818 = vmatprep.subr.bf16.mxu0 0
      %2819 = vmatpush1.bf16.msra.mxu0 0
      %2820 = vmatprep.subr.bf16.mxu0 0
      %2821 = vmatpush1.bf16.msra.mxu0 0
      %2822 = vmatprep.subr.bf16.mxu0 0
      %2823 = vmatpush1.bf16.msra.mxu0 0
      %2824 = vmatprep.subr.bf16.mxu0 0
      %2825 = vmatpush1.bf16.msra.mxu0 0
      %2826 = vmatprep.subr.bf16.mxu0 0
      %2827 = vmatpush1.bf16.msra.mxu0 0
      %2828 = vmatprep.subr.bf16.mxu0 0
      %2829 = vmatpush1.bf16.msra.mxu0 0
      %2830 = vmatprep.subr.bf16.mxu0 0
      %2831 = vmatpush1.bf16.msra.mxu0 0
      %2832 = vmatprep.mubr.bf16.mxu0 0
      %2833 = vmatmul.mubr.bf16.gmra.mrb[0].mxu0 %v1818
      %v2834 = vpop.f32.mrb[0].mxu0
      %v2835 = vadd.f32 %v2770, %v2834
      %v2836 = vpop.f32.mrb[0].mxu0
      %v2837 = vpop.f32.mrb[0].mxu0
      %v2838 = vadd.f32 %v2773, %v2837
      %v2839 = vpop.f32.mrb[0].mxu0
      %2840 = vmatprep.mubr.bf16.mxu0 0
      %2841 = vmatmul.mubr.bf16.gmra.mrb[0].mxu0 %v1821
      %v2842 = vpop.f32.mrb[0].mxu0
      %v2843 = vadd.f32 %v2778, %v2842
      %v2844 = vpop.f32.mrb[0].mxu0
      %v2845 = vpop.f32.mrb[0].mxu0
      %v2846 = vadd.f32 %v2781, %v2845
      %v2847 = vpop.f32.mrb[0].mxu0
      %2848 = vmatprep.mubr.bf16.mxu0 0
      %2849 = vmatmul.mubr.bf16.gmra.mrb[0].mxu0 %v1824
      %v2850 = vpop.f32.mrb[0].mxu0
      %v2851 = vadd.f32 %v2786, %v2850
      %v2852 = vpop.f32.mrb[0].mxu0
      %v2853 = vpop.f32.mrb[0].mxu0
      %v2854 = vadd.f32 %v2789, %v2853
      %v2855 = vpop.f32.mrb[0].mxu0
      %2856 = vmatprep.mubr.bf16.mxu0 0
      %2857 = vmatmul.mubr.bf16.gmra.mrb[0].mxu0 %v2587
      %v2858 = vpop.f32.mrb[0].mxu0
      %v2859 = vadd.f32 %v2794, %v2858
      %v2860 = vpop.f32.mrb[0].mxu0
      %v2861 = vpop.f32.mrb[0].mxu0
      %v2862 = vadd.f32 %v2797, %v2861
      %v2863 = vpop.f32.mrb[0].mxu0
      %2864 = vdwg.mxu0
      %v2865 = vadd.f32 %v2528, %v2835
      %v2866 = vadd.f32 %v2529, %v2838
      %v2867 = vadd.f32 %v2530, %v2843
      %v2868 = vadd.f32 %v2531, %v2846
      %v2869 = vadd.f32 %v2532, %v2851
      %v2870 = vadd.f32 %v2533, %v2854
      %v2871 = vadd.f32 %v2534, %v2859
      %v2872 = vadd.f32 %v2535, %v2862
      %2873 = vst [vmem:[#allocation2] sm:$0xff] %v2865
      %2874 = vst [vmem:[#allocation2 + $0x8] sm:$0xff] %v2866
      %2875 = vst [vmem:[#allocation2 + $0x10] sm:$0xff] %v2867
      %2876 = vst [vmem:[#allocation2 + $0x18] sm:$0xff] %v2868
      %2877 = vst [vmem:[#allocation2 + $0x20] sm:$0xff] %v2869
      %2878 = vst [vmem:[#allocation2 + $0x28] sm:$0xff] %v2870
      %2879 = vst [vmem:[#allocation2 + $0x30] sm:$0xff] %v2871
      %2880 = vst [vmem:[#allocation2 + $0x38] sm:$0xff] %v2872
      %v2881 = vld [vmem:[%s332] sm:$0xf]
      %v2882 = vld [vmem:[%s332 + $0x4] sm:$0x1]
      %v2883 = vld [vmem:[%s332 + $0x8] sm:$0xf]
      %v2884 = vld [vmem:[%s332 + $0xc] sm:$0x1]
      %v2885 = vld [vmem:[%s332 + $0x10] sm:$0xf]
      %v2886 = vld [vmem:[%s332 + $0x14] sm:$0x1]
      %v2887 = vld [vmem:[%s332 + $0x18] sm:$0xf]
      %v2888 = vld [vmem:[%s332 + $0x1c] sm:$0x1]
      %v2889 = vld [vmem:[%s332 + $0x20] sm:$0xf]
      %v2890 = vld [vmem:[%s332 + $0x24] sm:$0x1]
      %v2891 = vld [vmem:[%s332 + $0x28] sm:$0xf]
      %v2892 = vld [vmem:[%s332 + $0x2c] sm:$0x1]
      %v2893 = vld [vmem:[%s332 + $0x30] sm:$0xf]
      %v2894 = vld [vmem:[%s332 + $0x34] sm:$0x1]
      %v2895 = vld [vmem:[%s332 + $0x38] sm:$0xf]
      %v2896 = vld [vmem:[%s332 + $0x3c] sm:$0x1]
      %v2897 = vld [vmem:[%s332 + $0x40] sm:$0xf]
      %v2898 = vld [vmem:[%s332 + $0x44] sm:$0x1]
      %v2899 = vld [vmem:[%s332 + $0x48] sm:$0xf]
      %v2900 = vld [vmem:[%s332 + $0x4c] sm:$0x1]
      %v2917 = vunpack.c.l.b16 %v2881
      %v2918 = vunpack.c.l.b16 %v2882
      %v2919 = vunpack.c.l.b16 %v2883
      %v2920 = vunpack.c.l.b16 %v2884
      %v2921 = vunpack.c.l.b16 %v2885
      %v2922 = vunpack.c.l.b16 %v2886
      %v2923 = vunpack.c.l.b16 %v2887
      %v2924 = vunpack.c.l.b16 %v2888
      %v2925 = vunpack.c.l.b16 %v2889
      %v2926 = vunpack.c.l.b16 %v2890
      %v2927 = vunpack.c.l.b16 %v2891
      %v2928 = vunpack.c.l.b16 %v2892
      %v2929 = vunpack.c.l.b16 %v2893
      %v2930 = vunpack.c.l.b16 %v2894
      %v2931 = vunpack.c.l.b16 %v2895
      %v2932 = vunpack.c.l.b16 %v2896
      %v2933 = vpack.c.b16 %v2918, %v2917
      %v2934 = vpack.c.b16 %v2920, %v2919
      %v2935 = vpack.c.b16 %v2922, %v2921
      %v2936 = vpack.c.b16 %v2924, %v2923
      %v2937 = vpack.c.b16 %v2926, %v2925
      %v2938 = vpack.c.b16 %v2928, %v2927
      %v2939 = vpack.c.b16 %v2930, %v2929
      %v2940 = vpack.c.b16 %v2932, %v2931
      %v2942 = vshrl.u32 %v2933, 16
      %v2944 = vshll.u32 %v2933, 16
      %v2946 = vrot.slane %v2944, 1
      %v2947 = vor.u32 %v2942, %v2946
      %v2949 = vshrl.u32 %v2934, 16
      %v2951 = vshll.u32 %v2934, 16
      %v2953 = vrot.slane %v2951, 1
      %v2954 = vor.u32 %v2949, %v2953
      %v2956 = vshrl.u32 %v2935, 16
      %v2958 = vshll.u32 %v2935, 16
      %v2960 = vrot.slane %v2958, 1
      %v2961 = vor.u32 %v2956, %v2960
      %v2963 = vshrl.u32 %v2936, 16
      %v2965 = vshll.u32 %v2936, 16
      %v2967 = vrot.slane %v2965, 1
      %v2968 = vor.u32 %v2963, %v2967
      %v2970 = vshrl.u32 %v2937, 16
      %v2972 = vshll.u32 %v2937, 16
      %v2974 = vrot.slane %v2972, 1
      %v2975 = vor.u32 %v2970, %v2974
      %v2977 = vshrl.u32 %v2938, 16
      %v2979 = vshll.u32 %v2938, 16
      %v2981 = vrot.slane %v2979, 1
      %v2982 = vor.u32 %v2977, %v2981
      %v2984 = vshrl.u32 %v2939, 16
      %v2986 = vshll.u32 %v2939, 16
      %v2988 = vrot.slane %v2986, 1
      %v2989 = vor.u32 %v2984, %v2988
      %v2991 = vshrl.u32 %v2940, 16
      %v2993 = vshll.u32 %v2940, 16
      %v2995 = vrot.slane %v2993, 1
      %v2996 = vor.u32 %v2991, %v2995
      %v2997 = vrot.slane %v2933, 1
      %v2998 = vrot.slane %v2934, 1
      %v2999 = vrot.slane %v2935, 1
      %v3000 = vrot.slane %v2936, 1
      %v3001 = vrot.slane %v2937, 1
      %v3002 = vrot.slane %v2938, 1
      %v3003 = vrot.slane %v2939, 1
      %v3004 = vrot.slane %v2940, 1
      %v3005 = vunpack.c.l.b16 %v2947
      %v3006 = vunpack.c.l.b16 %v2997
      %v3007 = vunpack.c.l.b16 %v2954
      %v3008 = vunpack.c.l.b16 %v2998
      %v3009 = vunpack.c.l.b16 %v2961
      %v3010 = vunpack.c.l.b16 %v2999
      %v3011 = vunpack.c.l.b16 %v2968
      %v3012 = vunpack.c.l.b16 %v3000
      %v3013 = vunpack.c.l.b16 %v2975
      %v3014 = vunpack.c.l.b16 %v3001
      %v3015 = vunpack.c.l.b16 %v2982
      %v3016 = vunpack.c.l.b16 %v3002
      %v3017 = vunpack.c.l.b16 %v2989
      %v3018 = vunpack.c.l.b16 %v3003
      %v3019 = vunpack.c.l.b16 %v2996
      %v3020 = vunpack.c.l.b16 %v3004
      %v3021 = vld [vmem:[#allocation2] sm:$0xff]
      %v3022 = vld [vmem:[#allocation2 + $0x8] sm:$0xff]
      %v3023 = vld [vmem:[#allocation2 + $0x10] sm:$0xff]
      %v3024 = vld [vmem:[#allocation2 + $0x18] sm:$0xff]
      %v3025 = vld [vmem:[#allocation2 + $0x20] sm:$0xff]
      %v3026 = vld [vmem:[#allocation2 + $0x28] sm:$0xff]
      %v3027 = vld [vmem:[#allocation2 + $0x30] sm:$0xff]
      %v3028 = vld [vmem:[#allocation2 + $0x38] sm:$0xff]
      %s3029 = scalar_lea.vmem %s3, 1152
      %v3030 = vld [vmem:[%s3029] sm:$0xf]
      %v3031 = vld [vmem:[%s3029 + $0x4] sm:$0xf]
      %v3032 = vld [vmem:[%s3029 + $0x8] sm:$0xf]
      %v3033 = vld [vmem:[%s3029 + $0xc] sm:$0xf]
      %v3034 = vld [vmem:[%s3029 + $0x10] sm:$0xf]
      %v3035 = vld [vmem:[%s3029 + $0x14] sm:$0xf]
      %v3036 = vld [vmem:[%s3029 + $0x18] sm:$0xf]
      %v3037 = vld [vmem:[%s3029 + $0x1c] sm:$0xf]
      %v3038 = vld [vmem:[%s3029 + $0x20] sm:$0xf]
      %v3039 = vld [vmem:[%s3029 + $0x24] sm:$0xf]
      %v3040 = vld [vmem:[%s3029 + $0x28] sm:$0xf]
      %v3041 = vld [vmem:[%s3029 + $0x2c] sm:$0xf]
      %v3042 = vld [vmem:[%s3029 + $0x30] sm:$0xf]
      %v3043 = vld [vmem:[%s3029 + $0x34] sm:$0xf]
      %v3044 = vld [vmem:[%s3029 + $0x38] sm:$0xf]
      %v3045 = vld [vmem:[%s3029 + $0x3c] sm:$0xf]
      %v3046 = vld [vmem:[%s3029 + $0x40] sm:$0xf]
      %v3047 = vld [vmem:[%s3029 + $0x44] sm:$0xf]
      %v3048 = vld [vmem:[%s3029 + $0x48] sm:$0xf]
      %v3049 = vld [vmem:[%s3029 + $0x4c] sm:$0xf]
      %v3050 = vld [vmem:[%s3029 + $0x50] sm:$0xf]
      %v3051 = vld [vmem:[%s3029 + $0x54] sm:$0xf]
      %v3052 = vld [vmem:[%s3029 + $0x58] sm:$0xf]
      %v3053 = vld [vmem:[%s3029 + $0x5c] sm:$0xf]
      %v3054 = vld [vmem:[%s3029 + $0x60] sm:$0xf]
      %v3055 = vld [vmem:[%s3029 + $0x64] sm:$0xf]
      %v3056 = vld [vmem:[%s3029 + $0x68] sm:$0xf]
      %v3057 = vld [vmem:[%s3029 + $0x6c] sm:$0xf]
      %v3058 = vld [vmem:[%s3029 + $0x70] sm:$0xf]
      %v3059 = vld [vmem:[%s3029 + $0x74] sm:$0xf]
      %v3060 = vld [vmem:[%s3029 + $0x78] sm:$0xf]
      %v3061 = vld [vmem:[%s3029 + $0x7c] sm:$0xf]
      %v3062 = vld [vmem:[%s3029 + $0x80] sm:$0xf]
      %v3063 = vld [vmem:[%s3029 + $0x84] sm:$0xf]
      %v3064 = vld [vmem:[%s3029 + $0x88] sm:$0xf]
      %v3065 = vld [vmem:[%s3029 + $0x8c] sm:$0xf]
      %v3066 = vld [vmem:[%s3029 + $0x90] sm:$0xf]
      %v3067 = vld [vmem:[%s3029 + $0x94] sm:$0xf]
      %v3068 = vld [vmem:[%s3029 + $0x98] sm:$0xf]
      %v3069 = vld [vmem:[%s3029 + $0x9c] sm:$0xf]
      %v3070 = vld [vmem:[%s3029 + $0xa0] sm:$0xf]
      %v3071 = vld [vmem:[%s3029 + $0xa4] sm:$0xf]
      %v3072 = vld [vmem:[%s3029 + $0xa8] sm:$0xf]
      %v3073 = vld [vmem:[%s3029 + $0xac] sm:$0xf]
      %v3074 = vld [vmem:[%s3029 + $0xb0] sm:$0xf]
      %v3075 = vld [vmem:[%s3029 + $0xb4] sm:$0xf]
      %v3076 = vld [vmem:[%s3029 + $0xb8] sm:$0xf]
      %v3077 = vld [vmem:[%s3029 + $0xbc] sm:$0xf]
      %v3078 = vpack.c.b16 %v2919, %v2917
      %v3079 = vpack.c.b16 %v3007, %v3005
      %v3080 = vpack.c.b16 %v3008, %v3006
      %v3081 = vpack.c.b16 %v2923, %v2921
      %v3082 = vpack.c.b16 %v3011, %v3009
      %v3083 = vpack.c.b16 %v3012, %v3010
      %v3084 = vpack.c.b16 %v2927, %v2925
      %v3085 = vpack.c.b16 %v3015, %v3013
      %v3086 = vpack.c.b16 %v3016, %v3014
      %v3087 = vpack.c.b16 %v2931, %v2929
      %v3088 = vpack.c.b16 %v3019, %v3017
      %v3089 = vpack.c.b16 %v3020, %v3018
      %v3150 = vunpack.c.l.b16 %v3030
      %v3151 = vunpack.c.l.b16 %v3031
      %v3152 = vunpack.c.l.b16 %v3032
      %v3153 = vunpack.c.l.b16 %v3033
      %v3154 = vunpack.c.l.b16 %v3034
      %v3155 = vunpack.c.l.b16 %v3035
      %v3156 = vunpack.c.l.b16 %v3036
      %v3157 = vunpack.c.l.b16 %v3037
      %v3158 = vunpack.c.l.b16 %v3038
      %v3159 = vunpack.c.l.b16 %v3039
      %v3160 = vunpack.c.l.b16 %v3040
      %v3161 = vunpack.c.l.b16 %v3041
      %v3162 = vunpack.c.l.b16 %v3042
      %v3163 = vunpack.c.l.b16 %v3043
      %v3164 = vunpack.c.l.b16 %v3044
      %v3165 = vunpack.c.l.b16 %v3045
      %v3166 = vunpack.c.l.b16 %v3046
      %v3167 = vunpack.c.l.b16 %v3047
      %v3168 = vunpack.c.l.b16 %v3048
      %v3169 = vunpack.c.l.b16 %v3049
      %v3170 = vunpack.c.l.b16 %v3050
      %v3171 = vunpack.c.l.b16 %v3051
      %v3172 = vunpack.c.l.b16 %v3052
      %v3173 = vunpack.c.l.b16 %v3053
      %v3174 = vunpack.c.l.b16 %v3054
      %v3175 = vunpack.c.l.b16 %v3055
      %v3176 = vunpack.c.l.b16 %v3056
      %v3177 = vunpack.c.l.b16 %v3057
      %v3178 = vunpack.c.l.b16 %v3058
      %v3179 = vunpack.c.l.b16 %v3059
      %v3180 = vunpack.c.l.b16 %v3060
      %v3181 = vunpack.c.l.b16 %v3061
      %v3182 = vunpack.c.l.b16 %v3062
      %v3183 = vunpack.c.l.b16 %v3063
      %v3184 = vunpack.c.l.b16 %v3064
      %v3185 = vunpack.c.l.b16 %v3065
      %v3186 = vunpack.c.l.b16 %v3066
      %v3187 = vunpack.c.l.b16 %v3067
      %v3188 = vunpack.c.l.b16 %v3068
      %v3189 = vunpack.c.l.b16 %v3069
      %v3190 = vunpack.c.l.b16 %v3070
      %v3191 = vunpack.c.l.b16 %v3071
      %v3192 = vunpack.c.l.b16 %v3072
      %v3193 = vunpack.c.l.b16 %v3073
      %v3194 = vunpack.c.l.b16 %v3074
      %v3195 = vunpack.c.l.b16 %v3075
      %v3196 = vunpack.c.l.b16 %v3076
      %v3197 = vunpack.c.l.b16 %v3077
      %v3198 = vpack.c.b16 %v3151, %v3150
      %v3199 = vpack.c.b16 %v3153, %v3152
      %v3200 = vpack.c.b16 %v3155, %v3154
      %v3201 = vpack.c.b16 %v3157, %v3156
      %v3202 = vpack.c.b16 %v3159, %v3158
      %v3203 = vpack.c.b16 %v3161, %v3160
      %v3204 = vpack.c.b16 %v3163, %v3162
      %v3205 = vpack.c.b16 %v3165, %v3164
      %v3206 = vpack.c.b16 %v3167, %v3166
      %v3207 = vpack.c.b16 %v3169, %v3168
      %v3208 = vpack.c.b16 %v3171, %v3170
      %v3209 = vpack.c.b16 %v3173, %v3172
      %v3210 = vpack.c.b16 %v3175, %v3174
      %v3211 = vpack.c.b16 %v3177, %v3176
      %v3212 = vpack.c.b16 %v3179, %v3178
      %v3213 = vpack.c.b16 %v3181, %v3180
      %v3214 = vpack.c.b16 %v3183, %v3182
      %v3215 = vpack.c.b16 %v3185, %v3184
      %v3216 = vpack.c.b16 %v3187, %v3186
      %v3217 = vpack.c.b16 %v3189, %v3188
      %v3218 = vpack.c.b16 %v3191, %v3190
      %v3219 = vpack.c.b16 %v3193, %v3192
      %v3220 = vpack.c.b16 %v3195, %v3194
      %v3221 = vpack.c.b16 %v3197, %v3196
      %3246 = vmatprep.subr.bf16.mxu0 0
      %3247 = vmatpush1.bf16.msra.mxu0 %v3198
      %3248 = vmatprep.subr.bf16.mxu0 0
      %3249 = vmatpush1.bf16.msra.mxu0 %v3199
      %3250 = vmatprep.subr.bf16.mxu0 0
      %3251 = vmatpush1.bf16.msra.mxu0 %v3200
      %3252 = vmatprep.subr.bf16.mxu0 0
      %3253 = vmatpush1.bf16.msra.mxu0 %v3201
      %3254 = vmatprep.subr.bf16.mxu0 0
      %3255 = vmatpush1.bf16.msra.mxu0 %v3202
      %3256 = vmatprep.subr.bf16.mxu0 0
      %3257 = vmatpush1.bf16.msra.mxu0 %v3203
      %3258 = vmatprep.subr.bf16.mxu0 0
      %3259 = vmatpush1.bf16.msra.mxu0 %v3204
      %3260 = vmatprep.subr.bf16.mxu0 0
      %3261 = vmatpush1.bf16.msra.mxu0 %v3205
      %3262 = vmatprep.subr.bf16.mxu0 0
      %3263 = vmatpush1.bf16.msra.mxu0 %v3206
      %3264 = vmatprep.subr.bf16.mxu0 0
      %3265 = vmatpush1.bf16.msra.mxu0 %v3207
      %3266 = vmatprep.subr.bf16.mxu0 0
      %3267 = vmatpush1.bf16.msra.mxu0 %v3208
      %3268 = vmatprep.subr.bf16.mxu0 0
      %3269 = vmatpush1.bf16.msra.mxu0 %v3209
      %3270 = vmatprep.subr.bf16.mxu0 0
      %3271 = vmatpush1.bf16.msra.mxu0 %v3210
      %3272 = vmatprep.subr.bf16.mxu0 0
      %3273 = vmatpush1.bf16.msra.mxu0 %v3211
      %3274 = vmatprep.subr.bf16.mxu0 0
      %3275 = vmatpush1.bf16.msra.mxu0 %v3212
      %3276 = vmatprep.subr.bf16.mxu0 0
      %3277 = vmatpush1.bf16.msra.mxu0 %v3213
      %3278 = vmatprep.mubr.bf16.mxu0 %v3079
      %3279 = vmatmul.mubr.bf16.gmra.mrb[0].mxu0 %v3078
      %v3280 = vpop.f32.mrb[0].mxu0
      %v3281 = vadd.f32 0.0, %v3280
      %v3282 = vpop.f32.mrb[0].mxu0
      %v3283 = vpop.f32.mrb[0].mxu0
      %v3284 = vadd.f32 0.0, %v3283
      %v3285 = vpop.f32.mrb[0].mxu0
      %3286 = vmatprep.mubr.bf16.mxu0 %v3082
      %3287 = vmatmul.mubr.bf16.gmra.mrb[0].mxu0 %v3081
      %v3288 = vpop.f32.mrb[0].mxu0
      %v3289 = vadd.f32 0.0, %v3288
      %v3290 = vpop.f32.mrb[0].mxu0
      %v3291 = vpop.f32.mrb[0].mxu0
      %v3292 = vadd.f32 0.0, %v3291
      %v3293 = vpop.f32.mrb[0].mxu0
      %3294 = vmatprep.mubr.bf16.mxu0 %v3085
      %3295 = vmatmul.mubr.bf16.gmra.mrb[0].mxu0 %v3084
      %v3296 = vpop.f32.mrb[0].mxu0
      %v3297 = vadd.f32 0.0, %v3296
      %v3298 = vpop.f32.mrb[0].mxu0
      %v3299 = vpop.f32.mrb[0].mxu0
      %v3300 = vadd.f32 0.0, %v3299
      %v3301 = vpop.f32.mrb[0].mxu0
      %3302 = vmatprep.mubr.bf16.mxu0 %v3088
      %3303 = vmatmul.mubr.bf16.gmra.mrb[0].mxu0 %v3087
      %v3304 = vpop.f32.mrb[0].mxu0
      %v3305 = vadd.f32 0.0, %v3304
      %v3306 = vpop.f32.mrb[0].mxu0
      %v3307 = vpop.f32.mrb[0].mxu0
      %v3308 = vadd.f32 0.0, %v3307
      %v3309 = vpop.f32.mrb[0].mxu0
      %3310 = vdwg.mxu0
      %3311 = vmatprep.subr.bf16.mxu0 0
      %3312 = vmatpush1.bf16.msra.mxu0 %v3214
      %3313 = vmatprep.subr.bf16.mxu0 0
      %3314 = vmatpush1.bf16.msra.mxu0 %v3215
      %3315 = vmatprep.subr.bf16.mxu0 0
      %3316 = vmatpush1.bf16.msra.mxu0 %v3216
      %3317 = vmatprep.subr.bf16.mxu0 0
      %3318 = vmatpush1.bf16.msra.mxu0 %v3217
      %3319 = vmatprep.subr.bf16.mxu0 0
      %3320 = vmatpush1.bf16.msra.mxu0 %v3218
      %3321 = vmatprep.subr.bf16.mxu0 0
      %3322 = vmatpush1.bf16.msra.mxu0 %v3219
      %3323 = vmatprep.subr.bf16.mxu0 0
      %3324 = vmatpush1.bf16.msra.mxu0 %v3220
      %3325 = vmatprep.subr.bf16.mxu0 0
      %3326 = vmatpush1.bf16.msra.mxu0 %v3221
      %3327 = vmatprep.subr.bf16.mxu0 0
      %3328 = vmatpush1.bf16.msra.mxu0 0
      %3329 = vmatprep.subr.bf16.mxu0 0
      %3330 = vmatpush1.bf16.msra.mxu0 0
      %3331 = vmatprep.subr.bf16.mxu0 0
      %3332 = vmatpush1.bf16.msra.mxu0 0
      %3333 = vmatprep.subr.bf16.mxu0 0
      %3334 = vmatpush1.bf16.msra.mxu0 0
      %3335 = vmatprep.subr.bf16.mxu0 0
      %3336 = vmatpush1.bf16.msra.mxu0 0
      %3337 = vmatprep.subr.bf16.mxu0 0
      %3338 = vmatpush1.bf16.msra.mxu0 0
      %3339 = vmatprep.subr.bf16.mxu0 0
      %3340 = vmatpush1.bf16.msra.mxu0 0
      %3341 = vmatprep.subr.bf16.mxu0 0
      %3342 = vmatpush1.bf16.msra.mxu0 0
      %3343 = vmatprep.mubr.bf16.mxu0 0
      %3344 = vmatmul.mubr.bf16.gmra.mrb[0].mxu0 %v3080
      %v3345 = vpop.f32.mrb[0].mxu0
      %v3346 = vadd.f32 %v3281, %v3345
      %v3347 = vpop.f32.mrb[0].mxu0
      %v3348 = vpop.f32.mrb[0].mxu0
      %v3349 = vadd.f32 %v3284, %v3348
      %v3350 = vpop.f32.mrb[0].mxu0
      %3351 = vmatprep.mubr.bf16.mxu0 0
      %3352 = vmatmul.mubr.bf16.gmra.mrb[0].mxu0 %v3083
      %v3353 = vpop.f32.mrb[0].mxu0
      %v3354 = vadd.f32 %v3289, %v3353
      %v3355 = vpop.f32.mrb[0].mxu0
      %v3356 = vpop.f32.mrb[0].mxu0
      %v3357 = vadd.f32 %v3292, %v3356
      %v3358 = vpop.f32.mrb[0].mxu0
      %3359 = vmatprep.mubr.bf16.mxu0 0
      %3360 = vmatmul.mubr.bf16.gmra.mrb[0].mxu0 %v3086
      %v3361 = vpop.f32.mrb[0].mxu0
      %v3362 = vadd.f32 %v3297, %v3361
      %v3363 = vpop.f32.mrb[0].mxu0
      %v3364 = vpop.f32.mrb[0].mxu0
      %v3365 = vadd.f32 %v3300, %v3364
      %v3366 = vpop.f32.mrb[0].mxu0
      %3367 = vmatprep.mubr.bf16.mxu0 0
      %3368 = vmatmul.mubr.bf16.gmra.mrb[0].mxu0 %v3089
      %v3369 = vpop.f32.mrb[0].mxu0
      %v3370 = vadd.f32 %v3305, %v3369
      %v3371 = vpop.f32.mrb[0].mxu0
      %v3372 = vpop.f32.mrb[0].mxu0
      %v3373 = vadd.f32 %v3308, %v3372
      %v3374 = vpop.f32.mrb[0].mxu0
      %3375 = vdwg.mxu0
      %v3376 = vadd.f32 %v3021, %v3346
      %v3377 = vadd.f32 %v3022, %v3349
      %v3378 = vadd.f32 %v3023, %v3354
      %v3379 = vadd.f32 %v3024, %v3357
      %v3380 = vadd.f32 %v3025, %v3362
      %v3381 = vadd.f32 %v3026, %v3365
      %v3382 = vadd.f32 %v3027, %v3370
      %v3383 = vadd.f32 %v3028, %v3373
      %3384 = vst [vmem:[#allocation2] sm:$0xff] %v3376
      %3385 = vst [vmem:[#allocation2 + $0x8] sm:$0xff] %v3377
      %3386 = vst [vmem:[#allocation2 + $0x10] sm:$0xff] %v3378
      %3387 = vst [vmem:[#allocation2 + $0x18] sm:$0xff] %v3379
      %3388 = vst [vmem:[#allocation2 + $0x20] sm:$0xff] %v3380
      %3389 = vst [vmem:[#allocation2 + $0x28] sm:$0xff] %v3381
      %3390 = vst [vmem:[#allocation2 + $0x30] sm:$0xff] %v3382
      %3391 = vst [vmem:[#allocation2 + $0x38] sm:$0xff] %v3383
      %v3394 = vunpack.c.l.b16 %v2897
      %v3395 = vunpack.c.l.b16 %v2898
      %v3396 = vpack.c.b16 %v3395, %v3394
      %v3398 = vshrl.u32 %v3396, 16
      %v3400 = vshll.u32 %v3396, 16
      %v3402 = vrot.slane %v3400, 1
      %v3403 = vor.u32 %v3398, %v3402
      %v3404 = vrot.slane %v3396, 1
      %v3405 = vunpack.c.l.b16 %v3403
      %v3406 = vunpack.c.l.b16 %v3404
      %v3407 = vld [vmem:[#allocation2] sm:$0xff]
      %v3408 = vld [vmem:[#allocation2 + $0x8] sm:$0xff]
      %v3409 = vld [vmem:[#allocation2 + $0x10] sm:$0xff]
      %v3410 = vld [vmem:[#allocation2 + $0x18] sm:$0xff]
      %v3411 = vld [vmem:[#allocation2 + $0x20] sm:$0xff]
      %v3412 = vld [vmem:[#allocation2 + $0x28] sm:$0xff]
      %v3413 = vld [vmem:[#allocation2 + $0x30] sm:$0xff]
      %v3414 = vld [vmem:[#allocation2 + $0x38] sm:$0xff]
      %s3415 = scalar_lea.vmem %s3, 1344
      %v3416 = vld [vmem:[%s3415] sm:$0xf]
      %v3417 = vld [vmem:[%s3415 + $0x4] sm:$0xf]
      %v3418 = vld [vmem:[%s3415 + $0x8] sm:$0xf]
      %v3419 = vld [vmem:[%s3415 + $0xc] sm:$0xf]
      %v3420 = vld [vmem:[%s3415 + $0x10] sm:$0xf]
      %v3421 = vld [vmem:[%s3415 + $0x14] sm:$0xf]
      %v3422 = vld [vmem:[%s3415 + $0x18] sm:$0xf]
      %v3423 = vld [vmem:[%s3415 + $0x1c] sm:$0xf]
      %v3424 = vld [vmem:[%s3415 + $0x20] sm:$0xf]
      %v3425 = vld [vmem:[%s3415 + $0x24] sm:$0xf]
      %v3426 = vld [vmem:[%s3415 + $0x28] sm:$0xf]
      %v3427 = vld [vmem:[%s3415 + $0x2c] sm:$0xf]
      %v3428 = vld [vmem:[%s3415 + $0x30] sm:$0xf]
      %v3429 = vld [vmem:[%s3415 + $0x34] sm:$0xf]
      %v3430 = vld [vmem:[%s3415 + $0x38] sm:$0xf]
      %v3431 = vld [vmem:[%s3415 + $0x3c] sm:$0xf]
      %v3432 = vld [vmem:[%s3415 + $0x40] sm:$0xf]
      %v3433 = vld [vmem:[%s3415 + $0x44] sm:$0xf]
      %v3434 = vld [vmem:[%s3415 + $0x48] sm:$0xf]
      %v3435 = vld [vmem:[%s3415 + $0x4c] sm:$0xf]
      %v3436 = vld [vmem:[%s3415 + $0x50] sm:$0xf]
      %v3437 = vld [vmem:[%s3415 + $0x54] sm:$0xf]
      %v3438 = vld [vmem:[%s3415 + $0x58] sm:$0xf]
      %v3439 = vld [vmem:[%s3415 + $0x5c] sm:$0xf]
      %v3440 = vld [vmem:[%s3415 + $0x60] sm:$0xf]
      %v3441 = vld [vmem:[%s3415 + $0x64] sm:$0xf]
      %v3442 = vld [vmem:[%s3415 + $0x68] sm:$0xf]
      %v3443 = vld [vmem:[%s3415 + $0x6c] sm:$0xf]
      %v3444 = vld [vmem:[%s3415 + $0x70] sm:$0xf]
      %v3445 = vld [vmem:[%s3415 + $0x74] sm:$0xf]
      %v3446 = vld [vmem:[%s3415 + $0x78] sm:$0xf]
      %v3447 = vld [vmem:[%s3415 + $0x7c] sm:$0xf]
      %v3448 = vld [vmem:[%s3415 + $0x80] sm:$0xf]
      %v3449 = vld [vmem:[%s3415 + $0x84] sm:$0xf]
      %v3450 = vld [vmem:[%s3415 + $0x88] sm:$0xf]
      %v3451 = vld [vmem:[%s3415 + $0x8c] sm:$0xf]
      %v3452 = vld [vmem:[%s3415 + $0x90] sm:$0xf]
      %v3453 = vld [vmem:[%s3415 + $0x94] sm:$0xf]
      %v3454 = vld [vmem:[%s3415 + $0x98] sm:$0xf]
      %v3455 = vld [vmem:[%s3415 + $0x9c] sm:$0xf]
      %v3456 = vld [vmem:[%s3415 + $0xa0] sm:$0xf]
      %v3457 = vld [vmem:[%s3415 + $0xa4] sm:$0xf]
      %v3458 = vld [vmem:[%s3415 + $0xa8] sm:$0xf]
      %v3459 = vld [vmem:[%s3415 + $0xac] sm:$0xf]
      %v3460 = vld [vmem:[%s3415 + $0xb0] sm:$0xf]
      %v3461 = vld [vmem:[%s3415 + $0xb4] sm:$0xf]
      %v3462 = vld [vmem:[%s3415 + $0xb8] sm:$0xf]
      %v3463 = vld [vmem:[%s3415 + $0xbc] sm:$0xf]
      %v3464 = vpack.c.b16 %v2921, %v2919
      %v3465 = vpack.c.b16 %v3009, %v3007
      %v3466 = vpack.c.b16 %v3010, %v3008
      %v3467 = vpack.c.b16 %v2925, %v2923
      %v3468 = vpack.c.b16 %v3013, %v3011
      %v3469 = vpack.c.b16 %v3014, %v3012
      %v3470 = vpack.c.b16 %v2929, %v2927
      %v3471 = vpack.c.b16 %v3017, %v3015
      %v3472 = vpack.c.b16 %v3018, %v3016
      %v3473 = vpack.c.b16 %v3394, %v2931
      %v3474 = vpack.c.b16 %v3405, %v3019
      %v3475 = vpack.c.b16 %v3406, %v3020
      %v3536 = vunpack.c.l.b16 %v3416
      %v3537 = vunpack.c.l.b16 %v3417
      %v3538 = vunpack.c.l.b16 %v3418
      %v3539 = vunpack.c.l.b16 %v3419
      %v3540 = vunpack.c.l.b16 %v3420
      %v3541 = vunpack.c.l.b16 %v3421
      %v3542 = vunpack.c.l.b16 %v3422
      %v3543 = vunpack.c.l.b16 %v3423
      %v3544 = vunpack.c.l.b16 %v3424
      %v3545 = vunpack.c.l.b16 %v3425
      %v3546 = vunpack.c.l.b16 %v3426
      %v3547 = vunpack.c.l.b16 %v3427
      %v3548 = vunpack.c.l.b16 %v3428
      %v3549 = vunpack.c.l.b16 %v3429
      %v3550 = vunpack.c.l.b16 %v3430
      %v3551 = vunpack.c.l.b16 %v3431
      %v3552 = vunpack.c.l.b16 %v3432
      %v3553 = vunpack.c.l.b16 %v3433
      %v3554 = vunpack.c.l.b16 %v3434
      %v3555 = vunpack.c.l.b16 %v3435
      %v3556 = vunpack.c.l.b16 %v3436
      %v3557 = vunpack.c.l.b16 %v3437
      %v3558 = vunpack.c.l.b16 %v3438
      %v3559 = vunpack.c.l.b16 %v3439
      %v3560 = vunpack.c.l.b16 %v3440
      %v3561 = vunpack.c.l.b16 %v3441
      %v3562 = vunpack.c.l.b16 %v3442
      %v3563 = vunpack.c.l.b16 %v3443
      %v3564 = vunpack.c.l.b16 %v3444
      %v3565 = vunpack.c.l.b16 %v3445
      %v3566 = vunpack.c.l.b16 %v3446
      %v3567 = vunpack.c.l.b16 %v3447
      %v3568 = vunpack.c.l.b16 %v3448
      %v3569 = vunpack.c.l.b16 %v3449
      %v3570 = vunpack.c.l.b16 %v3450
      %v3571 = vunpack.c.l.b16 %v3451
      %v3572 = vunpack.c.l.b16 %v3452
      %v3573 = vunpack.c.l.b16 %v3453
      %v3574 = vunpack.c.l.b16 %v3454
      %v3575 = vunpack.c.l.b16 %v3455
      %v3576 = vunpack.c.l.b16 %v3456
      %v3577 = vunpack.c.l.b16 %v3457
      %v3578 = vunpack.c.l.b16 %v3458
      %v3579 = vunpack.c.l.b16 %v3459
      %v3580 = vunpack.c.l.b16 %v3460
      %v3581 = vunpack.c.l.b16 %v3461
      %v3582 = vunpack.c.l.b16 %v3462
      %v3583 = vunpack.c.l.b16 %v3463
      %v3584 = vpack.c.b16 %v3537, %v3536
      %v3585 = vpack.c.b16 %v3539, %v3538
      %v3586 = vpack.c.b16 %v3541, %v3540
      %v3587 = vpack.c.b16 %v3543, %v3542
      %v3588 = vpack.c.b16 %v3545, %v3544
      %v3589 = vpack.c.b16 %v3547, %v3546
      %v3590 = vpack.c.b16 %v3549, %v3548
      %v3591 = vpack.c.b16 %v3551, %v3550
      %v3592 = vpack.c.b16 %v3553, %v3552
      %v3593 = vpack.c.b16 %v3555, %v3554
      %v3594 = vpack.c.b16 %v3557, %v3556
      %v3595 = vpack.c.b16 %v3559, %v3558
      %v3596 = vpack.c.b16 %v3561, %v3560
      %v3597 = vpack.c.b16 %v3563, %v3562
      %v3598 = vpack.c.b16 %v3565, %v3564
      %v3599 = vpack.c.b16 %v3567, %v3566
      %v3600 = vpack.c.b16 %v3569, %v3568
      %v3601 = vpack.c.b16 %v3571, %v3570
      %v3602 = vpack.c.b16 %v3573, %v3572
      %v3603 = vpack.c.b16 %v3575, %v3574
      %v3604 = vpack.c.b16 %v3577, %v3576
      %v3605 = vpack.c.b16 %v3579, %v3578
      %v3606 = vpack.c.b16 %v3581, %v3580
      %v3607 = vpack.c.b16 %v3583, %v3582
      %3632 = vmatprep.subr.bf16.mxu0 0
      %3633 = vmatpush1.bf16.msra.mxu0 %v3584
      %3634 = vmatprep.subr.bf16.mxu0 0
      %3635 = vmatpush1.bf16.msra.mxu0 %v3585
      %3636 = vmatprep.subr.bf16.mxu0 0
      %3637 = vmatpush1.bf16.msra.mxu0 %v3586
      %3638 = vmatprep.subr.bf16.mxu0 0
      %3639 = vmatpush1.bf16.msra.mxu0 %v3587
      %3640 = vmatprep.subr.bf16.mxu0 0
      %3641 = vmatpush1.bf16.msra.mxu0 %v3588
      %3642 = vmatprep.subr.bf16.mxu0 0
      %3643 = vmatpush1.bf16.msra.mxu0 %v3589
      %3644 = vmatprep.subr.bf16.mxu0 0
      %3645 = vmatpush1.bf16.msra.mxu0 %v3590
      %3646 = vmatprep.subr.bf16.mxu0 0
      %3647 = vmatpush1.bf16.msra.mxu0 %v3591
      %3648 = vmatprep.subr.bf16.mxu0 0
      %3649 = vmatpush1.bf16.msra.mxu0 %v3592
      %3650 = vmatprep.subr.bf16.mxu0 0
      %3651 = vmatpush1.bf16.msra.mxu0 %v3593
      %3652 = vmatprep.subr.bf16.mxu0 0
      %3653 = vmatpush1.bf16.msra.mxu0 %v3594
      %3654 = vmatprep.subr.bf16.mxu0 0
      %3655 = vmatpush1.bf16.msra.mxu0 %v3595
      %3656 = vmatprep.subr.bf16.mxu0 0
      %3657 = vmatpush1.bf16.msra.mxu0 %v3596
      %3658 = vmatprep.subr.bf16.mxu0 0
      %3659 = vmatpush1.bf16.msra.mxu0 %v3597
      %3660 = vmatprep.subr.bf16.mxu0 0
      %3661 = vmatpush1.bf16.msra.mxu0 %v3598
      %3662 = vmatprep.subr.bf16.mxu0 0
      %3663 = vmatpush1.bf16.msra.mxu0 %v3599
      %3664 = vmatprep.mubr.bf16.mxu0 %v3465
      %3665 = vmatmul.mubr.bf16.gmra.mrb[0].mxu0 %v3464
      %v3666 = vpop.f32.mrb[0].mxu0
      %v3667 = vadd.f32 0.0, %v3666
      %v3668 = vpop.f32.mrb[0].mxu0
      %v3669 = vpop.f32.mrb[0].mxu0
      %v3670 = vadd.f32 0.0, %v3669
      %v3671 = vpop.f32.mrb[0].mxu0
      %3672 = vmatprep.mubr.bf16.mxu0 %v3468
      %3673 = vmatmul.mubr.bf16.gmra.mrb[0].mxu0 %v3467
      %v3674 = vpop.f32.mrb[0].mxu0
      %v3675 = vadd.f32 0.0, %v3674
      %v3676 = vpop.f32.mrb[0].mxu0
      %v3677 = vpop.f32.mrb[0].mxu0
      %v3678 = vadd.f32 0.0, %v3677
      %v3679 = vpop.f32.mrb[0].mxu0
      %3680 = vmatprep.mubr.bf16.mxu0 %v3471
      %3681 = vmatmul.mubr.bf16.gmra.mrb[0].mxu0 %v3470
      %v3682 = vpop.f32.mrb[0].mxu0
      %v3683 = vadd.f32 0.0, %v3682
      %v3684 = vpop.f32.mrb[0].mxu0
      %v3685 = vpop.f32.mrb[0].mxu0
      %v3686 = vadd.f32 0.0, %v3685
      %v3687 = vpop.f32.mrb[0].mxu0
      %3688 = vmatprep.mubr.bf16.mxu0 %v3474
      %3689 = vmatmul.mubr.bf16.gmra.mrb[0].mxu0 %v3473
      %v3690 = vpop.f32.mrb[0].mxu0
      %v3691 = vadd.f32 0.0, %v3690
      %v3692 = vpop.f32.mrb[0].mxu0
      %v3693 = vpop.f32.mrb[0].mxu0
      %v3694 = vadd.f32 0.0, %v3693
      %v3695 = vpop.f32.mrb[0].mxu0
      %3696 = vdwg.mxu0
      %3697 = vmatprep.subr.bf16.mxu0 0
      %3698 = vmatpush1.bf16.msra.mxu0 %v3600
      %3699 = vmatprep.subr.bf16.mxu0 0
      %3700 = vmatpush1.bf16.msra.mxu0 %v3601
      %3701 = vmatprep.subr.bf16.mxu0 0
      %3702 = vmatpush1.bf16.msra.mxu0 %v3602
      %3703 = vmatprep.subr.bf16.mxu0 0
      %3704 = vmatpush1.bf16.msra.mxu0 %v3603
      %3705 = vmatprep.subr.bf16.mxu0 0
      %3706 = vmatpush1.bf16.msra.mxu0 %v3604
      %3707 = vmatprep.subr.bf16.mxu0 0
      %3708 = vmatpush1.bf16.msra.mxu0 %v3605
      %3709 = vmatprep.subr.bf16.mxu0 0
      %3710 = vmatpush1.bf16.msra.mxu0 %v3606
      %3711 = vmatprep.subr.bf16.mxu0 0
      %3712 = vmatpush1.bf16.msra.mxu0 %v3607
      %3713 = vmatprep.subr.bf16.mxu0 0
      %3714 = vmatpush1.bf16.msra.mxu0 0
      %3715 = vmatprep.subr.bf16.mxu0 0
      %3716 = vmatpush1.bf16.msra.mxu0 0
      %3717 = vmatprep.subr.bf16.mxu0 0
      %3718 = vmatpush1.bf16.msra.mxu0 0
      %3719 = vmatprep.subr.bf16.mxu0 0
      %3720 = vmatpush1.bf16.msra.mxu0 0
      %3721 = vmatprep.subr.bf16.mxu0 0
      %3722 = vmatpush1.bf16.msra.mxu0 0
      %3723 = vmatprep.subr.bf16.mxu0 0
      %3724 = vmatpush1.bf16.msra.mxu0 0
      %3725 = vmatprep.subr.bf16.mxu0 0
      %3726 = vmatpush1.bf16.msra.mxu0 0
      %3727 = vmatprep.subr.bf16.mxu0 0
      %3728 = vmatpush1.bf16.msra.mxu0 0
      %3729 = vmatprep.mubr.bf16.mxu0 0
      %3730 = vmatmul.mubr.bf16.gmra.mrb[0].mxu0 %v3466
      %v3731 = vpop.f32.mrb[0].mxu0
      %v3732 = vadd.f32 %v3667, %v3731
      %v3733 = vpop.f32.mrb[0].mxu0
      %v3734 = vpop.f32.mrb[0].mxu0
      %v3735 = vadd.f32 %v3670, %v3734
      %v3736 = vpop.f32.mrb[0].mxu0
      %3737 = vmatprep.mubr.bf16.mxu0 0
      %3738 = vmatmul.mubr.bf16.gmra.mrb[0].mxu0 %v3469
      %v3739 = vpop.f32.mrb[0].mxu0
      %v3740 = vadd.f32 %v3675, %v3739
      %v3741 = vpop.f32.mrb[0].mxu0
      %v3742 = vpop.f32.mrb[0].mxu0
      %v3743 = vadd.f32 %v3678, %v3742
      %v3744 = vpop.f32.mrb[0].mxu0
      %3745 = vmatprep.mubr.bf16.mxu0 0
      %3746 = vmatmul.mubr.bf16.gmra.mrb[0].mxu0 %v3472
      %v3747 = vpop.f32.mrb[0].mxu0
      %v3748 = vadd.f32 %v3683, %v3747
      %v3749 = vpop.f32.mrb[0].mxu0
      %v3750 = vpop.f32.mrb[0].mxu0
      %v3751 = vadd.f32 %v3686, %v3750
      %v3752 = vpop.f32.mrb[0].mxu0
      %3753 = vmatprep.mubr.bf16.mxu0 0
      %3754 = vmatmul.mubr.bf16.gmra.mrb[0].mxu0 %v3475
      %v3755 = vpop.f32.mrb[0].mxu0
      %v3756 = vadd.f32 %v3691, %v3755
      %v3757 = vpop.f32.mrb[0].mxu0
      %v3758 = vpop.f32.mrb[0].mxu0
      %v3759 = vadd.f32 %v3694, %v3758
      %v3760 = vpop.f32.mrb[0].mxu0
      %3761 = vdwg.mxu0
      %v3762 = vadd.f32 %v3407, %v3732
      %v3763 = vadd.f32 %v3408, %v3735
      %v3764 = vadd.f32 %v3409, %v3740
      %v3765 = vadd.f32 %v3410, %v3743
      %v3766 = vadd.f32 %v3411, %v3748
      %v3767 = vadd.f32 %v3412, %v3751
      %v3768 = vadd.f32 %v3413, %v3756
      %v3769 = vadd.f32 %v3414, %v3759
      %3770 = vst [vmem:[#allocation2] sm:$0xff] %v3762
      %3771 = vst [vmem:[#allocation2 + $0x8] sm:$0xff] %v3763
      %3772 = vst [vmem:[#allocation2 + $0x10] sm:$0xff] %v3764
      %3773 = vst [vmem:[#allocation2 + $0x18] sm:$0xff] %v3765
      %3774 = vst [vmem:[#allocation2 + $0x20] sm:$0xff] %v3766
      %3775 = vst [vmem:[#allocation2 + $0x28] sm:$0xff] %v3767
      %3776 = vst [vmem:[#allocation2 + $0x30] sm:$0xff] %v3768
      %3777 = vst [vmem:[#allocation2 + $0x38] sm:$0xff] %v3769
      %v3780 = vunpack.c.l.b16 %v2899
      %v3781 = vunpack.c.l.b16 %v2900
      %v3782 = vpack.c.b16 %v3781, %v3780
      %v3784 = vshrl.u32 %v3782, 16
      %v3786 = vshll.u32 %v3782, 16
      %v3788 = vrot.slane %v3786, 1
      %v3789 = vor.u32 %v3784, %v3788
      %v3790 = vrot.slane %v3782, 1
      %v3791 = vunpack.c.l.b16 %v3789
      %v3792 = vunpack.c.l.b16 %v3790
      %v3793 = vld [vmem:[#allocation2] sm:$0xff]
      %v3794 = vld [vmem:[#allocation2 + $0x8] sm:$0xff]
      %v3795 = vld [vmem:[#allocation2 + $0x10] sm:$0xff]
      %v3796 = vld [vmem:[#allocation2 + $0x18] sm:$0xff]
      %v3797 = vld [vmem:[#allocation2 + $0x20] sm:$0xff]
      %v3798 = vld [vmem:[#allocation2 + $0x28] sm:$0xff]
      %v3799 = vld [vmem:[#allocation2 + $0x30] sm:$0xff]
      %v3800 = vld [vmem:[#allocation2 + $0x38] sm:$0xff]
      %s3801 = scalar_lea.vmem %s3, 1536
      %v3802 = vld [vmem:[%s3801] sm:$0xf]
      %v3803 = vld [vmem:[%s3801 + $0x4] sm:$0xf]
      %v3804 = vld [vmem:[%s3801 + $0x8] sm:$0xf]
      %v3805 = vld [vmem:[%s3801 + $0xc] sm:$0xf]
      %v3806 = vld [vmem:[%s3801 + $0x10] sm:$0xf]
      %v3807 = vld [vmem:[%s3801 + $0x14] sm:$0xf]
      %v3808 = vld [vmem:[%s3801 + $0x18] sm:$0xf]
      %v3809 = vld [vmem:[%s3801 + $0x1c] sm:$0xf]
      %v3810 = vld [vmem:[%s3801 + $0x20] sm:$0xf]
      %v3811 = vld [vmem:[%s3801 + $0x24] sm:$0xf]
      %v3812 = vld [vmem:[%s3801 + $0x28] sm:$0xf]
      %v3813 = vld [vmem:[%s3801 + $0x2c] sm:$0xf]
      %v3814 = vld [vmem:[%s3801 + $0x30] sm:$0xf]
      %v3815 = vld [vmem:[%s3801 + $0x34] sm:$0xf]
      %v3816 = vld [vmem:[%s3801 + $0x38] sm:$0xf]
      %v3817 = vld [vmem:[%s3801 + $0x3c] sm:$0xf]
      %v3818 = vld [vmem:[%s3801 + $0x40] sm:$0xf]
      %v3819 = vld [vmem:[%s3801 + $0x44] sm:$0xf]
      %v3820 = vld [vmem:[%s3801 + $0x48] sm:$0xf]
      %v3821 = vld [vmem:[%s3801 + $0x4c] sm:$0xf]
      %v3822 = vld [vmem:[%s3801 + $0x50] sm:$0xf]
      %v3823 = vld [vmem:[%s3801 + $0x54] sm:$0xf]
      %v3824 = vld [vmem:[%s3801 + $0x58] sm:$0xf]
      %v3825 = vld [vmem:[%s3801 + $0x5c] sm:$0xf]
      %v3826 = vld [vmem:[%s3801 + $0x60] sm:$0xf]
      %v3827 = vld [vmem:[%s3801 + $0x64] sm:$0xf]
      %v3828 = vld [vmem:[%s3801 + $0x68] sm:$0xf]
      %v3829 = vld [vmem:[%s3801 + $0x6c] sm:$0xf]
      %v3830 = vld [vmem:[%s3801 + $0x70] sm:$0xf]
      %v3831 = vld [vmem:[%s3801 + $0x74] sm:$0xf]
      %v3832 = vld [vmem:[%s3801 + $0x78] sm:$0xf]
      %v3833 = vld [vmem:[%s3801 + $0x7c] sm:$0xf]
      %v3834 = vld [vmem:[%s3801 + $0x80] sm:$0xf]
      %v3835 = vld [vmem:[%s3801 + $0x84] sm:$0xf]
      %v3836 = vld [vmem:[%s3801 + $0x88] sm:$0xf]
      %v3837 = vld [vmem:[%s3801 + $0x8c] sm:$0xf]
      %v3838 = vld [vmem:[%s3801 + $0x90] sm:$0xf]
      %v3839 = vld [vmem:[%s3801 + $0x94] sm:$0xf]
      %v3840 = vld [vmem:[%s3801 + $0x98] sm:$0xf]
      %v3841 = vld [vmem:[%s3801 + $0x9c] sm:$0xf]
      %v3842 = vld [vmem:[%s3801 + $0xa0] sm:$0xf]
      %v3843 = vld [vmem:[%s3801 + $0xa4] sm:$0xf]
      %v3844 = vld [vmem:[%s3801 + $0xa8] sm:$0xf]
      %v3845 = vld [vmem:[%s3801 + $0xac] sm:$0xf]
      %v3846 = vld [vmem:[%s3801 + $0xb0] sm:$0xf]
      %v3847 = vld [vmem:[%s3801 + $0xb4] sm:$0xf]
      %v3848 = vld [vmem:[%s3801 + $0xb8] sm:$0xf]
      %v3849 = vld [vmem:[%s3801 + $0xbc] sm:$0xf]
      %v3850 = vpack.c.b16 %v3780, %v3394
      %v3851 = vpack.c.b16 %v3791, %v3405
      %v3852 = vpack.c.b16 %v3792, %v3406
      %v3904 = vunpack.c.l.b16 %v3802
      %v3905 = vunpack.c.l.b16 %v3803
      %v3906 = vunpack.c.l.b16 %v3804
      %v3907 = vunpack.c.l.b16 %v3805
      %v3908 = vunpack.c.l.b16 %v3806
      %v3909 = vunpack.c.l.b16 %v3807
      %v3910 = vunpack.c.l.b16 %v3808
      %v3911 = vunpack.c.l.b16 %v3809
      %v3912 = vunpack.c.l.b16 %v3810
      %v3913 = vunpack.c.l.b16 %v3811
      %v3914 = vunpack.c.l.b16 %v3812
      %v3915 = vunpack.c.l.b16 %v3813
      %v3916 = vunpack.c.l.b16 %v3814
      %v3917 = vunpack.c.l.b16 %v3815
      %v3918 = vunpack.c.l.b16 %v3816
      %v3919 = vunpack.c.l.b16 %v3817
      %v3920 = vunpack.c.l.b16 %v3818
      %v3921 = vunpack.c.l.b16 %v3819
      %v3922 = vunpack.c.l.b16 %v3820
      %v3923 = vunpack.c.l.b16 %v3821
      %v3924 = vunpack.c.l.b16 %v3822
      %v3925 = vunpack.c.l.b16 %v3823
      %v3926 = vunpack.c.l.b16 %v3824
      %v3927 = vunpack.c.l.b16 %v3825
      %v3928 = vunpack.c.l.b16 %v3826
      %v3929 = vunpack.c.l.b16 %v3827
      %v3930 = vunpack.c.l.b16 %v3828
      %v3931 = vunpack.c.l.b16 %v3829
      %v3932 = vunpack.c.l.b16 %v3830
      %v3933 = vunpack.c.l.b16 %v3831
      %v3934 = vunpack.c.l.b16 %v3832
      %v3935 = vunpack.c.l.b16 %v3833
      %v3936 = vunpack.c.l.b16 %v3834
      %v3937 = vunpack.c.l.b16 %v3835
      %v3938 = vunpack.c.l.b16 %v3836
      %v3939 = vunpack.c.l.b16 %v3837
      %v3940 = vunpack.c.l.b16 %v3838
      %v3941 = vunpack.c.l.b16 %v3839
      %v3942 = vunpack.c.l.b16 %v3840
      %v3943 = vunpack.c.l.b16 %v3841
      %v3944 = vunpack.c.l.b16 %v3842
      %v3945 = vunpack.c.l.b16 %v3843
      %v3946 = vunpack.c.l.b16 %v3844
      %v3947 = vunpack.c.l.b16 %v3845
      %v3948 = vunpack.c.l.b16 %v3846
      %v3949 = vunpack.c.l.b16 %v3847
      %v3950 = vunpack.c.l.b16 %v3848
      %v3951 = vunpack.c.l.b16 %v3849
      %v3952 = vpack.c.b16 %v3905, %v3904
      %v3953 = vpack.c.b16 %v3907, %v3906
      %v3954 = vpack.c.b16 %v3909, %v3908
      %v3955 = vpack.c.b16 %v3911, %v3910
      %v3956 = vpack.c.b16 %v3913, %v3912
      %v3957 = vpack.c.b16 %v3915, %v3914
      %v3958 = vpack.c.b16 %v3917, %v3916
      %v3959 = vpack.c.b16 %v3919, %v3918
      %v3960 = vpack.c.b16 %v3921, %v3920
      %v3961 = vpack.c.b16 %v3923, %v3922
      %v3962 = vpack.c.b16 %v3925, %v3924
      %v3963 = vpack.c.b16 %v3927, %v3926
      %v3964 = vpack.c.b16 %v3929, %v3928
      %v3965 = vpack.c.b16 %v3931, %v3930
      %v3966 = vpack.c.b16 %v3933, %v3932
      %v3967 = vpack.c.b16 %v3935, %v3934
      %v3968 = vpack.c.b16 %v3937, %v3936
      %v3969 = vpack.c.b16 %v3939, %v3938
      %v3970 = vpack.c.b16 %v3941, %v3940
      %v3971 = vpack.c.b16 %v3943, %v3942
      %v3972 = vpack.c.b16 %v3945, %v3944
      %v3973 = vpack.c.b16 %v3947, %v3946
      %v3974 = vpack.c.b16 %v3949, %v3948
      %v3975 = vpack.c.b16 %v3951, %v3950
      %4000 = vmatprep.subr.bf16.mxu0 0
      %4001 = vmatpush1.bf16.msra.mxu0 %v3952
      %4002 = vmatprep.subr.bf16.mxu0 0
      %4003 = vmatpush1.bf16.msra.mxu0 %v3953
      %4004 = vmatprep.subr.bf16.mxu0 0
      %4005 = vmatpush1.bf16.msra.mxu0 %v3954
      %4006 = vmatprep.subr.bf16.mxu0 0
      %4007 = vmatpush1.bf16.msra.mxu0 %v3955
      %4008 = vmatprep.subr.bf16.mxu0 0
      %4009 = vmatpush1.bf16.msra.mxu0 %v3956
      %4010 = vmatprep.subr.bf16.mxu0 0
      %4011 = vmatpush1.bf16.msra.mxu0 %v3957
      %4012 = vmatprep.subr.bf16.mxu0 0
      %4013 = vmatpush1.bf16.msra.mxu0 %v3958
      %4014 = vmatprep.subr.bf16.mxu0 0
      %4015 = vmatpush1.bf16.msra.mxu0 %v3959
      %4016 = vmatprep.subr.bf16.mxu0 0
      %4017 = vmatpush1.bf16.msra.mxu0 %v3960
      %4018 = vmatprep.subr.bf16.mxu0 0
      %4019 = vmatpush1.bf16.msra.mxu0 %v3961
      %4020 = vmatprep.subr.bf16.mxu0 0
      %4021 = vmatpush1.bf16.msra.mxu0 %v3962
      %4022 = vmatprep.subr.bf16.mxu0 0
      %4023 = vmatpush1.bf16.msra.mxu0 %v3963
      %4024 = vmatprep.subr.bf16.mxu0 0
      %4025 = vmatpush1.bf16.msra.mxu0 %v3964
      %4026 = vmatprep.subr.bf16.mxu0 0
      %4027 = vmatpush1.bf16.msra.mxu0 %v3965
      %4028 = vmatprep.subr.bf16.mxu0 0
      %4029 = vmatpush1.bf16.msra.mxu0 %v3966
      %4030 = vmatprep.subr.bf16.mxu0 0
      %4031 = vmatpush1.bf16.msra.mxu0 %v3967
      %4032 = vmatprep.mubr.bf16.mxu0 %v3082
      %4033 = vmatmul.mubr.bf16.gmra.mrb[0].mxu0 %v3081
      %v4034 = vpop.f32.mrb[0].mxu0
      %v4035 = vadd.f32 0.0, %v4034
      %v4036 = vpop.f32.mrb[0].mxu0
      %v4037 = vpop.f32.mrb[0].mxu0
      %v4038 = vadd.f32 0.0, %v4037
      %v4039 = vpop.f32.mrb[0].mxu0
      %4040 = vmatprep.mubr.bf16.mxu0 %v3085
      %4041 = vmatmul.mubr.bf16.gmra.mrb[0].mxu0 %v3084
      %v4042 = vpop.f32.mrb[0].mxu0
      %v4043 = vadd.f32 0.0, %v4042
      %v4044 = vpop.f32.mrb[0].mxu0
      %v4045 = vpop.f32.mrb[0].mxu0
      %v4046 = vadd.f32 0.0, %v4045
      %v4047 = vpop.f32.mrb[0].mxu0
      %4048 = vmatprep.mubr.bf16.mxu0 %v3088
      %4049 = vmatmul.mubr.bf16.gmra.mrb[0].mxu0 %v3087
      %v4050 = vpop.f32.mrb[0].mxu0
      %v4051 = vadd.f32 0.0, %v4050
      %v4052 = vpop.f32.mrb[0].mxu0
      %v4053 = vpop.f32.mrb[0].mxu0
      %v4054 = vadd.f32 0.0, %v4053
      %v4055 = vpop.f32.mrb[0].mxu0
      %4056 = vmatprep.mubr.bf16.mxu0 %v3851
      %4057 = vmatmul.mubr.bf16.gmra.mrb[0].mxu0 %v3850
      %v4058 = vpop.f32.mrb[0].mxu0
      %v4059 = vadd.f32 0.0, %v4058
      %v4060 = vpop.f32.mrb[0].mxu0
      %v4061 = vpop.f32.mrb[0].mxu0
      %v4062 = vadd.f32 0.0, %v4061
      %v4063 = vpop.f32.mrb[0].mxu0
      %4064 = vdwg.mxu0
      %4065 = vmatprep.subr.bf16.mxu0 0
      %4066 = vmatpush1.bf16.msra.mxu0 %v3968
      %4067 = vmatprep.subr.bf16.mxu0 0
      %4068 = vmatpush1.bf16.msra.mxu0 %v3969
      %4069 = vmatprep.subr.bf16.mxu0 0
      %4070 = vmatpush1.bf16.msra.mxu0 %v3970
      %4071 = vmatprep.subr.bf16.mxu0 0
      %4072 = vmatpush1.bf16.msra.mxu0 %v3971
      %4073 = vmatprep.subr.bf16.mxu0 0
      %4074 = vmatpush1.bf16.msra.mxu0 %v3972
      %4075 = vmatprep.subr.bf16.mxu0 0
      %4076 = vmatpush1.bf16.msra.mxu0 %v3973
      %4077 = vmatprep.subr.bf16.mxu0 0
      %4078 = vmatpush1.bf16.msra.mxu0 %v3974
      %4079 = vmatprep.subr.bf16.mxu0 0
      %4080 = vmatpush1.bf16.msra.mxu0 %v3975
      %4081 = vmatprep.subr.bf16.mxu0 0
      %4082 = vmatpush1.bf16.msra.mxu0 0
      %4083 = vmatprep.subr.bf16.mxu0 0
      %4084 = vmatpush1.bf16.msra.mxu0 0
      %4085 = vmatprep.subr.bf16.mxu0 0
      %4086 = vmatpush1.bf16.msra.mxu0 0
      %4087 = vmatprep.subr.bf16.mxu0 0
      %4088 = vmatpush1.bf16.msra.mxu0 0
      %4089 = vmatprep.subr.bf16.mxu0 0
      %4090 = vmatpush1.bf16.msra.mxu0 0
      %4091 = vmatprep.subr.bf16.mxu0 0
      %4092 = vmatpush1.bf16.msra.mxu0 0
      %4093 = vmatprep.subr.bf16.mxu0 0
      %4094 = vmatpush1.bf16.msra.mxu0 0
      %4095 = vmatprep.subr.bf16.mxu0 0
      %4096 = vmatpush1.bf16.msra.mxu0 0
      %4097 = vmatprep.mubr.bf16.mxu0 0
      %4098 = vmatmul.mubr.bf16.gmra.mrb[0].mxu0 %v3083
      %v4099 = vpop.f32.mrb[0].mxu0
      %v4100 = vadd.f32 %v4035, %v4099
      %v4101 = vpop.f32.mrb[0].mxu0
      %v4102 = vpop.f32.mrb[0].mxu0
      %v4103 = vadd.f32 %v4038, %v4102
      %v4104 = vpop.f32.mrb[0].mxu0
      %4105 = vmatprep.mubr.bf16.mxu0 0
      %4106 = vmatmul.mubr.bf16.gmra.mrb[0].mxu0 %v3086
      %v4107 = vpop.f32.mrb[0].mxu0
      %v4108 = vadd.f32 %v4043, %v4107
      %v4109 = vpop.f32.mrb[0].mxu0
      %v4110 = vpop.f32.mrb[0].mxu0
      %v4111 = vadd.f32 %v4046, %v4110
      %v4112 = vpop.f32.mrb[0].mxu0
      %4113 = vmatprep.mubr.bf16.mxu0 0
      %4114 = vmatmul.mubr.bf16.gmra.mrb[0].mxu0 %v3089
      %v4115 = vpop.f32.mrb[0].mxu0
      %v4116 = vadd.f32 %v4051, %v4115
      %v4117 = vpop.f32.mrb[0].mxu0
      %v4118 = vpop.f32.mrb[0].mxu0
      %v4119 = vadd.f32 %v4054, %v4118
      %v4120 = vpop.f32.mrb[0].mxu0
      %4121 = vmatprep.mubr.bf16.mxu0 0
      %4122 = vmatmul.mubr.bf16.gmra.mrb[0].mxu0 %v3852
      %v4123 = vpop.f32.mrb[0].mxu0
      %v4124 = vadd.f32 %v4059, %v4123
      %v4125 = vpop.f32.mrb[0].mxu0
      %v4126 = vpop.f32.mrb[0].mxu0
      %v4127 = vadd.f32 %v4062, %v4126
      %v4128 = vpop.f32.mrb[0].mxu0
      %4129 = vdwg.mxu0
      %v4130 = vadd.f32 %v3793, %v4100
      %v4131 = vadd.f32 %v3794, %v4103
      %v4132 = vadd.f32 %v3795, %v4108
      %v4133 = vadd.f32 %v3796, %v4111
      %v4134 = vadd.f32 %v3797, %v4116
      %v4135 = vadd.f32 %v3798, %v4119
      %v4136 = vadd.f32 %v3799, %v4124
      %v4137 = vadd.f32 %v3800, %v4127
      %4138 = vst [vmem:[#allocation2] sm:$0xff] %v4130
      %4139 = vst [vmem:[#allocation2 + $0x8] sm:$0xff] %v4131
      %4140 = vst [vmem:[#allocation2 + $0x10] sm:$0xff] %v4132
      %4141 = vst [vmem:[#allocation2 + $0x18] sm:$0xff] %v4133
      %4142 = vst [vmem:[#allocation2 + $0x20] sm:$0xff] %v4134
      %4143 = vst [vmem:[#allocation2 + $0x28] sm:$0xff] %v4135
      %4144 = vst [vmem:[#allocation2 + $0x30] sm:$0xff] %v4136
      %4145 = vst [vmem:[#allocation2 + $0x38] sm:$0xff] %v4137
      %v4146 = vld [vmem:[#allocation2] sm:$0xff]
      %v4147 = vld [vmem:[#allocation2 + $0x8] sm:$0xff]
      %v4148 = vld [vmem:[#allocation2 + $0x10] sm:$0xff]
      %v4149 = vld [vmem:[#allocation2 + $0x18] sm:$0xff]
      %v4150 = vld [vmem:[#allocation2 + $0x20] sm:$0xff]
      %v4151 = vld [vmem:[#allocation2 + $0x28] sm:$0xff]
      %v4152 = vld [vmem:[#allocation2 + $0x30] sm:$0xff]
      %v4153 = vld [vmem:[#allocation2 + $0x38] sm:$0xff]
      %v4154 = vld [vmem:[%s4] sm:$0x1]
      %v4155 = vlaneseq
      %v4156 = vshrl.u32 %v4155, 7
      %v4157 = vsub.s32 0, %v4156
      %v4158 = vrot.slane %v4154, %v4157
      %v4159 = vmul.f32 %v4146, %v4158
      %v4160 = vmul.f32 %v4147, %v4158
      %v4161 = vmul.f32 %v4148, %v4158
      %v4162 = vmul.f32 %v4149, %v4158
      %v4163 = vmul.f32 %v4150, %v4158
      %v4164 = vmul.f32 %v4151, %v4158
      %v4165 = vmul.f32 %v4152, %v4158
      %v4166 = vmul.f32 %v4153, %v4158
      %v4167 = vld [vmem:[%s4 + $0x1] sm:$0x1]
      %v4168 = vlaneseq
      %v4169 = vshrl.u32 %v4168, 7
      %v4170 = vsub.s32 0, %v4169
      %v4171 = vrot.slane %v4167, %v4170
      %v4172 = vadd.f32 %v4159, %v4171
      %v4173 = vadd.f32 %v4160, %v4171
      %v4174 = vadd.f32 %v4161, %v4171
      %v4175 = vadd.f32 %v4162, %v4171
      %v4176 = vadd.f32 %v4163, %v4171
      %v4177 = vadd.f32 %v4164, %v4171
      %v4178 = vadd.f32 %v4165, %v4171
      %v4179 = vadd.f32 %v4166, %v4171
      %v4180 = vmax.f32 %v4172, 0.0
      %v4181 = vmax.f32 %v4173, 0.0
      %v4182 = vmax.f32 %v4174, 0.0
      %v4183 = vmax.f32 %v4175, 0.0
      %v4184 = vmax.f32 %v4176, 0.0
      %v4185 = vmax.f32 %v4177, 0.0
      %v4186 = vmax.f32 %v4178, 0.0
      %v4187 = vmax.f32 %v4179, 0.0
      %v4188 = vpack.c.bf16 %v4181, %v4180
      %v4189 = vpack.c.bf16 %v4183, %v4182
      %v4190 = vpack.c.bf16 %v4185, %v4184
      %v4191 = vpack.c.bf16 %v4187, %v4186
      %v4196 = vunpack.c.l.b16 %v4188
      %v4197 = vunpack.c.h.b16 %v4188
      %v4198 = vunpack.c.l.b16 %v4189
      %v4199 = vunpack.c.h.b16 %v4189
      %v4200 = vunpack.c.l.b16 %v4190
      %v4201 = vunpack.c.h.b16 %v4190
      %v4202 = vunpack.c.l.b16 %v4191
      %v4203 = vunpack.c.h.b16 %v4191
      %v4204 = vpack.c.b16 %v4196, %v4196
      %v4205 = vpack.c.b16 %v4197, %v4197
      %v4206 = vpack.c.b16 %v4198, %v4198
      %v4207 = vpack.c.b16 %v4199, %v4199
      %v4208 = vpack.c.b16 %v4200, %v4200
      %v4209 = vpack.c.b16 %v4201, %v4201
      %v4210 = vpack.c.b16 %v4202, %v4202
      %v4211 = vpack.c.b16 %v4203, %v4203
      %4220 = vst [vmem:[%s342] sm:$0xf] %v4204
      %4221 = vst [vmem:[%s342 + $0x4] sm:$0xf] %v4205
      %4222 = vst [vmem:[%s342 + $0x8] sm:$0xf] %v4206
      %4223 = vst [vmem:[%s342 + $0xc] sm:$0xf] %v4207
      %4224 = vst [vmem:[%s342 + $0x10] sm:$0xf] %v4208
      %4225 = vst [vmem:[%s342 + $0x14] sm:$0xf] %v4209
      %4226 = vst [vmem:[%s342 + $0x18] sm:$0xf] %v4210
      %4227 = vst [vmem:[%s342 + $0x1c] sm:$0xf] %v4211
      %p4228 = scmp.lt.s32.totalorder %s20, 1
      %s4229 = scalar_select %p4228, %s20, 1
      %p4230 = scmp.lt.s32.totalorder %s21, 7
      %s4231 = scalar_select %p4230, %s21, 7
      %s4232 = smul.addr %s4231, 8
      %s4233 = smul.addr %s4229, 64
      %s4234 = sadd.s32 %s4232, %s4233
      %s4235 = smul.addr %s4234, 4
      %s4236 = scalar_lea.vmem %s5, %s4235
      // Predicated region
      $region41: #{bottleneck_forward.4} parent=39 // pred_check
        %p4237 = pneg %p178
      $region42: #{bottleneck_forward.4} parent=39 // pred_check_branch
        %4239 = sbr.rel (%p4237) target = $region44
      $region43: #{bottleneck_forward.4} parent=39 // pred_region
        _
      $region44: #{bottleneck_forward.4} parent=39 // pred_fallthru
        _
    $region40: #{bottleneck_forward.4} parent=5 // pred_fallthru
      _
    %p4240 = scmp.le.s32.totalorder 2, %s11
    // Predicated region
    $region45: #{bottleneck_forward.4} parent=5 // pred_check
      %p4241 = pneg %p4240
    $region46: #{bottleneck_forward.4} parent=5 // pred_check_branch
      %4243 = sbr.rel (%p4241) target = $region48
    $region47: #{bottleneck_forward.4} parent=5 // pred_region
      %s4244 = ssub.s32 %s11, 2
      // Predicated region
      $region49: #{bottleneck_forward.4} parent=47 // pred_check
        %p4245 = pneg %p184
      $region50: #{bottleneck_forward.4} parent=47 // pred_check_branch
        %4247 = sbr.rel (%p4245) target = $region52
      $region51: #{bottleneck_forward.4} parent=47 // pred_region
        %p4248 = scmp.lt.s32.totalorder %s22, 1
        %s4249 = scalar_select %p4248, %s22, 1
        %p4250 = scmp.lt.s32.totalorder %s23, 7
        %s4251 = scalar_select %p4250, %s23, 7
        %s4252 = smul.addr %s4251, 8
        %s4253 = smul.addr %s4249, 64
        %s4254 = sadd.s32 %s4252, %s4253
        %s4255 = smul.addr %s4254, 4
        %s4256 = scalar_lea.vmem %s5, %s4255
      $region52: #{bottleneck_forward.4} parent=47 // pred_fallthru
        _
    $region48: #{bottleneck_forward.4} parent=5 // pred_fallthru
      _
  $region6: #{bottleneck_forward.4} parent=0 // loop_footer
    %s15 = sadd.s32 1, %s11
  $region7: #{bottleneck_forward.4} parent=0 // loop_footer_branch
    %10 = sbr.rel target = $region3
  $region8: #{bottleneck_forward.4} parent=0 // loop_exit
    _

</llo_original>
